<compile_context>
chip_gen: v7x
topology: tpu7x:2x2x1
jax: 0.10.0
libtpu: 0.0.40
codegen_flags: <defaults>
</compile_context>

<pallas_src>
import functools

import jax
import jax.numpy as jnp
import numpy as np
from jax import lax
from jax.experimental import pallas as pl
from jax.experimental.pallas import tpu as pltpu


# -----------------------------------------------------------------------------
# Fused Pallas kernel: wavefront over (3 x LSTM layer) + FC head
# -----------------------------------------------------------------------------
def _make_fused_kernel(num_layers, T, Bp, H):
    H4 = 4 * H
    S = T + num_layers - 1                  # wavefront steps (layer l handles t = s - l)
    unroll = True if S <= 16 else 8         # bounded unroll for long sequences

    def kernel(*refs):
        it = iter(refs)
        x_ref = next(it)                                        # (T*Bp, E)   bf16
        wih0_ref = next(it)                                     # (E, 4H)     bf16
        b0_ref = next(it)                                       # (1, 4H)     f32
        wrec_refs = [next(it) for _ in range(num_layers)]       # (H,8H)/(H,4H) bf16
        bias_refs = [next(it) for _ in range(num_layers - 1)]   # (1, 4H)     f32
        fcw_ref = next(it)                                      # (H, V)      bf16
        fcb_ref = next(it)                                      # (1, V)      f32
        out_ref = next(it)                                      # (Bp, V)     f32
        proj_scr = next(it)                                     # (T*Bp, 4H)  f32 scratch

        # ---- hoisted layer-0 input projection (+bias): one big MXU matmul,
        #      removed from the serial wavefront loop ---------------------------
        proj_scr[...] = (
            jnp.dot(x_ref[...], wih0_ref[...], preferred_element_type=jnp.float32)
            + b0_ref[...])

        # Recurrent weights stay VMEM-resident as values, reused every step.
        wrecs = [r[...] for r in wrec_refs]
        biases = [r[...] for r in bias_refs]

        def step(s, carry):
            hs, cs = carry
            # layer-0 input row; clamp for the epilogue steps (update is masked).
            row = pl.multiple_of(jnp.minimum(s, T - 1) * Bp, Bp)

            # L independent (Bp,H) x (H,8H | H,4H) matmuls; all use start-of-step
            # carries, so their MXU/VPU/EUP latencies overlap within the step.
            m = [jnp.dot(hs[l].astype(jnp.bfloat16), wrecs[l],
                         preferred_element_type=jnp.float32)
                 for l in range(num_layers)]

            new_hs, new_cs = [], []
            for l in range(num_layers):
                if l == 0:
                    gates = proj_scr[pl.ds(row, Bp), :] + m[0][:, :H4]
                else:
                    # input projection for layer l = second half of layer l-1's
                    # fused matmul (h_{l-1} @ W_ih_l).
                    gates = m[l - 1][:, H4:] + m[l][:, :H4] + biases[l - 1]
                # gate columns pre-permuted to [i,f,o,g]; g pre-scaled x2 so one
                # sigmoid slab covers all four gates (tanh(g) = 2*sigmoid(2g)-1).
                sg = jax.nn.sigmoid(gates)
                i_g = sg[:, 0:H]
                f_g = sg[:, H:2 * H]
                o_g = sg[:, 2 * H:3 * H]
                g_g = 2.0 * sg[:, 3 * H:] - 1.0
                c_new = f_g * cs[l] + i_g * g_g
                h_new = o_g * jnp.tanh(c_new)
                # wavefront mask: layer l is live for steps l .. l+T-1; outside
                # that window hold its state (cheap scalar-blend on the VPU).
                live = jnp.logical_and(s >= l, s < l + T).astype(jnp.float32)
                new_hs.append(hs[l] + live * (h_new - hs[l]))
                new_cs.append(cs[l] + live * (c_new - cs[l]))
            return (tuple(new_hs), tuple(new_cs))

        zeros = jnp.zeros((Bp, H), jnp.float32)
        init = (tuple(zeros for _ in range(num_layers)),
                tuple(zeros for _ in range(num_layers)))
        hs_fin, _ = lax.fori_loop(0, S, step, init, unroll=unroll)
        h_top = hs_fin[num_layers - 1]           # top layer's hidden state @ t = T-1

        # dropout (eval mode) is identity; FC head fused, last hidden state only.
        out_ref[...] = (
            jnp.dot(h_top.astype(jnp.bfloat16), fcw_ref[...],
                    preferred_element_type=jnp.float32)
            + fcb_ref[...]).astype(out_ref.dtype)

    return kernel


def _fused_forward_pallas(x2d, prep, *, T, Bp):
    num_layers = prep["num_layers"]
    H = prep["hidden"]
    V = prep["fc_w_t"].shape[1]

    operands = [x2d, prep["w_ih0"], prep["b0"],
                *prep["w_rec"], *prep["biases"],
                prep["fc_w_t"], prep["fc_b"]]
    in_specs = [pl.BlockSpec(a.shape, lambda i: (0, 0)) for a in operands]

    kernel = _make_fused_kernel(num_layers, T, Bp, H)
    return pl.pallas_call(
        kernel,
        out_shape=jax.ShapeDtypeStruct((Bp, V), jnp.float32),
        grid=(1,),
        in_specs=in_specs,
        out_specs=pl.BlockSpec((Bp, V), lambda i: (0, 0)),
        scratch_shapes=[
            pltpu.VMEM((T * Bp, 4 * H), jnp.float32),   # hoisted layer-0 projections
        ],
        compiler_params=pltpu.CompilerParams(
            dimension_semantics=("arbitrary",),
            vmem_limit_bytes=32 * 1024 * 1024,
        ),
    )(*operands)


# -----------------------------------------------------------------------------
# Parameter prep (host-side one-time transforms) and forward wrapper
# -----------------------------------------------------------------------------
def _permute_and_scale_gates(w_last_4h):
    """PyTorch gate order (i,f,g,o) -> kernel order (i,f,o,g); g block scaled x2
    so tanh(g) can be evaluated as 2*sigmoid(2g)-1 (single EUP sigmoid slab).
    Scaling by 2 is exact in f32/bf16, so pre-activations are bit-identical."""
    H = w_last_4h.shape[-1] // 4
    i, f, g, o = (w_last_4h[..., j * H:(j + 1) * H] for j in range(4))
    return jnp.concatenate([i, f, o, 2.0 * g], axis=-1)


def prepare_params(params):
    L = len(params["lstm"])
    H = params["lstm"][0]["w_hh"].shape[1]
    wih_t = [_permute_and_scale_gates(l["w_ih"].T) for l in params["lstm"]]   # (IN,4H)
    whh_t = [_permute_and_scale_gates(l["w_hh"].T) for l in params["lstm"]]   # (H,4H)
    biases = [_permute_and_scale_gates((l["b_ih"] + l["b_hh"]).reshape(1, -1))
              for l in params["lstm"]]                                        # (1,4H)

    prep = {
        "num_layers": L,
        "hidden": H,
        # bf16 table -> time-major bf16 gather, no separate transpose/cast pass.
        "embedding": params["embedding"].astype(jnp.bfloat16),
        "w_ih0": wih_t[0].astype(jnp.bfloat16),          # (E, 4H)
        "b0": biases[0].astype(jnp.float32),             # (1, 4H)
        "biases": [b.astype(jnp.float32) for b in biases[1:]],
        "fc_w_t": params["fc_w"].T.astype(jnp.bfloat16), # (H, V)
        "fc_b": params["fc_b"].reshape(1, -1).astype(jnp.float32),
    }
    # Fused recurrent weights: layer l -> [W_hh_l | W_ih_{l+1}]  (H, 8H),
    # last layer -> W_hh_{L-1}  (H, 4H).
    w_rec = []
    for l in range(L - 1):
        w_rec.append(jnp.concatenate([whh_t[l], wih_t[l + 1]],
                                     axis=1).astype(jnp.bfloat16))
    w_rec.append(whh_t[L - 1].astype(jnp.bfloat16))
    prep["w_rec"] = w_rec
    return prep


def lstm_text_generation_forward(prep, tokens):
    """Eval-mode forward equivalent to LSTMTextGenerationModel.forward.

    tokens: (B, T) int32 -> logits (B, vocab) float32
    """
    B, T = tokens.shape
    Bp = ((B + 7) // 8) * 8                        # pad batch to sublane multiple
    tokens_p = jnp.pad(tokens, ((0, Bp - B), (0, 0)))
    # Time-major bf16 embedding gather (plain XLA gather glue, no transpose pass).
    x = jnp.take(prep["embedding"], tokens_p.T, axis=0)       # (T, Bp, E) bf16
    x2d = x.reshape(T * Bp, -1)                               # (T*Bp, E)  bf16

    logits_p = _fused_forward_pallas(x2d, prep, T=T, Bp=Bp)
    # TODO(synk): dropout is identity in eval mode; training-mode dropout omitted.
    return logits_p[:B]


# -----------------------------------------------------------------------------
# Pure-JAX reference (same bf16-operand / f32-accumulate design decision)
# -----------------------------------------------------------------------------
def reference_forward(params, tokens):
    x = jnp.take(params["embedding"], tokens, axis=0).astype(jnp.float32)  # (B,T,E)
    B = x.shape[0]
    h_seq = jnp.transpose(x, (1, 0, 2))                                    # (T,B,E)
    for layer in params["lstm"]:
        w_ih_t = layer["w_ih"].T.astype(jnp.bfloat16)
        w_hh_t = layer["w_hh"].T.astype(jnp.bfloat16)
        bias = (layer["b_ih"] + layer["b_hh"]).astype(jnp.float32)
        H = layer["w_hh"].shape[1]

        def step(carry, x_t, w_ih_t=w_ih_t, w_hh_t=w_hh_t, bias=bias, H=H):
            h, c = carry
            gates = (jnp.dot(x_t.astype(jnp.bfloat16), w_ih_t,
                             preferred_element_type=jnp.float32)
                     + jnp.dot(h.astype(jnp.bfloat16), w_hh_t,
                               preferred_element_type=jnp.float32)
                     + bias)
            i_g = jax.nn.sigmoid(gates[:, 0 * H:1 * H])
            f_g = jax.nn.sigmoid(gates[:, 1 * H:2 * H])
            g_g = jnp.tanh(gates[:, 2 * H:3 * H])
            o_g = jax.nn.sigmoid(gates[:, 3 * H:4 * H])
            c = f_g * c + i_g * g_g
            h = o_g * jnp.tanh(c)
            return (h, c), h

        init = (jnp.zeros((B, H), jnp.float32), jnp.zeros((B, H), jnp.float32))
        _, h_seq = lax.scan(step, init, h_seq)
    h_last = h_seq[-1]
    return (jnp.dot(h_last.astype(jnp.bfloat16),
                    params["fc_w"].T.astype(jnp.bfloat16),
                    preferred_element_type=jnp.float32)
            + params["fc_b"])


# -----------------------------------------------------------------------------
# Deterministic parameter init (PyTorch nn.LSTM / nn.Linear shapes)
# -----------------------------------------------------------------------------
def init_params(key, vocab_size, embed_dim, hidden_dim, num_layers):
    keys = jax.random.split(key, 3 + 4 * num_layers)
    k = iter(keys)
    bound = 1.0 / np.sqrt(hidden_dim)
    params = {
        "embedding": jax.random.normal(next(k), (vocab_size, embed_dim), jnp.float32),
        "lstm": [],
    }
    for layer in range(num_layers):
        in_dim = embed_dim if layer == 0 else hidden_dim
        params["lstm"].append({
            "w_ih": jax.random.uniform(next(k), (4 * hidden_dim, in_dim),
                                       jnp.float32, -bound, bound),
            "w_hh": jax.random.uniform(next(k), (4 * hidden_dim, hidden_dim),
                                       jnp.float32, -bound, bound),
            "b_ih": jax.random.uniform(next(k), (4 * hidden_dim,),
                                       jnp.float32, -bound, bound),
            "b_hh": jax.random.uniform(next(k), (4 * hidden_dim,),
                                       jnp.float32, -bound, bound),
        })
    params["fc_w"] = jax.random.uniform(next(k), (vocab_size, hidden_dim),
                                        jnp.float32, -bound, bound)
    params["fc_b"] = jax.random.uniform(next(k), (vocab_size,),
                                        jnp.float32, -bound, bound)
    return params


# -----------------------------------------------------------------------------
if __name__ == "__main__":
    VOCAB = 128
    EMBED = 64
    HIDDEN = 128      # multiple of 128 keeps gate slicing lane-aligned
    NUM_LAYERS = 3
    B, T = 2, 8

    key = jax.random.PRNGKey(0)
    pkey, tkey = jax.random.split(key)
    params = init_params(pkey, VOCAB, EMBED, HIDDEN, NUM_LAYERS)
    prep = prepare_params(params)
    tokens = jax.random.randint(tkey, (B, T), 0, VOCAB, dtype=jnp.int32)

    fwd = jax.jit(functools.partial(lstm_text_generation_forward, prep))
    logits = jax.block_until_ready(fwd(tokens))

    ref = jax.block_until_ready(reference_forward(params, tokens))
    np.testing.assert_allclose(np.asarray(logits), np.asarray(ref),
                               rtol=2e-3, atol=2e-3)

    assert logits.shape == (B, VOCAB)
    print("KERNEL_OK")
</pallas_src>

<mosaic_0001>
module attributes {stable_mosaic.version = 11 : i64} {
  func.func @kernel(%arg0: i32, %arg1: memref<64x64xbf16, #tpu.memory_space<vmem>>, %arg2: memref<64x512xbf16, #tpu.memory_space<vmem>>, %arg3: memref<1x512xf32, #tpu.memory_space<vmem>>, %arg4: memref<128x1024xbf16, #tpu.memory_space<vmem>>, %arg5: memref<128x1024xbf16, #tpu.memory_space<vmem>>, %arg6: memref<128x512xbf16, #tpu.memory_space<vmem>>, %arg7: memref<1x512xf32, #tpu.memory_space<vmem>>, %arg8: memref<1x512xf32, #tpu.memory_space<vmem>>, %arg9: memref<128x128xbf16, #tpu.memory_space<vmem>>, %arg10: memref<1x128xf32, #tpu.memory_space<vmem>>, %arg11: memref<8x128xf32, #tpu.memory_space<vmem>>, %arg12: memref<64x512xf32, #tpu.memory_space<vmem>>) attributes {dimension_semantics = [#tpu.dimension_semantics<arbitrary>], iteration_bounds = array<i64: 1>, scalar_prefetch = 0 : i64, scratch_operands = 1 : i64, tpu.core_type = #tpu.core_type<tc>, window_params = [{pipeline_mode = #tpu.pipeline_mode<synchronous>, transform_indices = @transform_0, window_bounds = array<i64: 64, 64>}, {pipeline_mode = #tpu.pipeline_mode<synchronous>, transform_indices = @transform_1, window_bounds = array<i64: 64, 512>}, {pipeline_mode = #tpu.pipeline_mode<synchronous>, transform_indices = @transform_2, window_bounds = array<i64: 1, 512>}, {pipeline_mode = #tpu.pipeline_mode<synchronous>, transform_indices = @transform_3, window_bounds = array<i64: 128, 1024>}, {pipeline_mode = #tpu.pipeline_mode<synchronous>, transform_indices = @transform_4, window_bounds = array<i64: 128, 1024>}, {pipeline_mode = #tpu.pipeline_mode<synchronous>, transform_indices = @transform_5, window_bounds = array<i64: 128, 512>}, {pipeline_mode = #tpu.pipeline_mode<synchronous>, transform_indices = @transform_6, window_bounds = array<i64: 1, 512>}, {pipeline_mode = #tpu.pipeline_mode<synchronous>, transform_indices = @transform_7, window_bounds = array<i64: 1, 512>}, {pipeline_mode = #tpu.pipeline_mode<synchronous>, transform_indices = @transform_8, window_bounds = array<i64: 128, 128>}, {pipeline_mode = #tpu.pipeline_mode<synchronous>, transform_indices = @transform_9, window_bounds = array<i64: 1, 128>}, {pipeline_mode = #tpu.pipeline_mode<synchronous>, transform_indices = @transform_10, window_bounds = array<i64: 8, 128>}]} {
    %c0 = arith.constant 0 : index
    %c0_0 = arith.constant 0 : index
    %0 = vector.load %arg1[%c0, %c0_0] : memref<64x64xbf16, #tpu.memory_space<vmem>>, vector<64x64xbf16>
    %c0_1 = arith.constant 0 : index
    %c0_2 = arith.constant 0 : index
    %1 = vector.load %arg2[%c0_1, %c0_2] : memref<64x512xbf16, #tpu.memory_space<vmem>>, vector<64x512xbf16>
    %cst = arith.constant dense<0.000000e+00> : vector<64x512xf32>
    %2 = tpu.matmul %0, %1, %cst {dimension_numbers = #tpu.dot_dimension_numbers<[1], [0], [0], [1], [0, 0, 1, 1], [], []>} : vector<64x64xbf16>, vector<64x512xbf16>, vector<64x512xf32> -> vector<64x512xf32>
    %c0_3 = arith.constant 0 : index
    %c0_4 = arith.constant 0 : index
    %3 = vector.load %arg3[%c0_3, %c0_4] : memref<1x512xf32, #tpu.memory_space<vmem>>, vector<1x512xf32>
    %4 = vector.broadcast %3 : vector<1x512xf32> to vector<64x512xf32>
    %5 = arith.addf %2, %4 : vector<64x512xf32>
    %c0_5 = arith.constant 0 : index
    %c0_6 = arith.constant 0 : index
    %6 = vector.load %arg12[%c0_5, %c0_6] : memref<64x512xf32, #tpu.memory_space<vmem>>, vector<64x512xf32>
    tpu.vector_store %arg12[%c0_5, %c0_6], %5 {strides = array<i32>} : memref<64x512xf32, #tpu.memory_space<vmem>>, vector<64x512xf32>,
    %c0_7 = arith.constant 0 : index
    %c0_8 = arith.constant 0 : index
    %7 = vector.load %arg4[%c0_7, %c0_8] : memref<128x1024xbf16, #tpu.memory_space<vmem>>, vector<128x1024xbf16>
    %c0_9 = arith.constant 0 : index
    %c0_10 = arith.constant 0 : index
    %8 = vector.load %arg5[%c0_9, %c0_10] : memref<128x1024xbf16, #tpu.memory_space<vmem>>, vector<128x1024xbf16>
    %c0_11 = arith.constant 0 : index
    %c0_12 = arith.constant 0 : index
    %9 = vector.load %arg6[%c0_11, %c0_12] : memref<128x512xbf16, #tpu.memory_space<vmem>>, vector<128x512xbf16>
    %c0_13 = arith.constant 0 : index
    %c0_14 = arith.constant 0 : index
    %10 = vector.load %arg7[%c0_13, %c0_14] : memref<1x512xf32, #tpu.memory_space<vmem>>, vector<1x512xf32>
    %c0_15 = arith.constant 0 : index
    %c0_16 = arith.constant 0 : index
    %11 = vector.load %arg8[%c0_15, %c0_16] : memref<1x512xf32, #tpu.memory_space<vmem>>, vector<1x512xf32>
    %cst_17 = arith.constant 0.000000e+00 : f32
    %12 = vector.broadcast %cst_17 : f32 to vector<8x128xf32>
    %c0_i32 = arith.constant 0 : i32
    %c7_i32 = arith.constant 7 : i32
    %13 = arith.minsi %c0_i32, %c7_i32 : i32
    %c8_i32 = arith.constant 8 : i32
    %14 = arith.muli %13, %c8_i32 : i32
    %15 = tpu.assume_multiple %14, 8 : i32
    %16 = arith.truncf %12 : vector<8x128xf32> to vector<8x128xbf16>
    %cst_18 = arith.constant dense<0.000000e+00> : vector<8x1024xf32>
    %17 = tpu.matmul %16, %7, %cst_18 {dimension_numbers = #tpu.dot_dimension_numbers<[1], [0], [0], [1], [0, 0, 1, 1], [], []>} : vector<8x128xbf16>, vector<128x1024xbf16>, vector<8x1024xf32> -> vector<8x1024xf32>
    %18 = arith.truncf %12 : vector<8x128xf32> to vector<8x128xbf16>
    %cst_19 = arith.constant dense<0.000000e+00> : vector<8x1024xf32>
    %19 = tpu.matmul %18, %8, %cst_19 {dimension_numbers = #tpu.dot_dimension_numbers<[1], [0], [0], [1], [0, 0, 1, 1], [], []>} : vector<8x128xbf16>, vector<128x1024xbf16>, vector<8x1024xf32> -> vector<8x1024xf32>
    %20 = arith.truncf %12 : vector<8x128xf32> to vector<8x128xbf16>
    %cst_20 = arith.constant dense<0.000000e+00> : vector<8x512xf32>
    %21 = tpu.matmul %20, %9, %cst_20 {dimension_numbers = #tpu.dot_dimension_numbers<[1], [0], [0], [1], [0, 0, 1, 1], [], []>} : vector<8x128xbf16>, vector<128x512xbf16>, vector<8x512xf32> -> vector<8x512xf32>
    %22 = arith.index_cast %15 : i32 to index
    %c0_21 = arith.constant 0 : index
    %23 = vector.load %arg12[%22, %c0_21] : memref<64x512xf32, #tpu.memory_space<vmem>>, vector<8x512xf32>
    %24 = vector.extract_strided_slice %17 {offsets = [0, 0], sizes = [8, 512], strides = [1, 1]} : vector<8x1024xf32> to vector<8x512xf32>
    %25 = arith.addf %23, %24 : vector<8x512xf32>
    %26 = arith.negf %25 : vector<8x512xf32>
    %27 = math.exp %26 : vector<8x512xf32>
    %cst_22 = arith.constant 1.000000e+00 : f32
    %28 = vector.broadcast %cst_22 : f32 to vector<8x512xf32>
    %29 = arith.addf %28, %27 : vector<8x512xf32>
    %30 = arith.divf %28, %29 : vector<8x512xf32>
    %31 = vector.extract_strided_slice %30 {offsets = [0, 0], sizes = [8, 128], strides = [1, 1]} : vector<8x512xf32> to vector<8x128xf32>
    %32 = vector.extract_strided_slice %30 {offsets = [0, 128], sizes = [8, 128], strides = [1, 1]} : vector<8x512xf32> to vector<8x128xf32>
    %33 = vector.extract_strided_slice %30 {offsets = [0, 256], sizes = [8, 128], strides = [1, 1]} : vector<8x512xf32> to vector<8x128xf32>
    %34 = vector.extract_strided_slice %30 {offsets = [0, 384], sizes = [8, 128], strides = [1, 1]} : vector<8x512xf32> to vector<8x128xf32>
    %cst_23 = arith.constant 2.000000e+00 : f32
    %35 = vector.broadcast %cst_23 : f32 to vector<8x128xf32>
    %36 = arith.mulf %35, %34 : vector<8x128xf32>
    %cst_24 = arith.constant 1.000000e+00 : f32
    %37 = vector.broadcast %cst_24 : f32 to vector<8x128xf32>
    %38 = arith.subf %36, %37 : vector<8x128xf32>
    %39 = arith.mulf %32, %12 : vector<8x128xf32>
    %40 = arith.mulf %31, %38 : vector<8x128xf32>
    %41 = arith.addf %39, %40 : vector<8x128xf32>
    %42 = math.tanh %41 : vector<8x128xf32>
    %43 = arith.mulf %33, %42 : vector<8x128xf32>
    %c0_i32_25 = arith.constant 0 : i32
    %44 = arith.cmpi sge, %c0_i32, %c0_i32_25 : i32
    %c8_i32_26 = arith.constant 8 : i32
    %45 = arith.cmpi slt, %c0_i32, %c8_i32_26 : i32
    %46 = arith.andi %44, %45 : i1
    %47 = arith.extui %46 : i1 to i32
    %48 = arith.sitofp %47 : i32 to f32
    %49 = arith.subf %43, %12 : vector<8x128xf32>
    %50 = vector.broadcast %48 : f32 to vector<8x128xf32>
    %51 = arith.mulf %50, %49 : vector<8x128xf32>
    %52 = arith.addf %12, %51 : vector<8x128xf32>
    %53 = arith.subf %41, %12 : vector<8x128xf32>
    %54 = vector.broadcast %48 : f32 to vector<8x128xf32>
    %55 = arith.mulf %54, %53 : vector<8x128xf32>
    %56 = arith.addf %12, %55 : vector<8x128xf32>
    %57 = vector.extract_strided_slice %17 {offsets = [0, 512], sizes = [8, 512], strides = [1, 1]} : vector<8x1024xf32> to vector<8x512xf32>
    %58 = vector.extract_strided_slice %19 {offsets = [0, 0], sizes = [8, 512], strides = [1, 1]} : vector<8x1024xf32> to vector<8x512xf32>
    %59 = arith.addf %57, %58 : vector<8x512xf32>
    %60 = vector.broadcast %10 : vector<1x512xf32> to vector<8x512xf32>
    %61 = arith.addf %59, %60 : vector<8x512xf32>
    %62 = arith.negf %61 : vector<8x512xf32>
    %63 = math.exp %62 : vector<8x512xf32>
    %cst_27 = arith.constant 1.000000e+00 : f32
    %64 = vector.broadcast %cst_27 : f32 to vector<8x512xf32>
    %65 = arith.addf %64, %63 : vector<8x512xf32>
    %66 = arith.divf %64, %65 : vector<8x512xf32>
    %67 = vector.extract_strided_slice %66 {offsets = [0, 0], sizes = [8, 128], strides = [1, 1]} : vector<8x512xf32> to vector<8x128xf32>
    %68 = vector.extract_strided_slice %66 {offsets = [0, 128], sizes = [8, 128], strides = [1, 1]} : vector<8x512xf32> to vector<8x128xf32>
    %69 = vector.extract_strided_slice %66 {offsets = [0, 256], sizes = [8, 128], strides = [1, 1]} : vector<8x512xf32> to vector<8x128xf32>
    %70 = vector.extract_strided_slice %66 {offsets = [0, 384], sizes = [8, 128], strides = [1, 1]} : vector<8x512xf32> to vector<8x128xf32>
    %cst_28 = arith.constant 2.000000e+00 : f32
    %71 = vector.broadcast %cst_28 : f32 to vector<8x128xf32>
    %72 = arith.mulf %71, %70 : vector<8x128xf32>
    %cst_29 = arith.constant 1.000000e+00 : f32
    %73 = vector.broadcast %cst_29 : f32 to vector<8x128xf32>
    %74 = arith.subf %72, %73 : vector<8x128xf32>
    %75 = arith.mulf %68, %12 : vector<8x128xf32>
    %76 = arith.mulf %67, %74 : vector<8x128xf32>
    %77 = arith.addf %75, %76 : vector<8x128xf32>
    %78 = math.tanh %77 : vector<8x128xf32>
    %79 = arith.mulf %69, %78 : vector<8x128xf32>
    %c1_i32 = arith.constant 1 : i32
    %80 = arith.cmpi sge, %c0_i32, %c1_i32 : i32
    %c9_i32 = arith.constant 9 : i32
    %81 = arith.cmpi slt, %c0_i32, %c9_i32 : i32
    %82 = arith.andi %80, %81 : i1
    %83 = arith.extui %82 : i1 to i32
    %84 = arith.sitofp %83 : i32 to f32
    %85 = arith.subf %79, %12 : vector<8x128xf32>
    %86 = vector.broadcast %84 : f32 to vector<8x128xf32>
    %87 = arith.mulf %86, %85 : vector<8x128xf32>
    %88 = arith.addf %12, %87 : vector<8x128xf32>
    %89 = arith.subf %77, %12 : vector<8x128xf32>
    %90 = vector.broadcast %84 : f32 to vector<8x128xf32>
    %91 = arith.mulf %90, %89 : vector<8x128xf32>
    %92 = arith.addf %12, %91 : vector<8x128xf32>
    %93 = vector.extract_strided_slice %19 {offsets = [0, 512], sizes = [8, 512], strides = [1, 1]} : vector<8x1024xf32> to vector<8x512xf32>
    %94 = arith.addf %93, %21 : vector<8x512xf32>
    %95 = vector.broadcast %11 : vector<1x512xf32> to vector<8x512xf32>
    %96 = arith.addf %94, %95 : vector<8x512xf32>
    %97 = arith.negf %96 : vector<8x512xf32>
    %98 = math.exp %97 : vector<8x512xf32>
    %cst_30 = arith.constant 1.000000e+00 : f32
    %99 = vector.broadcast %cst_30 : f32 to vector<8x512xf32>
    %100 = arith.addf %99, %98 : vector<8x512xf32>
    %101 = arith.divf %99, %100 : vector<8x512xf32>
    %102 = vector.extract_strided_slice %101 {offsets = [0, 0], sizes = [8, 128], strides = [1, 1]} : vector<8x512xf32> to vector<8x128xf32>
    %103 = vector.extract_strided_slice %101 {offsets = [0, 128], sizes = [8, 128], strides = [1, 1]} : vector<8x512xf32> to vector<8x128xf32>
    %104 = vector.extract_strided_slice %101 {offsets = [0, 256], sizes = [8, 128], strides = [1, 1]} : vector<8x512xf32> to vector<8x128xf32>
    %105 = vector.extract_strided_slice %101 {offsets = [0, 384], sizes = [8, 128], strides = [1, 1]} : vector<8x512xf32> to vector<8x128xf32>
    %cst_31 = arith.constant 2.000000e+00 : f32
    %106 = vector.broadcast %cst_31 : f32 to vector<8x128xf32>
    %107 = arith.mulf %106, %105 : vector<8x128xf32>
    %cst_32 = arith.constant 1.000000e+00 : f32
    %108 = vector.broadcast %cst_32 : f32 to vector<8x128xf32>
    %109 = arith.subf %107, %108 : vector<8x128xf32>
    %110 = arith.mulf %103, %12 : vector<8x128xf32>
    %111 = arith.mulf %102, %109 : vector<8x128xf32>
    %112 = arith.addf %110, %111 : vector<8x128xf32>
    %113 = math.tanh %112 : vector<8x128xf32>
    %114 = arith.mulf %104, %113 : vector<8x128xf32>
    %c2_i32 = arith.constant 2 : i32
    %115 = arith.cmpi sge, %c0_i32, %c2_i32 : i32
    %c10_i32 = arith.constant 10 : i32
    %116 = arith.cmpi slt, %c0_i32, %c10_i32 : i32
    %117 = arith.andi %115, %116 : i1
    %118 = arith.extui %117 : i1 to i32
    %119 = arith.sitofp %118 : i32 to f32
    %120 = arith.subf %114, %12 : vector<8x128xf32>
    %121 = vector.broadcast %119 : f32 to vector<8x128xf32>
    %122 = arith.mulf %121, %120 : vector<8x128xf32>
    %123 = arith.addf %12, %122 : vector<8x128xf32>
    %124 = arith.subf %112, %12 : vector<8x128xf32>
    %125 = vector.broadcast %119 : f32 to vector<8x128xf32>
    %126 = arith.mulf %125, %124 : vector<8x128xf32>
    %127 = arith.addf %12, %126 : vector<8x128xf32>
    %c1_i32_33 = arith.constant 1 : i32
    %c7_i32_34 = arith.constant 7 : i32
    %128 = arith.minsi %c1_i32_33, %c7_i32_34 : i32
    %c8_i32_35 = arith.constant 8 : i32
    %129 = arith.muli %128, %c8_i32_35 : i32
    %130 = tpu.assume_multiple %129, 8 : i32
    %131 = arith.truncf %52 : vector<8x128xf32> to vector<8x128xbf16>
    %cst_36 = arith.constant dense<0.000000e+00> : vector<8x1024xf32>
    %132 = tpu.matmul %131, %7, %cst_36 {dimension_numbers = #tpu.dot_dimension_numbers<[1], [0], [0], [1], [0, 0, 1, 1], [], []>} : vector<8x128xbf16>, vector<128x1024xbf16>, vector<8x1024xf32> -> vector<8x1024xf32>
    %133 = arith.truncf %88 : vector<8x128xf32> to vector<8x128xbf16>
    %cst_37 = arith.constant dense<0.000000e+00> : vector<8x1024xf32>
    %134 = tpu.matmul %133, %8, %cst_37 {dimension_numbers = #tpu.dot_dimension_numbers<[1], [0], [0], [1], [0, 0, 1, 1], [], []>} : vector<8x128xbf16>, vector<128x1024xbf16>, vector<8x1024xf32> -> vector<8x1024xf32>
    %135 = arith.truncf %123 : vector<8x128xf32> to vector<8x128xbf16>
    %cst_38 = arith.constant dense<0.000000e+00> : vector<8x512xf32>
    %136 = tpu.matmul %135, %9, %cst_38 {dimension_numbers = #tpu.dot_dimension_numbers<[1], [0], [0], [1], [0, 0, 1, 1], [], []>} : vector<8x128xbf16>, vector<128x512xbf16>, vector<8x512xf32> -> vector<8x512xf32>
    %137 = arith.index_cast %130 : i32 to index
    %c0_39 = arith.constant 0 : index
    %138 = vector.load %arg12[%137, %c0_39] : memref<64x512xf32, #tpu.memory_space<vmem>>, vector<8x512xf32>
    %139 = vector.extract_strided_slice %132 {offsets = [0, 0], sizes = [8, 512], strides = [1, 1]} : vector<8x1024xf32> to vector<8x512xf32>
    %140 = arith.addf %138, %139 : vector<8x512xf32>
    %141 = arith.negf %140 : vector<8x512xf32>
    %142 = math.exp %141 : vector<8x512xf32>
    %cst_40 = arith.constant 1.000000e+00 : f32
    %143 = vector.broadcast %cst_40 : f32 to vector<8x512xf32>
    %144 = arith.addf %143, %142 : vector<8x512xf32>
    %145 = arith.divf %143, %144 : vector<8x512xf32>
    %146 = vector.extract_strided_slice %145 {offsets = [0, 0], sizes = [8, 128], strides = [1, 1]} : vector<8x512xf32> to vector<8x128xf32>
    %147 = vector.extract_strided_slice %145 {offsets = [0, 128], sizes = [8, 128], strides = [1, 1]} : vector<8x512xf32> to vector<8x128xf32>
    %148 = vector.extract_strided_slice %145 {offsets = [0, 256], sizes = [8, 128], strides = [1, 1]} : vector<8x512xf32> to vector<8x128xf32>
    %149 = vector.extract_strided_slice %145 {offsets = [0, 384], sizes = [8, 128], strides = [1, 1]} : vector<8x512xf32> to vector<8x128xf32>
    %cst_41 = arith.constant 2.000000e+00 : f32
    %150 = vector.broadcast %cst_41 : f32 to vector<8x128xf32>
    %151 = arith.mulf %150, %149 : vector<8x128xf32>
    %cst_42 = arith.constant 1.000000e+00 : f32
    %152 = vector.broadcast %cst_42 : f32 to vector<8x128xf32>
    %153 = arith.subf %151, %152 : vector<8x128xf32>
    %154 = arith.mulf %147, %56 : vector<8x128xf32>
    %155 = arith.mulf %146, %153 : vector<8x128xf32>
    %156 = arith.addf %154, %155 : vector<8x128xf32>
    %157 = math.tanh %156 : vector<8x128xf32>
    %158 = arith.mulf %148, %157 : vector<8x128xf32>
    %c0_i32_43 = arith.constant 0 : i32
    %159 = arith.cmpi sge, %c1_i32_33, %c0_i32_43 : i32
    %c8_i32_44 = arith.constant 8 : i32
    %160 = arith.cmpi slt, %c1_i32_33, %c8_i32_44 : i32
    %161 = arith.andi %159, %160 : i1
    %162 = arith.extui %161 : i1 to i32
    %163 = arith.sitofp %162 : i32 to f32
    %164 = arith.subf %158, %52 : vector<8x128xf32>
    %165 = vector.broadcast %163 : f32 to vector<8x128xf32>
    %166 = arith.mulf %165, %164 : vector<8x128xf32>
    %167 = arith.addf %52, %166 : vector<8x128xf32>
    %168 = arith.subf %156, %56 : vector<8x128xf32>
    %169 = vector.broadcast %163 : f32 to vector<8x128xf32>
    %170 = arith.mulf %169, %168 : vector<8x128xf32>
    %171 = arith.addf %56, %170 : vector<8x128xf32>
    %172 = vector.extract_strided_slice %132 {offsets = [0, 512], sizes = [8, 512], strides = [1, 1]} : vector<8x1024xf32> to vector<8x512xf32>
    %173 = vector.extract_strided_slice %134 {offsets = [0, 0], sizes = [8, 512], strides = [1, 1]} : vector<8x1024xf32> to vector<8x512xf32>
    %174 = arith.addf %172, %173 : vector<8x512xf32>
    %175 = vector.broadcast %10 : vector<1x512xf32> to vector<8x512xf32>
    %176 = arith.addf %174, %175 : vector<8x512xf32>
    %177 = arith.negf %176 : vector<8x512xf32>
    %178 = math.exp %177 : vector<8x512xf32>
    %cst_45 = arith.constant 1.000000e+00 : f32
    %179 = vector.broadcast %cst_45 : f32 to vector<8x512xf32>
    %180 = arith.addf %179, %178 : vector<8x512xf32>
    %181 = arith.divf %179, %180 : vector<8x512xf32>
    %182 = vector.extract_strided_slice %181 {offsets = [0, 0], sizes = [8, 128], strides = [1, 1]} : vector<8x512xf32> to vector<8x128xf32>
    %183 = vector.extract_strided_slice %181 {offsets = [0, 128], sizes = [8, 128], strides = [1, 1]} : vector<8x512xf32> to vector<8x128xf32>
    %184 = vector.extract_strided_slice %181 {offsets = [0, 256], sizes = [8, 128], strides = [1, 1]} : vector<8x512xf32> to vector<8x128xf32>
    %185 = vector.extract_strided_slice %181 {offsets = [0, 384], sizes = [8, 128], strides = [1, 1]} : vector<8x512xf32> to vector<8x128xf32>
    %cst_46 = arith.constant 2.000000e+00 : f32
    %186 = vector.broadcast %cst_46 : f32 to vector<8x128xf32>
    %187 = arith.mulf %186, %185 : vector<8x128xf32>
    %cst_47 = arith.constant 1.000000e+00 : f32
    %188 = vector.broadcast %cst_47 : f32 to vector<8x128xf32>
    %189 = arith.subf %187, %188 : vector<8x128xf32>
    %190 = arith.mulf %183, %92 : vector<8x128xf32>
    %191 = arith.mulf %182, %189 : vector<8x128xf32>
    %192 = arith.addf %190, %191 : vector<8x128xf32>
    %193 = math.tanh %192 : vector<8x128xf32>
    %194 = arith.mulf %184, %193 : vector<8x128xf32>
    %c1_i32_48 = arith.constant 1 : i32
    %195 = arith.cmpi sge, %c1_i32_33, %c1_i32_48 : i32
    %c9_i32_49 = arith.constant 9 : i32
    %196 = arith.cmpi slt, %c1_i32_33, %c9_i32_49 : i32
    %197 = arith.andi %195, %196 : i1
    %198 = arith.extui %197 : i1 to i32
    %199 = arith.sitofp %198 : i32 to f32
    %200 = arith.subf %194, %88 : vector<8x128xf32>
    %201 = vector.broadcast %199 : f32 to vector<8x128xf32>
    %202 = arith.mulf %201, %200 : vector<8x128xf32>
    %203 = arith.addf %88, %202 : vector<8x128xf32>
    %204 = arith.subf %192, %92 : vector<8x128xf32>
    %205 = vector.broadcast %199 : f32 to vector<8x128xf32>
    %206 = arith.mulf %205, %204 : vector<8x128xf32>
    %207 = arith.addf %92, %206 : vector<8x128xf32>
    %208 = vector.extract_strided_slice %134 {offsets = [0, 512], sizes = [8, 512], strides = [1, 1]} : vector<8x1024xf32> to vector<8x512xf32>
    %209 = arith.addf %208, %136 : vector<8x512xf32>
    %210 = vector.broadcast %11 : vector<1x512xf32> to vector<8x512xf32>
    %211 = arith.addf %209, %210 : vector<8x512xf32>
    %212 = arith.negf %211 : vector<8x512xf32>
    %213 = math.exp %212 : vector<8x512xf32>
    %cst_50 = arith.constant 1.000000e+00 : f32
    %214 = vector.broadcast %cst_50 : f32 to vector<8x512xf32>
    %215 = arith.addf %214, %213 : vector<8x512xf32>
    %216 = arith.divf %214, %215 : vector<8x512xf32>
    %217 = vector.extract_strided_slice %216 {offsets = [0, 0], sizes = [8, 128], strides = [1, 1]} : vector<8x512xf32> to vector<8x128xf32>
    %218 = vector.extract_strided_slice %216 {offsets = [0, 128], sizes = [8, 128], strides = [1, 1]} : vector<8x512xf32> to vector<8x128xf32>
    %219 = vector.extract_strided_slice %216 {offsets = [0, 256], sizes = [8, 128], strides = [1, 1]} : vector<8x512xf32> to vector<8x128xf32>
    %220 = vector.extract_strided_slice %216 {offsets = [0, 384], sizes = [8, 128], strides = [1, 1]} : vector<8x512xf32> to vector<8x128xf32>
    %cst_51 = arith.constant 2.000000e+00 : f32
    %221 = vector.broadcast %cst_51 : f32 to vector<8x128xf32>
    %222 = arith.mulf %221, %220 : vector<8x128xf32>
    %cst_52 = arith.constant 1.000000e+00 : f32
    %223 = vector.broadcast %cst_52 : f32 to vector<8x128xf32>
    %224 = arith.subf %222, %223 : vector<8x128xf32>
    %225 = arith.mulf %218, %127 : vector<8x128xf32>
    %226 = arith.mulf %217, %224 : vector<8x128xf32>
    %227 = arith.addf %225, %226 : vector<8x128xf32>
    %228 = math.tanh %227 : vector<8x128xf32>
    %229 = arith.mulf %219, %228 : vector<8x128xf32>
    %c2_i32_53 = arith.constant 2 : i32
    %230 = arith.cmpi sge, %c1_i32_33, %c2_i32_53 : i32
    %c10_i32_54 = arith.constant 10 : i32
    %231 = arith.cmpi slt, %c1_i32_33, %c10_i32_54 : i32
    %232 = arith.andi %230, %231 : i1
    %233 = arith.extui %232 : i1 to i32
    %234 = arith.sitofp %233 : i32 to f32
    %235 = arith.subf %229, %123 : vector<8x128xf32>
    %236 = vector.broadcast %234 : f32 to vector<8x128xf32>
    %237 = arith.mulf %236, %235 : vector<8x128xf32>
    %238 = arith.addf %123, %237 : vector<8x128xf32>
    %239 = arith.subf %227, %127 : vector<8x128xf32>
    %240 = vector.broadcast %234 : f32 to vector<8x128xf32>
    %241 = arith.mulf %240, %239 : vector<8x128xf32>
    %242 = arith.addf %127, %241 : vector<8x128xf32>
    %c2_i32_55 = arith.constant 2 : i32
    %c7_i32_56 = arith.constant 7 : i32
    %243 = arith.minsi %c2_i32_55, %c7_i32_56 : i32
    %c8_i32_57 = arith.constant 8 : i32
    %244 = arith.muli %243, %c8_i32_57 : i32
    %245 = tpu.assume_multiple %244, 8 : i32
    %246 = arith.truncf %167 : vector<8x128xf32> to vector<8x128xbf16>
    %cst_58 = arith.constant dense<0.000000e+00> : vector<8x1024xf32>
    %247 = tpu.matmul %246, %7, %cst_58 {dimension_numbers = #tpu.dot_dimension_numbers<[1], [0], [0], [1], [0, 0, 1, 1], [], []>} : vector<8x128xbf16>, vector<128x1024xbf16>, vector<8x1024xf32> -> vector<8x1024xf32>
    %248 = arith.truncf %203 : vector<8x128xf32> to vector<8x128xbf16>
    %cst_59 = arith.constant dense<0.000000e+00> : vector<8x1024xf32>
    %249 = tpu.matmul %248, %8, %cst_59 {dimension_numbers = #tpu.dot_dimension_numbers<[1], [0], [0], [1], [0, 0, 1, 1], [], []>} : vector<8x128xbf16>, vector<128x1024xbf16>, vector<8x1024xf32> -> vector<8x1024xf32>
    %250 = arith.truncf %238 : vector<8x128xf32> to vector<8x128xbf16>
    %cst_60 = arith.constant dense<0.000000e+00> : vector<8x512xf32>
    %251 = tpu.matmul %250, %9, %cst_60 {dimension_numbers = #tpu.dot_dimension_numbers<[1], [0], [0], [1], [0, 0, 1, 1], [], []>} : vector<8x128xbf16>, vector<128x512xbf16>, vector<8x512xf32> -> vector<8x512xf32>
    %252 = arith.index_cast %245 : i32 to index
    %c0_61 = arith.constant 0 : index
    %253 = vector.load %arg12[%252, %c0_61] : memref<64x512xf32, #tpu.memory_space<vmem>>, vector<8x512xf32>
    %254 = vector.extract_strided_slice %247 {offsets = [0, 0], sizes = [8, 512], strides = [1, 1]} : vector<8x1024xf32> to vector<8x512xf32>
    %255 = arith.addf %253, %254 : vector<8x512xf32>
    %256 = arith.negf %255 : vector<8x512xf32>
    %257 = math.exp %256 : vector<8x512xf32>
    %cst_62 = arith.constant 1.000000e+00 : f32
    %258 = vector.broadcast %cst_62 : f32 to vector<8x512xf32>
    %259 = arith.addf %258, %257 : vector<8x512xf32>
    %260 = arith.divf %258, %259 : vector<8x512xf32>
    %261 = vector.extract_strided_slice %260 {offsets = [0, 0], sizes = [8, 128], strides = [1, 1]} : vector<8x512xf32> to vector<8x128xf32>
    %262 = vector.extract_strided_slice %260 {offsets = [0, 128], sizes = [8, 128], strides = [1, 1]} : vector<8x512xf32> to vector<8x128xf32>
    %263 = vector.extract_strided_slice %260 {offsets = [0, 256], sizes = [8, 128], strides = [1, 1]} : vector<8x512xf32> to vector<8x128xf32>
    %264 = vector.extract_strided_slice %260 {offsets = [0, 384], sizes = [8, 128], strides = [1, 1]} : vector<8x512xf32> to vector<8x128xf32>
    %cst_63 = arith.constant 2.000000e+00 : f32
    %265 = vector.broadcast %cst_63 : f32 to vector<8x128xf32>
    %266 = arith.mulf %265, %264 : vector<8x128xf32>
    %cst_64 = arith.constant 1.000000e+00 : f32
    %267 = vector.broadcast %cst_64 : f32 to vector<8x128xf32>
    %268 = arith.subf %266, %267 : vector<8x128xf32>
    %269 = arith.mulf %262, %171 : vector<8x128xf32>
    %270 = arith.mulf %261, %268 : vector<8x128xf32>
    %271 = arith.addf %269, %270 : vector<8x128xf32>
    %272 = math.tanh %271 : vector<8x128xf32>
    %273 = arith.mulf %263, %272 : vector<8x128xf32>
    %c0_i32_65 = arith.constant 0 : i32
    %274 = arith.cmpi sge, %c2_i32_55, %c0_i32_65 : i32
    %c8_i32_66 = arith.constant 8 : i32
    %275 = arith.cmpi slt, %c2_i32_55, %c8_i32_66 : i32
    %276 = arith.andi %274, %275 : i1
    %277 = arith.extui %276 : i1 to i32
    %278 = arith.sitofp %277 : i32 to f32
    %279 = arith.subf %273, %167 : vector<8x128xf32>
    %280 = vector.broadcast %278 : f32 to vector<8x128xf32>
    %281 = arith.mulf %280, %279 : vector<8x128xf32>
    %282 = arith.addf %167, %281 : vector<8x128xf32>
    %283 = arith.subf %271, %171 : vector<8x128xf32>
    %284 = vector.broadcast %278 : f32 to vector<8x128xf32>
    %285 = arith.mulf %284, %283 : vector<8x128xf32>
    %286 = arith.addf %171, %285 : vector<8x128xf32>
    %287 = vector.extract_strided_slice %247 {offsets = [0, 512], sizes = [8, 512], strides = [1, 1]} : vector<8x1024xf32> to vector<8x512xf32>
    %288 = vector.extract_strided_slice %249 {offsets = [0, 0], sizes = [8, 512], strides = [1, 1]} : vector<8x1024xf32> to vector<8x512xf32>
    %289 = arith.addf %287, %288 : vector<8x512xf32>
    %290 = vector.broadcast %10 : vector<1x512xf32> to vector<8x512xf32>
    %291 = arith.addf %289, %290 : vector<8x512xf32>
    %292 = arith.negf %291 : vector<8x512xf32>
    %293 = math.exp %292 : vector<8x512xf32>
    %cst_67 = arith.constant 1.000000e+00 : f32
    %294 = vector.broadcast %cst_67 : f32 to vector<8x512xf32>
    %295 = arith.addf %294, %293 : vector<8x512xf32>
    %296 = arith.divf %294, %295 : vector<8x512xf32>
    %297 = vector.extract_strided_slice %296 {offsets = [0, 0], sizes = [8, 128], strides = [1, 1]} : vector<8x512xf32> to vector<8x128xf32>
    %298 = vector.extract_strided_slice %296 {offsets = [0, 128], sizes = [8, 128], strides = [1, 1]} : vector<8x512xf32> to vector<8x128xf32>
    %299 = vector.extract_strided_slice %296 {offsets = [0, 256], sizes = [8, 128], strides = [1, 1]} : vector<8x512xf32> to vector<8x128xf32>
    %300 = vector.extract_strided_slice %296 {offsets = [0, 384], sizes = [8, 128], strides = [1, 1]} : vector<8x512xf32> to vector<8x128xf32>
    %cst_68 = arith.constant 2.000000e+00 : f32
    %301 = vector.broadcast %cst_68 : f32 to vector<8x128xf32>
    %302 = arith.mulf %301, %300 : vector<8x128xf32>
    %cst_69 = arith.constant 1.000000e+00 : f32
    %303 = vector.broadcast %cst_69 : f32 to vector<8x128xf32>
    %304 = arith.subf %302, %303 : vector<8x128xf32>
    %305 = arith.mulf %298, %207 : vector<8x128xf32>
    %306 = arith.mulf %297, %304 : vector<8x128xf32>
    %307 = arith.addf %305, %306 : vector<8x128xf32>
    %308 = math.tanh %307 : vector<8x128xf32>
    %309 = arith.mulf %299, %308 : vector<8x128xf32>
    %c1_i32_70 = arith.constant 1 : i32
    %310 = arith.cmpi sge, %c2_i32_55, %c1_i32_70 : i32
    %c9_i32_71 = arith.constant 9 : i32
    %311 = arith.cmpi slt, %c2_i32_55, %c9_i32_71 : i32
    %312 = arith.andi %310, %311 : i1
    %313 = arith.extui %312 : i1 to i32
    %314 = arith.sitofp %313 : i32 to f32
    %315 = arith.subf %309, %203 : vector<8x128xf32>
    %316 = vector.broadcast %314 : f32 to vector<8x128xf32>
    %317 = arith.mulf %316, %315 : vector<8x128xf32>
    %318 = arith.addf %203, %317 : vector<8x128xf32>
    %319 = arith.subf %307, %207 : vector<8x128xf32>
    %320 = vector.broadcast %314 : f32 to vector<8x128xf32>
    %321 = arith.mulf %320, %319 : vector<8x128xf32>
    %322 = arith.addf %207, %321 : vector<8x128xf32>
    %323 = vector.extract_strided_slice %249 {offsets = [0, 512], sizes = [8, 512], strides = [1, 1]} : vector<8x1024xf32> to vector<8x512xf32>
    %324 = arith.addf %323, %251 : vector<8x512xf32>
    %325 = vector.broadcast %11 : vector<1x512xf32> to vector<8x512xf32>
    %326 = arith.addf %324, %325 : vector<8x512xf32>
    %327 = arith.negf %326 : vector<8x512xf32>
    %328 = math.exp %327 : vector<8x512xf32>
    %cst_72 = arith.constant 1.000000e+00 : f32
    %329 = vector.broadcast %cst_72 : f32 to vector<8x512xf32>
    %330 = arith.addf %329, %328 : vector<8x512xf32>
    %331 = arith.divf %329, %330 : vector<8x512xf32>
    %332 = vector.extract_strided_slice %331 {offsets = [0, 0], sizes = [8, 128], strides = [1, 1]} : vector<8x512xf32> to vector<8x128xf32>
    %333 = vector.extract_strided_slice %331 {offsets = [0, 128], sizes = [8, 128], strides = [1, 1]} : vector<8x512xf32> to vector<8x128xf32>
    %334 = vector.extract_strided_slice %331 {offsets = [0, 256], sizes = [8, 128], strides = [1, 1]} : vector<8x512xf32> to vector<8x128xf32>
    %335 = vector.extract_strided_slice %331 {offsets = [0, 384], sizes = [8, 128], strides = [1, 1]} : vector<8x512xf32> to vector<8x128xf32>
    %cst_73 = arith.constant 2.000000e+00 : f32
    %336 = vector.broadcast %cst_73 : f32 to vector<8x128xf32>
    %337 = arith.mulf %336, %335 : vector<8x128xf32>
    %cst_74 = arith.constant 1.000000e+00 : f32
    %338 = vector.broadcast %cst_74 : f32 to vector<8x128xf32>
    %339 = arith.subf %337, %338 : vector<8x128xf32>
    %340 = arith.mulf %333, %242 : vector<8x128xf32>
    %341 = arith.mulf %332, %339 : vector<8x128xf32>
    %342 = arith.addf %340, %341 : vector<8x128xf32>
    %343 = math.tanh %342 : vector<8x128xf32>
    %344 = arith.mulf %334, %343 : vector<8x128xf32>
    %c2_i32_75 = arith.constant 2 : i32
    %345 = arith.cmpi sge, %c2_i32_55, %c2_i32_75 : i32
    %c10_i32_76 = arith.constant 10 : i32
    %346 = arith.cmpi slt, %c2_i32_55, %c10_i32_76 : i32
    %347 = arith.andi %345, %346 : i1
    %348 = arith.extui %347 : i1 to i32
    %349 = arith.sitofp %348 : i32 to f32
    %350 = arith.subf %344, %238 : vector<8x128xf32>
    %351 = vector.broadcast %349 : f32 to vector<8x128xf32>
    %352 = arith.mulf %351, %350 : vector<8x128xf32>
    %353 = arith.addf %238, %352 : vector<8x128xf32>
    %354 = arith.subf %342, %242 : vector<8x128xf32>
    %355 = vector.broadcast %349 : f32 to vector<8x128xf32>
    %356 = arith.mulf %355, %354 : vector<8x128xf32>
    %357 = arith.addf %242, %356 : vector<8x128xf32>
    %c3_i32 = arith.constant 3 : i32
    %c7_i32_77 = arith.constant 7 : i32
    %358 = arith.minsi %c3_i32, %c7_i32_77 : i32
    %c8_i32_78 = arith.constant 8 : i32
    %359 = arith.muli %358, %c8_i32_78 : i32
    %360 = tpu.assume_multiple %359, 8 : i32
    %361 = arith.truncf %282 : vector<8x128xf32> to vector<8x128xbf16>
    %cst_79 = arith.constant dense<0.000000e+00> : vector<8x1024xf32>
    %362 = tpu.matmul %361, %7, %cst_79 {dimension_numbers = #tpu.dot_dimension_numbers<[1], [0], [0], [1], [0, 0, 1, 1], [], []>} : vector<8x128xbf16>, vector<128x1024xbf16>, vector<8x1024xf32> -> vector<8x1024xf32>
    %363 = arith.truncf %318 : vector<8x128xf32> to vector<8x128xbf16>
    %cst_80 = arith.constant dense<0.000000e+00> : vector<8x1024xf32>
    %364 = tpu.matmul %363, %8, %cst_80 {dimension_numbers = #tpu.dot_dimension_numbers<[1], [0], [0], [1], [0, 0, 1, 1], [], []>} : vector<8x128xbf16>, vector<128x1024xbf16>, vector<8x1024xf32> -> vector<8x1024xf32>
    %365 = arith.truncf %353 : vector<8x128xf32> to vector<8x128xbf16>
    %cst_81 = arith.constant dense<0.000000e+00> : vector<8x512xf32>
    %366 = tpu.matmul %365, %9, %cst_81 {dimension_numbers = #tpu.dot_dimension_numbers<[1], [0], [0], [1], [0, 0, 1, 1], [], []>} : vector<8x128xbf16>, vector<128x512xbf16>, vector<8x512xf32> -> vector<8x512xf32>
    %367 = arith.index_cast %360 : i32 to index
    %c0_82 = arith.constant 0 : index
    %368 = vector.load %arg12[%367, %c0_82] : memref<64x512xf32, #tpu.memory_space<vmem>>, vector<8x512xf32>
    %369 = vector.extract_strided_slice %362 {offsets = [0, 0], sizes = [8, 512], strides = [1, 1]} : vector<8x1024xf32> to vector<8x512xf32>
    %370 = arith.addf %368, %369 : vector<8x512xf32>
    %371 = arith.negf %370 : vector<8x512xf32>
    %372 = math.exp %371 : vector<8x512xf32>
    %cst_83 = arith.constant 1.000000e+00 : f32
    %373 = vector.broadcast %cst_83 : f32 to vector<8x512xf32>
    %374 = arith.addf %373, %372 : vector<8x512xf32>
    %375 = arith.divf %373, %374 : vector<8x512xf32>
    %376 = vector.extract_strided_slice %375 {offsets = [0, 0], sizes = [8, 128], strides = [1, 1]} : vector<8x512xf32> to vector<8x128xf32>
    %377 = vector.extract_strided_slice %375 {offsets = [0, 128], sizes = [8, 128], strides = [1, 1]} : vector<8x512xf32> to vector<8x128xf32>
    %378 = vector.extract_strided_slice %375 {offsets = [0, 256], sizes = [8, 128], strides = [1, 1]} : vector<8x512xf32> to vector<8x128xf32>
    %379 = vector.extract_strided_slice %375 {offsets = [0, 384], sizes = [8, 128], strides = [1, 1]} : vector<8x512xf32> to vector<8x128xf32>
    %cst_84 = arith.constant 2.000000e+00 : f32
    %380 = vector.broadcast %cst_84 : f32 to vector<8x128xf32>
    %381 = arith.mulf %380, %379 : vector<8x128xf32>
    %cst_85 = arith.constant 1.000000e+00 : f32
    %382 = vector.broadcast %cst_85 : f32 to vector<8x128xf32>
    %383 = arith.subf %381, %382 : vector<8x128xf32>
    %384 = arith.mulf %377, %286 : vector<8x128xf32>
    %385 = arith.mulf %376, %383 : vector<8x128xf32>
    %386 = arith.addf %384, %385 : vector<8x128xf32>
    %387 = math.tanh %386 : vector<8x128xf32>
    %388 = arith.mulf %378, %387 : vector<8x128xf32>
    %c0_i32_86 = arith.constant 0 : i32
    %389 = arith.cmpi sge, %c3_i32, %c0_i32_86 : i32
    %c8_i32_87 = arith.constant 8 : i32
    %390 = arith.cmpi slt, %c3_i32, %c8_i32_87 : i32
    %391 = arith.andi %389, %390 : i1
    %392 = arith.extui %391 : i1 to i32
    %393 = arith.sitofp %392 : i32 to f32
    %394 = arith.subf %388, %282 : vector<8x128xf32>
    %395 = vector.broadcast %393 : f32 to vector<8x128xf32>
    %396 = arith.mulf %395, %394 : vector<8x128xf32>
    %397 = arith.addf %282, %396 : vector<8x128xf32>
    %398 = arith.subf %386, %286 : vector<8x128xf32>
    %399 = vector.broadcast %393 : f32 to vector<8x128xf32>
    %400 = arith.mulf %399, %398 : vector<8x128xf32>
    %401 = arith.addf %286, %400 : vector<8x128xf32>
    %402 = vector.extract_strided_slice %362 {offsets = [0, 512], sizes = [8, 512], strides = [1, 1]} : vector<8x1024xf32> to vector<8x512xf32>
    %403 = vector.extract_strided_slice %364 {offsets = [0, 0], sizes = [8, 512], strides = [1, 1]} : vector<8x1024xf32> to vector<8x512xf32>
    %404 = arith.addf %402, %403 : vector<8x512xf32>
    %405 = vector.broadcast %10 : vector<1x512xf32> to vector<8x512xf32>
    %406 = arith.addf %404, %405 : vector<8x512xf32>
    %407 = arith.negf %406 : vector<8x512xf32>
    %408 = math.exp %407 : vector<8x512xf32>
    %cst_88 = arith.constant 1.000000e+00 : f32
    %409 = vector.broadcast %cst_88 : f32 to vector<8x512xf32>
    %410 = arith.addf %409, %408 : vector<8x512xf32>
    %411 = arith.divf %409, %410 : vector<8x512xf32>
    %412 = vector.extract_strided_slice %411 {offsets = [0, 0], sizes = [8, 128], strides = [1, 1]} : vector<8x512xf32> to vector<8x128xf32>
    %413 = vector.extract_strided_slice %411 {offsets = [0, 128], sizes = [8, 128], strides = [1, 1]} : vector<8x512xf32> to vector<8x128xf32>
    %414 = vector.extract_strided_slice %411 {offsets = [0, 256], sizes = [8, 128], strides = [1, 1]} : vector<8x512xf32> to vector<8x128xf32>
    %415 = vector.extract_strided_slice %411 {offsets = [0, 384], sizes = [8, 128], strides = [1, 1]} : vector<8x512xf32> to vector<8x128xf32>
    %cst_89 = arith.constant 2.000000e+00 : f32
    %416 = vector.broadcast %cst_89 : f32 to vector<8x128xf32>
    %417 = arith.mulf %416, %415 : vector<8x128xf32>
    %cst_90 = arith.constant 1.000000e+00 : f32
    %418 = vector.broadcast %cst_90 : f32 to vector<8x128xf32>
    %419 = arith.subf %417, %418 : vector<8x128xf32>
    %420 = arith.mulf %413, %322 : vector<8x128xf32>
    %421 = arith.mulf %412, %419 : vector<8x128xf32>
    %422 = arith.addf %420, %421 : vector<8x128xf32>
    %423 = math.tanh %422 : vector<8x128xf32>
    %424 = arith.mulf %414, %423 : vector<8x128xf32>
    %c1_i32_91 = arith.constant 1 : i32
    %425 = arith.cmpi sge, %c3_i32, %c1_i32_91 : i32
    %c9_i32_92 = arith.constant 9 : i32
    %426 = arith.cmpi slt, %c3_i32, %c9_i32_92 : i32
    %427 = arith.andi %425, %426 : i1
    %428 = arith.extui %427 : i1 to i32
    %429 = arith.sitofp %428 : i32 to f32
    %430 = arith.subf %424, %318 : vector<8x128xf32>
    %431 = vector.broadcast %429 : f32 to vector<8x128xf32>
    %432 = arith.mulf %431, %430 : vector<8x128xf32>
    %433 = arith.addf %318, %432 : vector<8x128xf32>
    %434 = arith.subf %422, %322 : vector<8x128xf32>
    %435 = vector.broadcast %429 : f32 to vector<8x128xf32>
    %436 = arith.mulf %435, %434 : vector<8x128xf32>
    %437 = arith.addf %322, %436 : vector<8x128xf32>
    %438 = vector.extract_strided_slice %364 {offsets = [0, 512], sizes = [8, 512], strides = [1, 1]} : vector<8x1024xf32> to vector<8x512xf32>
    %439 = arith.addf %438, %366 : vector<8x512xf32>
    %440 = vector.broadcast %11 : vector<1x512xf32> to vector<8x512xf32>
    %441 = arith.addf %439, %440 : vector<8x512xf32>
    %442 = arith.negf %441 : vector<8x512xf32>
    %443 = math.exp %442 : vector<8x512xf32>
    %cst_93 = arith.constant 1.000000e+00 : f32
    %444 = vector.broadcast %cst_93 : f32 to vector<8x512xf32>
    %445 = arith.addf %444, %443 : vector<8x512xf32>
    %446 = arith.divf %444, %445 : vector<8x512xf32>
    %447 = vector.extract_strided_slice %446 {offsets = [0, 0], sizes = [8, 128], strides = [1, 1]} : vector<8x512xf32> to vector<8x128xf32>
    %448 = vector.extract_strided_slice %446 {offsets = [0, 128], sizes = [8, 128], strides = [1, 1]} : vector<8x512xf32> to vector<8x128xf32>
    %449 = vector.extract_strided_slice %446 {offsets = [0, 256], sizes = [8, 128], strides = [1, 1]} : vector<8x512xf32> to vector<8x128xf32>
    %450 = vector.extract_strided_slice %446 {offsets = [0, 384], sizes = [8, 128], strides = [1, 1]} : vector<8x512xf32> to vector<8x128xf32>
    %cst_94 = arith.constant 2.000000e+00 : f32
    %451 = vector.broadcast %cst_94 : f32 to vector<8x128xf32>
    %452 = arith.mulf %451, %450 : vector<8x128xf32>
    %cst_95 = arith.constant 1.000000e+00 : f32
    %453 = vector.broadcast %cst_95 : f32 to vector<8x128xf32>
    %454 = arith.subf %452, %453 : vector<8x128xf32>
    %455 = arith.mulf %448, %357 : vector<8x128xf32>
    %456 = arith.mulf %447, %454 : vector<8x128xf32>
    %457 = arith.addf %455, %456 : vector<8x128xf32>
    %458 = math.tanh %457 : vector<8x128xf32>
    %459 = arith.mulf %449, %458 : vector<8x128xf32>
    %c2_i32_96 = arith.constant 2 : i32
    %460 = arith.cmpi sge, %c3_i32, %c2_i32_96 : i32
    %c10_i32_97 = arith.constant 10 : i32
    %461 = arith.cmpi slt, %c3_i32, %c10_i32_97 : i32
    %462 = arith.andi %460, %461 : i1
    %463 = arith.extui %462 : i1 to i32
    %464 = arith.sitofp %463 : i32 to f32
    %465 = arith.subf %459, %353 : vector<8x128xf32>
    %466 = vector.broadcast %464 : f32 to vector<8x128xf32>
    %467 = arith.mulf %466, %465 : vector<8x128xf32>
    %468 = arith.addf %353, %467 : vector<8x128xf32>
    %469 = arith.subf %457, %357 : vector<8x128xf32>
    %470 = vector.broadcast %464 : f32 to vector<8x128xf32>
    %471 = arith.mulf %470, %469 : vector<8x128xf32>
    %472 = arith.addf %357, %471 : vector<8x128xf32>
    %c4_i32 = arith.constant 4 : i32
    %c7_i32_98 = arith.constant 7 : i32
    %473 = arith.minsi %c4_i32, %c7_i32_98 : i32
    %c8_i32_99 = arith.constant 8 : i32
    %474 = arith.muli %473, %c8_i32_99 : i32
    %475 = tpu.assume_multiple %474, 8 : i32
    %476 = arith.truncf %397 : vector<8x128xf32> to vector<8x128xbf16>
    %cst_100 = arith.constant dense<0.000000e+00> : vector<8x1024xf32>
    %477 = tpu.matmul %476, %7, %cst_100 {dimension_numbers = #tpu.dot_dimension_numbers<[1], [0], [0], [1], [0, 0, 1, 1], [], []>} : vector<8x128xbf16>, vector<128x1024xbf16>, vector<8x1024xf32> -> vector<8x1024xf32>
    %478 = arith.truncf %433 : vector<8x128xf32> to vector<8x128xbf16>
    %cst_101 = arith.constant dense<0.000000e+00> : vector<8x1024xf32>
    %479 = tpu.matmul %478, %8, %cst_101 {dimension_numbers = #tpu.dot_dimension_numbers<[1], [0], [0], [1], [0, 0, 1, 1], [], []>} : vector<8x128xbf16>, vector<128x1024xbf16>, vector<8x1024xf32> -> vector<8x1024xf32>
    %480 = arith.truncf %468 : vector<8x128xf32> to vector<8x128xbf16>
    %cst_102 = arith.constant dense<0.000000e+00> : vector<8x512xf32>
    %481 = tpu.matmul %480, %9, %cst_102 {dimension_numbers = #tpu.dot_dimension_numbers<[1], [0], [0], [1], [0, 0, 1, 1], [], []>} : vector<8x128xbf16>, vector<128x512xbf16>, vector<8x512xf32> -> vector<8x512xf32>
    %482 = arith.index_cast %475 : i32 to index
    %c0_103 = arith.constant 0 : index
    %483 = vector.load %arg12[%482, %c0_103] : memref<64x512xf32, #tpu.memory_space<vmem>>, vector<8x512xf32>
    %484 = vector.extract_strided_slice %477 {offsets = [0, 0], sizes = [8, 512], strides = [1, 1]} : vector<8x1024xf32> to vector<8x512xf32>
    %485 = arith.addf %483, %484 : vector<8x512xf32>
    %486 = arith.negf %485 : vector<8x512xf32>
    %487 = math.exp %486 : vector<8x512xf32>
    %cst_104 = arith.constant 1.000000e+00 : f32
    %488 = vector.broadcast %cst_104 : f32 to vector<8x512xf32>
    %489 = arith.addf %488, %487 : vector<8x512xf32>
    %490 = arith.divf %488, %489 : vector<8x512xf32>
    %491 = vector.extract_strided_slice %490 {offsets = [0, 0], sizes = [8, 128], strides = [1, 1]} : vector<8x512xf32> to vector<8x128xf32>
    %492 = vector.extract_strided_slice %490 {offsets = [0, 128], sizes = [8, 128], strides = [1, 1]} : vector<8x512xf32> to vector<8x128xf32>
    %493 = vector.extract_strided_slice %490 {offsets = [0, 256], sizes = [8, 128], strides = [1, 1]} : vector<8x512xf32> to vector<8x128xf32>
    %494 = vector.extract_strided_slice %490 {offsets = [0, 384], sizes = [8, 128], strides = [1, 1]} : vector<8x512xf32> to vector<8x128xf32>
    %cst_105 = arith.constant 2.000000e+00 : f32
    %495 = vector.broadcast %cst_105 : f32 to vector<8x128xf32>
    %496 = arith.mulf %495, %494 : vector<8x128xf32>
    %cst_106 = arith.constant 1.000000e+00 : f32
    %497 = vector.broadcast %cst_106 : f32 to vector<8x128xf32>
    %498 = arith.subf %496, %497 : vector<8x128xf32>
    %499 = arith.mulf %492, %401 : vector<8x128xf32>
    %500 = arith.mulf %491, %498 : vector<8x128xf32>
    %501 = arith.addf %499, %500 : vector<8x128xf32>
    %502 = math.tanh %501 : vector<8x128xf32>
    %503 = arith.mulf %493, %502 : vector<8x128xf32>
    %c0_i32_107 = arith.constant 0 : i32
    %504 = arith.cmpi sge, %c4_i32, %c0_i32_107 : i32
    %c8_i32_108 = arith.constant 8 : i32
    %505 = arith.cmpi slt, %c4_i32, %c8_i32_108 : i32
    %506 = arith.andi %504, %505 : i1
    %507 = arith.extui %506 : i1 to i32
    %508 = arith.sitofp %507 : i32 to f32
    %509 = arith.subf %503, %397 : vector<8x128xf32>
    %510 = vector.broadcast %508 : f32 to vector<8x128xf32>
    %511 = arith.mulf %510, %509 : vector<8x128xf32>
    %512 = arith.addf %397, %511 : vector<8x128xf32>
    %513 = arith.subf %501, %401 : vector<8x128xf32>
    %514 = vector.broadcast %508 : f32 to vector<8x128xf32>
    %515 = arith.mulf %514, %513 : vector<8x128xf32>
    %516 = arith.addf %401, %515 : vector<8x128xf32>
    %517 = vector.extract_strided_slice %477 {offsets = [0, 512], sizes = [8, 512], strides = [1, 1]} : vector<8x1024xf32> to vector<8x512xf32>
    %518 = vector.extract_strided_slice %479 {offsets = [0, 0], sizes = [8, 512], strides = [1, 1]} : vector<8x1024xf32> to vector<8x512xf32>
    %519 = arith.addf %517, %518 : vector<8x512xf32>
    %520 = vector.broadcast %10 : vector<1x512xf32> to vector<8x512xf32>
    %521 = arith.addf %519, %520 : vector<8x512xf32>
    %522 = arith.negf %521 : vector<8x512xf32>
    %523 = math.exp %522 : vector<8x512xf32>
    %cst_109 = arith.constant 1.000000e+00 : f32
    %524 = vector.broadcast %cst_109 : f32 to vector<8x512xf32>
    %525 = arith.addf %524, %523 : vector<8x512xf32>
    %526 = arith.divf %524, %525 : vector<8x512xf32>
    %527 = vector.extract_strided_slice %526 {offsets = [0, 0], sizes = [8, 128], strides = [1, 1]} : vector<8x512xf32> to vector<8x128xf32>
    %528 = vector.extract_strided_slice %526 {offsets = [0, 128], sizes = [8, 128], strides = [1, 1]} : vector<8x512xf32> to vector<8x128xf32>
    %529 = vector.extract_strided_slice %526 {offsets = [0, 256], sizes = [8, 128], strides = [1, 1]} : vector<8x512xf32> to vector<8x128xf32>
    %530 = vector.extract_strided_slice %526 {offsets = [0, 384], sizes = [8, 128], strides = [1, 1]} : vector<8x512xf32> to vector<8x128xf32>
    %cst_110 = arith.constant 2.000000e+00 : f32
    %531 = vector.broadcast %cst_110 : f32 to vector<8x128xf32>
    %532 = arith.mulf %531, %530 : vector<8x128xf32>
    %cst_111 = arith.constant 1.000000e+00 : f32
    %533 = vector.broadcast %cst_111 : f32 to vector<8x128xf32>
    %534 = arith.subf %532, %533 : vector<8x128xf32>
    %535 = arith.mulf %528, %437 : vector<8x128xf32>
    %536 = arith.mulf %527, %534 : vector<8x128xf32>
    %537 = arith.addf %535, %536 : vector<8x128xf32>
    %538 = math.tanh %537 : vector<8x128xf32>
    %539 = arith.mulf %529, %538 : vector<8x128xf32>
    %c1_i32_112 = arith.constant 1 : i32
    %540 = arith.cmpi sge, %c4_i32, %c1_i32_112 : i32
    %c9_i32_113 = arith.constant 9 : i32
    %541 = arith.cmpi slt, %c4_i32, %c9_i32_113 : i32
    %542 = arith.andi %540, %541 : i1
    %543 = arith.extui %542 : i1 to i32
    %544 = arith.sitofp %543 : i32 to f32
    %545 = arith.subf %539, %433 : vector<8x128xf32>
    %546 = vector.broadcast %544 : f32 to vector<8x128xf32>
    %547 = arith.mulf %546, %545 : vector<8x128xf32>
    %548 = arith.addf %433, %547 : vector<8x128xf32>
    %549 = arith.subf %537, %437 : vector<8x128xf32>
    %550 = vector.broadcast %544 : f32 to vector<8x128xf32>
    %551 = arith.mulf %550, %549 : vector<8x128xf32>
    %552 = arith.addf %437, %551 : vector<8x128xf32>
    %553 = vector.extract_strided_slice %479 {offsets = [0, 512], sizes = [8, 512], strides = [1, 1]} : vector<8x1024xf32> to vector<8x512xf32>
    %554 = arith.addf %553, %481 : vector<8x512xf32>
    %555 = vector.broadcast %11 : vector<1x512xf32> to vector<8x512xf32>
    %556 = arith.addf %554, %555 : vector<8x512xf32>
    %557 = arith.negf %556 : vector<8x512xf32>
    %558 = math.exp %557 : vector<8x512xf32>
    %cst_114 = arith.constant 1.000000e+00 : f32
    %559 = vector.broadcast %cst_114 : f32 to vector<8x512xf32>
    %560 = arith.addf %559, %558 : vector<8x512xf32>
    %561 = arith.divf %559, %560 : vector<8x512xf32>
    %562 = vector.extract_strided_slice %561 {offsets = [0, 0], sizes = [8, 128], strides = [1, 1]} : vector<8x512xf32> to vector<8x128xf32>
    %563 = vector.extract_strided_slice %561 {offsets = [0, 128], sizes = [8, 128], strides = [1, 1]} : vector<8x512xf32> to vector<8x128xf32>
    %564 = vector.extract_strided_slice %561 {offsets = [0, 256], sizes = [8, 128], strides = [1, 1]} : vector<8x512xf32> to vector<8x128xf32>
    %565 = vector.extract_strided_slice %561 {offsets = [0, 384], sizes = [8, 128], strides = [1, 1]} : vector<8x512xf32> to vector<8x128xf32>
    %cst_115 = arith.constant 2.000000e+00 : f32
    %566 = vector.broadcast %cst_115 : f32 to vector<8x128xf32>
    %567 = arith.mulf %566, %565 : vector<8x128xf32>
    %cst_116 = arith.constant 1.000000e+00 : f32
    %568 = vector.broadcast %cst_116 : f32 to vector<8x128xf32>
    %569 = arith.subf %567, %568 : vector<8x128xf32>
    %570 = arith.mulf %563, %472 : vector<8x128xf32>
    %571 = arith.mulf %562, %569 : vector<8x128xf32>
    %572 = arith.addf %570, %571 : vector<8x128xf32>
    %573 = math.tanh %572 : vector<8x128xf32>
    %574 = arith.mulf %564, %573 : vector<8x128xf32>
    %c2_i32_117 = arith.constant 2 : i32
    %575 = arith.cmpi sge, %c4_i32, %c2_i32_117 : i32
    %c10_i32_118 = arith.constant 10 : i32
    %576 = arith.cmpi slt, %c4_i32, %c10_i32_118 : i32
    %577 = arith.andi %575, %576 : i1
    %578 = arith.extui %577 : i1 to i32
    %579 = arith.sitofp %578 : i32 to f32
    %580 = arith.subf %574, %468 : vector<8x128xf32>
    %581 = vector.broadcast %579 : f32 to vector<8x128xf32>
    %582 = arith.mulf %581, %580 : vector<8x128xf32>
    %583 = arith.addf %468, %582 : vector<8x128xf32>
    %584 = arith.subf %572, %472 : vector<8x128xf32>
    %585 = vector.broadcast %579 : f32 to vector<8x128xf32>
    %586 = arith.mulf %585, %584 : vector<8x128xf32>
    %587 = arith.addf %472, %586 : vector<8x128xf32>
    %c5_i32 = arith.constant 5 : i32
    %c7_i32_119 = arith.constant 7 : i32
    %588 = arith.minsi %c5_i32, %c7_i32_119 : i32
    %c8_i32_120 = arith.constant 8 : i32
    %589 = arith.muli %588, %c8_i32_120 : i32
    %590 = tpu.assume_multiple %589, 8 : i32
    %591 = arith.truncf %512 : vector<8x128xf32> to vector<8x128xbf16>
    %cst_121 = arith.constant dense<0.000000e+00> : vector<8x1024xf32>
    %592 = tpu.matmul %591, %7, %cst_121 {dimension_numbers = #tpu.dot_dimension_numbers<[1], [0], [0], [1], [0, 0, 1, 1], [], []>} : vector<8x128xbf16>, vector<128x1024xbf16>, vector<8x1024xf32> -> vector<8x1024xf32>
    %593 = arith.truncf %548 : vector<8x128xf32> to vector<8x128xbf16>
    %cst_122 = arith.constant dense<0.000000e+00> : vector<8x1024xf32>
    %594 = tpu.matmul %593, %8, %cst_122 {dimension_numbers = #tpu.dot_dimension_numbers<[1], [0], [0], [1], [0, 0, 1, 1], [], []>} : vector<8x128xbf16>, vector<128x1024xbf16>, vector<8x1024xf32> -> vector<8x1024xf32>
    %595 = arith.truncf %583 : vector<8x128xf32> to vector<8x128xbf16>
    %cst_123 = arith.constant dense<0.000000e+00> : vector<8x512xf32>
    %596 = tpu.matmul %595, %9, %cst_123 {dimension_numbers = #tpu.dot_dimension_numbers<[1], [0], [0], [1], [0, 0, 1, 1], [], []>} : vector<8x128xbf16>, vector<128x512xbf16>, vector<8x512xf32> -> vector<8x512xf32>
    %597 = arith.index_cast %590 : i32 to index
    %c0_124 = arith.constant 0 : index
    %598 = vector.load %arg12[%597, %c0_124] : memref<64x512xf32, #tpu.memory_space<vmem>>, vector<8x512xf32>
    %599 = vector.extract_strided_slice %592 {offsets = [0, 0], sizes = [8, 512], strides = [1, 1]} : vector<8x1024xf32> to vector<8x512xf32>
    %600 = arith.addf %598, %599 : vector<8x512xf32>
    %601 = arith.negf %600 : vector<8x512xf32>
    %602 = math.exp %601 : vector<8x512xf32>
    %cst_125 = arith.constant 1.000000e+00 : f32
    %603 = vector.broadcast %cst_125 : f32 to vector<8x512xf32>
    %604 = arith.addf %603, %602 : vector<8x512xf32>
    %605 = arith.divf %603, %604 : vector<8x512xf32>
    %606 = vector.extract_strided_slice %605 {offsets = [0, 0], sizes = [8, 128], strides = [1, 1]} : vector<8x512xf32> to vector<8x128xf32>
    %607 = vector.extract_strided_slice %605 {offsets = [0, 128], sizes = [8, 128], strides = [1, 1]} : vector<8x512xf32> to vector<8x128xf32>
    %608 = vector.extract_strided_slice %605 {offsets = [0, 256], sizes = [8, 128], strides = [1, 1]} : vector<8x512xf32> to vector<8x128xf32>
    %609 = vector.extract_strided_slice %605 {offsets = [0, 384], sizes = [8, 128], strides = [1, 1]} : vector<8x512xf32> to vector<8x128xf32>
    %cst_126 = arith.constant 2.000000e+00 : f32
    %610 = vector.broadcast %cst_126 : f32 to vector<8x128xf32>
    %611 = arith.mulf %610, %609 : vector<8x128xf32>
    %cst_127 = arith.constant 1.000000e+00 : f32
    %612 = vector.broadcast %cst_127 : f32 to vector<8x128xf32>
    %613 = arith.subf %611, %612 : vector<8x128xf32>
    %614 = arith.mulf %607, %516 : vector<8x128xf32>
    %615 = arith.mulf %606, %613 : vector<8x128xf32>
    %616 = arith.addf %614, %615 : vector<8x128xf32>
    %617 = math.tanh %616 : vector<8x128xf32>
    %618 = arith.mulf %608, %617 : vector<8x128xf32>
    %c0_i32_128 = arith.constant 0 : i32
    %619 = arith.cmpi sge, %c5_i32, %c0_i32_128 : i32
    %c8_i32_129 = arith.constant 8 : i32
    %620 = arith.cmpi slt, %c5_i32, %c8_i32_129 : i32
    %621 = arith.andi %619, %620 : i1
    %622 = arith.extui %621 : i1 to i32
    %623 = arith.sitofp %622 : i32 to f32
    %624 = arith.subf %618, %512 : vector<8x128xf32>
    %625 = vector.broadcast %623 : f32 to vector<8x128xf32>
    %626 = arith.mulf %625, %624 : vector<8x128xf32>
    %627 = arith.addf %512, %626 : vector<8x128xf32>
    %628 = arith.subf %616, %516 : vector<8x128xf32>
    %629 = vector.broadcast %623 : f32 to vector<8x128xf32>
    %630 = arith.mulf %629, %628 : vector<8x128xf32>
    %631 = arith.addf %516, %630 : vector<8x128xf32>
    %632 = vector.extract_strided_slice %592 {offsets = [0, 512], sizes = [8, 512], strides = [1, 1]} : vector<8x1024xf32> to vector<8x512xf32>
    %633 = vector.extract_strided_slice %594 {offsets = [0, 0], sizes = [8, 512], strides = [1, 1]} : vector<8x1024xf32> to vector<8x512xf32>
    %634 = arith.addf %632, %633 : vector<8x512xf32>
    %635 = vector.broadcast %10 : vector<1x512xf32> to vector<8x512xf32>
    %636 = arith.addf %634, %635 : vector<8x512xf32>
    %637 = arith.negf %636 : vector<8x512xf32>
    %638 = math.exp %637 : vector<8x512xf32>
    %cst_130 = arith.constant 1.000000e+00 : f32
    %639 = vector.broadcast %cst_130 : f32 to vector<8x512xf32>
    %640 = arith.addf %639, %638 : vector<8x512xf32>
    %641 = arith.divf %639, %640 : vector<8x512xf32>
    %642 = vector.extract_strided_slice %641 {offsets = [0, 0], sizes = [8, 128], strides = [1, 1]} : vector<8x512xf32> to vector<8x128xf32>
    %643 = vector.extract_strided_slice %641 {offsets = [0, 128], sizes = [8, 128], strides = [1, 1]} : vector<8x512xf32> to vector<8x128xf32>
    %644 = vector.extract_strided_slice %641 {offsets = [0, 256], sizes = [8, 128], strides = [1, 1]} : vector<8x512xf32> to vector<8x128xf32>
    %645 = vector.extract_strided_slice %641 {offsets = [0, 384], sizes = [8, 128], strides = [1, 1]} : vector<8x512xf32> to vector<8x128xf32>
    %cst_131 = arith.constant 2.000000e+00 : f32
    %646 = vector.broadcast %cst_131 : f32 to vector<8x128xf32>
    %647 = arith.mulf %646, %645 : vector<8x128xf32>
    %cst_132 = arith.constant 1.000000e+00 : f32
    %648 = vector.broadcast %cst_132 : f32 to vector<8x128xf32>
    %649 = arith.subf %647, %648 : vector<8x128xf32>
    %650 = arith.mulf %643, %552 : vector<8x128xf32>
    %651 = arith.mulf %642, %649 : vector<8x128xf32>
    %652 = arith.addf %650, %651 : vector<8x128xf32>
    %653 = math.tanh %652 : vector<8x128xf32>
    %654 = arith.mulf %644, %653 : vector<8x128xf32>
    %c1_i32_133 = arith.constant 1 : i32
    %655 = arith.cmpi sge, %c5_i32, %c1_i32_133 : i32
    %c9_i32_134 = arith.constant 9 : i32
    %656 = arith.cmpi slt, %c5_i32, %c9_i32_134 : i32
    %657 = arith.andi %655, %656 : i1
    %658 = arith.extui %657 : i1 to i32
    %659 = arith.sitofp %658 : i32 to f32
    %660 = arith.subf %654, %548 : vector<8x128xf32>
    %661 = vector.broadcast %659 : f32 to vector<8x128xf32>
    %662 = arith.mulf %661, %660 : vector<8x128xf32>
    %663 = arith.addf %548, %662 : vector<8x128xf32>
    %664 = arith.subf %652, %552 : vector<8x128xf32>
    %665 = vector.broadcast %659 : f32 to vector<8x128xf32>
    %666 = arith.mulf %665, %664 : vector<8x128xf32>
    %667 = arith.addf %552, %666 : vector<8x128xf32>
    %668 = vector.extract_strided_slice %594 {offsets = [0, 512], sizes = [8, 512], strides = [1, 1]} : vector<8x1024xf32> to vector<8x512xf32>
    %669 = arith.addf %668, %596 : vector<8x512xf32>
    %670 = vector.broadcast %11 : vector<1x512xf32> to vector<8x512xf32>
    %671 = arith.addf %669, %670 : vector<8x512xf32>
    %672 = arith.negf %671 : vector<8x512xf32>
    %673 = math.exp %672 : vector<8x512xf32>
    %cst_135 = arith.constant 1.000000e+00 : f32
    %674 = vector.broadcast %cst_135 : f32 to vector<8x512xf32>
    %675 = arith.addf %674, %673 : vector<8x512xf32>
    %676 = arith.divf %674, %675 : vector<8x512xf32>
    %677 = vector.extract_strided_slice %676 {offsets = [0, 0], sizes = [8, 128], strides = [1, 1]} : vector<8x512xf32> to vector<8x128xf32>
    %678 = vector.extract_strided_slice %676 {offsets = [0, 128], sizes = [8, 128], strides = [1, 1]} : vector<8x512xf32> to vector<8x128xf32>
    %679 = vector.extract_strided_slice %676 {offsets = [0, 256], sizes = [8, 128], strides = [1, 1]} : vector<8x512xf32> to vector<8x128xf32>
    %680 = vector.extract_strided_slice %676 {offsets = [0, 384], sizes = [8, 128], strides = [1, 1]} : vector<8x512xf32> to vector<8x128xf32>
    %cst_136 = arith.constant 2.000000e+00 : f32
    %681 = vector.broadcast %cst_136 : f32 to vector<8x128xf32>
    %682 = arith.mulf %681, %680 : vector<8x128xf32>
    %cst_137 = arith.constant 1.000000e+00 : f32
    %683 = vector.broadcast %cst_137 : f32 to vector<8x128xf32>
    %684 = arith.subf %682, %683 : vector<8x128xf32>
    %685 = arith.mulf %678, %587 : vector<8x128xf32>
    %686 = arith.mulf %677, %684 : vector<8x128xf32>
    %687 = arith.addf %685, %686 : vector<8x128xf32>
    %688 = math.tanh %687 : vector<8x128xf32>
    %689 = arith.mulf %679, %688 : vector<8x128xf32>
    %c2_i32_138 = arith.constant 2 : i32
    %690 = arith.cmpi sge, %c5_i32, %c2_i32_138 : i32
    %c10_i32_139 = arith.constant 10 : i32
    %691 = arith.cmpi slt, %c5_i32, %c10_i32_139 : i32
    %692 = arith.andi %690, %691 : i1
    %693 = arith.extui %692 : i1 to i32
    %694 = arith.sitofp %693 : i32 to f32
    %695 = arith.subf %689, %583 : vector<8x128xf32>
    %696 = vector.broadcast %694 : f32 to vector<8x128xf32>
    %697 = arith.mulf %696, %695 : vector<8x128xf32>
    %698 = arith.addf %583, %697 : vector<8x128xf32>
    %699 = arith.subf %687, %587 : vector<8x128xf32>
    %700 = vector.broadcast %694 : f32 to vector<8x128xf32>
    %701 = arith.mulf %700, %699 : vector<8x128xf32>
    %702 = arith.addf %587, %701 : vector<8x128xf32>
    %c6_i32 = arith.constant 6 : i32
    %c7_i32_140 = arith.constant 7 : i32
    %703 = arith.minsi %c6_i32, %c7_i32_140 : i32
    %c8_i32_141 = arith.constant 8 : i32
    %704 = arith.muli %703, %c8_i32_141 : i32
    %705 = tpu.assume_multiple %704, 8 : i32
    %706 = arith.truncf %627 : vector<8x128xf32> to vector<8x128xbf16>
    %cst_142 = arith.constant dense<0.000000e+00> : vector<8x1024xf32>
    %707 = tpu.matmul %706, %7, %cst_142 {dimension_numbers = #tpu.dot_dimension_numbers<[1], [0], [0], [1], [0, 0, 1, 1], [], []>} : vector<8x128xbf16>, vector<128x1024xbf16>, vector<8x1024xf32> -> vector<8x1024xf32>
    %708 = arith.truncf %663 : vector<8x128xf32> to vector<8x128xbf16>
    %cst_143 = arith.constant dense<0.000000e+00> : vector<8x1024xf32>
    %709 = tpu.matmul %708, %8, %cst_143 {dimension_numbers = #tpu.dot_dimension_numbers<[1], [0], [0], [1], [0, 0, 1, 1], [], []>} : vector<8x128xbf16>, vector<128x1024xbf16>, vector<8x1024xf32> -> vector<8x1024xf32>
    %710 = arith.truncf %698 : vector<8x128xf32> to vector<8x128xbf16>
    %cst_144 = arith.constant dense<0.000000e+00> : vector<8x512xf32>
    %711 = tpu.matmul %710, %9, %cst_144 {dimension_numbers = #tpu.dot_dimension_numbers<[1], [0], [0], [1], [0, 0, 1, 1], [], []>} : vector<8x128xbf16>, vector<128x512xbf16>, vector<8x512xf32> -> vector<8x512xf32>
    %712 = arith.index_cast %705 : i32 to index
    %c0_145 = arith.constant 0 : index
    %713 = vector.load %arg12[%712, %c0_145] : memref<64x512xf32, #tpu.memory_space<vmem>>, vector<8x512xf32>
    %714 = vector.extract_strided_slice %707 {offsets = [0, 0], sizes = [8, 512], strides = [1, 1]} : vector<8x1024xf32> to vector<8x512xf32>
    %715 = arith.addf %713, %714 : vector<8x512xf32>
    %716 = arith.negf %715 : vector<8x512xf32>
    %717 = math.exp %716 : vector<8x512xf32>
    %cst_146 = arith.constant 1.000000e+00 : f32
    %718 = vector.broadcast %cst_146 : f32 to vector<8x512xf32>
    %719 = arith.addf %718, %717 : vector<8x512xf32>
    %720 = arith.divf %718, %719 : vector<8x512xf32>
    %721 = vector.extract_strided_slice %720 {offsets = [0, 0], sizes = [8, 128], strides = [1, 1]} : vector<8x512xf32> to vector<8x128xf32>
    %722 = vector.extract_strided_slice %720 {offsets = [0, 128], sizes = [8, 128], strides = [1, 1]} : vector<8x512xf32> to vector<8x128xf32>
    %723 = vector.extract_strided_slice %720 {offsets = [0, 256], sizes = [8, 128], strides = [1, 1]} : vector<8x512xf32> to vector<8x128xf32>
    %724 = vector.extract_strided_slice %720 {offsets = [0, 384], sizes = [8, 128], strides = [1, 1]} : vector<8x512xf32> to vector<8x128xf32>
    %cst_147 = arith.constant 2.000000e+00 : f32
    %725 = vector.broadcast %cst_147 : f32 to vector<8x128xf32>
    %726 = arith.mulf %725, %724 : vector<8x128xf32>
    %cst_148 = arith.constant 1.000000e+00 : f32
    %727 = vector.broadcast %cst_148 : f32 to vector<8x128xf32>
    %728 = arith.subf %726, %727 : vector<8x128xf32>
    %729 = arith.mulf %722, %631 : vector<8x128xf32>
    %730 = arith.mulf %721, %728 : vector<8x128xf32>
    %731 = arith.addf %729, %730 : vector<8x128xf32>
    %732 = math.tanh %731 : vector<8x128xf32>
    %733 = arith.mulf %723, %732 : vector<8x128xf32>
    %c0_i32_149 = arith.constant 0 : i32
    %734 = arith.cmpi sge, %c6_i32, %c0_i32_149 : i32
    %c8_i32_150 = arith.constant 8 : i32
    %735 = arith.cmpi slt, %c6_i32, %c8_i32_150 : i32
    %736 = arith.andi %734, %735 : i1
    %737 = arith.extui %736 : i1 to i32
    %738 = arith.sitofp %737 : i32 to f32
    %739 = arith.subf %733, %627 : vector<8x128xf32>
    %740 = vector.broadcast %738 : f32 to vector<8x128xf32>
    %741 = arith.mulf %740, %739 : vector<8x128xf32>
    %742 = arith.addf %627, %741 : vector<8x128xf32>
    %743 = arith.subf %731, %631 : vector<8x128xf32>
    %744 = vector.broadcast %738 : f32 to vector<8x128xf32>
    %745 = arith.mulf %744, %743 : vector<8x128xf32>
    %746 = arith.addf %631, %745 : vector<8x128xf32>
    %747 = vector.extract_strided_slice %707 {offsets = [0, 512], sizes = [8, 512], strides = [1, 1]} : vector<8x1024xf32> to vector<8x512xf32>
    %748 = vector.extract_strided_slice %709 {offsets = [0, 0], sizes = [8, 512], strides = [1, 1]} : vector<8x1024xf32> to vector<8x512xf32>
    %749 = arith.addf %747, %748 : vector<8x512xf32>
    %750 = vector.broadcast %10 : vector<1x512xf32> to vector<8x512xf32>
    %751 = arith.addf %749, %750 : vector<8x512xf32>
    %752 = arith.negf %751 : vector<8x512xf32>
    %753 = math.exp %752 : vector<8x512xf32>
    %cst_151 = arith.constant 1.000000e+00 : f32
    %754 = vector.broadcast %cst_151 : f32 to vector<8x512xf32>
    %755 = arith.addf %754, %753 : vector<8x512xf32>
    %756 = arith.divf %754, %755 : vector<8x512xf32>
    %757 = vector.extract_strided_slice %756 {offsets = [0, 0], sizes = [8, 128], strides = [1, 1]} : vector<8x512xf32> to vector<8x128xf32>
    %758 = vector.extract_strided_slice %756 {offsets = [0, 128], sizes = [8, 128], strides = [1, 1]} : vector<8x512xf32> to vector<8x128xf32>
    %759 = vector.extract_strided_slice %756 {offsets = [0, 256], sizes = [8, 128], strides = [1, 1]} : vector<8x512xf32> to vector<8x128xf32>
    %760 = vector.extract_strided_slice %756 {offsets = [0, 384], sizes = [8, 128], strides = [1, 1]} : vector<8x512xf32> to vector<8x128xf32>
    %cst_152 = arith.constant 2.000000e+00 : f32
    %761 = vector.broadcast %cst_152 : f32 to vector<8x128xf32>
    %762 = arith.mulf %761, %760 : vector<8x128xf32>
    %cst_153 = arith.constant 1.000000e+00 : f32
    %763 = vector.broadcast %cst_153 : f32 to vector<8x128xf32>
    %764 = arith.subf %762, %763 : vector<8x128xf32>
    %765 = arith.mulf %758, %667 : vector<8x128xf32>
    %766 = arith.mulf %757, %764 : vector<8x128xf32>
    %767 = arith.addf %765, %766 : vector<8x128xf32>
    %768 = math.tanh %767 : vector<8x128xf32>
    %769 = arith.mulf %759, %768 : vector<8x128xf32>
    %c1_i32_154 = arith.constant 1 : i32
    %770 = arith.cmpi sge, %c6_i32, %c1_i32_154 : i32
    %c9_i32_155 = arith.constant 9 : i32
    %771 = arith.cmpi slt, %c6_i32, %c9_i32_155 : i32
    %772 = arith.andi %770, %771 : i1
    %773 = arith.extui %772 : i1 to i32
    %774 = arith.sitofp %773 : i32 to f32
    %775 = arith.subf %769, %663 : vector<8x128xf32>
    %776 = vector.broadcast %774 : f32 to vector<8x128xf32>
    %777 = arith.mulf %776, %775 : vector<8x128xf32>
    %778 = arith.addf %663, %777 : vector<8x128xf32>
    %779 = arith.subf %767, %667 : vector<8x128xf32>
    %780 = vector.broadcast %774 : f32 to vector<8x128xf32>
    %781 = arith.mulf %780, %779 : vector<8x128xf32>
    %782 = arith.addf %667, %781 : vector<8x128xf32>
    %783 = vector.extract_strided_slice %709 {offsets = [0, 512], sizes = [8, 512], strides = [1, 1]} : vector<8x1024xf32> to vector<8x512xf32>
    %784 = arith.addf %783, %711 : vector<8x512xf32>
    %785 = vector.broadcast %11 : vector<1x512xf32> to vector<8x512xf32>
    %786 = arith.addf %784, %785 : vector<8x512xf32>
    %787 = arith.negf %786 : vector<8x512xf32>
    %788 = math.exp %787 : vector<8x512xf32>
    %cst_156 = arith.constant 1.000000e+00 : f32
    %789 = vector.broadcast %cst_156 : f32 to vector<8x512xf32>
    %790 = arith.addf %789, %788 : vector<8x512xf32>
    %791 = arith.divf %789, %790 : vector<8x512xf32>
    %792 = vector.extract_strided_slice %791 {offsets = [0, 0], sizes = [8, 128], strides = [1, 1]} : vector<8x512xf32> to vector<8x128xf32>
    %793 = vector.extract_strided_slice %791 {offsets = [0, 128], sizes = [8, 128], strides = [1, 1]} : vector<8x512xf32> to vector<8x128xf32>
    %794 = vector.extract_strided_slice %791 {offsets = [0, 256], sizes = [8, 128], strides = [1, 1]} : vector<8x512xf32> to vector<8x128xf32>
    %795 = vector.extract_strided_slice %791 {offsets = [0, 384], sizes = [8, 128], strides = [1, 1]} : vector<8x512xf32> to vector<8x128xf32>
    %cst_157 = arith.constant 2.000000e+00 : f32
    %796 = vector.broadcast %cst_157 : f32 to vector<8x128xf32>
    %797 = arith.mulf %796, %795 : vector<8x128xf32>
    %cst_158 = arith.constant 1.000000e+00 : f32
    %798 = vector.broadcast %cst_158 : f32 to vector<8x128xf32>
    %799 = arith.subf %797, %798 : vector<8x128xf32>
    %800 = arith.mulf %793, %702 : vector<8x128xf32>
    %801 = arith.mulf %792, %799 : vector<8x128xf32>
    %802 = arith.addf %800, %801 : vector<8x128xf32>
    %803 = math.tanh %802 : vector<8x128xf32>
    %804 = arith.mulf %794, %803 : vector<8x128xf32>
    %c2_i32_159 = arith.constant 2 : i32
    %805 = arith.cmpi sge, %c6_i32, %c2_i32_159 : i32
    %c10_i32_160 = arith.constant 10 : i32
    %806 = arith.cmpi slt, %c6_i32, %c10_i32_160 : i32
    %807 = arith.andi %805, %806 : i1
    %808 = arith.extui %807 : i1 to i32
    %809 = arith.sitofp %808 : i32 to f32
    %810 = arith.subf %804, %698 : vector<8x128xf32>
    %811 = vector.broadcast %809 : f32 to vector<8x128xf32>
    %812 = arith.mulf %811, %810 : vector<8x128xf32>
    %813 = arith.addf %698, %812 : vector<8x128xf32>
    %814 = arith.subf %802, %702 : vector<8x128xf32>
    %815 = vector.broadcast %809 : f32 to vector<8x128xf32>
    %816 = arith.mulf %815, %814 : vector<8x128xf32>
    %817 = arith.addf %702, %816 : vector<8x128xf32>
    %c7_i32_161 = arith.constant 7 : i32
    %c7_i32_162 = arith.constant 7 : i32
    %818 = arith.minsi %c7_i32_161, %c7_i32_162 : i32
    %c8_i32_163 = arith.constant 8 : i32
    %819 = arith.muli %818, %c8_i32_163 : i32
    %820 = tpu.assume_multiple %819, 8 : i32
    %821 = arith.truncf %742 : vector<8x128xf32> to vector<8x128xbf16>
    %cst_164 = arith.constant dense<0.000000e+00> : vector<8x1024xf32>
    %822 = tpu.matmul %821, %7, %cst_164 {dimension_numbers = #tpu.dot_dimension_numbers<[1], [0], [0], [1], [0, 0, 1, 1], [], []>} : vector<8x128xbf16>, vector<128x1024xbf16>, vector<8x1024xf32> -> vector<8x1024xf32>
    %823 = arith.truncf %778 : vector<8x128xf32> to vector<8x128xbf16>
    %cst_165 = arith.constant dense<0.000000e+00> : vector<8x1024xf32>
    %824 = tpu.matmul %823, %8, %cst_165 {dimension_numbers = #tpu.dot_dimension_numbers<[1], [0], [0], [1], [0, 0, 1, 1], [], []>} : vector<8x128xbf16>, vector<128x1024xbf16>, vector<8x1024xf32> -> vector<8x1024xf32>
    %825 = arith.truncf %813 : vector<8x128xf32> to vector<8x128xbf16>
    %cst_166 = arith.constant dense<0.000000e+00> : vector<8x512xf32>
    %826 = tpu.matmul %825, %9, %cst_166 {dimension_numbers = #tpu.dot_dimension_numbers<[1], [0], [0], [1], [0, 0, 1, 1], [], []>} : vector<8x128xbf16>, vector<128x512xbf16>, vector<8x512xf32> -> vector<8x512xf32>
    %827 = arith.index_cast %820 : i32 to index
    %c0_167 = arith.constant 0 : index
    %828 = vector.load %arg12[%827, %c0_167] : memref<64x512xf32, #tpu.memory_space<vmem>>, vector<8x512xf32>
    %829 = vector.extract_strided_slice %822 {offsets = [0, 0], sizes = [8, 512], strides = [1, 1]} : vector<8x1024xf32> to vector<8x512xf32>
    %830 = arith.addf %828, %829 : vector<8x512xf32>
    %831 = arith.negf %830 : vector<8x512xf32>
    %832 = math.exp %831 : vector<8x512xf32>
    %cst_168 = arith.constant 1.000000e+00 : f32
    %833 = vector.broadcast %cst_168 : f32 to vector<8x512xf32>
    %834 = arith.addf %833, %832 : vector<8x512xf32>
    %835 = arith.divf %833, %834 : vector<8x512xf32>
    %836 = vector.extract_strided_slice %835 {offsets = [0, 0], sizes = [8, 128], strides = [1, 1]} : vector<8x512xf32> to vector<8x128xf32>
    %837 = vector.extract_strided_slice %835 {offsets = [0, 128], sizes = [8, 128], strides = [1, 1]} : vector<8x512xf32> to vector<8x128xf32>
    %838 = vector.extract_strided_slice %835 {offsets = [0, 256], sizes = [8, 128], strides = [1, 1]} : vector<8x512xf32> to vector<8x128xf32>
    %839 = vector.extract_strided_slice %835 {offsets = [0, 384], sizes = [8, 128], strides = [1, 1]} : vector<8x512xf32> to vector<8x128xf32>
    %cst_169 = arith.constant 2.000000e+00 : f32
    %840 = vector.broadcast %cst_169 : f32 to vector<8x128xf32>
    %841 = arith.mulf %840, %839 : vector<8x128xf32>
    %cst_170 = arith.constant 1.000000e+00 : f32
    %842 = vector.broadcast %cst_170 : f32 to vector<8x128xf32>
    %843 = arith.subf %841, %842 : vector<8x128xf32>
    %844 = arith.mulf %837, %746 : vector<8x128xf32>
    %845 = arith.mulf %836, %843 : vector<8x128xf32>
    %846 = arith.addf %844, %845 : vector<8x128xf32>
    %847 = math.tanh %846 : vector<8x128xf32>
    %848 = arith.mulf %838, %847 : vector<8x128xf32>
    %c0_i32_171 = arith.constant 0 : i32
    %849 = arith.cmpi sge, %c7_i32_161, %c0_i32_171 : i32
    %c8_i32_172 = arith.constant 8 : i32
    %850 = arith.cmpi slt, %c7_i32_161, %c8_i32_172 : i32
    %851 = arith.andi %849, %850 : i1
    %852 = arith.extui %851 : i1 to i32
    %853 = arith.sitofp %852 : i32 to f32
    %854 = arith.subf %848, %742 : vector<8x128xf32>
    %855 = vector.broadcast %853 : f32 to vector<8x128xf32>
    %856 = arith.mulf %855, %854 : vector<8x128xf32>
    %857 = arith.addf %742, %856 : vector<8x128xf32>
    %858 = arith.subf %846, %746 : vector<8x128xf32>
    %859 = vector.broadcast %853 : f32 to vector<8x128xf32>
    %860 = arith.mulf %859, %858 : vector<8x128xf32>
    %861 = arith.addf %746, %860 : vector<8x128xf32>
    %862 = vector.extract_strided_slice %822 {offsets = [0, 512], sizes = [8, 512], strides = [1, 1]} : vector<8x1024xf32> to vector<8x512xf32>
    %863 = vector.extract_strided_slice %824 {offsets = [0, 0], sizes = [8, 512], strides = [1, 1]} : vector<8x1024xf32> to vector<8x512xf32>
    %864 = arith.addf %862, %863 : vector<8x512xf32>
    %865 = vector.broadcast %10 : vector<1x512xf32> to vector<8x512xf32>
    %866 = arith.addf %864, %865 : vector<8x512xf32>
    %867 = arith.negf %866 : vector<8x512xf32>
    %868 = math.exp %867 : vector<8x512xf32>
    %cst_173 = arith.constant 1.000000e+00 : f32
    %869 = vector.broadcast %cst_173 : f32 to vector<8x512xf32>
    %870 = arith.addf %869, %868 : vector<8x512xf32>
    %871 = arith.divf %869, %870 : vector<8x512xf32>
    %872 = vector.extract_strided_slice %871 {offsets = [0, 0], sizes = [8, 128], strides = [1, 1]} : vector<8x512xf32> to vector<8x128xf32>
    %873 = vector.extract_strided_slice %871 {offsets = [0, 128], sizes = [8, 128], strides = [1, 1]} : vector<8x512xf32> to vector<8x128xf32>
    %874 = vector.extract_strided_slice %871 {offsets = [0, 256], sizes = [8, 128], strides = [1, 1]} : vector<8x512xf32> to vector<8x128xf32>
    %875 = vector.extract_strided_slice %871 {offsets = [0, 384], sizes = [8, 128], strides = [1, 1]} : vector<8x512xf32> to vector<8x128xf32>
    %cst_174 = arith.constant 2.000000e+00 : f32
    %876 = vector.broadcast %cst_174 : f32 to vector<8x128xf32>
    %877 = arith.mulf %876, %875 : vector<8x128xf32>
    %cst_175 = arith.constant 1.000000e+00 : f32
    %878 = vector.broadcast %cst_175 : f32 to vector<8x128xf32>
    %879 = arith.subf %877, %878 : vector<8x128xf32>
    %880 = arith.mulf %873, %782 : vector<8x128xf32>
    %881 = arith.mulf %872, %879 : vector<8x128xf32>
    %882 = arith.addf %880, %881 : vector<8x128xf32>
    %883 = math.tanh %882 : vector<8x128xf32>
    %884 = arith.mulf %874, %883 : vector<8x128xf32>
    %c1_i32_176 = arith.constant 1 : i32
    %885 = arith.cmpi sge, %c7_i32_161, %c1_i32_176 : i32
    %c9_i32_177 = arith.constant 9 : i32
    %886 = arith.cmpi slt, %c7_i32_161, %c9_i32_177 : i32
    %887 = arith.andi %885, %886 : i1
    %888 = arith.extui %887 : i1 to i32
    %889 = arith.sitofp %888 : i32 to f32
    %890 = arith.subf %884, %778 : vector<8x128xf32>
    %891 = vector.broadcast %889 : f32 to vector<8x128xf32>
    %892 = arith.mulf %891, %890 : vector<8x128xf32>
    %893 = arith.addf %778, %892 : vector<8x128xf32>
    %894 = arith.subf %882, %782 : vector<8x128xf32>
    %895 = vector.broadcast %889 : f32 to vector<8x128xf32>
    %896 = arith.mulf %895, %894 : vector<8x128xf32>
    %897 = arith.addf %782, %896 : vector<8x128xf32>
    %898 = vector.extract_strided_slice %824 {offsets = [0, 512], sizes = [8, 512], strides = [1, 1]} : vector<8x1024xf32> to vector<8x512xf32>
    %899 = arith.addf %898, %826 : vector<8x512xf32>
    %900 = vector.broadcast %11 : vector<1x512xf32> to vector<8x512xf32>
    %901 = arith.addf %899, %900 : vector<8x512xf32>
    %902 = arith.negf %901 : vector<8x512xf32>
    %903 = math.exp %902 : vector<8x512xf32>
    %cst_178 = arith.constant 1.000000e+00 : f32
    %904 = vector.broadcast %cst_178 : f32 to vector<8x512xf32>
    %905 = arith.addf %904, %903 : vector<8x512xf32>
    %906 = arith.divf %904, %905 : vector<8x512xf32>
    %907 = vector.extract_strided_slice %906 {offsets = [0, 0], sizes = [8, 128], strides = [1, 1]} : vector<8x512xf32> to vector<8x128xf32>
    %908 = vector.extract_strided_slice %906 {offsets = [0, 128], sizes = [8, 128], strides = [1, 1]} : vector<8x512xf32> to vector<8x128xf32>
    %909 = vector.extract_strided_slice %906 {offsets = [0, 256], sizes = [8, 128], strides = [1, 1]} : vector<8x512xf32> to vector<8x128xf32>
    %910 = vector.extract_strided_slice %906 {offsets = [0, 384], sizes = [8, 128], strides = [1, 1]} : vector<8x512xf32> to vector<8x128xf32>
    %cst_179 = arith.constant 2.000000e+00 : f32
    %911 = vector.broadcast %cst_179 : f32 to vector<8x128xf32>
    %912 = arith.mulf %911, %910 : vector<8x128xf32>
    %cst_180 = arith.constant 1.000000e+00 : f32
    %913 = vector.broadcast %cst_180 : f32 to vector<8x128xf32>
    %914 = arith.subf %912, %913 : vector<8x128xf32>
    %915 = arith.mulf %908, %817 : vector<8x128xf32>
    %916 = arith.mulf %907, %914 : vector<8x128xf32>
    %917 = arith.addf %915, %916 : vector<8x128xf32>
    %918 = math.tanh %917 : vector<8x128xf32>
    %919 = arith.mulf %909, %918 : vector<8x128xf32>
    %c2_i32_181 = arith.constant 2 : i32
    %920 = arith.cmpi sge, %c7_i32_161, %c2_i32_181 : i32
    %c10_i32_182 = arith.constant 10 : i32
    %921 = arith.cmpi slt, %c7_i32_161, %c10_i32_182 : i32
    %922 = arith.andi %920, %921 : i1
    %923 = arith.extui %922 : i1 to i32
    %924 = arith.sitofp %923 : i32 to f32
    %925 = arith.subf %919, %813 : vector<8x128xf32>
    %926 = vector.broadcast %924 : f32 to vector<8x128xf32>
    %927 = arith.mulf %926, %925 : vector<8x128xf32>
    %928 = arith.addf %813, %927 : vector<8x128xf32>
    %929 = arith.subf %917, %817 : vector<8x128xf32>
    %930 = vector.broadcast %924 : f32 to vector<8x128xf32>
    %931 = arith.mulf %930, %929 : vector<8x128xf32>
    %932 = arith.addf %817, %931 : vector<8x128xf32>
    %c8_i32_183 = arith.constant 8 : i32
    %c7_i32_184 = arith.constant 7 : i32
    %933 = arith.minsi %c8_i32_183, %c7_i32_184 : i32
    %c8_i32_185 = arith.constant 8 : i32
    %934 = arith.muli %933, %c8_i32_185 : i32
    %935 = tpu.assume_multiple %934, 8 : i32
    %936 = arith.truncf %857 : vector<8x128xf32> to vector<8x128xbf16>
    %cst_186 = arith.constant dense<0.000000e+00> : vector<8x1024xf32>
    %937 = tpu.matmul %936, %7, %cst_186 {dimension_numbers = #tpu.dot_dimension_numbers<[1], [0], [0], [1], [0, 0, 1, 1], [], []>} : vector<8x128xbf16>, vector<128x1024xbf16>, vector<8x1024xf32> -> vector<8x1024xf32>
    %938 = arith.truncf %893 : vector<8x128xf32> to vector<8x128xbf16>
    %cst_187 = arith.constant dense<0.000000e+00> : vector<8x1024xf32>
    %939 = tpu.matmul %938, %8, %cst_187 {dimension_numbers = #tpu.dot_dimension_numbers<[1], [0], [0], [1], [0, 0, 1, 1], [], []>} : vector<8x128xbf16>, vector<128x1024xbf16>, vector<8x1024xf32> -> vector<8x1024xf32>
    %940 = arith.truncf %928 : vector<8x128xf32> to vector<8x128xbf16>
    %cst_188 = arith.constant dense<0.000000e+00> : vector<8x512xf32>
    %941 = tpu.matmul %940, %9, %cst_188 {dimension_numbers = #tpu.dot_dimension_numbers<[1], [0], [0], [1], [0, 0, 1, 1], [], []>} : vector<8x128xbf16>, vector<128x512xbf16>, vector<8x512xf32> -> vector<8x512xf32>
    %942 = arith.index_cast %935 : i32 to index
    %c0_189 = arith.constant 0 : index
    %943 = vector.load %arg12[%942, %c0_189] : memref<64x512xf32, #tpu.memory_space<vmem>>, vector<8x512xf32>
    %944 = vector.extract_strided_slice %937 {offsets = [0, 0], sizes = [8, 512], strides = [1, 1]} : vector<8x1024xf32> to vector<8x512xf32>
    %945 = arith.addf %943, %944 : vector<8x512xf32>
    %946 = arith.negf %945 : vector<8x512xf32>
    %947 = math.exp %946 : vector<8x512xf32>
    %cst_190 = arith.constant 1.000000e+00 : f32
    %948 = vector.broadcast %cst_190 : f32 to vector<8x512xf32>
    %949 = arith.addf %948, %947 : vector<8x512xf32>
    %950 = arith.divf %948, %949 : vector<8x512xf32>
    %951 = vector.extract_strided_slice %950 {offsets = [0, 0], sizes = [8, 128], strides = [1, 1]} : vector<8x512xf32> to vector<8x128xf32>
    %952 = vector.extract_strided_slice %950 {offsets = [0, 128], sizes = [8, 128], strides = [1, 1]} : vector<8x512xf32> to vector<8x128xf32>
    %953 = vector.extract_strided_slice %950 {offsets = [0, 256], sizes = [8, 128], strides = [1, 1]} : vector<8x512xf32> to vector<8x128xf32>
    %954 = vector.extract_strided_slice %950 {offsets = [0, 384], sizes = [8, 128], strides = [1, 1]} : vector<8x512xf32> to vector<8x128xf32>
    %cst_191 = arith.constant 2.000000e+00 : f32
    %955 = vector.broadcast %cst_191 : f32 to vector<8x128xf32>
    %956 = arith.mulf %955, %954 : vector<8x128xf32>
    %cst_192 = arith.constant 1.000000e+00 : f32
    %957 = vector.broadcast %cst_192 : f32 to vector<8x128xf32>
    %958 = arith.subf %956, %957 : vector<8x128xf32>
    %959 = arith.mulf %952, %861 : vector<8x128xf32>
    %960 = arith.mulf %951, %958 : vector<8x128xf32>
    %961 = arith.addf %959, %960 : vector<8x128xf32>
    %962 = math.tanh %961 : vector<8x128xf32>
    %963 = arith.mulf %953, %962 : vector<8x128xf32>
    %c0_i32_193 = arith.constant 0 : i32
    %964 = arith.cmpi sge, %c8_i32_183, %c0_i32_193 : i32
    %c8_i32_194 = arith.constant 8 : i32
    %965 = arith.cmpi slt, %c8_i32_183, %c8_i32_194 : i32
    %966 = arith.andi %964, %965 : i1
    %967 = arith.extui %966 : i1 to i32
    %968 = arith.sitofp %967 : i32 to f32
    %969 = arith.subf %963, %857 : vector<8x128xf32>
    %970 = vector.broadcast %968 : f32 to vector<8x128xf32>
    %971 = arith.mulf %970, %969 : vector<8x128xf32>
    %972 = arith.addf %857, %971 : vector<8x128xf32>
    %973 = arith.subf %961, %861 : vector<8x128xf32>
    %974 = vector.broadcast %968 : f32 to vector<8x128xf32>
    %975 = arith.mulf %974, %973 : vector<8x128xf32>
    %976 = arith.addf %861, %975 : vector<8x128xf32>
    %977 = vector.extract_strided_slice %937 {offsets = [0, 512], sizes = [8, 512], strides = [1, 1]} : vector<8x1024xf32> to vector<8x512xf32>
    %978 = vector.extract_strided_slice %939 {offsets = [0, 0], sizes = [8, 512], strides = [1, 1]} : vector<8x1024xf32> to vector<8x512xf32>
    %979 = arith.addf %977, %978 : vector<8x512xf32>
    %980 = vector.broadcast %10 : vector<1x512xf32> to vector<8x512xf32>
    %981 = arith.addf %979, %980 : vector<8x512xf32>
    %982 = arith.negf %981 : vector<8x512xf32>
    %983 = math.exp %982 : vector<8x512xf32>
    %cst_195 = arith.constant 1.000000e+00 : f32
    %984 = vector.broadcast %cst_195 : f32 to vector<8x512xf32>
    %985 = arith.addf %984, %983 : vector<8x512xf32>
    %986 = arith.divf %984, %985 : vector<8x512xf32>
    %987 = vector.extract_strided_slice %986 {offsets = [0, 0], sizes = [8, 128], strides = [1, 1]} : vector<8x512xf32> to vector<8x128xf32>
    %988 = vector.extract_strided_slice %986 {offsets = [0, 128], sizes = [8, 128], strides = [1, 1]} : vector<8x512xf32> to vector<8x128xf32>
    %989 = vector.extract_strided_slice %986 {offsets = [0, 256], sizes = [8, 128], strides = [1, 1]} : vector<8x512xf32> to vector<8x128xf32>
    %990 = vector.extract_strided_slice %986 {offsets = [0, 384], sizes = [8, 128], strides = [1, 1]} : vector<8x512xf32> to vector<8x128xf32>
    %cst_196 = arith.constant 2.000000e+00 : f32
    %991 = vector.broadcast %cst_196 : f32 to vector<8x128xf32>
    %992 = arith.mulf %991, %990 : vector<8x128xf32>
    %cst_197 = arith.constant 1.000000e+00 : f32
    %993 = vector.broadcast %cst_197 : f32 to vector<8x128xf32>
    %994 = arith.subf %992, %993 : vector<8x128xf32>
    %995 = arith.mulf %988, %897 : vector<8x128xf32>
    %996 = arith.mulf %987, %994 : vector<8x128xf32>
    %997 = arith.addf %995, %996 : vector<8x128xf32>
    %998 = math.tanh %997 : vector<8x128xf32>
    %999 = arith.mulf %989, %998 : vector<8x128xf32>
    %c1_i32_198 = arith.constant 1 : i32
    %1000 = arith.cmpi sge, %c8_i32_183, %c1_i32_198 : i32
    %c9_i32_199 = arith.constant 9 : i32
    %1001 = arith.cmpi slt, %c8_i32_183, %c9_i32_199 : i32
    %1002 = arith.andi %1000, %1001 : i1
    %1003 = arith.extui %1002 : i1 to i32
    %1004 = arith.sitofp %1003 : i32 to f32
    %1005 = arith.subf %999, %893 : vector<8x128xf32>
    %1006 = vector.broadcast %1004 : f32 to vector<8x128xf32>
    %1007 = arith.mulf %1006, %1005 : vector<8x128xf32>
    %1008 = arith.addf %893, %1007 : vector<8x128xf32>
    %1009 = arith.subf %997, %897 : vector<8x128xf32>
    %1010 = vector.broadcast %1004 : f32 to vector<8x128xf32>
    %1011 = arith.mulf %1010, %1009 : vector<8x128xf32>
    %1012 = arith.addf %897, %1011 : vector<8x128xf32>
    %1013 = vector.extract_strided_slice %939 {offsets = [0, 512], sizes = [8, 512], strides = [1, 1]} : vector<8x1024xf32> to vector<8x512xf32>
    %1014 = arith.addf %1013, %941 : vector<8x512xf32>
    %1015 = vector.broadcast %11 : vector<1x512xf32> to vector<8x512xf32>
    %1016 = arith.addf %1014, %1015 : vector<8x512xf32>
    %1017 = arith.negf %1016 : vector<8x512xf32>
    %1018 = math.exp %1017 : vector<8x512xf32>
    %cst_200 = arith.constant 1.000000e+00 : f32
    %1019 = vector.broadcast %cst_200 : f32 to vector<8x512xf32>
    %1020 = arith.addf %1019, %1018 : vector<8x512xf32>
    %1021 = arith.divf %1019, %1020 : vector<8x512xf32>
    %1022 = vector.extract_strided_slice %1021 {offsets = [0, 0], sizes = [8, 128], strides = [1, 1]} : vector<8x512xf32> to vector<8x128xf32>
    %1023 = vector.extract_strided_slice %1021 {offsets = [0, 128], sizes = [8, 128], strides = [1, 1]} : vector<8x512xf32> to vector<8x128xf32>
    %1024 = vector.extract_strided_slice %1021 {offsets = [0, 256], sizes = [8, 128], strides = [1, 1]} : vector<8x512xf32> to vector<8x128xf32>
    %1025 = vector.extract_strided_slice %1021 {offsets = [0, 384], sizes = [8, 128], strides = [1, 1]} : vector<8x512xf32> to vector<8x128xf32>
    %cst_201 = arith.constant 2.000000e+00 : f32
    %1026 = vector.broadcast %cst_201 : f32 to vector<8x128xf32>
    %1027 = arith.mulf %1026, %1025 : vector<8x128xf32>
    %cst_202 = arith.constant 1.000000e+00 : f32
    %1028 = vector.broadcast %cst_202 : f32 to vector<8x128xf32>
    %1029 = arith.subf %1027, %1028 : vector<8x128xf32>
    %1030 = arith.mulf %1023, %932 : vector<8x128xf32>
    %1031 = arith.mulf %1022, %1029 : vector<8x128xf32>
    %1032 = arith.addf %1030, %1031 : vector<8x128xf32>
    %1033 = math.tanh %1032 : vector<8x128xf32>
    %1034 = arith.mulf %1024, %1033 : vector<8x128xf32>
    %c2_i32_203 = arith.constant 2 : i32
    %1035 = arith.cmpi sge, %c8_i32_183, %c2_i32_203 : i32
    %c10_i32_204 = arith.constant 10 : i32
    %1036 = arith.cmpi slt, %c8_i32_183, %c10_i32_204 : i32
    %1037 = arith.andi %1035, %1036 : i1
    %1038 = arith.extui %1037 : i1 to i32
    %1039 = arith.sitofp %1038 : i32 to f32
    %1040 = arith.subf %1034, %928 : vector<8x128xf32>
    %1041 = vector.broadcast %1039 : f32 to vector<8x128xf32>
    %1042 = arith.mulf %1041, %1040 : vector<8x128xf32>
    %1043 = arith.addf %928, %1042 : vector<8x128xf32>
    %1044 = arith.subf %1032, %932 : vector<8x128xf32>
    %1045 = vector.broadcast %1039 : f32 to vector<8x128xf32>
    %1046 = arith.mulf %1045, %1044 : vector<8x128xf32>
    %1047 = arith.addf %932, %1046 : vector<8x128xf32>
    %c9_i32_205 = arith.constant 9 : i32
    %c7_i32_206 = arith.constant 7 : i32
    %1048 = arith.minsi %c9_i32_205, %c7_i32_206 : i32
    %c8_i32_207 = arith.constant 8 : i32
    %1049 = arith.muli %1048, %c8_i32_207 : i32
    %1050 = tpu.assume_multiple %1049, 8 : i32
    %1051 = arith.truncf %972 : vector<8x128xf32> to vector<8x128xbf16>
    %cst_208 = arith.constant dense<0.000000e+00> : vector<8x1024xf32>
    %1052 = tpu.matmul %1051, %7, %cst_208 {dimension_numbers = #tpu.dot_dimension_numbers<[1], [0], [0], [1], [0, 0, 1, 1], [], []>} : vector<8x128xbf16>, vector<128x1024xbf16>, vector<8x1024xf32> -> vector<8x1024xf32>
    %1053 = arith.truncf %1008 : vector<8x128xf32> to vector<8x128xbf16>
    %cst_209 = arith.constant dense<0.000000e+00> : vector<8x1024xf32>
    %1054 = tpu.matmul %1053, %8, %cst_209 {dimension_numbers = #tpu.dot_dimension_numbers<[1], [0], [0], [1], [0, 0, 1, 1], [], []>} : vector<8x128xbf16>, vector<128x1024xbf16>, vector<8x1024xf32> -> vector<8x1024xf32>
    %1055 = arith.truncf %1043 : vector<8x128xf32> to vector<8x128xbf16>
    %cst_210 = arith.constant dense<0.000000e+00> : vector<8x512xf32>
    %1056 = tpu.matmul %1055, %9, %cst_210 {dimension_numbers = #tpu.dot_dimension_numbers<[1], [0], [0], [1], [0, 0, 1, 1], [], []>} : vector<8x128xbf16>, vector<128x512xbf16>, vector<8x512xf32> -> vector<8x512xf32>
    %1057 = arith.index_cast %1050 : i32 to index
    %c0_211 = arith.constant 0 : index
    %1058 = vector.load %arg12[%1057, %c0_211] : memref<64x512xf32, #tpu.memory_space<vmem>>, vector<8x512xf32>
    %1059 = vector.extract_strided_slice %1052 {offsets = [0, 0], sizes = [8, 512], strides = [1, 1]} : vector<8x1024xf32> to vector<8x512xf32>
    %1060 = arith.addf %1058, %1059 : vector<8x512xf32>
    %1061 = arith.negf %1060 : vector<8x512xf32>
    %1062 = math.exp %1061 : vector<8x512xf32>
    %cst_212 = arith.constant 1.000000e+00 : f32
    %1063 = vector.broadcast %cst_212 : f32 to vector<8x512xf32>
    %1064 = arith.addf %1063, %1062 : vector<8x512xf32>
    %1065 = arith.divf %1063, %1064 : vector<8x512xf32>
    %1066 = vector.extract_strided_slice %1065 {offsets = [0, 0], sizes = [8, 128], strides = [1, 1]} : vector<8x512xf32> to vector<8x128xf32>
    %1067 = vector.extract_strided_slice %1065 {offsets = [0, 128], sizes = [8, 128], strides = [1, 1]} : vector<8x512xf32> to vector<8x128xf32>
    %1068 = vector.extract_strided_slice %1065 {offsets = [0, 256], sizes = [8, 128], strides = [1, 1]} : vector<8x512xf32> to vector<8x128xf32>
    %1069 = vector.extract_strided_slice %1065 {offsets = [0, 384], sizes = [8, 128], strides = [1, 1]} : vector<8x512xf32> to vector<8x128xf32>
    %cst_213 = arith.constant 2.000000e+00 : f32
    %1070 = vector.broadcast %cst_213 : f32 to vector<8x128xf32>
    %1071 = arith.mulf %1070, %1069 : vector<8x128xf32>
    %cst_214 = arith.constant 1.000000e+00 : f32
    %1072 = vector.broadcast %cst_214 : f32 to vector<8x128xf32>
    %1073 = arith.subf %1071, %1072 : vector<8x128xf32>
    %1074 = arith.mulf %1067, %976 : vector<8x128xf32>
    %1075 = arith.mulf %1066, %1073 : vector<8x128xf32>
    %1076 = arith.addf %1074, %1075 : vector<8x128xf32>
    %1077 = math.tanh %1076 : vector<8x128xf32>
    %1078 = arith.mulf %1068, %1077 : vector<8x128xf32>
    %c0_i32_215 = arith.constant 0 : i32
    %1079 = arith.cmpi sge, %c9_i32_205, %c0_i32_215 : i32
    %c8_i32_216 = arith.constant 8 : i32
    %1080 = arith.cmpi slt, %c9_i32_205, %c8_i32_216 : i32
    %1081 = arith.andi %1079, %1080 : i1
    %1082 = arith.extui %1081 : i1 to i32
    %1083 = arith.sitofp %1082 : i32 to f32
    %1084 = arith.subf %1078, %972 : vector<8x128xf32>
    %1085 = vector.broadcast %1083 : f32 to vector<8x128xf32>
    %1086 = arith.mulf %1085, %1084 : vector<8x128xf32>
    %1087 = arith.addf %972, %1086 : vector<8x128xf32>
    %1088 = arith.subf %1076, %976 : vector<8x128xf32>
    %1089 = vector.broadcast %1083 : f32 to vector<8x128xf32>
    %1090 = arith.mulf %1089, %1088 : vector<8x128xf32>
    %1091 = arith.addf %976, %1090 : vector<8x128xf32>
    %1092 = vector.extract_strided_slice %1052 {offsets = [0, 512], sizes = [8, 512], strides = [1, 1]} : vector<8x1024xf32> to vector<8x512xf32>
    %1093 = vector.extract_strided_slice %1054 {offsets = [0, 0], sizes = [8, 512], strides = [1, 1]} : vector<8x1024xf32> to vector<8x512xf32>
    %1094 = arith.addf %1092, %1093 : vector<8x512xf32>
    %1095 = vector.broadcast %10 : vector<1x512xf32> to vector<8x512xf32>
    %1096 = arith.addf %1094, %1095 : vector<8x512xf32>
    %1097 = arith.negf %1096 : vector<8x512xf32>
    %1098 = math.exp %1097 : vector<8x512xf32>
    %cst_217 = arith.constant 1.000000e+00 : f32
    %1099 = vector.broadcast %cst_217 : f32 to vector<8x512xf32>
    %1100 = arith.addf %1099, %1098 : vector<8x512xf32>
    %1101 = arith.divf %1099, %1100 : vector<8x512xf32>
    %1102 = vector.extract_strided_slice %1101 {offsets = [0, 0], sizes = [8, 128], strides = [1, 1]} : vector<8x512xf32> to vector<8x128xf32>
    %1103 = vector.extract_strided_slice %1101 {offsets = [0, 128], sizes = [8, 128], strides = [1, 1]} : vector<8x512xf32> to vector<8x128xf32>
    %1104 = vector.extract_strided_slice %1101 {offsets = [0, 256], sizes = [8, 128], strides = [1, 1]} : vector<8x512xf32> to vector<8x128xf32>
    %1105 = vector.extract_strided_slice %1101 {offsets = [0, 384], sizes = [8, 128], strides = [1, 1]} : vector<8x512xf32> to vector<8x128xf32>
    %cst_218 = arith.constant 2.000000e+00 : f32
    %1106 = vector.broadcast %cst_218 : f32 to vector<8x128xf32>
    %1107 = arith.mulf %1106, %1105 : vector<8x128xf32>
    %cst_219 = arith.constant 1.000000e+00 : f32
    %1108 = vector.broadcast %cst_219 : f32 to vector<8x128xf32>
    %1109 = arith.subf %1107, %1108 : vector<8x128xf32>
    %1110 = arith.mulf %1103, %1012 : vector<8x128xf32>
    %1111 = arith.mulf %1102, %1109 : vector<8x128xf32>
    %1112 = arith.addf %1110, %1111 : vector<8x128xf32>
    %1113 = math.tanh %1112 : vector<8x128xf32>
    %1114 = arith.mulf %1104, %1113 : vector<8x128xf32>
    %c1_i32_220 = arith.constant 1 : i32
    %1115 = arith.cmpi sge, %c9_i32_205, %c1_i32_220 : i32
    %c9_i32_221 = arith.constant 9 : i32
    %1116 = arith.cmpi slt, %c9_i32_205, %c9_i32_221 : i32
    %1117 = arith.andi %1115, %1116 : i1
    %1118 = arith.extui %1117 : i1 to i32
    %1119 = arith.sitofp %1118 : i32 to f32
    %1120 = arith.subf %1114, %1008 : vector<8x128xf32>
    %1121 = vector.broadcast %1119 : f32 to vector<8x128xf32>
    %1122 = arith.mulf %1121, %1120 : vector<8x128xf32>
    %1123 = arith.addf %1008, %1122 : vector<8x128xf32>
    %1124 = arith.subf %1112, %1012 : vector<8x128xf32>
    %1125 = vector.broadcast %1119 : f32 to vector<8x128xf32>
    %1126 = arith.mulf %1125, %1124 : vector<8x128xf32>
    %1127 = arith.addf %1012, %1126 : vector<8x128xf32>
    %1128 = vector.extract_strided_slice %1054 {offsets = [0, 512], sizes = [8, 512], strides = [1, 1]} : vector<8x1024xf32> to vector<8x512xf32>
    %1129 = arith.addf %1128, %1056 : vector<8x512xf32>
    %1130 = vector.broadcast %11 : vector<1x512xf32> to vector<8x512xf32>
    %1131 = arith.addf %1129, %1130 : vector<8x512xf32>
    %1132 = arith.negf %1131 : vector<8x512xf32>
    %1133 = math.exp %1132 : vector<8x512xf32>
    %cst_222 = arith.constant 1.000000e+00 : f32
    %1134 = vector.broadcast %cst_222 : f32 to vector<8x512xf32>
    %1135 = arith.addf %1134, %1133 : vector<8x512xf32>
    %1136 = arith.divf %1134, %1135 : vector<8x512xf32>
    %1137 = vector.extract_strided_slice %1136 {offsets = [0, 0], sizes = [8, 128], strides = [1, 1]} : vector<8x512xf32> to vector<8x128xf32>
    %1138 = vector.extract_strided_slice %1136 {offsets = [0, 128], sizes = [8, 128], strides = [1, 1]} : vector<8x512xf32> to vector<8x128xf32>
    %1139 = vector.extract_strided_slice %1136 {offsets = [0, 256], sizes = [8, 128], strides = [1, 1]} : vector<8x512xf32> to vector<8x128xf32>
    %1140 = vector.extract_strided_slice %1136 {offsets = [0, 384], sizes = [8, 128], strides = [1, 1]} : vector<8x512xf32> to vector<8x128xf32>
    %cst_223 = arith.constant 2.000000e+00 : f32
    %1141 = vector.broadcast %cst_223 : f32 to vector<8x128xf32>
    %1142 = arith.mulf %1141, %1140 : vector<8x128xf32>
    %cst_224 = arith.constant 1.000000e+00 : f32
    %1143 = vector.broadcast %cst_224 : f32 to vector<8x128xf32>
    %1144 = arith.subf %1142, %1143 : vector<8x128xf32>
    %1145 = arith.mulf %1138, %1047 : vector<8x128xf32>
    %1146 = arith.mulf %1137, %1144 : vector<8x128xf32>
    %1147 = arith.addf %1145, %1146 : vector<8x128xf32>
    %1148 = math.tanh %1147 : vector<8x128xf32>
    %1149 = arith.mulf %1139, %1148 : vector<8x128xf32>
    %c2_i32_225 = arith.constant 2 : i32
    %1150 = arith.cmpi sge, %c9_i32_205, %c2_i32_225 : i32
    %c10_i32_226 = arith.constant 10 : i32
    %1151 = arith.cmpi slt, %c9_i32_205, %c10_i32_226 : i32
    %1152 = arith.andi %1150, %1151 : i1
    %1153 = arith.extui %1152 : i1 to i32
    %1154 = arith.sitofp %1153 : i32 to f32
    %1155 = arith.subf %1149, %1043 : vector<8x128xf32>
    %1156 = vector.broadcast %1154 : f32 to vector<8x128xf32>
    %1157 = arith.mulf %1156, %1155 : vector<8x128xf32>
    %1158 = arith.addf %1043, %1157 : vector<8x128xf32>
    %1159 = arith.subf %1147, %1047 : vector<8x128xf32>
    %1160 = vector.broadcast %1154 : f32 to vector<8x128xf32>
    %1161 = arith.mulf %1160, %1159 : vector<8x128xf32>
    %1162 = arith.addf %1047, %1161 : vector<8x128xf32>
    %c10_i32_227 = arith.constant 10 : i32
    %1163 = arith.truncf %1158 : vector<8x128xf32> to vector<8x128xbf16>
    %c0_228 = arith.constant 0 : index
    %c0_229 = arith.constant 0 : index
    %1164 = vector.load %arg9[%c0_228, %c0_229] : memref<128x128xbf16, #tpu.memory_space<vmem>>, vector<128x128xbf16>
    %cst_230 = arith.constant dense<0.000000e+00> : vector<8x128xf32>
    %1165 = tpu.matmul %1163, %1164, %cst_230 {dimension_numbers = #tpu.dot_dimension_numbers<[1], [0], [0], [1], [0, 0, 1, 1], [], []>} : vector<8x128xbf16>, vector<128x128xbf16>, vector<8x128xf32> -> vector<8x128xf32>
    %c0_231 = arith.constant 0 : index
    %c0_232 = arith.constant 0 : index
    %1166 = vector.load %arg10[%c0_231, %c0_232] : memref<1x128xf32, #tpu.memory_space<vmem>>, vector<1x128xf32>
    %1167 = vector.broadcast %1166 : vector<1x128xf32> to vector<8x128xf32>
    %1168 = arith.addf %1165, %1167 : vector<8x128xf32>
    %c0_233 = arith.constant 0 : index
    %c0_234 = arith.constant 0 : index
    %1169 = vector.load %arg11[%c0_233, %c0_234] : memref<8x128xf32, #tpu.memory_space<vmem>>, vector<8x128xf32>
    tpu.vector_store %arg11[%c0_233, %c0_234], %1168 {strides = array<i32>} : memref<8x128xf32, #tpu.memory_space<vmem>>, vector<8x128xf32>,
    return
  }
  func.func @transform_0(%arg0: i32) -> (i32, i32) {
    %c0_i32 = arith.constant 0 : i32
    %c0_i32_0 = arith.constant 0 : i32
    %c0_i32_1 = arith.constant 0 : i32
    return %c0_i32, %c0_i32_0 : i32, i32
  }
  func.func @transform_1(%arg0: i32) -> (i32, i32) {
    %c0_i32 = arith.constant 0 : i32
    %c0_i32_0 = arith.constant 0 : i32
    %c0_i32_1 = arith.constant 0 : i32
    return %c0_i32, %c0_i32_0 : i32, i32
  }
  func.func @transform_2(%arg0: i32) -> (i32, i32) {
    %c0_i32 = arith.constant 0 : i32
    %c0_i32_0 = arith.constant 0 : i32
    %c0_i32_1 = arith.constant 0 : i32
    return %c0_i32, %c0_i32_0 : i32, i32
  }
  func.func @transform_3(%arg0: i32) -> (i32, i32) {
    %c0_i32 = arith.constant 0 : i32
    %c0_i32_0 = arith.constant 0 : i32
    %c0_i32_1 = arith.constant 0 : i32
    return %c0_i32, %c0_i32_0 : i32, i32
  }
  func.func @transform_4(%arg0: i32) -> (i32, i32) {
    %c0_i32 = arith.constant 0 : i32
    %c0_i32_0 = arith.constant 0 : i32
    %c0_i32_1 = arith.constant 0 : i32
    return %c0_i32, %c0_i32_0 : i32, i32
  }
  func.func @transform_5(%arg0: i32) -> (i32, i32) {
    %c0_i32 = arith.constant 0 : i32
    %c0_i32_0 = arith.constant 0 : i32
    %c0_i32_1 = arith.constant 0 : i32
    return %c0_i32, %c0_i32_0 : i32, i32
  }
  func.func @transform_6(%arg0: i32) -> (i32, i32) {
    %c0_i32 = arith.constant 0 : i32
    %c0_i32_0 = arith.constant 0 : i32
    %c0_i32_1 = arith.constant 0 : i32
    return %c0_i32, %c0_i32_0 : i32, i32
  }
  func.func @transform_7(%arg0: i32) -> (i32, i32) {
    %c0_i32 = arith.constant 0 : i32
    %c0_i32_0 = arith.constant 0 : i32
    %c0_i32_1 = arith.constant 0 : i32
    return %c0_i32, %c0_i32_0 : i32, i32
  }
  func.func @transform_8(%arg0: i32) -> (i32, i32) {
    %c0_i32 = arith.constant 0 : i32
    %c0_i32_0 = arith.constant 0 : i32
    %c0_i32_1 = arith.constant 0 : i32
    return %c0_i32, %c0_i32_0 : i32, i32
  }
  func.func @transform_9(%arg0: i32) -> (i32, i32) {
    %c0_i32 = arith.constant 0 : i32
    %c0_i32_0 = arith.constant 0 : i32
    %c0_i32_1 = arith.constant 0 : i32
    return %c0_i32, %c0_i32_0 : i32, i32
  }
  func.func @transform_10(%arg0: i32) -> (i32, i32) {
    %c0_i32 = arith.constant 0 : i32
    %c0_i32_0 = arith.constant 0 : i32
    %c0_i32_1 = arith.constant 0 : i32
    return %c0_i32, %c0_i32_0 : i32, i32
  }
}

</mosaic_0001>

<llo_original>
// kernel: lstm_text_generation_forward.1
$region0: #{lstm_text_generation_forward.1}
  #allocation0 [shape = 'u32[]', space=smem, size = 0x4, offset = 0x4, fixed_abs, tag = 'smem constant byte address 0x4 - core index']
  #allocation1 [shape = 'u32[144,128]{1,0:T(1,128)}', space=vmem, size = 0x12000, scoped, tag = 'internal scratch']
  #allocation2 [shape = 'f32[64,512]{1,0:T(8,128)}', space=vmem, size = 0x20000, scoped, tag = 'scratch operand']
  %s0 = inlined_call_operand.vmem [shape: bf16[64,64], index: 0, kind: input, shape index: {}]
  %s1 = inlined_call_operand.vmem [shape: bf16[64,512], index: 1, kind: input, shape index: {}]
  %s2 = inlined_call_operand.vmem [shape: f32[1,512], index: 2, kind: input, shape index: {}]
  %s3 = inlined_call_operand.vmem [shape: bf16[128,1024], index: 3, kind: input, shape index: {}]
  %s4 = inlined_call_operand.vmem [shape: bf16[128,1024], index: 4, kind: input, shape index: {}]
  %s5 = inlined_call_operand.vmem [shape: bf16[128,512], index: 5, kind: input, shape index: {}]
  %s6 = inlined_call_operand.vmem [shape: f32[1,512], index: 6, kind: input, shape index: {}]
  %s7 = inlined_call_operand.vmem [shape: f32[1,512], index: 7, kind: input, shape index: {}]
  %s8 = inlined_call_operand.vmem [shape: bf16[128,128], index: 8, kind: input, shape index: {}]
  %s9 = inlined_call_operand.vmem [shape: f32[1,128], index: 9, kind: input, shape index: {}]
  %s10 = inlined_call_operand.vmem [shape: f32[8,128], index: 10, kind: output, shape index: {}]
  %s11 = sld [smem:[#allocation0]]
  $region50: #{lstm_text_generation_forward.1} parent=0
    _
  %s13 = ssub.s32 1, %s11
  %s14 = scalar_select 0, %s13, %s11
  // Predicated region
  $region2: #{lstm_text_generation_forward.1} parent=0 // pred_check
    _
  $region3: #{lstm_text_generation_forward.1} parent=0 // pred_check_branch
    %16 = sbr.rel (0) target = $region5
  $region4: #{lstm_text_generation_forward.1} parent=0 // pred_region
    _
  $region5: #{lstm_text_generation_forward.1} parent=0 // pred_fallthru
    _
  // Predicated region
  $region6: #{lstm_text_generation_forward.1} parent=0 // pred_check
    _
  $region7: #{lstm_text_generation_forward.1} parent=0 // pred_check_branch
    %18 = sbr.rel (0) target = $region9
  $region8: #{lstm_text_generation_forward.1} parent=0 // pred_region
    _
  $region9: #{lstm_text_generation_forward.1} parent=0 // pred_fallthru
    _
  // Predicated region
  $region10: #{lstm_text_generation_forward.1} parent=0 // pred_check
    _
  $region11: #{lstm_text_generation_forward.1} parent=0 // pred_check_branch
    %20 = sbr.rel (0) target = $region13
  $region12: #{lstm_text_generation_forward.1} parent=0 // pred_region
    _
  $region13: #{lstm_text_generation_forward.1} parent=0 // pred_fallthru
    _
  // Predicated region
  $region14: #{lstm_text_generation_forward.1} parent=0 // pred_check
    _
  $region15: #{lstm_text_generation_forward.1} parent=0 // pred_check_branch
    %22 = sbr.rel (0) target = $region17
  $region16: #{lstm_text_generation_forward.1} parent=0 // pred_region
    _
  $region17: #{lstm_text_generation_forward.1} parent=0 // pred_fallthru
    _
  // Predicated region
  $region18: #{lstm_text_generation_forward.1} parent=0 // pred_check
    _
  $region19: #{lstm_text_generation_forward.1} parent=0 // pred_check_branch
    %24 = sbr.rel (0) target = $region21
  $region20: #{lstm_text_generation_forward.1} parent=0 // pred_region
    _
  $region21: #{lstm_text_generation_forward.1} parent=0 // pred_fallthru
    _
  // Predicated region
  $region22: #{lstm_text_generation_forward.1} parent=0 // pred_check
    _
  $region23: #{lstm_text_generation_forward.1} parent=0 // pred_check_branch
    %26 = sbr.rel (0) target = $region25
  $region24: #{lstm_text_generation_forward.1} parent=0 // pred_region
    _
  $region25: #{lstm_text_generation_forward.1} parent=0 // pred_fallthru
    _
  // Predicated region
  $region26: #{lstm_text_generation_forward.1} parent=0 // pred_check
    _
  $region27: #{lstm_text_generation_forward.1} parent=0 // pred_check_branch
    %28 = sbr.rel (0) target = $region29
  $region28: #{lstm_text_generation_forward.1} parent=0 // pred_region
    _
  $region29: #{lstm_text_generation_forward.1} parent=0 // pred_fallthru
    _
  // Predicated region
  $region30: #{lstm_text_generation_forward.1} parent=0 // pred_check
    _
  $region31: #{lstm_text_generation_forward.1} parent=0 // pred_check_branch
    %30 = sbr.rel (0) target = $region33
  $region32: #{lstm_text_generation_forward.1} parent=0 // pred_region
    _
  $region33: #{lstm_text_generation_forward.1} parent=0 // pred_fallthru
    _
  // Predicated region
  $region34: #{lstm_text_generation_forward.1} parent=0 // pred_check
    _
  $region35: #{lstm_text_generation_forward.1} parent=0 // pred_check_branch
    %32 = sbr.rel (0) target = $region37
  $region36: #{lstm_text_generation_forward.1} parent=0 // pred_region
    _
  $region37: #{lstm_text_generation_forward.1} parent=0 // pred_fallthru
    _
  // Predicated region
  $region38: #{lstm_text_generation_forward.1} parent=0 // pred_check
    _
  $region39: #{lstm_text_generation_forward.1} parent=0 // pred_check_branch
    %34 = sbr.rel (0) target = $region41
  $region40: #{lstm_text_generation_forward.1} parent=0 // pred_region
    _
  $region41: #{lstm_text_generation_forward.1} parent=0 // pred_fallthru
    _
  %v36 = vld [vmem:[%s0] sm:$0xf]
  %v37 = vld [vmem:[%s0 + $0x4] sm:$0xf]
  %v38 = vld [vmem:[%s0 + $0x8] sm:$0xf]
  %v39 = vld [vmem:[%s0 + $0xc] sm:$0xf]
  %v40 = vld [vmem:[%s0 + $0x10] sm:$0xf]
  %v41 = vld [vmem:[%s0 + $0x14] sm:$0xf]
  %v42 = vld [vmem:[%s0 + $0x18] sm:$0xf]
  %v43 = vld [vmem:[%s0 + $0x1c] sm:$0xf]
  %v44 = vld [vmem:[%s1] sm:$0xff]
  %v45 = vld [vmem:[%s1 + $0x8] sm:$0xff]
  %v46 = vld [vmem:[%s1 + $0x10] sm:$0xff]
  %v47 = vld [vmem:[%s1 + $0x18] sm:$0xff]
  %v48 = vld [vmem:[%s1 + $0x20] sm:$0xff]
  %v49 = vld [vmem:[%s1 + $0x28] sm:$0xff]
  %v50 = vld [vmem:[%s1 + $0x30] sm:$0xff]
  %v51 = vld [vmem:[%s1 + $0x38] sm:$0xff]
  %v52 = vld [vmem:[%s1 + $0x40] sm:$0xff]
  %v53 = vld [vmem:[%s1 + $0x48] sm:$0xff]
  %v54 = vld [vmem:[%s1 + $0x50] sm:$0xff]
  %v55 = vld [vmem:[%s1 + $0x58] sm:$0xff]
  %v56 = vld [vmem:[%s1 + $0x60] sm:$0xff]
  %v57 = vld [vmem:[%s1 + $0x68] sm:$0xff]
  %v58 = vld [vmem:[%s1 + $0x70] sm:$0xff]
  %v59 = vld [vmem:[%s1 + $0x78] sm:$0xff]
  %v60 = vld [vmem:[%s2] sm:$0xf]
  %v62 = vlaneseq
  %v63 = vshrl.u32 %v62, 7
  %v64 = vsub.s32 0, %v63
  %v65 = vrot.slane %v60, %v64
  %v66 = vlaneseq
  %v67 = vshrl.u32 %v66, 7
  %v68 = vsub.s32 1, %v67
  %v69 = vrot.slane %v60, %v68
  %v70 = vlaneseq
  %v71 = vshrl.u32 %v70, 7
  %v72 = vsub.s32 2, %v71
  %v73 = vrot.slane %v60, %v72
  %v74 = vlaneseq
  %v75 = vshrl.u32 %v74, 7
  %v76 = vsub.s32 3, %v75
  %v77 = vrot.slane %v60, %v76
  %v90 = vunpack.c.l.b16 %v36
  %v91 = vunpack.c.l.b16 %v37
  %v92 = vunpack.c.l.b16 %v38
  %v93 = vunpack.c.l.b16 %v39
  %v94 = vunpack.c.l.b16 %v40
  %v95 = vunpack.c.l.b16 %v41
  %v96 = vunpack.c.l.b16 %v42
  %v97 = vunpack.c.l.b16 %v43
  %v98 = vpack.c.b16 %v91, %v90
  %v99 = vpack.c.b16 %v93, %v92
  %v100 = vpack.c.b16 %v95, %v94
  %v101 = vpack.c.b16 %v97, %v96
  %v118 = vunpack.c.l.b16 %v44
  %v119 = vunpack.c.h.b16 %v44
  %v120 = vunpack.c.l.b16 %v45
  %v121 = vunpack.c.h.b16 %v45
  %v122 = vunpack.c.l.b16 %v46
  %v123 = vunpack.c.h.b16 %v46
  %v124 = vunpack.c.l.b16 %v47
  %v125 = vunpack.c.h.b16 %v47
  %v126 = vunpack.c.l.b16 %v48
  %v127 = vunpack.c.h.b16 %v48
  %v128 = vunpack.c.l.b16 %v49
  %v129 = vunpack.c.h.b16 %v49
  %v130 = vunpack.c.l.b16 %v50
  %v131 = vunpack.c.h.b16 %v50
  %v132 = vunpack.c.l.b16 %v51
  %v133 = vunpack.c.h.b16 %v51
  %v134 = vunpack.c.l.b16 %v52
  %v135 = vunpack.c.h.b16 %v52
  %v136 = vunpack.c.l.b16 %v53
  %v137 = vunpack.c.h.b16 %v53
  %v138 = vunpack.c.l.b16 %v54
  %v139 = vunpack.c.h.b16 %v54
  %v140 = vunpack.c.l.b16 %v55
  %v141 = vunpack.c.h.b16 %v55
  %v142 = vunpack.c.l.b16 %v56
  %v143 = vunpack.c.h.b16 %v56
  %v144 = vunpack.c.l.b16 %v57
  %v145 = vunpack.c.h.b16 %v57
  %v146 = vunpack.c.l.b16 %v58
  %v147 = vunpack.c.h.b16 %v58
  %v148 = vunpack.c.l.b16 %v59
  %v149 = vunpack.c.h.b16 %v59
  %v150 = vpack.c.b16 %v122, %v118
  %v151 = vpack.c.b16 %v123, %v119
  %v152 = vpack.c.b16 %v124, %v120
  %v153 = vpack.c.b16 %v125, %v121
  %v154 = vpack.c.b16 %v130, %v126
  %v155 = vpack.c.b16 %v131, %v127
  %v156 = vpack.c.b16 %v132, %v128
  %v157 = vpack.c.b16 %v133, %v129
  %v158 = vpack.c.b16 %v138, %v134
  %v159 = vpack.c.b16 %v139, %v135
  %v160 = vpack.c.b16 %v140, %v136
  %v161 = vpack.c.b16 %v141, %v137
  %v162 = vpack.c.b16 %v146, %v142
  %v163 = vpack.c.b16 %v147, %v143
  %v164 = vpack.c.b16 %v148, %v144
  %v165 = vpack.c.b16 %v149, %v145
  %vm182 = vcmask 523264
  %v184 = vsel %vm182, %v98, 0
  %v187 = vsel %vm182, %v99, 0
  %v190 = vsel %vm182, %v100, 0
  %v193 = vsel %vm182, %v101, 0
  %195 = vmatprep.subr.bf16.mxu0 %v151
  %196 = vmatpush1.bf16.msra.mxu0 %v150
  %197 = vmatprep.subr.bf16.mxu0 %v155
  %198 = vmatpush1.bf16.msra.mxu0 %v154
  %199 = vmatprep.subr.bf16.mxu0 %v159
  %200 = vmatpush1.bf16.msra.mxu0 %v158
  %201 = vmatprep.subr.bf16.mxu0 %v163
  %202 = vmatpush1.bf16.msra.mxu0 %v162
  %203 = vmatprep.subr.bf16.mxu0 0
  %204 = vmatpush1.bf16.msra.mxu0 0
  %205 = vmatprep.subr.bf16.mxu0 0
  %206 = vmatpush1.bf16.msra.mxu0 0
  %207 = vmatprep.subr.bf16.mxu0 0
  %208 = vmatpush1.bf16.msra.mxu0 0
  %209 = vmatprep.subr.bf16.mxu0 0
  %210 = vmatpush1.bf16.msra.mxu0 0
  %211 = vmatprep.subr.bf16.mxu0 0
  %212 = vmatpush1.bf16.msra.mxu0 0
  %213 = vmatprep.subr.bf16.mxu0 0
  %214 = vmatpush1.bf16.msra.mxu0 0
  %215 = vmatprep.subr.bf16.mxu0 0
  %216 = vmatpush1.bf16.msra.mxu0 0
  %217 = vmatprep.subr.bf16.mxu0 0
  %218 = vmatpush1.bf16.msra.mxu0 0
  %219 = vmatprep.subr.bf16.mxu0 0
  %220 = vmatpush1.bf16.msra.mxu0 0
  %221 = vmatprep.subr.bf16.mxu0 0
  %222 = vmatpush1.bf16.msra.mxu0 0
  %223 = vmatprep.subr.bf16.mxu0 0
  %224 = vmatpush1.bf16.msra.mxu0 0
  %225 = vmatprep.subr.bf16.mxu0 0
  %226 = vmatpush1.bf16.msra.mxu0 0
  %227 = vmatprep.mubr.bf16.mxu0 0
  %228 = vmatmul.mubr.bf16.gmra.mrb[0].mxu0 %v184
  %v229 = vpop.f32.mrb[0].mxu0
  %v230 = vadd.f32 %v65, %v229
  %v231 = vpop.f32.mrb[0].mxu0
  %v232 = vadd.f32 %v69, %v231
  %v233 = vpop.f32.mrb[0].mxu0
  %v234 = vadd.f32 %v65, %v233
  %v235 = vpop.f32.mrb[0].mxu0
  %v236 = vadd.f32 %v69, %v235
  %237 = vmatprep.mubr.bf16.mxu0 0
  %238 = vmatmul.mubr.bf16.gmra.mrb[0].mxu0 %v187
  %v239 = vpop.f32.mrb[0].mxu0
  %v240 = vadd.f32 %v65, %v239
  %v241 = vpop.f32.mrb[0].mxu0
  %v242 = vadd.f32 %v69, %v241
  %v243 = vpop.f32.mrb[0].mxu0
  %v244 = vadd.f32 %v65, %v243
  %v245 = vpop.f32.mrb[0].mxu0
  %v246 = vadd.f32 %v69, %v245
  %247 = vmatprep.mubr.bf16.mxu0 0
  %248 = vmatmul.mubr.bf16.gmra.mrb[0].mxu0 %v190
  %v249 = vpop.f32.mrb[0].mxu0
  %v250 = vadd.f32 %v65, %v249
  %v251 = vpop.f32.mrb[0].mxu0
  %v252 = vadd.f32 %v69, %v251
  %v253 = vpop.f32.mrb[0].mxu0
  %v254 = vadd.f32 %v65, %v253
  %v255 = vpop.f32.mrb[0].mxu0
  %v256 = vadd.f32 %v69, %v255
  %257 = vmatprep.mubr.bf16.mxu0 0
  %258 = vmatmul.mubr.bf16.gmra.mrb[0].mxu0 %v193
  %v259 = vpop.f32.mrb[0].mxu0
  %v260 = vadd.f32 %v65, %v259
  %v261 = vpop.f32.mrb[0].mxu0
  %v262 = vadd.f32 %v69, %v261
  %v263 = vpop.f32.mrb[0].mxu0
  %v264 = vadd.f32 %v65, %v263
  %v265 = vpop.f32.mrb[0].mxu0
  %v266 = vadd.f32 %v69, %v265
  %267 = vdwg.mxu0
  %268 = vmatprep.subr.bf16.mxu0 %v153
  %269 = vmatpush1.bf16.msra.mxu0 %v152
  %270 = vmatprep.subr.bf16.mxu0 %v157
  %271 = vmatpush1.bf16.msra.mxu0 %v156
  %272 = vmatprep.subr.bf16.mxu0 %v161
  %273 = vmatpush1.bf16.msra.mxu0 %v160
  %274 = vmatprep.subr.bf16.mxu0 %v165
  %275 = vmatpush1.bf16.msra.mxu0 %v164
  %276 = vmatprep.subr.bf16.mxu0 0
  %277 = vmatpush1.bf16.msra.mxu0 0
  %278 = vmatprep.subr.bf16.mxu0 0
  %279 = vmatpush1.bf16.msra.mxu0 0
  %280 = vmatprep.subr.bf16.mxu0 0
  %281 = vmatpush1.bf16.msra.mxu0 0
  %282 = vmatprep.subr.bf16.mxu0 0
  %283 = vmatpush1.bf16.msra.mxu0 0
  %284 = vmatprep.subr.bf16.mxu0 0
  %285 = vmatpush1.bf16.msra.mxu0 0
  %286 = vmatprep.subr.bf16.mxu0 0
  %287 = vmatpush1.bf16.msra.mxu0 0
  %288 = vmatprep.subr.bf16.mxu0 0
  %289 = vmatpush1.bf16.msra.mxu0 0
  %290 = vmatprep.subr.bf16.mxu0 0
  %291 = vmatpush1.bf16.msra.mxu0 0
  %292 = vmatprep.subr.bf16.mxu0 0
  %293 = vmatpush1.bf16.msra.mxu0 0
  %294 = vmatprep.subr.bf16.mxu0 0
  %295 = vmatpush1.bf16.msra.mxu0 0
  %296 = vmatprep.subr.bf16.mxu0 0
  %297 = vmatpush1.bf16.msra.mxu0 0
  %298 = vmatprep.subr.bf16.mxu0 0
  %299 = vmatpush1.bf16.msra.mxu0 0
  %300 = vmatprep.mubr.bf16.mxu0 0
  %301 = vmatmul.mubr.bf16.gmra.mrb[0].mxu0 %v184
  %v302 = vpop.f32.mrb[0].mxu0
  %v303 = vadd.f32 %v73, %v302
  %v304 = vpop.f32.mrb[0].mxu0
  %v305 = vadd.f32 %v77, %v304
  %v306 = vpop.f32.mrb[0].mxu0
  %v307 = vadd.f32 %v73, %v306
  %v308 = vpop.f32.mrb[0].mxu0
  %v309 = vadd.f32 %v77, %v308
  %310 = vmatprep.mubr.bf16.mxu0 0
  %311 = vmatmul.mubr.bf16.gmra.mrb[0].mxu0 %v187
  %v312 = vpop.f32.mrb[0].mxu0
  %v313 = vadd.f32 %v73, %v312
  %v314 = vpop.f32.mrb[0].mxu0
  %v315 = vadd.f32 %v77, %v314
  %v316 = vpop.f32.mrb[0].mxu0
  %v317 = vadd.f32 %v73, %v316
  %v318 = vpop.f32.mrb[0].mxu0
  %v319 = vadd.f32 %v77, %v318
  %320 = vmatprep.mubr.bf16.mxu0 0
  %321 = vmatmul.mubr.bf16.gmra.mrb[0].mxu0 %v190
  %v322 = vpop.f32.mrb[0].mxu0
  %v323 = vadd.f32 %v73, %v322
  %v324 = vpop.f32.mrb[0].mxu0
  %v325 = vadd.f32 %v77, %v324
  %v326 = vpop.f32.mrb[0].mxu0
  %v327 = vadd.f32 %v73, %v326
  %v328 = vpop.f32.mrb[0].mxu0
  %v329 = vadd.f32 %v77, %v328
  %330 = vmatprep.mubr.bf16.mxu0 0
  %331 = vmatmul.mubr.bf16.gmra.mrb[0].mxu0 %v193
  %v332 = vpop.f32.mrb[0].mxu0
  %v333 = vadd.f32 %v73, %v332
  %v334 = vpop.f32.mrb[0].mxu0
  %v335 = vadd.f32 %v77, %v334
  %v336 = vpop.f32.mrb[0].mxu0
  %v337 = vadd.f32 %v73, %v336
  %v338 = vpop.f32.mrb[0].mxu0
  %v339 = vadd.f32 %v77, %v338
  %340 = vdwg.mxu0
  %341 = vst [vmem:[#allocation2] sm:$0xff] %v230
  %342 = vst [vmem:[#allocation2 + $0x8] sm:$0xff] %v232
  %343 = vst [vmem:[#allocation2 + $0x10] sm:$0xff] %v303
  %344 = vst [vmem:[#allocation2 + $0x18] sm:$0xff] %v305
  %345 = vst [vmem:[#allocation2 + $0x20] sm:$0xff] %v234
  %346 = vst [vmem:[#allocation2 + $0x28] sm:$0xff] %v236
  %347 = vst [vmem:[#allocation2 + $0x30] sm:$0xff] %v307
  %348 = vst [vmem:[#allocation2 + $0x38] sm:$0xff] %v309
  %349 = vst [vmem:[#allocation2 + $0x40] sm:$0xff] %v240
  %350 = vst [vmem:[#allocation2 + $0x48] sm:$0xff] %v242
  %351 = vst [vmem:[#allocation2 + $0x50] sm:$0xff] %v313
  %352 = vst [vmem:[#allocation2 + $0x58] sm:$0xff] %v315
  %353 = vst [vmem:[#allocation2 + $0x60] sm:$0xff] %v244
  %354 = vst [vmem:[#allocation2 + $0x68] sm:$0xff] %v246
  %355 = vst [vmem:[#allocation2 + $0x70] sm:$0xff] %v317
  %356 = vst [vmem:[#allocation2 + $0x78] sm:$0xff] %v319
  %357 = vst [vmem:[#allocation2 + $0x80] sm:$0xff] %v250
  %358 = vst [vmem:[#allocation2 + $0x88] sm:$0xff] %v252
  %359 = vst [vmem:[#allocation2 + $0x90] sm:$0xff] %v323
  %360 = vst [vmem:[#allocation2 + $0x98] sm:$0xff] %v325
  %361 = vst [vmem:[#allocation2 + $0xa0] sm:$0xff] %v254
  %362 = vst [vmem:[#allocation2 + $0xa8] sm:$0xff] %v256
  %363 = vst [vmem:[#allocation2 + $0xb0] sm:$0xff] %v327
  %364 = vst [vmem:[#allocation2 + $0xb8] sm:$0xff] %v329
  %365 = vst [vmem:[#allocation2 + $0xc0] sm:$0xff] %v260
  %366 = vst [vmem:[#allocation2 + $0xc8] sm:$0xff] %v262
  %367 = vst [vmem:[#allocation2 + $0xd0] sm:$0xff] %v333
  %368 = vst [vmem:[#allocation2 + $0xd8] sm:$0xff] %v335
  %369 = vst [vmem:[#allocation2 + $0xe0] sm:$0xff] %v264
  %370 = vst [vmem:[#allocation2 + $0xe8] sm:$0xff] %v266
  %371 = vst [vmem:[#allocation2 + $0xf0] sm:$0xff] %v337
  %372 = vst [vmem:[#allocation2 + $0xf8] sm:$0xff] %v339
  %v373 = vld [vmem:[%s3] sm:$0xff]
  %v374 = vld [vmem:[%s3 + $0x8] sm:$0xff]
  %v375 = vld [vmem:[%s3 + $0x10] sm:$0xff]
  %v376 = vld [vmem:[%s3 + $0x18] sm:$0xff]
  %v377 = vld [vmem:[%s3 + $0x20] sm:$0xff]
  %v378 = vld [vmem:[%s3 + $0x28] sm:$0xff]
  %v379 = vld [vmem:[%s3 + $0x30] sm:$0xff]
  %v380 = vld [vmem:[%s3 + $0x38] sm:$0xff]
  %v381 = vld [vmem:[%s3 + $0x40] sm:$0xff]
  %v382 = vld [vmem:[%s3 + $0x48] sm:$0xff]
  %v383 = vld [vmem:[%s3 + $0x50] sm:$0xff]
  %v384 = vld [vmem:[%s3 + $0x58] sm:$0xff]
  %v385 = vld [vmem:[%s3 + $0x60] sm:$0xff]
  %v386 = vld [vmem:[%s3 + $0x68] sm:$0xff]
  %v387 = vld [vmem:[%s3 + $0x70] sm:$0xff]
  %v388 = vld [vmem:[%s3 + $0x78] sm:$0xff]
  %v389 = vld [vmem:[%s3 + $0x80] sm:$0xff]
  %v390 = vld [vmem:[%s3 + $0x88] sm:$0xff]
  %v391 = vld [vmem:[%s3 + $0x90] sm:$0xff]
  %v392 = vld [vmem:[%s3 + $0x98] sm:$0xff]
  %v393 = vld [vmem:[%s3 + $0xa0] sm:$0xff]
  %v394 = vld [vmem:[%s3 + $0xa8] sm:$0xff]
  %v395 = vld [vmem:[%s3 + $0xb0] sm:$0xff]
  %v396 = vld [vmem:[%s3 + $0xb8] sm:$0xff]
  %v397 = vld [vmem:[%s3 + $0xc0] sm:$0xff]
  %v398 = vld [vmem:[%s3 + $0xc8] sm:$0xff]
  %v399 = vld [vmem:[%s3 + $0xd0] sm:$0xff]
  %v400 = vld [vmem:[%s3 + $0xd8] sm:$0xff]
  %v401 = vld [vmem:[%s3 + $0xe0] sm:$0xff]
  %v402 = vld [vmem:[%s3 + $0xe8] sm:$0xff]
  %v403 = vld [vmem:[%s3 + $0xf0] sm:$0xff]
  %v404 = vld [vmem:[%s3 + $0xf8] sm:$0xff]
  %v405 = vld [vmem:[%s3 + $0x100] sm:$0xff]
  %v406 = vld [vmem:[%s3 + $0x108] sm:$0xff]
  %v407 = vld [vmem:[%s3 + $0x110] sm:$0xff]
  %v408 = vld [vmem:[%s3 + $0x118] sm:$0xff]
  %v409 = vld [vmem:[%s3 + $0x120] sm:$0xff]
  %v410 = vld [vmem:[%s3 + $0x128] sm:$0xff]
  %v411 = vld [vmem:[%s3 + $0x130] sm:$0xff]
  %v412 = vld [vmem:[%s3 + $0x138] sm:$0xff]
  %v413 = vld [vmem:[%s3 + $0x140] sm:$0xff]
  %v414 = vld [vmem:[%s3 + $0x148] sm:$0xff]
  %v415 = vld [vmem:[%s3 + $0x150] sm:$0xff]
  %v416 = vld [vmem:[%s3 + $0x158] sm:$0xff]
  %v417 = vld [vmem:[%s3 + $0x160] sm:$0xff]
  %v418 = vld [vmem:[%s3 + $0x168] sm:$0xff]
  %v419 = vld [vmem:[%s3 + $0x170] sm:$0xff]
  %v420 = vld [vmem:[%s3 + $0x178] sm:$0xff]
  %v421 = vld [vmem:[%s3 + $0x180] sm:$0xff]
  %v422 = vld [vmem:[%s3 + $0x188] sm:$0xff]
  %v423 = vld [vmem:[%s3 + $0x190] sm:$0xff]
  %v424 = vld [vmem:[%s3 + $0x198] sm:$0xff]
  %v425 = vld [vmem:[%s3 + $0x1a0] sm:$0xff]
  %v426 = vld [vmem:[%s3 + $0x1a8] sm:$0xff]
  %v427 = vld [vmem:[%s3 + $0x1b0] sm:$0xff]
  %v428 = vld [vmem:[%s3 + $0x1b8] sm:$0xff]
  %v429 = vld [vmem:[%s3 + $0x1c0] sm:$0xff]
  %v430 = vld [vmem:[%s3 + $0x1c8] sm:$0xff]
  %v431 = vld [vmem:[%s3 + $0x1d0] sm:$0xff]
  %v432 = vld [vmem:[%s3 + $0x1d8] sm:$0xff]
  %v433 = vld [vmem:[%s3 + $0x1e0] sm:$0xff]
  %v434 = vld [vmem:[%s3 + $0x1e8] sm:$0xff]
  %v435 = vld [vmem:[%s3 + $0x1f0] sm:$0xff]
  %v436 = vld [vmem:[%s3 + $0x1f8] sm:$0xff]
  %v437 = vld [vmem:[%s4] sm:$0xff]
  %v438 = vld [vmem:[%s4 + $0x8] sm:$0xff]
  %v439 = vld [vmem:[%s4 + $0x10] sm:$0xff]
  %v440 = vld [vmem:[%s4 + $0x18] sm:$0xff]
  %v441 = vld [vmem:[%s4 + $0x20] sm:$0xff]
  %v442 = vld [vmem:[%s4 + $0x28] sm:$0xff]
  %v443 = vld [vmem:[%s4 + $0x30] sm:$0xff]
  %v444 = vld [vmem:[%s4 + $0x38] sm:$0xff]
  %v445 = vld [vmem:[%s4 + $0x40] sm:$0xff]
  %v446 = vld [vmem:[%s4 + $0x48] sm:$0xff]
  %v447 = vld [vmem:[%s4 + $0x50] sm:$0xff]
  %v448 = vld [vmem:[%s4 + $0x58] sm:$0xff]
  %v449 = vld [vmem:[%s4 + $0x60] sm:$0xff]
  %v450 = vld [vmem:[%s4 + $0x68] sm:$0xff]
  %v451 = vld [vmem:[%s4 + $0x70] sm:$0xff]
  %v452 = vld [vmem:[%s4 + $0x78] sm:$0xff]
  %v453 = vld [vmem:[%s4 + $0x80] sm:$0xff]
  %v454 = vld [vmem:[%s4 + $0x88] sm:$0xff]
  %v455 = vld [vmem:[%s4 + $0x90] sm:$0xff]
  %v456 = vld [vmem:[%s4 + $0x98] sm:$0xff]
  %v457 = vld [vmem:[%s4 + $0xa0] sm:$0xff]
  %v458 = vld [vmem:[%s4 + $0xa8] sm:$0xff]
  %v459 = vld [vmem:[%s4 + $0xb0] sm:$0xff]
  %v460 = vld [vmem:[%s4 + $0xb8] sm:$0xff]
  %v461 = vld [vmem:[%s4 + $0xc0] sm:$0xff]
  %v462 = vld [vmem:[%s4 + $0xc8] sm:$0xff]
  %v463 = vld [vmem:[%s4 + $0xd0] sm:$0xff]
  %v464 = vld [vmem:[%s4 + $0xd8] sm:$0xff]
  %v465 = vld [vmem:[%s4 + $0xe0] sm:$0xff]
  %v466 = vld [vmem:[%s4 + $0xe8] sm:$0xff]
  %v467 = vld [vmem:[%s4 + $0xf0] sm:$0xff]
  %v468 = vld [vmem:[%s4 + $0xf8] sm:$0xff]
  %v469 = vld [vmem:[%s4 + $0x100] sm:$0xff]
  %v470 = vld [vmem:[%s4 + $0x108] sm:$0xff]
  %v471 = vld [vmem:[%s4 + $0x110] sm:$0xff]
  %v472 = vld [vmem:[%s4 + $0x118] sm:$0xff]
  %v473 = vld [vmem:[%s4 + $0x120] sm:$0xff]
  %v474 = vld [vmem:[%s4 + $0x128] sm:$0xff]
  %v475 = vld [vmem:[%s4 + $0x130] sm:$0xff]
  %v476 = vld [vmem:[%s4 + $0x138] sm:$0xff]
  %v477 = vld [vmem:[%s4 + $0x140] sm:$0xff]
  %v478 = vld [vmem:[%s4 + $0x148] sm:$0xff]
  %v479 = vld [vmem:[%s4 + $0x150] sm:$0xff]
  %v480 = vld [vmem:[%s4 + $0x158] sm:$0xff]
  %v481 = vld [vmem:[%s4 + $0x160] sm:$0xff]
  %v482 = vld [vmem:[%s4 + $0x168] sm:$0xff]
  %v483 = vld [vmem:[%s4 + $0x170] sm:$0xff]
  %v484 = vld [vmem:[%s4 + $0x178] sm:$0xff]
  %v485 = vld [vmem:[%s4 + $0x180] sm:$0xff]
  %v486 = vld [vmem:[%s4 + $0x188] sm:$0xff]
  %v487 = vld [vmem:[%s4 + $0x190] sm:$0xff]
  %v488 = vld [vmem:[%s4 + $0x198] sm:$0xff]
  %v489 = vld [vmem:[%s4 + $0x1a0] sm:$0xff]
  %v490 = vld [vmem:[%s4 + $0x1a8] sm:$0xff]
  %v491 = vld [vmem:[%s4 + $0x1b0] sm:$0xff]
  %v492 = vld [vmem:[%s4 + $0x1b8] sm:$0xff]
  %v493 = vld [vmem:[%s4 + $0x1c0] sm:$0xff]
  %v494 = vld [vmem:[%s4 + $0x1c8] sm:$0xff]
  %v495 = vld [vmem:[%s4 + $0x1d0] sm:$0xff]
  %v496 = vld [vmem:[%s4 + $0x1d8] sm:$0xff]
  %v497 = vld [vmem:[%s4 + $0x1e0] sm:$0xff]
  %v498 = vld [vmem:[%s4 + $0x1e8] sm:$0xff]
  %v499 = vld [vmem:[%s4 + $0x1f0] sm:$0xff]
  %v500 = vld [vmem:[%s4 + $0x1f8] sm:$0xff]
  %v501 = vld [vmem:[%s5] sm:$0xff]
  %v502 = vld [vmem:[%s5 + $0x8] sm:$0xff]
  %v503 = vld [vmem:[%s5 + $0x10] sm:$0xff]
  %v504 = vld [vmem:[%s5 + $0x18] sm:$0xff]
  %v505 = vld [vmem:[%s5 + $0x20] sm:$0xff]
  %v506 = vld [vmem:[%s5 + $0x28] sm:$0xff]
  %v507 = vld [vmem:[%s5 + $0x30] sm:$0xff]
  %v508 = vld [vmem:[%s5 + $0x38] sm:$0xff]
  %v509 = vld [vmem:[%s5 + $0x40] sm:$0xff]
  %v510 = vld [vmem:[%s5 + $0x48] sm:$0xff]
  %v511 = vld [vmem:[%s5 + $0x50] sm:$0xff]
  %v512 = vld [vmem:[%s5 + $0x58] sm:$0xff]
  %v513 = vld [vmem:[%s5 + $0x60] sm:$0xff]
  %v514 = vld [vmem:[%s5 + $0x68] sm:$0xff]
  %v515 = vld [vmem:[%s5 + $0x70] sm:$0xff]
  %v516 = vld [vmem:[%s5 + $0x78] sm:$0xff]
  %v517 = vld [vmem:[%s5 + $0x80] sm:$0xff]
  %v518 = vld [vmem:[%s5 + $0x88] sm:$0xff]
  %v519 = vld [vmem:[%s5 + $0x90] sm:$0xff]
  %v520 = vld [vmem:[%s5 + $0x98] sm:$0xff]
  %v521 = vld [vmem:[%s5 + $0xa0] sm:$0xff]
  %v522 = vld [vmem:[%s5 + $0xa8] sm:$0xff]
  %v523 = vld [vmem:[%s5 + $0xb0] sm:$0xff]
  %v524 = vld [vmem:[%s5 + $0xb8] sm:$0xff]
  %v525 = vld [vmem:[%s5 + $0xc0] sm:$0xff]
  %v526 = vld [vmem:[%s5 + $0xc8] sm:$0xff]
  %v527 = vld [vmem:[%s5 + $0xd0] sm:$0xff]
  %v528 = vld [vmem:[%s5 + $0xd8] sm:$0xff]
  %v529 = vld [vmem:[%s5 + $0xe0] sm:$0xff]
  %v530 = vld [vmem:[%s5 + $0xe8] sm:$0xff]
  %v531 = vld [vmem:[%s5 + $0xf0] sm:$0xff]
  %v532 = vld [vmem:[%s5 + $0xf8] sm:$0xff]
  %v533 = vld [vmem:[%s6] sm:$0xf]
  %v534 = vld [vmem:[%s7] sm:$0xf]
  %v599 = vunpack.c.l.b16 %v373
  %v600 = vunpack.c.h.b16 %v373
  %v601 = vunpack.c.l.b16 %v374
  %v602 = vunpack.c.h.b16 %v374
  %v603 = vunpack.c.l.b16 %v375
  %v604 = vunpack.c.h.b16 %v375
  %v605 = vunpack.c.l.b16 %v376
  %v606 = vunpack.c.h.b16 %v376
  %v607 = vunpack.c.l.b16 %v377
  %v608 = vunpack.c.h.b16 %v377
  %v609 = vunpack.c.l.b16 %v378
  %v610 = vunpack.c.h.b16 %v378
  %v611 = vunpack.c.l.b16 %v379
  %v612 = vunpack.c.h.b16 %v379
  %v613 = vunpack.c.l.b16 %v380
  %v614 = vunpack.c.h.b16 %v380
  %v615 = vunpack.c.l.b16 %v381
  %v616 = vunpack.c.h.b16 %v381
  %v617 = vunpack.c.l.b16 %v382
  %v618 = vunpack.c.h.b16 %v382
  %v619 = vunpack.c.l.b16 %v383
  %v620 = vunpack.c.h.b16 %v383
  %v621 = vunpack.c.l.b16 %v384
  %v622 = vunpack.c.h.b16 %v384
  %v623 = vunpack.c.l.b16 %v385
  %v624 = vunpack.c.h.b16 %v385
  %v625 = vunpack.c.l.b16 %v386
  %v626 = vunpack.c.h.b16 %v386
  %v627 = vunpack.c.l.b16 %v387
  %v628 = vunpack.c.h.b16 %v387
  %v629 = vunpack.c.l.b16 %v388
  %v630 = vunpack.c.h.b16 %v388
  %v631 = vunpack.c.l.b16 %v389
  %v632 = vunpack.c.h.b16 %v389
  %v633 = vunpack.c.l.b16 %v390
  %v634 = vunpack.c.h.b16 %v390
  %v635 = vunpack.c.l.b16 %v391
  %v636 = vunpack.c.h.b16 %v391
  %v637 = vunpack.c.l.b16 %v392
  %v638 = vunpack.c.h.b16 %v392
  %v639 = vunpack.c.l.b16 %v393
  %v640 = vunpack.c.h.b16 %v393
  %v641 = vunpack.c.l.b16 %v394
  %v642 = vunpack.c.h.b16 %v394
  %v643 = vunpack.c.l.b16 %v395
  %v644 = vunpack.c.h.b16 %v395
  %v645 = vunpack.c.l.b16 %v396
  %v646 = vunpack.c.h.b16 %v396
  %v647 = vunpack.c.l.b16 %v397
  %v648 = vunpack.c.h.b16 %v397
  %v649 = vunpack.c.l.b16 %v398
  %v650 = vunpack.c.h.b16 %v398
  %v651 = vunpack.c.l.b16 %v399
  %v652 = vunpack.c.h.b16 %v399
  %v653 = vunpack.c.l.b16 %v400
  %v654 = vunpack.c.h.b16 %v400
  %v655 = vunpack.c.l.b16 %v401
  %v656 = vunpack.c.h.b16 %v401
  %v657 = vunpack.c.l.b16 %v402
  %v658 = vunpack.c.h.b16 %v402
  %v659 = vunpack.c.l.b16 %v403
  %v660 = vunpack.c.h.b16 %v403
  %v661 = vunpack.c.l.b16 %v404
  %v662 = vunpack.c.h.b16 %v404
  %v663 = vunpack.c.l.b16 %v405
  %v664 = vunpack.c.h.b16 %v405
  %v665 = vunpack.c.l.b16 %v406
  %v666 = vunpack.c.h.b16 %v406
  %v667 = vunpack.c.l.b16 %v407
  %v668 = vunpack.c.h.b16 %v407
  %v669 = vunpack.c.l.b16 %v408
  %v670 = vunpack.c.h.b16 %v408
  %v671 = vunpack.c.l.b16 %v409
  %v672 = vunpack.c.h.b16 %v409
  %v673 = vunpack.c.l.b16 %v410
  %v674 = vunpack.c.h.b16 %v410
  %v675 = vunpack.c.l.b16 %v411
  %v676 = vunpack.c.h.b16 %v411
  %v677 = vunpack.c.l.b16 %v412
  %v678 = vunpack.c.h.b16 %v412
  %v679 = vunpack.c.l.b16 %v413
  %v680 = vunpack.c.h.b16 %v413
  %v681 = vunpack.c.l.b16 %v414
  %v682 = vunpack.c.h.b16 %v414
  %v683 = vunpack.c.l.b16 %v415
  %v684 = vunpack.c.h.b16 %v415
  %v685 = vunpack.c.l.b16 %v416
  %v686 = vunpack.c.h.b16 %v416
  %v687 = vunpack.c.l.b16 %v417
  %v688 = vunpack.c.h.b16 %v417
  %v689 = vunpack.c.l.b16 %v418
  %v690 = vunpack.c.h.b16 %v418
  %v691 = vunpack.c.l.b16 %v419
  %v692 = vunpack.c.h.b16 %v419
  %v693 = vunpack.c.l.b16 %v420
  %v694 = vunpack.c.h.b16 %v420
  %v695 = vunpack.c.l.b16 %v421
  %v696 = vunpack.c.h.b16 %v421
  %v697 = vunpack.c.l.b16 %v422
  %v698 = vunpack.c.h.b16 %v422
  %v699 = vunpack.c.l.b16 %v423
  %v700 = vunpack.c.h.b16 %v423
  %v701 = vunpack.c.l.b16 %v424
  %v702 = vunpack.c.h.b16 %v424
  %v703 = vunpack.c.l.b16 %v425
  %v704 = vunpack.c.h.b16 %v425
  %v705 = vunpack.c.l.b16 %v426
  %v706 = vunpack.c.h.b16 %v426
  %v707 = vunpack.c.l.b16 %v427
  %v708 = vunpack.c.h.b16 %v427
  %v709 = vunpack.c.l.b16 %v428
  %v710 = vunpack.c.h.b16 %v428
  %v711 = vunpack.c.l.b16 %v429
  %v712 = vunpack.c.h.b16 %v429
  %v713 = vunpack.c.l.b16 %v430
  %v714 = vunpack.c.h.b16 %v430
  %v715 = vunpack.c.l.b16 %v431
  %v716 = vunpack.c.h.b16 %v431
  %v717 = vunpack.c.l.b16 %v432
  %v718 = vunpack.c.h.b16 %v432
  %v719 = vunpack.c.l.b16 %v433
  %v720 = vunpack.c.h.b16 %v433
  %v721 = vunpack.c.l.b16 %v434
  %v722 = vunpack.c.h.b16 %v434
  %v723 = vunpack.c.l.b16 %v435
  %v724 = vunpack.c.h.b16 %v435
  %v725 = vunpack.c.l.b16 %v436
  %v726 = vunpack.c.h.b16 %v436
  %v727 = vpack.c.b16 %v607, %v599
  %v728 = vpack.c.b16 %v608, %v600
  %v729 = vpack.c.b16 %v609, %v601
  %v730 = vpack.c.b16 %v610, %v602
  %v731 = vpack.c.b16 %v611, %v603
  %v732 = vpack.c.b16 %v612, %v604
  %v733 = vpack.c.b16 %v613, %v605
  %v734 = vpack.c.b16 %v614, %v606
  %v735 = vpack.c.b16 %v623, %v615
  %v736 = vpack.c.b16 %v624, %v616
  %v737 = vpack.c.b16 %v625, %v617
  %v738 = vpack.c.b16 %v626, %v618
  %v739 = vpack.c.b16 %v627, %v619
  %v740 = vpack.c.b16 %v628, %v620
  %v741 = vpack.c.b16 %v629, %v621
  %v742 = vpack.c.b16 %v630, %v622
  %v743 = vpack.c.b16 %v639, %v631
  %v744 = vpack.c.b16 %v640, %v632
  %v745 = vpack.c.b16 %v641, %v633
  %v746 = vpack.c.b16 %v642, %v634
  %v747 = vpack.c.b16 %v643, %v635
  %v748 = vpack.c.b16 %v644, %v636
  %v749 = vpack.c.b16 %v645, %v637
  %v750 = vpack.c.b16 %v646, %v638
  %v751 = vpack.c.b16 %v655, %v647
  %v752 = vpack.c.b16 %v656, %v648
  %v753 = vpack.c.b16 %v657, %v649
  %v754 = vpack.c.b16 %v658, %v650
  %v755 = vpack.c.b16 %v659, %v651
  %v756 = vpack.c.b16 %v660, %v652
  %v757 = vpack.c.b16 %v661, %v653
  %v758 = vpack.c.b16 %v662, %v654
  %v759 = vpack.c.b16 %v671, %v663
  %v760 = vpack.c.b16 %v672, %v664
  %v761 = vpack.c.b16 %v673, %v665
  %v762 = vpack.c.b16 %v674, %v666
  %v763 = vpack.c.b16 %v675, %v667
  %v764 = vpack.c.b16 %v676, %v668
  %v765 = vpack.c.b16 %v677, %v669
  %v766 = vpack.c.b16 %v678, %v670
  %v767 = vpack.c.b16 %v687, %v679
  %v768 = vpack.c.b16 %v688, %v680
  %v769 = vpack.c.b16 %v689, %v681
  %v770 = vpack.c.b16 %v690, %v682
  %v771 = vpack.c.b16 %v691, %v683
  %v772 = vpack.c.b16 %v692, %v684
  %v773 = vpack.c.b16 %v693, %v685
  %v774 = vpack.c.b16 %v694, %v686
  %v775 = vpack.c.b16 %v703, %v695
  %v776 = vpack.c.b16 %v704, %v696
  %v777 = vpack.c.b16 %v705, %v697
  %v778 = vpack.c.b16 %v706, %v698
  %v779 = vpack.c.b16 %v707, %v699
  %v780 = vpack.c.b16 %v708, %v700
  %v781 = vpack.c.b16 %v709, %v701
  %v782 = vpack.c.b16 %v710, %v702
  %v783 = vpack.c.b16 %v719, %v711
  %v784 = vpack.c.b16 %v720, %v712
  %v785 = vpack.c.b16 %v721, %v713
  %v786 = vpack.c.b16 %v722, %v714
  %v787 = vpack.c.b16 %v723, %v715
  %v788 = vpack.c.b16 %v724, %v716
  %v789 = vpack.c.b16 %v725, %v717
  %v790 = vpack.c.b16 %v726, %v718
  %855 = vmatprep.subr.bf16.mxu0 %v728
  %856 = vmatpush1.bf16.msra.mxu0 %v727
  %857 = vmatprep.subr.bf16.mxu0 %v736
  %858 = vmatpush1.bf16.msra.mxu0 %v735
  %859 = vmatprep.subr.bf16.mxu0 %v744
  %860 = vmatpush1.bf16.msra.mxu0 %v743
  %861 = vmatprep.subr.bf16.mxu0 %v752
  %862 = vmatpush1.bf16.msra.mxu0 %v751
  %863 = vmatprep.subr.bf16.mxu0 %v760
  %864 = vmatpush1.bf16.msra.mxu0 %v759
  %865 = vmatprep.subr.bf16.mxu0 %v768
  %866 = vmatpush1.bf16.msra.mxu0 %v767
  %867 = vmatprep.subr.bf16.mxu0 %v776
  %868 = vmatpush1.bf16.msra.mxu0 %v775
  %869 = vmatprep.subr.bf16.mxu0 %v784
  %870 = vmatpush1.bf16.msra.mxu0 %v783
  %871 = vmatprep.subr.bf16.mxu0 0
  %872 = vmatpush1.bf16.msra.mxu0 0
  %873 = vmatprep.subr.bf16.mxu0 0
  %874 = vmatpush1.bf16.msra.mxu0 0
  %875 = vmatprep.subr.bf16.mxu0 0
  %876 = vmatpush1.bf16.msra.mxu0 0
  %877 = vmatprep.subr.bf16.mxu0 0
  %878 = vmatpush1.bf16.msra.mxu0 0
  %879 = vmatprep.subr.bf16.mxu0 0
  %880 = vmatpush1.bf16.msra.mxu0 0
  %881 = vmatprep.subr.bf16.mxu0 0
  %882 = vmatpush1.bf16.msra.mxu0 0
  %883 = vmatprep.subr.bf16.mxu0 0
  %884 = vmatpush1.bf16.msra.mxu0 0
  %885 = vmatprep.subr.bf16.mxu0 0
  %886 = vmatpush1.bf16.msra.mxu0 0
  %887 = vmatprep.mubr.bf16.mxu0 0
  %888 = vmatmul.mubr.bf16.gmra.mrb[0].mxu0 0
  %v889 = vpop.f32.mrb[0].mxu0
  %v890 = vadd.f32 0.0, %v889
  %v891 = vpop.f32.mrb[0].mxu0
  %v892 = vadd.f32 0.0, %v891
  %v893 = vpop.f32.mrb[0].mxu0
  %v894 = vpop.f32.mrb[0].mxu0
  %895 = vdwg.mxu0
  %896 = vmatprep.subr.bf16.mxu0 %v730
  %897 = vmatpush1.bf16.msra.mxu0 %v729
  %898 = vmatprep.subr.bf16.mxu0 %v738
  %899 = vmatpush1.bf16.msra.mxu0 %v737
  %900 = vmatprep.subr.bf16.mxu0 %v746
  %901 = vmatpush1.bf16.msra.mxu0 %v745
  %902 = vmatprep.subr.bf16.mxu0 %v754
  %903 = vmatpush1.bf16.msra.mxu0 %v753
  %904 = vmatprep.subr.bf16.mxu0 %v762
  %905 = vmatpush1.bf16.msra.mxu0 %v761
  %906 = vmatprep.subr.bf16.mxu0 %v770
  %907 = vmatpush1.bf16.msra.mxu0 %v769
  %908 = vmatprep.subr.bf16.mxu0 %v778
  %909 = vmatpush1.bf16.msra.mxu0 %v777
  %910 = vmatprep.subr.bf16.mxu0 %v786
  %911 = vmatpush1.bf16.msra.mxu0 %v785
  %912 = vmatprep.subr.bf16.mxu0 0
  %913 = vmatpush1.bf16.msra.mxu0 0
  %914 = vmatprep.subr.bf16.mxu0 0
  %915 = vmatpush1.bf16.msra.mxu0 0
  %916 = vmatprep.subr.bf16.mxu0 0
  %917 = vmatpush1.bf16.msra.mxu0 0
  %918 = vmatprep.subr.bf16.mxu0 0
  %919 = vmatpush1.bf16.msra.mxu0 0
  %920 = vmatprep.subr.bf16.mxu0 0
  %921 = vmatpush1.bf16.msra.mxu0 0
  %922 = vmatprep.subr.bf16.mxu0 0
  %923 = vmatpush1.bf16.msra.mxu0 0
  %924 = vmatprep.subr.bf16.mxu0 0
  %925 = vmatpush1.bf16.msra.mxu0 0
  %926 = vmatprep.subr.bf16.mxu0 0
  %927 = vmatpush1.bf16.msra.mxu0 0
  %928 = vmatprep.mubr.bf16.mxu0 0
  %929 = vmatmul.mubr.bf16.gmra.mrb[0].mxu0 0
  %v930 = vpop.f32.mrb[0].mxu0
  %v931 = vadd.f32 0.0, %v930
  %v932 = vpop.f32.mrb[0].mxu0
  %v933 = vadd.f32 0.0, %v932
  %v934 = vpop.f32.mrb[0].mxu0
  %v935 = vpop.f32.mrb[0].mxu0
  %936 = vdwg.mxu0
  %937 = vmatprep.subr.bf16.mxu0 %v732
  %938 = vmatpush1.bf16.msra.mxu0 %v731
  %939 = vmatprep.subr.bf16.mxu0 %v740
  %940 = vmatpush1.bf16.msra.mxu0 %v739
  %941 = vmatprep.subr.bf16.mxu0 %v748
  %942 = vmatpush1.bf16.msra.mxu0 %v747
  %943 = vmatprep.subr.bf16.mxu0 %v756
  %944 = vmatpush1.bf16.msra.mxu0 %v755
  %945 = vmatprep.subr.bf16.mxu0 %v764
  %946 = vmatpush1.bf16.msra.mxu0 %v763
  %947 = vmatprep.subr.bf16.mxu0 %v772
  %948 = vmatpush1.bf16.msra.mxu0 %v771
  %949 = vmatprep.subr.bf16.mxu0 %v780
  %950 = vmatpush1.bf16.msra.mxu0 %v779
  %951 = vmatprep.subr.bf16.mxu0 %v788
  %952 = vmatpush1.bf16.msra.mxu0 %v787
  %953 = vmatprep.subr.bf16.mxu0 0
  %954 = vmatpush1.bf16.msra.mxu0 0
  %955 = vmatprep.subr.bf16.mxu0 0
  %956 = vmatpush1.bf16.msra.mxu0 0
  %957 = vmatprep.subr.bf16.mxu0 0
  %958 = vmatpush1.bf16.msra.mxu0 0
  %959 = vmatprep.subr.bf16.mxu0 0
  %960 = vmatpush1.bf16.msra.mxu0 0
  %961 = vmatprep.subr.bf16.mxu0 0
  %962 = vmatpush1.bf16.msra.mxu0 0
  %963 = vmatprep.subr.bf16.mxu0 0
  %964 = vmatpush1.bf16.msra.mxu0 0
  %965 = vmatprep.subr.bf16.mxu0 0
  %966 = vmatpush1.bf16.msra.mxu0 0
  %967 = vmatprep.subr.bf16.mxu0 0
  %968 = vmatpush1.bf16.msra.mxu0 0
  %969 = vmatprep.mubr.bf16.mxu0 0
  %970 = vmatmul.mubr.bf16.gmra.mrb[0].mxu0 0
  %v971 = vpop.f32.mrb[0].mxu0
  %v972 = vadd.f32 0.0, %v971
  %v973 = vpop.f32.mrb[0].mxu0
  %v974 = vadd.f32 0.0, %v973
  %v975 = vpop.f32.mrb[0].mxu0
  %v976 = vpop.f32.mrb[0].mxu0
  %977 = vdwg.mxu0
  %978 = vmatprep.subr.bf16.mxu0 %v734
  %979 = vmatpush1.bf16.msra.mxu0 %v733
  %980 = vmatprep.subr.bf16.mxu0 %v742
  %981 = vmatpush1.bf16.msra.mxu0 %v741
  %982 = vmatprep.subr.bf16.mxu0 %v750
  %983 = vmatpush1.bf16.msra.mxu0 %v749
  %984 = vmatprep.subr.bf16.mxu0 %v758
  %985 = vmatpush1.bf16.msra.mxu0 %v757
  %986 = vmatprep.subr.bf16.mxu0 %v766
  %987 = vmatpush1.bf16.msra.mxu0 %v765
  %988 = vmatprep.subr.bf16.mxu0 %v774
  %989 = vmatpush1.bf16.msra.mxu0 %v773
  %990 = vmatprep.subr.bf16.mxu0 %v782
  %991 = vmatpush1.bf16.msra.mxu0 %v781
  %992 = vmatprep.subr.bf16.mxu0 %v790
  %993 = vmatpush1.bf16.msra.mxu0 %v789
  %994 = vmatprep.subr.bf16.mxu0 0
  %995 = vmatpush1.bf16.msra.mxu0 0
  %996 = vmatprep.subr.bf16.mxu0 0
  %997 = vmatpush1.bf16.msra.mxu0 0
  %998 = vmatprep.subr.bf16.mxu0 0
  %999 = vmatpush1.bf16.msra.mxu0 0
  %1000 = vmatprep.subr.bf16.mxu0 0
  %1001 = vmatpush1.bf16.msra.mxu0 0
  %1002 = vmatprep.subr.bf16.mxu0 0
  %1003 = vmatpush1.bf16.msra.mxu0 0
  %1004 = vmatprep.subr.bf16.mxu0 0
  %1005 = vmatpush1.bf16.msra.mxu0 0
  %1006 = vmatprep.subr.bf16.mxu0 0
  %1007 = vmatpush1.bf16.msra.mxu0 0
  %1008 = vmatprep.subr.bf16.mxu0 0
  %1009 = vmatpush1.bf16.msra.mxu0 0
  %1010 = vmatprep.mubr.bf16.mxu0 0
  %1011 = vmatmul.mubr.bf16.gmra.mrb[0].mxu0 0
  %v1012 = vpop.f32.mrb[0].mxu0
  %v1013 = vadd.f32 0.0, %v1012
  %v1014 = vpop.f32.mrb[0].mxu0
  %v1015 = vadd.f32 0.0, %v1014
  %v1016 = vpop.f32.mrb[0].mxu0
  %v1017 = vpop.f32.mrb[0].mxu0
  %1018 = vdwg.mxu0
  %v1083 = vunpack.c.l.b16 %v437
  %v1084 = vunpack.c.h.b16 %v437
  %v1085 = vunpack.c.l.b16 %v438
  %v1086 = vunpack.c.h.b16 %v438
  %v1087 = vunpack.c.l.b16 %v439
  %v1088 = vunpack.c.h.b16 %v439
  %v1089 = vunpack.c.l.b16 %v440
  %v1090 = vunpack.c.h.b16 %v440
  %v1091 = vunpack.c.l.b16 %v441
  %v1092 = vunpack.c.h.b16 %v441
  %v1093 = vunpack.c.l.b16 %v442
  %v1094 = vunpack.c.h.b16 %v442
  %v1095 = vunpack.c.l.b16 %v443
  %v1096 = vunpack.c.h.b16 %v443
  %v1097 = vunpack.c.l.b16 %v444
  %v1098 = vunpack.c.h.b16 %v444
  %v1099 = vunpack.c.l.b16 %v445
  %v1100 = vunpack.c.h.b16 %v445
  %v1101 = vunpack.c.l.b16 %v446
  %v1102 = vunpack.c.h.b16 %v446
  %v1103 = vunpack.c.l.b16 %v447
  %v1104 = vunpack.c.h.b16 %v447
  %v1105 = vunpack.c.l.b16 %v448
  %v1106 = vunpack.c.h.b16 %v448
  %v1107 = vunpack.c.l.b16 %v449
  %v1108 = vunpack.c.h.b16 %v449
  %v1109 = vunpack.c.l.b16 %v450
  %v1110 = vunpack.c.h.b16 %v450
  %v1111 = vunpack.c.l.b16 %v451
  %v1112 = vunpack.c.h.b16 %v451
  %v1113 = vunpack.c.l.b16 %v452
  %v1114 = vunpack.c.h.b16 %v452
  %v1115 = vunpack.c.l.b16 %v453
  %v1116 = vunpack.c.h.b16 %v453
  %v1117 = vunpack.c.l.b16 %v454
  %v1118 = vunpack.c.h.b16 %v454
  %v1119 = vunpack.c.l.b16 %v455
  %v1120 = vunpack.c.h.b16 %v455
  %v1121 = vunpack.c.l.b16 %v456
  %v1122 = vunpack.c.h.b16 %v456
  %v1123 = vunpack.c.l.b16 %v457
  %v1124 = vunpack.c.h.b16 %v457
  %v1125 = vunpack.c.l.b16 %v458
  %v1126 = vunpack.c.h.b16 %v458
  %v1127 = vunpack.c.l.b16 %v459
  %v1128 = vunpack.c.h.b16 %v459
  %v1129 = vunpack.c.l.b16 %v460
  %v1130 = vunpack.c.h.b16 %v460
  %v1131 = vunpack.c.l.b16 %v461
  %v1132 = vunpack.c.h.b16 %v461
  %v1133 = vunpack.c.l.b16 %v462
  %v1134 = vunpack.c.h.b16 %v462
  %v1135 = vunpack.c.l.b16 %v463
  %v1136 = vunpack.c.h.b16 %v463
  %v1137 = vunpack.c.l.b16 %v464
  %v1138 = vunpack.c.h.b16 %v464
  %v1139 = vunpack.c.l.b16 %v465
  %v1140 = vunpack.c.h.b16 %v465
  %v1141 = vunpack.c.l.b16 %v466
  %v1142 = vunpack.c.h.b16 %v466
  %v1143 = vunpack.c.l.b16 %v467
  %v1144 = vunpack.c.h.b16 %v467
  %v1145 = vunpack.c.l.b16 %v468
  %v1146 = vunpack.c.h.b16 %v468
  %v1147 = vunpack.c.l.b16 %v469
  %v1148 = vunpack.c.h.b16 %v469
  %v1149 = vunpack.c.l.b16 %v470
  %v1150 = vunpack.c.h.b16 %v470
  %v1151 = vunpack.c.l.b16 %v471
  %v1152 = vunpack.c.h.b16 %v471
  %v1153 = vunpack.c.l.b16 %v472
  %v1154 = vunpack.c.h.b16 %v472
  %v1155 = vunpack.c.l.b16 %v473
  %v1156 = vunpack.c.h.b16 %v473
  %v1157 = vunpack.c.l.b16 %v474
  %v1158 = vunpack.c.h.b16 %v474
  %v1159 = vunpack.c.l.b16 %v475
  %v1160 = vunpack.c.h.b16 %v475
  %v1161 = vunpack.c.l.b16 %v476
  %v1162 = vunpack.c.h.b16 %v476
  %v1163 = vunpack.c.l.b16 %v477
  %v1164 = vunpack.c.h.b16 %v477
  %v1165 = vunpack.c.l.b16 %v478
  %v1166 = vunpack.c.h.b16 %v478
  %v1167 = vunpack.c.l.b16 %v479
  %v1168 = vunpack.c.h.b16 %v479
  %v1169 = vunpack.c.l.b16 %v480
  %v1170 = vunpack.c.h.b16 %v480
  %v1171 = vunpack.c.l.b16 %v481
  %v1172 = vunpack.c.h.b16 %v481
  %v1173 = vunpack.c.l.b16 %v482
  %v1174 = vunpack.c.h.b16 %v482
  %v1175 = vunpack.c.l.b16 %v483
  %v1176 = vunpack.c.h.b16 %v483
  %v1177 = vunpack.c.l.b16 %v484
  %v1178 = vunpack.c.h.b16 %v484
  %v1179 = vunpack.c.l.b16 %v485
  %v1180 = vunpack.c.h.b16 %v485
  %v1181 = vunpack.c.l.b16 %v486
  %v1182 = vunpack.c.h.b16 %v486
  %v1183 = vunpack.c.l.b16 %v487
  %v1184 = vunpack.c.h.b16 %v487
  %v1185 = vunpack.c.l.b16 %v488
  %v1186 = vunpack.c.h.b16 %v488
  %v1187 = vunpack.c.l.b16 %v489
  %v1188 = vunpack.c.h.b16 %v489
  %v1189 = vunpack.c.l.b16 %v490
  %v1190 = vunpack.c.h.b16 %v490
  %v1191 = vunpack.c.l.b16 %v491
  %v1192 = vunpack.c.h.b16 %v491
  %v1193 = vunpack.c.l.b16 %v492
  %v1194 = vunpack.c.h.b16 %v492
  %v1195 = vunpack.c.l.b16 %v493
  %v1196 = vunpack.c.h.b16 %v493
  %v1197 = vunpack.c.l.b16 %v494
  %v1198 = vunpack.c.h.b16 %v494
  %v1199 = vunpack.c.l.b16 %v495
  %v1200 = vunpack.c.h.b16 %v495
  %v1201 = vunpack.c.l.b16 %v496
  %v1202 = vunpack.c.h.b16 %v496
  %v1203 = vunpack.c.l.b16 %v497
  %v1204 = vunpack.c.h.b16 %v497
  %v1205 = vunpack.c.l.b16 %v498
  %v1206 = vunpack.c.h.b16 %v498
  %v1207 = vunpack.c.l.b16 %v499
  %v1208 = vunpack.c.h.b16 %v499
  %v1209 = vunpack.c.l.b16 %v500
  %v1210 = vunpack.c.h.b16 %v500
  %v1211 = vpack.c.b16 %v1091, %v1083
  %v1212 = vpack.c.b16 %v1092, %v1084
  %v1213 = vpack.c.b16 %v1093, %v1085
  %v1214 = vpack.c.b16 %v1094, %v1086
  %v1215 = vpack.c.b16 %v1095, %v1087
  %v1216 = vpack.c.b16 %v1096, %v1088
  %v1217 = vpack.c.b16 %v1097, %v1089
  %v1218 = vpack.c.b16 %v1098, %v1090
  %v1219 = vpack.c.b16 %v1107, %v1099
  %v1220 = vpack.c.b16 %v1108, %v1100
  %v1221 = vpack.c.b16 %v1109, %v1101
  %v1222 = vpack.c.b16 %v1110, %v1102
  %v1223 = vpack.c.b16 %v1111, %v1103
  %v1224 = vpack.c.b16 %v1112, %v1104
  %v1225 = vpack.c.b16 %v1113, %v1105
  %v1226 = vpack.c.b16 %v1114, %v1106
  %v1227 = vpack.c.b16 %v1123, %v1115
  %v1228 = vpack.c.b16 %v1124, %v1116
  %v1229 = vpack.c.b16 %v1125, %v1117
  %v1230 = vpack.c.b16 %v1126, %v1118
  %v1231 = vpack.c.b16 %v1127, %v1119
  %v1232 = vpack.c.b16 %v1128, %v1120
  %v1233 = vpack.c.b16 %v1129, %v1121
  %v1234 = vpack.c.b16 %v1130, %v1122
  %v1235 = vpack.c.b16 %v1139, %v1131
  %v1236 = vpack.c.b16 %v1140, %v1132
  %v1237 = vpack.c.b16 %v1141, %v1133
  %v1238 = vpack.c.b16 %v1142, %v1134
  %v1239 = vpack.c.b16 %v1143, %v1135
  %v1240 = vpack.c.b16 %v1144, %v1136
  %v1241 = vpack.c.b16 %v1145, %v1137
  %v1242 = vpack.c.b16 %v1146, %v1138
  %v1243 = vpack.c.b16 %v1155, %v1147
  %v1244 = vpack.c.b16 %v1156, %v1148
  %v1245 = vpack.c.b16 %v1157, %v1149
  %v1246 = vpack.c.b16 %v1158, %v1150
  %v1247 = vpack.c.b16 %v1159, %v1151
  %v1248 = vpack.c.b16 %v1160, %v1152
  %v1249 = vpack.c.b16 %v1161, %v1153
  %v1250 = vpack.c.b16 %v1162, %v1154
  %v1251 = vpack.c.b16 %v1171, %v1163
  %v1252 = vpack.c.b16 %v1172, %v1164
  %v1253 = vpack.c.b16 %v1173, %v1165
  %v1254 = vpack.c.b16 %v1174, %v1166
  %v1255 = vpack.c.b16 %v1175, %v1167
  %v1256 = vpack.c.b16 %v1176, %v1168
  %v1257 = vpack.c.b16 %v1177, %v1169
  %v1258 = vpack.c.b16 %v1178, %v1170
  %v1259 = vpack.c.b16 %v1187, %v1179
  %v1260 = vpack.c.b16 %v1188, %v1180
  %v1261 = vpack.c.b16 %v1189, %v1181
  %v1262 = vpack.c.b16 %v1190, %v1182
  %v1263 = vpack.c.b16 %v1191, %v1183
  %v1264 = vpack.c.b16 %v1192, %v1184
  %v1265 = vpack.c.b16 %v1193, %v1185
  %v1266 = vpack.c.b16 %v1194, %v1186
  %v1267 = vpack.c.b16 %v1203, %v1195
  %v1268 = vpack.c.b16 %v1204, %v1196
  %v1269 = vpack.c.b16 %v1205, %v1197
  %v1270 = vpack.c.b16 %v1206, %v1198
  %v1271 = vpack.c.b16 %v1207, %v1199
  %v1272 = vpack.c.b16 %v1208, %v1200
  %v1273 = vpack.c.b16 %v1209, %v1201
  %v1274 = vpack.c.b16 %v1210, %v1202
  %1339 = vmatprep.subr.bf16.mxu0 %v1212
  %1340 = vmatpush1.bf16.msra.mxu0 %v1211
  %1341 = vmatprep.subr.bf16.mxu0 %v1220
  %1342 = vmatpush1.bf16.msra.mxu0 %v1219
  %1343 = vmatprep.subr.bf16.mxu0 %v1228
  %1344 = vmatpush1.bf16.msra.mxu0 %v1227
  %1345 = vmatprep.subr.bf16.mxu0 %v1236
  %1346 = vmatpush1.bf16.msra.mxu0 %v1235
  %1347 = vmatprep.subr.bf16.mxu0 %v1244
  %1348 = vmatpush1.bf16.msra.mxu0 %v1243
  %1349 = vmatprep.subr.bf16.mxu0 %v1252
  %1350 = vmatpush1.bf16.msra.mxu0 %v1251
  %1351 = vmatprep.subr.bf16.mxu0 %v1260
  %1352 = vmatpush1.bf16.msra.mxu0 %v1259
  %1353 = vmatprep.subr.bf16.mxu0 %v1268
  %1354 = vmatpush1.bf16.msra.mxu0 %v1267
  %1355 = vmatprep.subr.bf16.mxu0 0
  %1356 = vmatpush1.bf16.msra.mxu0 0
  %1357 = vmatprep.subr.bf16.mxu0 0
  %1358 = vmatpush1.bf16.msra.mxu0 0
  %1359 = vmatprep.subr.bf16.mxu0 0
  %1360 = vmatpush1.bf16.msra.mxu0 0
  %1361 = vmatprep.subr.bf16.mxu0 0
  %1362 = vmatpush1.bf16.msra.mxu0 0
  %1363 = vmatprep.subr.bf16.mxu0 0
  %1364 = vmatpush1.bf16.msra.mxu0 0
  %1365 = vmatprep.subr.bf16.mxu0 0
  %1366 = vmatpush1.bf16.msra.mxu0 0
  %1367 = vmatprep.subr.bf16.mxu0 0
  %1368 = vmatpush1.bf16.msra.mxu0 0
  %1369 = vmatprep.subr.bf16.mxu0 0
  %1370 = vmatpush1.bf16.msra.mxu0 0
  %1371 = vmatprep.mubr.bf16.mxu0 0
  %1372 = vmatmul.mubr.bf16.gmra.mrb[0].mxu0 0
  %v1373 = vpop.f32.mrb[0].mxu0
  %v1374 = vadd.f32 0.0, %v1373
  %v1375 = vpop.f32.mrb[0].mxu0
  %v1376 = vadd.f32 0.0, %v1375
  %v1377 = vpop.f32.mrb[0].mxu0
  %v1378 = vpop.f32.mrb[0].mxu0
  %1379 = vdwg.mxu0
  %1380 = vmatprep.subr.bf16.mxu0 %v1214
  %1381 = vmatpush1.bf16.msra.mxu0 %v1213
  %1382 = vmatprep.subr.bf16.mxu0 %v1222
  %1383 = vmatpush1.bf16.msra.mxu0 %v1221
  %1384 = vmatprep.subr.bf16.mxu0 %v1230
  %1385 = vmatpush1.bf16.msra.mxu0 %v1229
  %1386 = vmatprep.subr.bf16.mxu0 %v1238
  %1387 = vmatpush1.bf16.msra.mxu0 %v1237
  %1388 = vmatprep.subr.bf16.mxu0 %v1246
  %1389 = vmatpush1.bf16.msra.mxu0 %v1245
  %1390 = vmatprep.subr.bf16.mxu0 %v1254
  %1391 = vmatpush1.bf16.msra.mxu0 %v1253
  %1392 = vmatprep.subr.bf16.mxu0 %v1262
  %1393 = vmatpush1.bf16.msra.mxu0 %v1261
  %1394 = vmatprep.subr.bf16.mxu0 %v1270
  %1395 = vmatpush1.bf16.msra.mxu0 %v1269
  %1396 = vmatprep.subr.bf16.mxu0 0
  %1397 = vmatpush1.bf16.msra.mxu0 0
  %1398 = vmatprep.subr.bf16.mxu0 0
  %1399 = vmatpush1.bf16.msra.mxu0 0
  %1400 = vmatprep.subr.bf16.mxu0 0
  %1401 = vmatpush1.bf16.msra.mxu0 0
  %1402 = vmatprep.subr.bf16.mxu0 0
  %1403 = vmatpush1.bf16.msra.mxu0 0
  %1404 = vmatprep.subr.bf16.mxu0 0
  %1405 = vmatpush1.bf16.msra.mxu0 0
  %1406 = vmatprep.subr.bf16.mxu0 0
  %1407 = vmatpush1.bf16.msra.mxu0 0
  %1408 = vmatprep.subr.bf16.mxu0 0
  %1409 = vmatpush1.bf16.msra.mxu0 0
  %1410 = vmatprep.subr.bf16.mxu0 0
  %1411 = vmatpush1.bf16.msra.mxu0 0
  %1412 = vmatprep.mubr.bf16.mxu0 0
  %1413 = vmatmul.mubr.bf16.gmra.mrb[0].mxu0 0
  %v1414 = vpop.f32.mrb[0].mxu0
  %v1415 = vadd.f32 0.0, %v1414
  %v1416 = vpop.f32.mrb[0].mxu0
  %v1417 = vadd.f32 0.0, %v1416
  %v1418 = vpop.f32.mrb[0].mxu0
  %v1419 = vpop.f32.mrb[0].mxu0
  %1420 = vdwg.mxu0
  %1421 = vmatprep.subr.bf16.mxu0 %v1216
  %1422 = vmatpush1.bf16.msra.mxu0 %v1215
  %1423 = vmatprep.subr.bf16.mxu0 %v1224
  %1424 = vmatpush1.bf16.msra.mxu0 %v1223
  %1425 = vmatprep.subr.bf16.mxu0 %v1232
  %1426 = vmatpush1.bf16.msra.mxu0 %v1231
  %1427 = vmatprep.subr.bf16.mxu0 %v1240
  %1428 = vmatpush1.bf16.msra.mxu0 %v1239
  %1429 = vmatprep.subr.bf16.mxu0 %v1248
  %1430 = vmatpush1.bf16.msra.mxu0 %v1247
  %1431 = vmatprep.subr.bf16.mxu0 %v1256
  %1432 = vmatpush1.bf16.msra.mxu0 %v1255
  %1433 = vmatprep.subr.bf16.mxu0 %v1264
  %1434 = vmatpush1.bf16.msra.mxu0 %v1263
  %1435 = vmatprep.subr.bf16.mxu0 %v1272
  %1436 = vmatpush1.bf16.msra.mxu0 %v1271
  %1437 = vmatprep.subr.bf16.mxu0 0
  %1438 = vmatpush1.bf16.msra.mxu0 0
  %1439 = vmatprep.subr.bf16.mxu0 0
  %1440 = vmatpush1.bf16.msra.mxu0 0
  %1441 = vmatprep.subr.bf16.mxu0 0
  %1442 = vmatpush1.bf16.msra.mxu0 0
  %1443 = vmatprep.subr.bf16.mxu0 0
  %1444 = vmatpush1.bf16.msra.mxu0 0
  %1445 = vmatprep.subr.bf16.mxu0 0
  %1446 = vmatpush1.bf16.msra.mxu0 0
  %1447 = vmatprep.subr.bf16.mxu0 0
  %1448 = vmatpush1.bf16.msra.mxu0 0
  %1449 = vmatprep.subr.bf16.mxu0 0
  %1450 = vmatpush1.bf16.msra.mxu0 0
  %1451 = vmatprep.subr.bf16.mxu0 0
  %1452 = vmatpush1.bf16.msra.mxu0 0
  %1453 = vmatprep.mubr.bf16.mxu0 0
  %1454 = vmatmul.mubr.bf16.gmra.mrb[0].mxu0 0
  %v1455 = vpop.f32.mrb[0].mxu0
  %v1456 = vadd.f32 0.0, %v1455
  %v1457 = vpop.f32.mrb[0].mxu0
  %v1458 = vadd.f32 0.0, %v1457
  %v1459 = vpop.f32.mrb[0].mxu0
  %v1460 = vpop.f32.mrb[0].mxu0
  %1461 = vdwg.mxu0
  %1462 = vmatprep.subr.bf16.mxu0 %v1218
  %1463 = vmatpush1.bf16.msra.mxu0 %v1217
  %1464 = vmatprep.subr.bf16.mxu0 %v1226
  %1465 = vmatpush1.bf16.msra.mxu0 %v1225
  %1466 = vmatprep.subr.bf16.mxu0 %v1234
  %1467 = vmatpush1.bf16.msra.mxu0 %v1233
  %1468 = vmatprep.subr.bf16.mxu0 %v1242
  %1469 = vmatpush1.bf16.msra.mxu0 %v1241
  %1470 = vmatprep.subr.bf16.mxu0 %v1250
  %1471 = vmatpush1.bf16.msra.mxu0 %v1249
  %1472 = vmatprep.subr.bf16.mxu0 %v1258
  %1473 = vmatpush1.bf16.msra.mxu0 %v1257
  %1474 = vmatprep.subr.bf16.mxu0 %v1266
  %1475 = vmatpush1.bf16.msra.mxu0 %v1265
  %1476 = vmatprep.subr.bf16.mxu0 %v1274
  %1477 = vmatpush1.bf16.msra.mxu0 %v1273
  %1478 = vmatprep.subr.bf16.mxu0 0
  %1479 = vmatpush1.bf16.msra.mxu0 0
  %1480 = vmatprep.subr.bf16.mxu0 0
  %1481 = vmatpush1.bf16.msra.mxu0 0
  %1482 = vmatprep.subr.bf16.mxu0 0
  %1483 = vmatpush1.bf16.msra.mxu0 0
  %1484 = vmatprep.subr.bf16.mxu0 0
  %1485 = vmatpush1.bf16.msra.mxu0 0
  %1486 = vmatprep.subr.bf16.mxu0 0
  %1487 = vmatpush1.bf16.msra.mxu0 0
  %1488 = vmatprep.subr.bf16.mxu0 0
  %1489 = vmatpush1.bf16.msra.mxu0 0
  %1490 = vmatprep.subr.bf16.mxu0 0
  %1491 = vmatpush1.bf16.msra.mxu0 0
  %1492 = vmatprep.subr.bf16.mxu0 0
  %1493 = vmatpush1.bf16.msra.mxu0 0
  %1494 = vmatprep.mubr.bf16.mxu0 0
  %1495 = vmatmul.mubr.bf16.gmra.mrb[0].mxu0 0
  %v1496 = vpop.f32.mrb[0].mxu0
  %v1497 = vadd.f32 0.0, %v1496
  %v1498 = vpop.f32.mrb[0].mxu0
  %v1499 = vadd.f32 0.0, %v1498
  %v1500 = vpop.f32.mrb[0].mxu0
  %v1501 = vpop.f32.mrb[0].mxu0
  %1502 = vdwg.mxu0
  %v1535 = vunpack.c.l.b16 %v501
  %v1536 = vunpack.c.h.b16 %v501
  %v1537 = vunpack.c.l.b16 %v502
  %v1538 = vunpack.c.h.b16 %v502
  %v1539 = vunpack.c.l.b16 %v503
  %v1540 = vunpack.c.h.b16 %v503
  %v1541 = vunpack.c.l.b16 %v504
  %v1542 = vunpack.c.h.b16 %v504
  %v1543 = vunpack.c.l.b16 %v505
  %v1544 = vunpack.c.h.b16 %v505
  %v1545 = vunpack.c.l.b16 %v506
  %v1546 = vunpack.c.h.b16 %v506
  %v1547 = vunpack.c.l.b16 %v507
  %v1548 = vunpack.c.h.b16 %v507
  %v1549 = vunpack.c.l.b16 %v508
  %v1550 = vunpack.c.h.b16 %v508
  %v1551 = vunpack.c.l.b16 %v509
  %v1552 = vunpack.c.h.b16 %v509
  %v1553 = vunpack.c.l.b16 %v510
  %v1554 = vunpack.c.h.b16 %v510
  %v1555 = vunpack.c.l.b16 %v511
  %v1556 = vunpack.c.h.b16 %v511
  %v1557 = vunpack.c.l.b16 %v512
  %v1558 = vunpack.c.h.b16 %v512
  %v1559 = vunpack.c.l.b16 %v513
  %v1560 = vunpack.c.h.b16 %v513
  %v1561 = vunpack.c.l.b16 %v514
  %v1562 = vunpack.c.h.b16 %v514
  %v1563 = vunpack.c.l.b16 %v515
  %v1564 = vunpack.c.h.b16 %v515
  %v1565 = vunpack.c.l.b16 %v516
  %v1566 = vunpack.c.h.b16 %v516
  %v1567 = vunpack.c.l.b16 %v517
  %v1568 = vunpack.c.h.b16 %v517
  %v1569 = vunpack.c.l.b16 %v518
  %v1570 = vunpack.c.h.b16 %v518
  %v1571 = vunpack.c.l.b16 %v519
  %v1572 = vunpack.c.h.b16 %v519
  %v1573 = vunpack.c.l.b16 %v520
  %v1574 = vunpack.c.h.b16 %v520
  %v1575 = vunpack.c.l.b16 %v521
  %v1576 = vunpack.c.h.b16 %v521
  %v1577 = vunpack.c.l.b16 %v522
  %v1578 = vunpack.c.h.b16 %v522
  %v1579 = vunpack.c.l.b16 %v523
  %v1580 = vunpack.c.h.b16 %v523
  %v1581 = vunpack.c.l.b16 %v524
  %v1582 = vunpack.c.h.b16 %v524
  %v1583 = vunpack.c.l.b16 %v525
  %v1584 = vunpack.c.h.b16 %v525
  %v1585 = vunpack.c.l.b16 %v526
  %v1586 = vunpack.c.h.b16 %v526
  %v1587 = vunpack.c.l.b16 %v527
  %v1588 = vunpack.c.h.b16 %v527
  %v1589 = vunpack.c.l.b16 %v528
  %v1590 = vunpack.c.h.b16 %v528
  %v1591 = vunpack.c.l.b16 %v529
  %v1592 = vunpack.c.h.b16 %v529
  %v1593 = vunpack.c.l.b16 %v530
  %v1594 = vunpack.c.h.b16 %v530
  %v1595 = vunpack.c.l.b16 %v531
  %v1596 = vunpack.c.h.b16 %v531
  %v1597 = vunpack.c.l.b16 %v532
  %v1598 = vunpack.c.h.b16 %v532
  %v1599 = vpack.c.b16 %v1539, %v1535
  %v1600 = vpack.c.b16 %v1540, %v1536
  %v1601 = vpack.c.b16 %v1541, %v1537
  %v1602 = vpack.c.b16 %v1542, %v1538
  %v1603 = vpack.c.b16 %v1547, %v1543
  %v1604 = vpack.c.b16 %v1548, %v1544
  %v1605 = vpack.c.b16 %v1549, %v1545
  %v1606 = vpack.c.b16 %v1550, %v1546
  %v1607 = vpack.c.b16 %v1555, %v1551
  %v1608 = vpack.c.b16 %v1556, %v1552
  %v1609 = vpack.c.b16 %v1557, %v1553
  %v1610 = vpack.c.b16 %v1558, %v1554
  %v1611 = vpack.c.b16 %v1563, %v1559
  %v1612 = vpack.c.b16 %v1564, %v1560
  %v1613 = vpack.c.b16 %v1565, %v1561
  %v1614 = vpack.c.b16 %v1566, %v1562
  %v1615 = vpack.c.b16 %v1571, %v1567
  %v1616 = vpack.c.b16 %v1572, %v1568
  %v1617 = vpack.c.b16 %v1573, %v1569
  %v1618 = vpack.c.b16 %v1574, %v1570
  %v1619 = vpack.c.b16 %v1579, %v1575
  %v1620 = vpack.c.b16 %v1580, %v1576
  %v1621 = vpack.c.b16 %v1581, %v1577
  %v1622 = vpack.c.b16 %v1582, %v1578
  %v1623 = vpack.c.b16 %v1587, %v1583
  %v1624 = vpack.c.b16 %v1588, %v1584
  %v1625 = vpack.c.b16 %v1589, %v1585
  %v1626 = vpack.c.b16 %v1590, %v1586
  %v1627 = vpack.c.b16 %v1595, %v1591
  %v1628 = vpack.c.b16 %v1596, %v1592
  %v1629 = vpack.c.b16 %v1597, %v1593
  %v1630 = vpack.c.b16 %v1598, %v1594
  %1663 = vmatprep.subr.bf16.mxu0 %v1600
  %1664 = vmatpush1.bf16.msra.mxu0 %v1599
  %1665 = vmatprep.subr.bf16.mxu0 %v1604
  %1666 = vmatpush1.bf16.msra.mxu0 %v1603
  %1667 = vmatprep.subr.bf16.mxu0 %v1608
  %1668 = vmatpush1.bf16.msra.mxu0 %v1607
  %1669 = vmatprep.subr.bf16.mxu0 %v1612
  %1670 = vmatpush1.bf16.msra.mxu0 %v1611
  %1671 = vmatprep.subr.bf16.mxu0 %v1616
  %1672 = vmatpush1.bf16.msra.mxu0 %v1615
  %1673 = vmatprep.subr.bf16.mxu0 %v1620
  %1674 = vmatpush1.bf16.msra.mxu0 %v1619
  %1675 = vmatprep.subr.bf16.mxu0 %v1624
  %1676 = vmatpush1.bf16.msra.mxu0 %v1623
  %1677 = vmatprep.subr.bf16.mxu0 %v1628
  %1678 = vmatpush1.bf16.msra.mxu0 %v1627
  %1679 = vmatprep.subr.bf16.mxu0 0
  %1680 = vmatpush1.bf16.msra.mxu0 0
  %1681 = vmatprep.subr.bf16.mxu0 0
  %1682 = vmatpush1.bf16.msra.mxu0 0
  %1683 = vmatprep.subr.bf16.mxu0 0
  %1684 = vmatpush1.bf16.msra.mxu0 0
  %1685 = vmatprep.subr.bf16.mxu0 0
  %1686 = vmatpush1.bf16.msra.mxu0 0
  %1687 = vmatprep.subr.bf16.mxu0 0
  %1688 = vmatpush1.bf16.msra.mxu0 0
  %1689 = vmatprep.subr.bf16.mxu0 0
  %1690 = vmatpush1.bf16.msra.mxu0 0
  %1691 = vmatprep.subr.bf16.mxu0 0
  %1692 = vmatpush1.bf16.msra.mxu0 0
  %1693 = vmatprep.subr.bf16.mxu0 0
  %1694 = vmatpush1.bf16.msra.mxu0 0
  %1695 = vmatprep.mubr.bf16.mxu0 0
  %1696 = vmatmul.mubr.bf16.gmra.mrb[0].mxu0 0
  %v1697 = vpop.f32.mrb[0].mxu0
  %v1698 = vadd.f32 0.0, %v1697
  %v1699 = vpop.f32.mrb[0].mxu0
  %v1700 = vadd.f32 0.0, %v1699
  %v1701 = vpop.f32.mrb[0].mxu0
  %v1702 = vpop.f32.mrb[0].mxu0
  %1703 = vdwg.mxu0
  %1704 = vmatprep.subr.bf16.mxu0 %v1602
  %1705 = vmatpush1.bf16.msra.mxu0 %v1601
  %1706 = vmatprep.subr.bf16.mxu0 %v1606
  %1707 = vmatpush1.bf16.msra.mxu0 %v1605
  %1708 = vmatprep.subr.bf16.mxu0 %v1610
  %1709 = vmatpush1.bf16.msra.mxu0 %v1609
  %1710 = vmatprep.subr.bf16.mxu0 %v1614
  %1711 = vmatpush1.bf16.msra.mxu0 %v1613
  %1712 = vmatprep.subr.bf16.mxu0 %v1618
  %1713 = vmatpush1.bf16.msra.mxu0 %v1617
  %1714 = vmatprep.subr.bf16.mxu0 %v1622
  %1715 = vmatpush1.bf16.msra.mxu0 %v1621
  %1716 = vmatprep.subr.bf16.mxu0 %v1626
  %1717 = vmatpush1.bf16.msra.mxu0 %v1625
  %1718 = vmatprep.subr.bf16.mxu0 %v1630
  %1719 = vmatpush1.bf16.msra.mxu0 %v1629
  %1720 = vmatprep.subr.bf16.mxu0 0
  %1721 = vmatpush1.bf16.msra.mxu0 0
  %1722 = vmatprep.subr.bf16.mxu0 0
  %1723 = vmatpush1.bf16.msra.mxu0 0
  %1724 = vmatprep.subr.bf16.mxu0 0
  %1725 = vmatpush1.bf16.msra.mxu0 0
  %1726 = vmatprep.subr.bf16.mxu0 0
  %1727 = vmatpush1.bf16.msra.mxu0 0
  %1728 = vmatprep.subr.bf16.mxu0 0
  %1729 = vmatpush1.bf16.msra.mxu0 0
  %1730 = vmatprep.subr.bf16.mxu0 0
  %1731 = vmatpush1.bf16.msra.mxu0 0
  %1732 = vmatprep.subr.bf16.mxu0 0
  %1733 = vmatpush1.bf16.msra.mxu0 0
  %1734 = vmatprep.subr.bf16.mxu0 0
  %1735 = vmatpush1.bf16.msra.mxu0 0
  %1736 = vmatprep.mubr.bf16.mxu0 0
  %1737 = vmatmul.mubr.bf16.gmra.mrb[0].mxu0 0
  %v1738 = vpop.f32.mrb[0].mxu0
  %v1739 = vadd.f32 0.0, %v1738
  %v1740 = vpop.f32.mrb[0].mxu0
  %v1741 = vadd.f32 0.0, %v1740
  %v1742 = vpop.f32.mrb[0].mxu0
  %v1743 = vpop.f32.mrb[0].mxu0
  %1744 = vdwg.mxu0
  %s1745 = smul.u32 0, 4
  %s1746 = smul.addr %s1745, 8
  %s1747 = scalar_lea.vmem [#allocation2], %s1746
  %v1748 = vld [vmem:[%s1747] sm:$0xff]
  %v1749 = vld [vmem:[%s1747 + $0x8] sm:$0xff]
  %v1750 = vld [vmem:[%s1747 + $0x10] sm:$0xff]
  %v1751 = vld [vmem:[%s1747 + $0x18] sm:$0xff]
  %v1752 = vadd.f32 %v1748, %v890
  %v1753 = vadd.f32 %v1749, %v892
  %v1754 = vadd.f32 %v1750, %v931
  %v1755 = vadd.f32 %v1751, %v933
  %v1756 = vxor.u32 %v1752, 2147483648
  %v1757 = vxor.u32 %v1753, 2147483648
  %v1758 = vxor.u32 %v1754, 2147483648
  %v1759 = vxor.u32 %v1755, 2147483648
  %v1760 = vmul.f32 %v1756, 1.442695
  %v1761 = vpow.pop %v1760
  %v1762 = vmul.f32 %v1757, 1.442695
  %v1763 = vpow.pop %v1762
  %v1764 = vmul.f32 %v1758, 1.442695
  %v1765 = vpow.pop %v1764
  %v1766 = vmul.f32 %v1759, 1.442695
  %v1767 = vpow.pop %v1766
  %v1768 = vadd.f32 %v1761, 1.0
  %v1769 = vadd.f32 %v1763, 1.0
  %v1770 = vadd.f32 %v1765, 1.0
  %v1771 = vadd.f32 %v1767, 1.0
  %v1772 = vrcp.pop %v1768
  %v1773 = vmul.f32 1.0, %v1772
  %v1774 = vrcp.pop %v1769
  %v1775 = vmul.f32 1.0, %v1774
  %v1776 = vrcp.pop %v1770
  %v1777 = vmul.f32 1.0, %v1776
  %v1778 = vrcp.pop %v1771
  %v1779 = vmul.f32 1.0, %v1778
  %v1780 = vmul.f32 %v1779, 2.0
  %v1781 = vsub.f32 %v1780, 1.0
  %v1782 = vmul.f32 %v1775, 0.0
  %v1783 = vmul.f32 %v1773, %v1781
  %v1784 = vadd.f32 %v1782, %v1783
  %v1785 = vtanh.pop %v1784
  %v1786 = vmul.f32 %v1777, %v1785
  %v1787 = vadd.f32 %v1786, 0.0
  %v1788 = vadd.f32 %v1784, 0.0
  %v1789 = vadd.f32 %v972, %v1374
  %v1790 = vadd.f32 %v974, %v1376
  %v1791 = vadd.f32 %v1013, %v1415
  %v1792 = vadd.f32 %v1015, %v1417
  %v1794 = vlaneseq
  %v1795 = vshrl.u32 %v1794, 7
  %v1796 = vsub.s32 0, %v1795
  %v1797 = vrot.slane %v533, %v1796
  %v1798 = vlaneseq
  %v1799 = vshrl.u32 %v1798, 7
  %v1800 = vsub.s32 1, %v1799
  %v1801 = vrot.slane %v533, %v1800
  %v1802 = vlaneseq
  %v1803 = vshrl.u32 %v1802, 7
  %v1804 = vsub.s32 2, %v1803
  %v1805 = vrot.slane %v533, %v1804
  %v1806 = vlaneseq
  %v1807 = vshrl.u32 %v1806, 7
  %v1808 = vsub.s32 3, %v1807
  %v1809 = vrot.slane %v533, %v1808
  %v1814 = vadd.f32 %v1789, %v1797
  %v1815 = vadd.f32 %v1790, %v1801
  %v1816 = vadd.f32 %v1791, %v1805
  %v1817 = vadd.f32 %v1792, %v1809
  %v1818 = vxor.u32 %v1814, 2147483648
  %v1819 = vxor.u32 %v1815, 2147483648
  %v1820 = vxor.u32 %v1816, 2147483648
  %v1821 = vxor.u32 %v1817, 2147483648
  %v1822 = vmul.f32 %v1818, 1.442695
  %v1823 = vpow.pop %v1822
  %v1824 = vmul.f32 %v1819, 1.442695
  %v1825 = vpow.pop %v1824
  %v1826 = vmul.f32 %v1820, 1.442695
  %v1827 = vpow.pop %v1826
  %v1828 = vmul.f32 %v1821, 1.442695
  %v1829 = vpow.pop %v1828
  %v1830 = vadd.f32 %v1823, 1.0
  %v1831 = vadd.f32 %v1825, 1.0
  %v1832 = vadd.f32 %v1827, 1.0
  %v1833 = vadd.f32 %v1829, 1.0
  %v1834 = vrcp.pop %v1830
  %v1835 = vmul.f32 1.0, %v1834
  %v1836 = vrcp.pop %v1831
  %v1837 = vmul.f32 1.0, %v1836
  %v1838 = vrcp.pop %v1832
  %v1839 = vmul.f32 1.0, %v1838
  %v1840 = vrcp.pop %v1833
  %v1841 = vmul.f32 1.0, %v1840
  %v1842 = vmul.f32 %v1841, 2.0
  %v1843 = vsub.f32 %v1842, 1.0
  %v1844 = vmul.f32 %v1837, 0.0
  %v1845 = vmul.f32 %v1835, %v1843
  %v1846 = vadd.f32 %v1844, %v1845
  %v1847 = vtanh.pop %v1846
  %v1848 = vmul.f32 %v1839, %v1847
  %v1849 = vmul.f32 %v1848, 0.0
  %v1850 = vadd.f32 %v1849, 0.0
  %v1851 = vmul.f32 %v1846, 0.0
  %v1852 = vadd.f32 %v1851, 0.0
  %v1853 = vadd.f32 %v1456, %v1698
  %v1854 = vadd.f32 %v1458, %v1700
  %v1855 = vadd.f32 %v1497, %v1739
  %v1856 = vadd.f32 %v1499, %v1741
  %v1858 = vlaneseq
  %v1859 = vshrl.u32 %v1858, 7
  %v1860 = vsub.s32 0, %v1859
  %v1861 = vrot.slane %v534, %v1860
  %v1862 = vlaneseq
  %v1863 = vshrl.u32 %v1862, 7
  %v1864 = vsub.s32 1, %v1863
  %v1865 = vrot.slane %v534, %v1864
  %v1866 = vlaneseq
  %v1867 = vshrl.u32 %v1866, 7
  %v1868 = vsub.s32 2, %v1867
  %v1869 = vrot.slane %v534, %v1868
  %v1870 = vlaneseq
  %v1871 = vshrl.u32 %v1870, 7
  %v1872 = vsub.s32 3, %v1871
  %v1873 = vrot.slane %v534, %v1872
  %v1878 = vadd.f32 %v1853, %v1861
  %v1879 = vadd.f32 %v1854, %v1865
  %v1880 = vadd.f32 %v1855, %v1869
  %v1881 = vadd.f32 %v1856, %v1873
  %v1882 = vxor.u32 %v1878, 2147483648
  %v1883 = vxor.u32 %v1879, 2147483648
  %v1884 = vxor.u32 %v1880, 2147483648
  %v1885 = vxor.u32 %v1881, 2147483648
  %v1886 = vmul.f32 %v1882, 1.442695
  %v1887 = vpow.pop %v1886
  %v1888 = vmul.f32 %v1883, 1.442695
  %v1889 = vpow.pop %v1888
  %v1890 = vmul.f32 %v1884, 1.442695
  %v1891 = vpow.pop %v1890
  %v1892 = vmul.f32 %v1885, 1.442695
  %v1893 = vpow.pop %v1892
  %v1894 = vadd.f32 %v1887, 1.0
  %v1895 = vadd.f32 %v1889, 1.0
  %v1896 = vadd.f32 %v1891, 1.0
  %v1897 = vadd.f32 %v1893, 1.0
  %v1898 = vrcp.pop %v1894
  %v1899 = vmul.f32 1.0, %v1898
  %v1900 = vrcp.pop %v1895
  %v1901 = vmul.f32 1.0, %v1900
  %v1902 = vrcp.pop %v1896
  %v1903 = vmul.f32 1.0, %v1902
  %v1904 = vrcp.pop %v1897
  %v1905 = vmul.f32 1.0, %v1904
  %v1906 = vmul.f32 %v1905, 2.0
  %v1907 = vsub.f32 %v1906, 1.0
  %v1908 = vmul.f32 %v1901, 0.0
  %v1909 = vmul.f32 %v1899, %v1907
  %v1910 = vadd.f32 %v1908, %v1909
  %v1911 = vtanh.pop %v1910
  %v1912 = vmul.f32 %v1903, %v1911
  %v1913 = vmul.f32 %v1912, 0.0
  %v1914 = vadd.f32 %v1913, 0.0
  %v1915 = vmul.f32 %v1910, 0.0
  %v1916 = vadd.f32 %v1915, 0.0
  %v1917 = vpack.c.bf16 %v1787, %v1787
  %1918 = vmatprep.subr.bf16.mxu0 %v728
  %1919 = vmatpush1.bf16.msra.mxu0 %v727
  %1920 = vmatprep.subr.bf16.mxu0 %v736
  %1921 = vmatpush1.bf16.msra.mxu0 %v735
  %1922 = vmatprep.subr.bf16.mxu0 %v744
  %1923 = vmatpush1.bf16.msra.mxu0 %v743
  %1924 = vmatprep.subr.bf16.mxu0 %v752
  %1925 = vmatpush1.bf16.msra.mxu0 %v751
  %1926 = vmatprep.subr.bf16.mxu0 %v760
  %1927 = vmatpush1.bf16.msra.mxu0 %v759
  %1928 = vmatprep.subr.bf16.mxu0 %v768
  %1929 = vmatpush1.bf16.msra.mxu0 %v767
  %1930 = vmatprep.subr.bf16.mxu0 %v776
  %1931 = vmatpush1.bf16.msra.mxu0 %v775
  %1932 = vmatprep.subr.bf16.mxu0 %v784
  %1933 = vmatpush1.bf16.msra.mxu0 %v783
  %1934 = vmatprep.subr.bf16.mxu0 0
  %1935 = vmatpush1.bf16.msra.mxu0 0
  %1936 = vmatprep.subr.bf16.mxu0 0
  %1937 = vmatpush1.bf16.msra.mxu0 0
  %1938 = vmatprep.subr.bf16.mxu0 0
  %1939 = vmatpush1.bf16.msra.mxu0 0
  %1940 = vmatprep.subr.bf16.mxu0 0
  %1941 = vmatpush1.bf16.msra.mxu0 0
  %1942 = vmatprep.subr.bf16.mxu0 0
  %1943 = vmatpush1.bf16.msra.mxu0 0
  %1944 = vmatprep.subr.bf16.mxu0 0
  %1945 = vmatpush1.bf16.msra.mxu0 0
  %1946 = vmatprep.subr.bf16.mxu0 0
  %1947 = vmatpush1.bf16.msra.mxu0 0
  %1948 = vmatprep.subr.bf16.mxu0 0
  %1949 = vmatpush1.bf16.msra.mxu0 0
  %1950 = vmatprep.mubr.bf16.mxu0 0
  %1951 = vmatmul.mubr.bf16.gmra.mrb[0].mxu0 %v1917
  %v1952 = vpop.f32.mrb[0].mxu0
  %v1953 = vadd.f32 0.0, %v1952
  %v1954 = vpop.f32.mrb[0].mxu0
  %v1955 = vadd.f32 0.0, %v1954
  %v1956 = vpop.f32.mrb[0].mxu0
  %v1957 = vpop.f32.mrb[0].mxu0
  %1958 = vdwg.mxu0
  %1959 = vmatprep.subr.bf16.mxu0 %v730
  %1960 = vmatpush1.bf16.msra.mxu0 %v729
  %1961 = vmatprep.subr.bf16.mxu0 %v738
  %1962 = vmatpush1.bf16.msra.mxu0 %v737
  %1963 = vmatprep.subr.bf16.mxu0 %v746
  %1964 = vmatpush1.bf16.msra.mxu0 %v745
  %1965 = vmatprep.subr.bf16.mxu0 %v754
  %1966 = vmatpush1.bf16.msra.mxu0 %v753
  %1967 = vmatprep.subr.bf16.mxu0 %v762
  %1968 = vmatpush1.bf16.msra.mxu0 %v761
  %1969 = vmatprep.subr.bf16.mxu0 %v770
  %1970 = vmatpush1.bf16.msra.mxu0 %v769
  %1971 = vmatprep.subr.bf16.mxu0 %v778
  %1972 = vmatpush1.bf16.msra.mxu0 %v777
  %1973 = vmatprep.subr.bf16.mxu0 %v786
  %1974 = vmatpush1.bf16.msra.mxu0 %v785
  %1975 = vmatprep.subr.bf16.mxu0 0
  %1976 = vmatpush1.bf16.msra.mxu0 0
  %1977 = vmatprep.subr.bf16.mxu0 0
  %1978 = vmatpush1.bf16.msra.mxu0 0
  %1979 = vmatprep.subr.bf16.mxu0 0
  %1980 = vmatpush1.bf16.msra.mxu0 0
  %1981 = vmatprep.subr.bf16.mxu0 0
  %1982 = vmatpush1.bf16.msra.mxu0 0
  %1983 = vmatprep.subr.bf16.mxu0 0
  %1984 = vmatpush1.bf16.msra.mxu0 0
  %1985 = vmatprep.subr.bf16.mxu0 0
  %1986 = vmatpush1.bf16.msra.mxu0 0
  %1987 = vmatprep.subr.bf16.mxu0 0
  %1988 = vmatpush1.bf16.msra.mxu0 0
  %1989 = vmatprep.subr.bf16.mxu0 0
  %1990 = vmatpush1.bf16.msra.mxu0 0
  %1991 = vmatprep.mubr.bf16.mxu0 0
  %1992 = vmatmul.mubr.bf16.gmra.mrb[0].mxu0 %v1917
  %v1993 = vpop.f32.mrb[0].mxu0
  %v1994 = vadd.f32 0.0, %v1993
  %v1995 = vpop.f32.mrb[0].mxu0
  %v1996 = vadd.f32 0.0, %v1995
  %v1997 = vpop.f32.mrb[0].mxu0
  %v1998 = vpop.f32.mrb[0].mxu0
  %1999 = vdwg.mxu0
  %2000 = vmatprep.subr.bf16.mxu0 %v732
  %2001 = vmatpush1.bf16.msra.mxu0 %v731
  %2002 = vmatprep.subr.bf16.mxu0 %v740
  %2003 = vmatpush1.bf16.msra.mxu0 %v739
  %2004 = vmatprep.subr.bf16.mxu0 %v748
  %2005 = vmatpush1.bf16.msra.mxu0 %v747
  %2006 = vmatprep.subr.bf16.mxu0 %v756
  %2007 = vmatpush1.bf16.msra.mxu0 %v755
  %2008 = vmatprep.subr.bf16.mxu0 %v764
  %2009 = vmatpush1.bf16.msra.mxu0 %v763
  %2010 = vmatprep.subr.bf16.mxu0 %v772
  %2011 = vmatpush1.bf16.msra.mxu0 %v771
  %2012 = vmatprep.subr.bf16.mxu0 %v780
  %2013 = vmatpush1.bf16.msra.mxu0 %v779
  %2014 = vmatprep.subr.bf16.mxu0 %v788
  %2015 = vmatpush1.bf16.msra.mxu0 %v787
  %2016 = vmatprep.subr.bf16.mxu0 0
  %2017 = vmatpush1.bf16.msra.mxu0 0
  %2018 = vmatprep.subr.bf16.mxu0 0
  %2019 = vmatpush1.bf16.msra.mxu0 0
  %2020 = vmatprep.subr.bf16.mxu0 0
  %2021 = vmatpush1.bf16.msra.mxu0 0
  %2022 = vmatprep.subr.bf16.mxu0 0
  %2023 = vmatpush1.bf16.msra.mxu0 0
  %2024 = vmatprep.subr.bf16.mxu0 0
  %2025 = vmatpush1.bf16.msra.mxu0 0
  %2026 = vmatprep.subr.bf16.mxu0 0
  %2027 = vmatpush1.bf16.msra.mxu0 0
  %2028 = vmatprep.subr.bf16.mxu0 0
  %2029 = vmatpush1.bf16.msra.mxu0 0
  %2030 = vmatprep.subr.bf16.mxu0 0
  %2031 = vmatpush1.bf16.msra.mxu0 0
  %2032 = vmatprep.mubr.bf16.mxu0 0
  %2033 = vmatmul.mubr.bf16.gmra.mrb[0].mxu0 %v1917
  %v2034 = vpop.f32.mrb[0].mxu0
  %v2035 = vadd.f32 0.0, %v2034
  %v2036 = vpop.f32.mrb[0].mxu0
  %v2037 = vadd.f32 0.0, %v2036
  %v2038 = vpop.f32.mrb[0].mxu0
  %v2039 = vpop.f32.mrb[0].mxu0
  %2040 = vdwg.mxu0
  %2041 = vmatprep.subr.bf16.mxu0 %v734
  %2042 = vmatpush1.bf16.msra.mxu0 %v733
  %2043 = vmatprep.subr.bf16.mxu0 %v742
  %2044 = vmatpush1.bf16.msra.mxu0 %v741
  %2045 = vmatprep.subr.bf16.mxu0 %v750
  %2046 = vmatpush1.bf16.msra.mxu0 %v749
  %2047 = vmatprep.subr.bf16.mxu0 %v758
  %2048 = vmatpush1.bf16.msra.mxu0 %v757
  %2049 = vmatprep.subr.bf16.mxu0 %v766
  %2050 = vmatpush1.bf16.msra.mxu0 %v765
  %2051 = vmatprep.subr.bf16.mxu0 %v774
  %2052 = vmatpush1.bf16.msra.mxu0 %v773
  %2053 = vmatprep.subr.bf16.mxu0 %v782
  %2054 = vmatpush1.bf16.msra.mxu0 %v781
  %2055 = vmatprep.subr.bf16.mxu0 %v790
  %2056 = vmatpush1.bf16.msra.mxu0 %v789
  %2057 = vmatprep.subr.bf16.mxu0 0
  %2058 = vmatpush1.bf16.msra.mxu0 0
  %2059 = vmatprep.subr.bf16.mxu0 0
  %2060 = vmatpush1.bf16.msra.mxu0 0
  %2061 = vmatprep.subr.bf16.mxu0 0
  %2062 = vmatpush1.bf16.msra.mxu0 0
  %2063 = vmatprep.subr.bf16.mxu0 0
  %2064 = vmatpush1.bf16.msra.mxu0 0
  %2065 = vmatprep.subr.bf16.mxu0 0
  %2066 = vmatpush1.bf16.msra.mxu0 0
  %2067 = vmatprep.subr.bf16.mxu0 0
  %2068 = vmatpush1.bf16.msra.mxu0 0
  %2069 = vmatprep.subr.bf16.mxu0 0
  %2070 = vmatpush1.bf16.msra.mxu0 0
  %2071 = vmatprep.subr.bf16.mxu0 0
  %2072 = vmatpush1.bf16.msra.mxu0 0
  %2073 = vmatprep.mubr.bf16.mxu0 0
  %2074 = vmatmul.mubr.bf16.gmra.mrb[0].mxu0 %v1917
  %v2075 = vpop.f32.mrb[0].mxu0
  %v2076 = vadd.f32 0.0, %v2075
  %v2077 = vpop.f32.mrb[0].mxu0
  %v2078 = vadd.f32 0.0, %v2077
  %v2079 = vpop.f32.mrb[0].mxu0
  %v2080 = vpop.f32.mrb[0].mxu0
  %2081 = vdwg.mxu0
  %v2082 = vpack.c.bf16 %v1850, %v1850
  %2083 = vmatprep.subr.bf16.mxu0 %v1212
  %2084 = vmatpush1.bf16.msra.mxu0 %v1211
  %2085 = vmatprep.subr.bf16.mxu0 %v1220
  %2086 = vmatpush1.bf16.msra.mxu0 %v1219
  %2087 = vmatprep.subr.bf16.mxu0 %v1228
  %2088 = vmatpush1.bf16.msra.mxu0 %v1227
  %2089 = vmatprep.subr.bf16.mxu0 %v1236
  %2090 = vmatpush1.bf16.msra.mxu0 %v1235
  %2091 = vmatprep.subr.bf16.mxu0 %v1244
  %2092 = vmatpush1.bf16.msra.mxu0 %v1243
  %2093 = vmatprep.subr.bf16.mxu0 %v1252
  %2094 = vmatpush1.bf16.msra.mxu0 %v1251
  %2095 = vmatprep.subr.bf16.mxu0 %v1260
  %2096 = vmatpush1.bf16.msra.mxu0 %v1259
  %2097 = vmatprep.subr.bf16.mxu0 %v1268
  %2098 = vmatpush1.bf16.msra.mxu0 %v1267
  %2099 = vmatprep.subr.bf16.mxu0 0
  %2100 = vmatpush1.bf16.msra.mxu0 0
  %2101 = vmatprep.subr.bf16.mxu0 0
  %2102 = vmatpush1.bf16.msra.mxu0 0
  %2103 = vmatprep.subr.bf16.mxu0 0
  %2104 = vmatpush1.bf16.msra.mxu0 0
  %2105 = vmatprep.subr.bf16.mxu0 0
  %2106 = vmatpush1.bf16.msra.mxu0 0
  %2107 = vmatprep.subr.bf16.mxu0 0
  %2108 = vmatpush1.bf16.msra.mxu0 0
  %2109 = vmatprep.subr.bf16.mxu0 0
  %2110 = vmatpush1.bf16.msra.mxu0 0
  %2111 = vmatprep.subr.bf16.mxu0 0
  %2112 = vmatpush1.bf16.msra.mxu0 0
  %2113 = vmatprep.subr.bf16.mxu0 0
  %2114 = vmatpush1.bf16.msra.mxu0 0
  %2115 = vmatprep.mubr.bf16.mxu0 0
  %2116 = vmatmul.mubr.bf16.gmra.mrb[0].mxu0 %v2082
  %v2117 = vpop.f32.mrb[0].mxu0
  %v2118 = vadd.f32 0.0, %v2117
  %v2119 = vpop.f32.mrb[0].mxu0
  %v2120 = vadd.f32 0.0, %v2119
  %v2121 = vpop.f32.mrb[0].mxu0
  %v2122 = vpop.f32.mrb[0].mxu0
  %2123 = vdwg.mxu0
  %2124 = vmatprep.subr.bf16.mxu0 %v1214
  %2125 = vmatpush1.bf16.msra.mxu0 %v1213
  %2126 = vmatprep.subr.bf16.mxu0 %v1222
  %2127 = vmatpush1.bf16.msra.mxu0 %v1221
  %2128 = vmatprep.subr.bf16.mxu0 %v1230
  %2129 = vmatpush1.bf16.msra.mxu0 %v1229
  %2130 = vmatprep.subr.bf16.mxu0 %v1238
  %2131 = vmatpush1.bf16.msra.mxu0 %v1237
  %2132 = vmatprep.subr.bf16.mxu0 %v1246
  %2133 = vmatpush1.bf16.msra.mxu0 %v1245
  %2134 = vmatprep.subr.bf16.mxu0 %v1254
  %2135 = vmatpush1.bf16.msra.mxu0 %v1253
  %2136 = vmatprep.subr.bf16.mxu0 %v1262
  %2137 = vmatpush1.bf16.msra.mxu0 %v1261
  %2138 = vmatprep.subr.bf16.mxu0 %v1270
  %2139 = vmatpush1.bf16.msra.mxu0 %v1269
  %2140 = vmatprep.subr.bf16.mxu0 0
  %2141 = vmatpush1.bf16.msra.mxu0 0
  %2142 = vmatprep.subr.bf16.mxu0 0
  %2143 = vmatpush1.bf16.msra.mxu0 0
  %2144 = vmatprep.subr.bf16.mxu0 0
  %2145 = vmatpush1.bf16.msra.mxu0 0
  %2146 = vmatprep.subr.bf16.mxu0 0
  %2147 = vmatpush1.bf16.msra.mxu0 0
  %2148 = vmatprep.subr.bf16.mxu0 0
  %2149 = vmatpush1.bf16.msra.mxu0 0
  %2150 = vmatprep.subr.bf16.mxu0 0
  %2151 = vmatpush1.bf16.msra.mxu0 0
  %2152 = vmatprep.subr.bf16.mxu0 0
  %2153 = vmatpush1.bf16.msra.mxu0 0
  %2154 = vmatprep.subr.bf16.mxu0 0
  %2155 = vmatpush1.bf16.msra.mxu0 0
  %2156 = vmatprep.mubr.bf16.mxu0 0
  %2157 = vmatmul.mubr.bf16.gmra.mrb[0].mxu0 %v2082
  %v2158 = vpop.f32.mrb[0].mxu0
  %v2159 = vadd.f32 0.0, %v2158
  %v2160 = vpop.f32.mrb[0].mxu0
  %v2161 = vadd.f32 0.0, %v2160
  %v2162 = vpop.f32.mrb[0].mxu0
  %v2163 = vpop.f32.mrb[0].mxu0
  %2164 = vdwg.mxu0
  %2165 = vmatprep.subr.bf16.mxu0 %v1216
  %2166 = vmatpush1.bf16.msra.mxu0 %v1215
  %2167 = vmatprep.subr.bf16.mxu0 %v1224
  %2168 = vmatpush1.bf16.msra.mxu0 %v1223
  %2169 = vmatprep.subr.bf16.mxu0 %v1232
  %2170 = vmatpush1.bf16.msra.mxu0 %v1231
  %2171 = vmatprep.subr.bf16.mxu0 %v1240
  %2172 = vmatpush1.bf16.msra.mxu0 %v1239
  %2173 = vmatprep.subr.bf16.mxu0 %v1248
  %2174 = vmatpush1.bf16.msra.mxu0 %v1247
  %2175 = vmatprep.subr.bf16.mxu0 %v1256
  %2176 = vmatpush1.bf16.msra.mxu0 %v1255
  %2177 = vmatprep.subr.bf16.mxu0 %v1264
  %2178 = vmatpush1.bf16.msra.mxu0 %v1263
  %2179 = vmatprep.subr.bf16.mxu0 %v1272
  %2180 = vmatpush1.bf16.msra.mxu0 %v1271
  %2181 = vmatprep.subr.bf16.mxu0 0
  %2182 = vmatpush1.bf16.msra.mxu0 0
  %2183 = vmatprep.subr.bf16.mxu0 0
  %2184 = vmatpush1.bf16.msra.mxu0 0
  %2185 = vmatprep.subr.bf16.mxu0 0
  %2186 = vmatpush1.bf16.msra.mxu0 0
  %2187 = vmatprep.subr.bf16.mxu0 0
  %2188 = vmatpush1.bf16.msra.mxu0 0
  %2189 = vmatprep.subr.bf16.mxu0 0
  %2190 = vmatpush1.bf16.msra.mxu0 0
  %2191 = vmatprep.subr.bf16.mxu0 0
  %2192 = vmatpush1.bf16.msra.mxu0 0
  %2193 = vmatprep.subr.bf16.mxu0 0
  %2194 = vmatpush1.bf16.msra.mxu0 0
  %2195 = vmatprep.subr.bf16.mxu0 0
  %2196 = vmatpush1.bf16.msra.mxu0 0
  %2197 = vmatprep.mubr.bf16.mxu0 0
  %2198 = vmatmul.mubr.bf16.gmra.mrb[0].mxu0 %v2082
  %v2199 = vpop.f32.mrb[0].mxu0
  %v2200 = vadd.f32 0.0, %v2199
  %v2201 = vpop.f32.mrb[0].mxu0
  %v2202 = vadd.f32 0.0, %v2201
  %v2203 = vpop.f32.mrb[0].mxu0
  %v2204 = vpop.f32.mrb[0].mxu0
  %2205 = vdwg.mxu0
  %2206 = vmatprep.subr.bf16.mxu0 %v1218
  %2207 = vmatpush1.bf16.msra.mxu0 %v1217
  %2208 = vmatprep.subr.bf16.mxu0 %v1226
  %2209 = vmatpush1.bf16.msra.mxu0 %v1225
  %2210 = vmatprep.subr.bf16.mxu0 %v1234
  %2211 = vmatpush1.bf16.msra.mxu0 %v1233
  %2212 = vmatprep.subr.bf16.mxu0 %v1242
  %2213 = vmatpush1.bf16.msra.mxu0 %v1241
  %2214 = vmatprep.subr.bf16.mxu0 %v1250
  %2215 = vmatpush1.bf16.msra.mxu0 %v1249
  %2216 = vmatprep.subr.bf16.mxu0 %v1258
  %2217 = vmatpush1.bf16.msra.mxu0 %v1257
  %2218 = vmatprep.subr.bf16.mxu0 %v1266
  %2219 = vmatpush1.bf16.msra.mxu0 %v1265
  %2220 = vmatprep.subr.bf16.mxu0 %v1274
  %2221 = vmatpush1.bf16.msra.mxu0 %v1273
  %2222 = vmatprep.subr.bf16.mxu0 0
  %2223 = vmatpush1.bf16.msra.mxu0 0
  %2224 = vmatprep.subr.bf16.mxu0 0
  %2225 = vmatpush1.bf16.msra.mxu0 0
  %2226 = vmatprep.subr.bf16.mxu0 0
  %2227 = vmatpush1.bf16.msra.mxu0 0
  %2228 = vmatprep.subr.bf16.mxu0 0
  %2229 = vmatpush1.bf16.msra.mxu0 0
  %2230 = vmatprep.subr.bf16.mxu0 0
  %2231 = vmatpush1.bf16.msra.mxu0 0
  %2232 = vmatprep.subr.bf16.mxu0 0
  %2233 = vmatpush1.bf16.msra.mxu0 0
  %2234 = vmatprep.subr.bf16.mxu0 0
  %2235 = vmatpush1.bf16.msra.mxu0 0
  %2236 = vmatprep.subr.bf16.mxu0 0
  %2237 = vmatpush1.bf16.msra.mxu0 0
  %2238 = vmatprep.mubr.bf16.mxu0 0
  %2239 = vmatmul.mubr.bf16.gmra.mrb[0].mxu0 %v2082
  %v2240 = vpop.f32.mrb[0].mxu0
  %v2241 = vadd.f32 0.0, %v2240
  %v2242 = vpop.f32.mrb[0].mxu0
  %v2243 = vadd.f32 0.0, %v2242
  %v2244 = vpop.f32.mrb[0].mxu0
  %v2245 = vpop.f32.mrb[0].mxu0
  %2246 = vdwg.mxu0
  %v2247 = vpack.c.bf16 %v1914, %v1914
  %2248 = vmatprep.subr.bf16.mxu0 %v1600
  %2249 = vmatpush1.bf16.msra.mxu0 %v1599
  %2250 = vmatprep.subr.bf16.mxu0 %v1604
  %2251 = vmatpush1.bf16.msra.mxu0 %v1603
  %2252 = vmatprep.subr.bf16.mxu0 %v1608
  %2253 = vmatpush1.bf16.msra.mxu0 %v1607
  %2254 = vmatprep.subr.bf16.mxu0 %v1612
  %2255 = vmatpush1.bf16.msra.mxu0 %v1611
  %2256 = vmatprep.subr.bf16.mxu0 %v1616
  %2257 = vmatpush1.bf16.msra.mxu0 %v1615
  %2258 = vmatprep.subr.bf16.mxu0 %v1620
  %2259 = vmatpush1.bf16.msra.mxu0 %v1619
  %2260 = vmatprep.subr.bf16.mxu0 %v1624
  %2261 = vmatpush1.bf16.msra.mxu0 %v1623
  %2262 = vmatprep.subr.bf16.mxu0 %v1628
  %2263 = vmatpush1.bf16.msra.mxu0 %v1627
  %2264 = vmatprep.subr.bf16.mxu0 0
  %2265 = vmatpush1.bf16.msra.mxu0 0
  %2266 = vmatprep.subr.bf16.mxu0 0
  %2267 = vmatpush1.bf16.msra.mxu0 0
  %2268 = vmatprep.subr.bf16.mxu0 0
  %2269 = vmatpush1.bf16.msra.mxu0 0
  %2270 = vmatprep.subr.bf16.mxu0 0
  %2271 = vmatpush1.bf16.msra.mxu0 0
  %2272 = vmatprep.subr.bf16.mxu0 0
  %2273 = vmatpush1.bf16.msra.mxu0 0
  %2274 = vmatprep.subr.bf16.mxu0 0
  %2275 = vmatpush1.bf16.msra.mxu0 0
  %2276 = vmatprep.subr.bf16.mxu0 0
  %2277 = vmatpush1.bf16.msra.mxu0 0
  %2278 = vmatprep.subr.bf16.mxu0 0
  %2279 = vmatpush1.bf16.msra.mxu0 0
  %2280 = vmatprep.mubr.bf16.mxu0 0
  %2281 = vmatmul.mubr.bf16.gmra.mrb[0].mxu0 %v2247
  %v2282 = vpop.f32.mrb[0].mxu0
  %v2283 = vadd.f32 0.0, %v2282
  %v2284 = vpop.f32.mrb[0].mxu0
  %v2285 = vadd.f32 0.0, %v2284
  %v2286 = vpop.f32.mrb[0].mxu0
  %v2287 = vpop.f32.mrb[0].mxu0
  %2288 = vdwg.mxu0
  %2289 = vmatprep.subr.bf16.mxu0 %v1602
  %2290 = vmatpush1.bf16.msra.mxu0 %v1601
  %2291 = vmatprep.subr.bf16.mxu0 %v1606
  %2292 = vmatpush1.bf16.msra.mxu0 %v1605
  %2293 = vmatprep.subr.bf16.mxu0 %v1610
  %2294 = vmatpush1.bf16.msra.mxu0 %v1609
  %2295 = vmatprep.subr.bf16.mxu0 %v1614
  %2296 = vmatpush1.bf16.msra.mxu0 %v1613
  %2297 = vmatprep.subr.bf16.mxu0 %v1618
  %2298 = vmatpush1.bf16.msra.mxu0 %v1617
  %2299 = vmatprep.subr.bf16.mxu0 %v1622
  %2300 = vmatpush1.bf16.msra.mxu0 %v1621
  %2301 = vmatprep.subr.bf16.mxu0 %v1626
  %2302 = vmatpush1.bf16.msra.mxu0 %v1625
  %2303 = vmatprep.subr.bf16.mxu0 %v1630
  %2304 = vmatpush1.bf16.msra.mxu0 %v1629
  %2305 = vmatprep.subr.bf16.mxu0 0
  %2306 = vmatpush1.bf16.msra.mxu0 0
  %2307 = vmatprep.subr.bf16.mxu0 0
  %2308 = vmatpush1.bf16.msra.mxu0 0
  %2309 = vmatprep.subr.bf16.mxu0 0
  %2310 = vmatpush1.bf16.msra.mxu0 0
  %2311 = vmatprep.subr.bf16.mxu0 0
  %2312 = vmatpush1.bf16.msra.mxu0 0
  %2313 = vmatprep.subr.bf16.mxu0 0
  %2314 = vmatpush1.bf16.msra.mxu0 0
  %2315 = vmatprep.subr.bf16.mxu0 0
  %2316 = vmatpush1.bf16.msra.mxu0 0
  %2317 = vmatprep.subr.bf16.mxu0 0
  %2318 = vmatpush1.bf16.msra.mxu0 0
  %2319 = vmatprep.subr.bf16.mxu0 0
  %2320 = vmatpush1.bf16.msra.mxu0 0
  %2321 = vmatprep.mubr.bf16.mxu0 0
  %2322 = vmatmul.mubr.bf16.gmra.mrb[0].mxu0 %v2247
  %v2323 = vpop.f32.mrb[0].mxu0
  %v2324 = vadd.f32 0.0, %v2323
  %v2325 = vpop.f32.mrb[0].mxu0
  %v2326 = vadd.f32 0.0, %v2325
  %v2327 = vpop.f32.mrb[0].mxu0
  %v2328 = vpop.f32.mrb[0].mxu0
  %2329 = vdwg.mxu0
  %s2330 = smul.u32 1, 4
  %s2331 = smul.addr %s2330, 8
  %s2332 = scalar_lea.vmem [#allocation2], %s2331
  %v2333 = vld [vmem:[%s2332] sm:$0xff]
  %v2334 = vld [vmem:[%s2332 + $0x8] sm:$0xff]
  %v2335 = vld [vmem:[%s2332 + $0x10] sm:$0xff]
  %v2336 = vld [vmem:[%s2332 + $0x18] sm:$0xff]
  %v2337 = vadd.f32 %v2333, %v1953
  %v2338 = vadd.f32 %v2334, %v1955
  %v2339 = vadd.f32 %v2335, %v1994
  %v2340 = vadd.f32 %v2336, %v1996
  %v2341 = vxor.u32 %v2337, 2147483648
  %v2342 = vxor.u32 %v2338, 2147483648
  %v2343 = vxor.u32 %v2339, 2147483648
  %v2344 = vxor.u32 %v2340, 2147483648
  %v2345 = vmul.f32 %v2341, 1.442695
  %v2346 = vpow.pop %v2345
  %v2347 = vmul.f32 %v2342, 1.442695
  %v2348 = vpow.pop %v2347
  %v2349 = vmul.f32 %v2343, 1.442695
  %v2350 = vpow.pop %v2349
  %v2351 = vmul.f32 %v2344, 1.442695
  %v2352 = vpow.pop %v2351
  %v2353 = vadd.f32 %v2346, 1.0
  %v2354 = vadd.f32 %v2348, 1.0
  %v2355 = vadd.f32 %v2350, 1.0
  %v2356 = vadd.f32 %v2352, 1.0
  %v2357 = vrcp.pop %v2353
  %v2358 = vmul.f32 1.0, %v2357
  %v2359 = vrcp.pop %v2354
  %v2360 = vmul.f32 1.0, %v2359
  %v2361 = vrcp.pop %v2355
  %v2362 = vmul.f32 1.0, %v2361
  %v2363 = vrcp.pop %v2356
  %v2364 = vmul.f32 1.0, %v2363
  %v2365 = vmul.f32 %v2364, 2.0
  %v2366 = vsub.f32 %v2365, 1.0
  %v2367 = vmul.f32 %v2360, %v1788
  %v2368 = vmul.f32 %v2358, %v2366
  %v2369 = vadd.f32 %v2367, %v2368
  %v2370 = vtanh.pop %v2369
  %v2371 = vmul.f32 %v2362, %v2370
  %v2372 = vsub.f32 %v2371, %v1787
  %v2373 = vadd.f32 %v1787, %v2372
  %v2374 = vsub.f32 %v2369, %v1788
  %v2375 = vadd.f32 %v1788, %v2374
  %v2376 = vadd.f32 %v2035, %v2118
  %v2377 = vadd.f32 %v2037, %v2120
  %v2378 = vadd.f32 %v2076, %v2159
  %v2379 = vadd.f32 %v2078, %v2161
  %v2380 = vadd.f32 %v2376, %v1797
  %v2381 = vadd.f32 %v2377, %v1801
  %v2382 = vadd.f32 %v2378, %v1805
  %v2383 = vadd.f32 %v2379, %v1809
  %v2384 = vxor.u32 %v2380, 2147483648
  %v2385 = vxor.u32 %v2381, 2147483648
  %v2386 = vxor.u32 %v2382, 2147483648
  %v2387 = vxor.u32 %v2383, 2147483648
  %v2388 = vmul.f32 %v2384, 1.442695
  %v2389 = vpow.pop %v2388
  %v2390 = vmul.f32 %v2385, 1.442695
  %v2391 = vpow.pop %v2390
  %v2392 = vmul.f32 %v2386, 1.442695
  %v2393 = vpow.pop %v2392
  %v2394 = vmul.f32 %v2387, 1.442695
  %v2395 = vpow.pop %v2394
  %v2396 = vadd.f32 %v2389, 1.0
  %v2397 = vadd.f32 %v2391, 1.0
  %v2398 = vadd.f32 %v2393, 1.0
  %v2399 = vadd.f32 %v2395, 1.0
  %v2400 = vrcp.pop %v2396
  %v2401 = vmul.f32 1.0, %v2400
  %v2402 = vrcp.pop %v2397
  %v2403 = vmul.f32 1.0, %v2402
  %v2404 = vrcp.pop %v2398
  %v2405 = vmul.f32 1.0, %v2404
  %v2406 = vrcp.pop %v2399
  %v2407 = vmul.f32 1.0, %v2406
  %v2408 = vmul.f32 %v2407, 2.0
  %v2409 = vsub.f32 %v2408, 1.0
  %v2410 = vmul.f32 %v2403, %v1852
  %v2411 = vmul.f32 %v2401, %v2409
  %v2412 = vadd.f32 %v2410, %v2411
  %v2413 = vtanh.pop %v2412
  %v2414 = vmul.f32 %v2405, %v2413
  %v2415 = vsub.f32 %v2414, %v1850
  %v2416 = vadd.f32 %v1850, %v2415
  %v2417 = vsub.f32 %v2412, %v1852
  %v2418 = vadd.f32 %v1852, %v2417
  %v2419 = vadd.f32 %v2200, %v2283
  %v2420 = vadd.f32 %v2202, %v2285
  %v2421 = vadd.f32 %v2241, %v2324
  %v2422 = vadd.f32 %v2243, %v2326
  %v2423 = vadd.f32 %v2419, %v1861
  %v2424 = vadd.f32 %v2420, %v1865
  %v2425 = vadd.f32 %v2421, %v1869
  %v2426 = vadd.f32 %v2422, %v1873
  %v2427 = vxor.u32 %v2423, 2147483648
  %v2428 = vxor.u32 %v2424, 2147483648
  %v2429 = vxor.u32 %v2425, 2147483648
  %v2430 = vxor.u32 %v2426, 2147483648
  %v2431 = vmul.f32 %v2427, 1.442695
  %v2432 = vpow.pop %v2431
  %v2433 = vmul.f32 %v2428, 1.442695
  %v2434 = vpow.pop %v2433
  %v2435 = vmul.f32 %v2429, 1.442695
  %v2436 = vpow.pop %v2435
  %v2437 = vmul.f32 %v2430, 1.442695
  %v2438 = vpow.pop %v2437
  %v2439 = vadd.f32 %v2432, 1.0
  %v2440 = vadd.f32 %v2434, 1.0
  %v2441 = vadd.f32 %v2436, 1.0
  %v2442 = vadd.f32 %v2438, 1.0
  %v2443 = vrcp.pop %v2439
  %v2444 = vmul.f32 1.0, %v2443
  %v2445 = vrcp.pop %v2440
  %v2446 = vmul.f32 1.0, %v2445
  %v2447 = vrcp.pop %v2441
  %v2448 = vmul.f32 1.0, %v2447
  %v2449 = vrcp.pop %v2442
  %v2450 = vmul.f32 1.0, %v2449
  %v2451 = vmul.f32 %v2450, 2.0
  %v2452 = vsub.f32 %v2451, 1.0
  %v2453 = vmul.f32 %v2446, %v1916
  %v2454 = vmul.f32 %v2444, %v2452
  %v2455 = vadd.f32 %v2453, %v2454
  %v2456 = vtanh.pop %v2455
  %v2457 = vmul.f32 %v2448, %v2456
  %v2458 = vsub.f32 %v2457, %v1914
  %v2459 = vmul.f32 %v2458, 0.0
  %v2460 = vadd.f32 %v1914, %v2459
  %v2461 = vsub.f32 %v2455, %v1916
  %v2462 = vmul.f32 %v2461, 0.0
  %v2463 = vadd.f32 %v1916, %v2462
  %v2464 = vpack.c.bf16 %v2373, %v2373
  %2465 = vmatprep.subr.bf16.mxu0 %v728
  %2466 = vmatpush1.bf16.msra.mxu0 %v727
  %2467 = vmatprep.subr.bf16.mxu0 %v736
  %2468 = vmatpush1.bf16.msra.mxu0 %v735
  %2469 = vmatprep.subr.bf16.mxu0 %v744
  %2470 = vmatpush1.bf16.msra.mxu0 %v743
  %2471 = vmatprep.subr.bf16.mxu0 %v752
  %2472 = vmatpush1.bf16.msra.mxu0 %v751
  %2473 = vmatprep.subr.bf16.mxu0 %v760
  %2474 = vmatpush1.bf16.msra.mxu0 %v759
  %2475 = vmatprep.subr.bf16.mxu0 %v768
  %2476 = vmatpush1.bf16.msra.mxu0 %v767
  %2477 = vmatprep.subr.bf16.mxu0 %v776
  %2478 = vmatpush1.bf16.msra.mxu0 %v775
  %2479 = vmatprep.subr.bf16.mxu0 %v784
  %2480 = vmatpush1.bf16.msra.mxu0 %v783
  %2481 = vmatprep.subr.bf16.mxu0 0
  %2482 = vmatpush1.bf16.msra.mxu0 0
  %2483 = vmatprep.subr.bf16.mxu0 0
  %2484 = vmatpush1.bf16.msra.mxu0 0
  %2485 = vmatprep.subr.bf16.mxu0 0
  %2486 = vmatpush1.bf16.msra.mxu0 0
  %2487 = vmatprep.subr.bf16.mxu0 0
  %2488 = vmatpush1.bf16.msra.mxu0 0
  %2489 = vmatprep.subr.bf16.mxu0 0
  %2490 = vmatpush1.bf16.msra.mxu0 0
  %2491 = vmatprep.subr.bf16.mxu0 0
  %2492 = vmatpush1.bf16.msra.mxu0 0
  %2493 = vmatprep.subr.bf16.mxu0 0
  %2494 = vmatpush1.bf16.msra.mxu0 0
  %2495 = vmatprep.subr.bf16.mxu0 0
  %2496 = vmatpush1.bf16.msra.mxu0 0
  %2497 = vmatprep.mubr.bf16.mxu0 0
  %2498 = vmatmul.mubr.bf16.gmra.mrb[0].mxu0 %v2464
  %v2499 = vpop.f32.mrb[0].mxu0
  %v2500 = vadd.f32 0.0, %v2499
  %v2501 = vpop.f32.mrb[0].mxu0
  %v2502 = vadd.f32 0.0, %v2501
  %v2503 = vpop.f32.mrb[0].mxu0
  %v2504 = vpop.f32.mrb[0].mxu0
  %2505 = vdwg.mxu0
  %2506 = vmatprep.subr.bf16.mxu0 %v730
  %2507 = vmatpush1.bf16.msra.mxu0 %v729
  %2508 = vmatprep.subr.bf16.mxu0 %v738
  %2509 = vmatpush1.bf16.msra.mxu0 %v737
  %2510 = vmatprep.subr.bf16.mxu0 %v746
  %2511 = vmatpush1.bf16.msra.mxu0 %v745
  %2512 = vmatprep.subr.bf16.mxu0 %v754
  %2513 = vmatpush1.bf16.msra.mxu0 %v753
  %2514 = vmatprep.subr.bf16.mxu0 %v762
  %2515 = vmatpush1.bf16.msra.mxu0 %v761
  %2516 = vmatprep.subr.bf16.mxu0 %v770
  %2517 = vmatpush1.bf16.msra.mxu0 %v769
  %2518 = vmatprep.subr.bf16.mxu0 %v778
  %2519 = vmatpush1.bf16.msra.mxu0 %v777
  %2520 = vmatprep.subr.bf16.mxu0 %v786
  %2521 = vmatpush1.bf16.msra.mxu0 %v785
  %2522 = vmatprep.subr.bf16.mxu0 0
  %2523 = vmatpush1.bf16.msra.mxu0 0
  %2524 = vmatprep.subr.bf16.mxu0 0
  %2525 = vmatpush1.bf16.msra.mxu0 0
  %2526 = vmatprep.subr.bf16.mxu0 0
  %2527 = vmatpush1.bf16.msra.mxu0 0
  %2528 = vmatprep.subr.bf16.mxu0 0
  %2529 = vmatpush1.bf16.msra.mxu0 0
  %2530 = vmatprep.subr.bf16.mxu0 0
  %2531 = vmatpush1.bf16.msra.mxu0 0
  %2532 = vmatprep.subr.bf16.mxu0 0
  %2533 = vmatpush1.bf16.msra.mxu0 0
  %2534 = vmatprep.subr.bf16.mxu0 0
  %2535 = vmatpush1.bf16.msra.mxu0 0
  %2536 = vmatprep.subr.bf16.mxu0 0
  %2537 = vmatpush1.bf16.msra.mxu0 0
  %2538 = vmatprep.mubr.bf16.mxu0 0
  %2539 = vmatmul.mubr.bf16.gmra.mrb[0].mxu0 %v2464
  %v2540 = vpop.f32.mrb[0].mxu0
  %v2541 = vadd.f32 0.0, %v2540
  %v2542 = vpop.f32.mrb[0].mxu0
  %v2543 = vadd.f32 0.0, %v2542
  %v2544 = vpop.f32.mrb[0].mxu0
  %v2545 = vpop.f32.mrb[0].mxu0
  %2546 = vdwg.mxu0
  %2547 = vmatprep.subr.bf16.mxu0 %v732
  %2548 = vmatpush1.bf16.msra.mxu0 %v731
  %2549 = vmatprep.subr.bf16.mxu0 %v740
  %2550 = vmatpush1.bf16.msra.mxu0 %v739
  %2551 = vmatprep.subr.bf16.mxu0 %v748
  %2552 = vmatpush1.bf16.msra.mxu0 %v747
  %2553 = vmatprep.subr.bf16.mxu0 %v756
  %2554 = vmatpush1.bf16.msra.mxu0 %v755
  %2555 = vmatprep.subr.bf16.mxu0 %v764
  %2556 = vmatpush1.bf16.msra.mxu0 %v763
  %2557 = vmatprep.subr.bf16.mxu0 %v772
  %2558 = vmatpush1.bf16.msra.mxu0 %v771
  %2559 = vmatprep.subr.bf16.mxu0 %v780
  %2560 = vmatpush1.bf16.msra.mxu0 %v779
  %2561 = vmatprep.subr.bf16.mxu0 %v788
  %2562 = vmatpush1.bf16.msra.mxu0 %v787
  %2563 = vmatprep.subr.bf16.mxu0 0
  %2564 = vmatpush1.bf16.msra.mxu0 0
  %2565 = vmatprep.subr.bf16.mxu0 0
  %2566 = vmatpush1.bf16.msra.mxu0 0
  %2567 = vmatprep.subr.bf16.mxu0 0
  %2568 = vmatpush1.bf16.msra.mxu0 0
  %2569 = vmatprep.subr.bf16.mxu0 0
  %2570 = vmatpush1.bf16.msra.mxu0 0
  %2571 = vmatprep.subr.bf16.mxu0 0
  %2572 = vmatpush1.bf16.msra.mxu0 0
  %2573 = vmatprep.subr.bf16.mxu0 0
  %2574 = vmatpush1.bf16.msra.mxu0 0
  %2575 = vmatprep.subr.bf16.mxu0 0
  %2576 = vmatpush1.bf16.msra.mxu0 0
  %2577 = vmatprep.subr.bf16.mxu0 0
  %2578 = vmatpush1.bf16.msra.mxu0 0
  %2579 = vmatprep.mubr.bf16.mxu0 0
  %2580 = vmatmul.mubr.bf16.gmra.mrb[0].mxu0 %v2464
  %v2581 = vpop.f32.mrb[0].mxu0
  %v2582 = vadd.f32 0.0, %v2581
  %v2583 = vpop.f32.mrb[0].mxu0
  %v2584 = vadd.f32 0.0, %v2583
  %v2585 = vpop.f32.mrb[0].mxu0
  %v2586 = vpop.f32.mrb[0].mxu0
  %2587 = vdwg.mxu0
  %2588 = vmatprep.subr.bf16.mxu0 %v734
  %2589 = vmatpush1.bf16.msra.mxu0 %v733
  %2590 = vmatprep.subr.bf16.mxu0 %v742
  %2591 = vmatpush1.bf16.msra.mxu0 %v741
  %2592 = vmatprep.subr.bf16.mxu0 %v750
  %2593 = vmatpush1.bf16.msra.mxu0 %v749
  %2594 = vmatprep.subr.bf16.mxu0 %v758
  %2595 = vmatpush1.bf16.msra.mxu0 %v757
  %2596 = vmatprep.subr.bf16.mxu0 %v766
  %2597 = vmatpush1.bf16.msra.mxu0 %v765
  %2598 = vmatprep.subr.bf16.mxu0 %v774
  %2599 = vmatpush1.bf16.msra.mxu0 %v773
  %2600 = vmatprep.subr.bf16.mxu0 %v782
  %2601 = vmatpush1.bf16.msra.mxu0 %v781
  %2602 = vmatprep.subr.bf16.mxu0 %v790
  %2603 = vmatpush1.bf16.msra.mxu0 %v789
  %2604 = vmatprep.subr.bf16.mxu0 0
  %2605 = vmatpush1.bf16.msra.mxu0 0
  %2606 = vmatprep.subr.bf16.mxu0 0
  %2607 = vmatpush1.bf16.msra.mxu0 0
  %2608 = vmatprep.subr.bf16.mxu0 0
  %2609 = vmatpush1.bf16.msra.mxu0 0
  %2610 = vmatprep.subr.bf16.mxu0 0
  %2611 = vmatpush1.bf16.msra.mxu0 0
  %2612 = vmatprep.subr.bf16.mxu0 0
  %2613 = vmatpush1.bf16.msra.mxu0 0
  %2614 = vmatprep.subr.bf16.mxu0 0
  %2615 = vmatpush1.bf16.msra.mxu0 0
  %2616 = vmatprep.subr.bf16.mxu0 0
  %2617 = vmatpush1.bf16.msra.mxu0 0
  %2618 = vmatprep.subr.bf16.mxu0 0
  %2619 = vmatpush1.bf16.msra.mxu0 0
  %2620 = vmatprep.mubr.bf16.mxu0 0
  %2621 = vmatmul.mubr.bf16.gmra.mrb[0].mxu0 %v2464
  %v2622 = vpop.f32.mrb[0].mxu0
  %v2623 = vadd.f32 0.0, %v2622
  %v2624 = vpop.f32.mrb[0].mxu0
  %v2625 = vadd.f32 0.0, %v2624
  %v2626 = vpop.f32.mrb[0].mxu0
  %v2627 = vpop.f32.mrb[0].mxu0
  %2628 = vdwg.mxu0
  %v2629 = vpack.c.bf16 %v2416, %v2416
  %2630 = vmatprep.subr.bf16.mxu0 %v1212
  %2631 = vmatpush1.bf16.msra.mxu0 %v1211
  %2632 = vmatprep.subr.bf16.mxu0 %v1220
  %2633 = vmatpush1.bf16.msra.mxu0 %v1219
  %2634 = vmatprep.subr.bf16.mxu0 %v1228
  %2635 = vmatpush1.bf16.msra.mxu0 %v1227
  %2636 = vmatprep.subr.bf16.mxu0 %v1236
  %2637 = vmatpush1.bf16.msra.mxu0 %v1235
  %2638 = vmatprep.subr.bf16.mxu0 %v1244
  %2639 = vmatpush1.bf16.msra.mxu0 %v1243
  %2640 = vmatprep.subr.bf16.mxu0 %v1252
  %2641 = vmatpush1.bf16.msra.mxu0 %v1251
  %2642 = vmatprep.subr.bf16.mxu0 %v1260
  %2643 = vmatpush1.bf16.msra.mxu0 %v1259
  %2644 = vmatprep.subr.bf16.mxu0 %v1268
  %2645 = vmatpush1.bf16.msra.mxu0 %v1267
  %2646 = vmatprep.subr.bf16.mxu0 0
  %2647 = vmatpush1.bf16.msra.mxu0 0
  %2648 = vmatprep.subr.bf16.mxu0 0
  %2649 = vmatpush1.bf16.msra.mxu0 0
  %2650 = vmatprep.subr.bf16.mxu0 0
  %2651 = vmatpush1.bf16.msra.mxu0 0
  %2652 = vmatprep.subr.bf16.mxu0 0
  %2653 = vmatpush1.bf16.msra.mxu0 0
  %2654 = vmatprep.subr.bf16.mxu0 0
  %2655 = vmatpush1.bf16.msra.mxu0 0
  %2656 = vmatprep.subr.bf16.mxu0 0
  %2657 = vmatpush1.bf16.msra.mxu0 0
  %2658 = vmatprep.subr.bf16.mxu0 0
  %2659 = vmatpush1.bf16.msra.mxu0 0
  %2660 = vmatprep.subr.bf16.mxu0 0
  %2661 = vmatpush1.bf16.msra.mxu0 0
  %2662 = vmatprep.mubr.bf16.mxu0 0
  %2663 = vmatmul.mubr.bf16.gmra.mrb[0].mxu0 %v2629
  %v2664 = vpop.f32.mrb[0].mxu0
  %v2665 = vadd.f32 0.0, %v2664
  %v2666 = vpop.f32.mrb[0].mxu0
  %v2667 = vadd.f32 0.0, %v2666
  %v2668 = vpop.f32.mrb[0].mxu0
  %v2669 = vpop.f32.mrb[0].mxu0
  %2670 = vdwg.mxu0
  %2671 = vmatprep.subr.bf16.mxu0 %v1214
  %2672 = vmatpush1.bf16.msra.mxu0 %v1213
  %2673 = vmatprep.subr.bf16.mxu0 %v1222
  %2674 = vmatpush1.bf16.msra.mxu0 %v1221
  %2675 = vmatprep.subr.bf16.mxu0 %v1230
  %2676 = vmatpush1.bf16.msra.mxu0 %v1229
  %2677 = vmatprep.subr.bf16.mxu0 %v1238
  %2678 = vmatpush1.bf16.msra.mxu0 %v1237
  %2679 = vmatprep.subr.bf16.mxu0 %v1246
  %2680 = vmatpush1.bf16.msra.mxu0 %v1245
  %2681 = vmatprep.subr.bf16.mxu0 %v1254
  %2682 = vmatpush1.bf16.msra.mxu0 %v1253
  %2683 = vmatprep.subr.bf16.mxu0 %v1262
  %2684 = vmatpush1.bf16.msra.mxu0 %v1261
  %2685 = vmatprep.subr.bf16.mxu0 %v1270
  %2686 = vmatpush1.bf16.msra.mxu0 %v1269
  %2687 = vmatprep.subr.bf16.mxu0 0
  %2688 = vmatpush1.bf16.msra.mxu0 0
  %2689 = vmatprep.subr.bf16.mxu0 0
  %2690 = vmatpush1.bf16.msra.mxu0 0
  %2691 = vmatprep.subr.bf16.mxu0 0
  %2692 = vmatpush1.bf16.msra.mxu0 0
  %2693 = vmatprep.subr.bf16.mxu0 0
  %2694 = vmatpush1.bf16.msra.mxu0 0
  %2695 = vmatprep.subr.bf16.mxu0 0
  %2696 = vmatpush1.bf16.msra.mxu0 0
  %2697 = vmatprep.subr.bf16.mxu0 0
  %2698 = vmatpush1.bf16.msra.mxu0 0
  %2699 = vmatprep.subr.bf16.mxu0 0
  %2700 = vmatpush1.bf16.msra.mxu0 0
  %2701 = vmatprep.subr.bf16.mxu0 0
  %2702 = vmatpush1.bf16.msra.mxu0 0
  %2703 = vmatprep.mubr.bf16.mxu0 0
  %2704 = vmatmul.mubr.bf16.gmra.mrb[0].mxu0 %v2629
  %v2705 = vpop.f32.mrb[0].mxu0
  %v2706 = vadd.f32 0.0, %v2705
  %v2707 = vpop.f32.mrb[0].mxu0
  %v2708 = vadd.f32 0.0, %v2707
  %v2709 = vpop.f32.mrb[0].mxu0
  %v2710 = vpop.f32.mrb[0].mxu0
  %2711 = vdwg.mxu0
  %2712 = vmatprep.subr.bf16.mxu0 %v1216
  %2713 = vmatpush1.bf16.msra.mxu0 %v1215
  %2714 = vmatprep.subr.bf16.mxu0 %v1224
  %2715 = vmatpush1.bf16.msra.mxu0 %v1223
  %2716 = vmatprep.subr.bf16.mxu0 %v1232
  %2717 = vmatpush1.bf16.msra.mxu0 %v1231
  %2718 = vmatprep.subr.bf16.mxu0 %v1240
  %2719 = vmatpush1.bf16.msra.mxu0 %v1239
  %2720 = vmatprep.subr.bf16.mxu0 %v1248
  %2721 = vmatpush1.bf16.msra.mxu0 %v1247
  %2722 = vmatprep.subr.bf16.mxu0 %v1256
  %2723 = vmatpush1.bf16.msra.mxu0 %v1255
  %2724 = vmatprep.subr.bf16.mxu0 %v1264
  %2725 = vmatpush1.bf16.msra.mxu0 %v1263
  %2726 = vmatprep.subr.bf16.mxu0 %v1272
  %2727 = vmatpush1.bf16.msra.mxu0 %v1271
  %2728 = vmatprep.subr.bf16.mxu0 0
  %2729 = vmatpush1.bf16.msra.mxu0 0
  %2730 = vmatprep.subr.bf16.mxu0 0
  %2731 = vmatpush1.bf16.msra.mxu0 0
  %2732 = vmatprep.subr.bf16.mxu0 0
  %2733 = vmatpush1.bf16.msra.mxu0 0
  %2734 = vmatprep.subr.bf16.mxu0 0
  %2735 = vmatpush1.bf16.msra.mxu0 0
  %2736 = vmatprep.subr.bf16.mxu0 0
  %2737 = vmatpush1.bf16.msra.mxu0 0
  %2738 = vmatprep.subr.bf16.mxu0 0
  %2739 = vmatpush1.bf16.msra.mxu0 0
  %2740 = vmatprep.subr.bf16.mxu0 0
  %2741 = vmatpush1.bf16.msra.mxu0 0
  %2742 = vmatprep.subr.bf16.mxu0 0
  %2743 = vmatpush1.bf16.msra.mxu0 0
  %2744 = vmatprep.mubr.bf16.mxu0 0
  %2745 = vmatmul.mubr.bf16.gmra.mrb[0].mxu0 %v2629
  %v2746 = vpop.f32.mrb[0].mxu0
  %v2747 = vadd.f32 0.0, %v2746
  %v2748 = vpop.f32.mrb[0].mxu0
  %v2749 = vadd.f32 0.0, %v2748
  %v2750 = vpop.f32.mrb[0].mxu0
  %v2751 = vpop.f32.mrb[0].mxu0
  %2752 = vdwg.mxu0
  %2753 = vmatprep.subr.bf16.mxu0 %v1218
  %2754 = vmatpush1.bf16.msra.mxu0 %v1217
  %2755 = vmatprep.subr.bf16.mxu0 %v1226
  %2756 = vmatpush1.bf16.msra.mxu0 %v1225
  %2757 = vmatprep.subr.bf16.mxu0 %v1234
  %2758 = vmatpush1.bf16.msra.mxu0 %v1233
  %2759 = vmatprep.subr.bf16.mxu0 %v1242
  %2760 = vmatpush1.bf16.msra.mxu0 %v1241
  %2761 = vmatprep.subr.bf16.mxu0 %v1250
  %2762 = vmatpush1.bf16.msra.mxu0 %v1249
  %2763 = vmatprep.subr.bf16.mxu0 %v1258
  %2764 = vmatpush1.bf16.msra.mxu0 %v1257
  %2765 = vmatprep.subr.bf16.mxu0 %v1266
  %2766 = vmatpush1.bf16.msra.mxu0 %v1265
  %2767 = vmatprep.subr.bf16.mxu0 %v1274
  %2768 = vmatpush1.bf16.msra.mxu0 %v1273
  %2769 = vmatprep.subr.bf16.mxu0 0
  %2770 = vmatpush1.bf16.msra.mxu0 0
  %2771 = vmatprep.subr.bf16.mxu0 0
  %2772 = vmatpush1.bf16.msra.mxu0 0
  %2773 = vmatprep.subr.bf16.mxu0 0
  %2774 = vmatpush1.bf16.msra.mxu0 0
  %2775 = vmatprep.subr.bf16.mxu0 0
  %2776 = vmatpush1.bf16.msra.mxu0 0
  %2777 = vmatprep.subr.bf16.mxu0 0
  %2778 = vmatpush1.bf16.msra.mxu0 0
  %2779 = vmatprep.subr.bf16.mxu0 0
  %2780 = vmatpush1.bf16.msra.mxu0 0
  %2781 = vmatprep.subr.bf16.mxu0 0
  %2782 = vmatpush1.bf16.msra.mxu0 0
  %2783 = vmatprep.subr.bf16.mxu0 0
  %2784 = vmatpush1.bf16.msra.mxu0 0
  %2785 = vmatprep.mubr.bf16.mxu0 0
  %2786 = vmatmul.mubr.bf16.gmra.mrb[0].mxu0 %v2629
  %v2787 = vpop.f32.mrb[0].mxu0
  %v2788 = vadd.f32 0.0, %v2787
  %v2789 = vpop.f32.mrb[0].mxu0
  %v2790 = vadd.f32 0.0, %v2789
  %v2791 = vpop.f32.mrb[0].mxu0
  %v2792 = vpop.f32.mrb[0].mxu0
  %2793 = vdwg.mxu0
  %v2794 = vpack.c.bf16 %v2460, %v2460
  %2795 = vmatprep.subr.bf16.mxu0 %v1600
  %2796 = vmatpush1.bf16.msra.mxu0 %v1599
  %2797 = vmatprep.subr.bf16.mxu0 %v1604
  %2798 = vmatpush1.bf16.msra.mxu0 %v1603
  %2799 = vmatprep.subr.bf16.mxu0 %v1608
  %2800 = vmatpush1.bf16.msra.mxu0 %v1607
  %2801 = vmatprep.subr.bf16.mxu0 %v1612
  %2802 = vmatpush1.bf16.msra.mxu0 %v1611
  %2803 = vmatprep.subr.bf16.mxu0 %v1616
  %2804 = vmatpush1.bf16.msra.mxu0 %v1615
  %2805 = vmatprep.subr.bf16.mxu0 %v1620
  %2806 = vmatpush1.bf16.msra.mxu0 %v1619
  %2807 = vmatprep.subr.bf16.mxu0 %v1624
  %2808 = vmatpush1.bf16.msra.mxu0 %v1623
  %2809 = vmatprep.subr.bf16.mxu0 %v1628
  %2810 = vmatpush1.bf16.msra.mxu0 %v1627
  %2811 = vmatprep.subr.bf16.mxu0 0
  %2812 = vmatpush1.bf16.msra.mxu0 0
  %2813 = vmatprep.subr.bf16.mxu0 0
  %2814 = vmatpush1.bf16.msra.mxu0 0
  %2815 = vmatprep.subr.bf16.mxu0 0
  %2816 = vmatpush1.bf16.msra.mxu0 0
  %2817 = vmatprep.subr.bf16.mxu0 0
  %2818 = vmatpush1.bf16.msra.mxu0 0
  %2819 = vmatprep.subr.bf16.mxu0 0
  %2820 = vmatpush1.bf16.msra.mxu0 0
  %2821 = vmatprep.subr.bf16.mxu0 0
  %2822 = vmatpush1.bf16.msra.mxu0 0
  %2823 = vmatprep.subr.bf16.mxu0 0
  %2824 = vmatpush1.bf16.msra.mxu0 0
  %2825 = vmatprep.subr.bf16.mxu0 0
  %2826 = vmatpush1.bf16.msra.mxu0 0
  %2827 = vmatprep.mubr.bf16.mxu0 0
  %2828 = vmatmul.mubr.bf16.gmra.mrb[0].mxu0 %v2794
  %v2829 = vpop.f32.mrb[0].mxu0
  %v2830 = vadd.f32 0.0, %v2829
  %v2831 = vpop.f32.mrb[0].mxu0
  %v2832 = vadd.f32 0.0, %v2831
  %v2833 = vpop.f32.mrb[0].mxu0
  %v2834 = vpop.f32.mrb[0].mxu0
  %2835 = vdwg.mxu0
  %2836 = vmatprep.subr.bf16.mxu0 %v1602
  %2837 = vmatpush1.bf16.msra.mxu0 %v1601
  %2838 = vmatprep.subr.bf16.mxu0 %v1606
  %2839 = vmatpush1.bf16.msra.mxu0 %v1605
  %2840 = vmatprep.subr.bf16.mxu0 %v1610
  %2841 = vmatpush1.bf16.msra.mxu0 %v1609
  %2842 = vmatprep.subr.bf16.mxu0 %v1614
  %2843 = vmatpush1.bf16.msra.mxu0 %v1613
  %2844 = vmatprep.subr.bf16.mxu0 %v1618
  %2845 = vmatpush1.bf16.msra.mxu0 %v1617
  %2846 = vmatprep.subr.bf16.mxu0 %v1622
  %2847 = vmatpush1.bf16.msra.mxu0 %v1621
  %2848 = vmatprep.subr.bf16.mxu0 %v1626
  %2849 = vmatpush1.bf16.msra.mxu0 %v1625
  %2850 = vmatprep.subr.bf16.mxu0 %v1630
  %2851 = vmatpush1.bf16.msra.mxu0 %v1629
  %2852 = vmatprep.subr.bf16.mxu0 0
  %2853 = vmatpush1.bf16.msra.mxu0 0
  %2854 = vmatprep.subr.bf16.mxu0 0
  %2855 = vmatpush1.bf16.msra.mxu0 0
  %2856 = vmatprep.subr.bf16.mxu0 0
  %2857 = vmatpush1.bf16.msra.mxu0 0
  %2858 = vmatprep.subr.bf16.mxu0 0
  %2859 = vmatpush1.bf16.msra.mxu0 0
  %2860 = vmatprep.subr.bf16.mxu0 0
  %2861 = vmatpush1.bf16.msra.mxu0 0
  %2862 = vmatprep.subr.bf16.mxu0 0
  %2863 = vmatpush1.bf16.msra.mxu0 0
  %2864 = vmatprep.subr.bf16.mxu0 0
  %2865 = vmatpush1.bf16.msra.mxu0 0
  %2866 = vmatprep.subr.bf16.mxu0 0
  %2867 = vmatpush1.bf16.msra.mxu0 0
  %2868 = vmatprep.mubr.bf16.mxu0 0
  %2869 = vmatmul.mubr.bf16.gmra.mrb[0].mxu0 %v2794
  %v2870 = vpop.f32.mrb[0].mxu0
  %v2871 = vadd.f32 0.0, %v2870
  %v2872 = vpop.f32.mrb[0].mxu0
  %v2873 = vadd.f32 0.0, %v2872
  %v2874 = vpop.f32.mrb[0].mxu0
  %v2875 = vpop.f32.mrb[0].mxu0
  %2876 = vdwg.mxu0
  %s2877 = smul.u32 2, 4
  %s2878 = smul.addr %s2877, 8
  %s2879 = scalar_lea.vmem [#allocation2], %s2878
  %v2880 = vld [vmem:[%s2879] sm:$0xff]
  %v2881 = vld [vmem:[%s2879 + $0x8] sm:$0xff]
  %v2882 = vld [vmem:[%s2879 + $0x10] sm:$0xff]
  %v2883 = vld [vmem:[%s2879 + $0x18] sm:$0xff]
  %v2884 = vadd.f32 %v2880, %v2500
  %v2885 = vadd.f32 %v2881, %v2502
  %v2886 = vadd.f32 %v2882, %v2541
  %v2887 = vadd.f32 %v2883, %v2543
  %v2888 = vxor.u32 %v2884, 2147483648
  %v2889 = vxor.u32 %v2885, 2147483648
  %v2890 = vxor.u32 %v2886, 2147483648
  %v2891 = vxor.u32 %v2887, 2147483648
  %v2892 = vmul.f32 %v2888, 1.442695
  %v2893 = vpow.pop %v2892
  %v2894 = vmul.f32 %v2889, 1.442695
  %v2895 = vpow.pop %v2894
  %v2896 = vmul.f32 %v2890, 1.442695
  %v2897 = vpow.pop %v2896
  %v2898 = vmul.f32 %v2891, 1.442695
  %v2899 = vpow.pop %v2898
  %v2900 = vadd.f32 %v2893, 1.0
  %v2901 = vadd.f32 %v2895, 1.0
  %v2902 = vadd.f32 %v2897, 1.0
  %v2903 = vadd.f32 %v2899, 1.0
  %v2904 = vrcp.pop %v2900
  %v2905 = vmul.f32 1.0, %v2904
  %v2906 = vrcp.pop %v2901
  %v2907 = vmul.f32 1.0, %v2906
  %v2908 = vrcp.pop %v2902
  %v2909 = vmul.f32 1.0, %v2908
  %v2910 = vrcp.pop %v2903
  %v2911 = vmul.f32 1.0, %v2910
  %v2912 = vmul.f32 %v2911, 2.0
  %v2913 = vsub.f32 %v2912, 1.0
  %v2914 = vmul.f32 %v2907, %v2375
  %v2915 = vmul.f32 %v2905, %v2913
  %v2916 = vadd.f32 %v2914, %v2915
  %v2917 = vtanh.pop %v2916
  %v2918 = vmul.f32 %v2909, %v2917
  %v2919 = vsub.f32 %v2918, %v2373
  %v2920 = vadd.f32 %v2373, %v2919
  %v2921 = vsub.f32 %v2916, %v2375
  %v2922 = vadd.f32 %v2375, %v2921
  %v2923 = vadd.f32 %v2582, %v2665
  %v2924 = vadd.f32 %v2584, %v2667
  %v2925 = vadd.f32 %v2623, %v2706
  %v2926 = vadd.f32 %v2625, %v2708
  %v2927 = vadd.f32 %v2923, %v1797
  %v2928 = vadd.f32 %v2924, %v1801
  %v2929 = vadd.f32 %v2925, %v1805
  %v2930 = vadd.f32 %v2926, %v1809
  %v2931 = vxor.u32 %v2927, 2147483648
  %v2932 = vxor.u32 %v2928, 2147483648
  %v2933 = vxor.u32 %v2929, 2147483648
  %v2934 = vxor.u32 %v2930, 2147483648
  %v2935 = vmul.f32 %v2931, 1.442695
  %v2936 = vpow.pop %v2935
  %v2937 = vmul.f32 %v2932, 1.442695
  %v2938 = vpow.pop %v2937
  %v2939 = vmul.f32 %v2933, 1.442695
  %v2940 = vpow.pop %v2939
  %v2941 = vmul.f32 %v2934, 1.442695
  %v2942 = vpow.pop %v2941
  %v2943 = vadd.f32 %v2936, 1.0
  %v2944 = vadd.f32 %v2938, 1.0
  %v2945 = vadd.f32 %v2940, 1.0
  %v2946 = vadd.f32 %v2942, 1.0
  %v2947 = vrcp.pop %v2943
  %v2948 = vmul.f32 1.0, %v2947
  %v2949 = vrcp.pop %v2944
  %v2950 = vmul.f32 1.0, %v2949
  %v2951 = vrcp.pop %v2945
  %v2952 = vmul.f32 1.0, %v2951
  %v2953 = vrcp.pop %v2946
  %v2954 = vmul.f32 1.0, %v2953
  %v2955 = vmul.f32 %v2954, 2.0
  %v2956 = vsub.f32 %v2955, 1.0
  %v2957 = vmul.f32 %v2950, %v2418
  %v2958 = vmul.f32 %v2948, %v2956
  %v2959 = vadd.f32 %v2957, %v2958
  %v2960 = vtanh.pop %v2959
  %v2961 = vmul.f32 %v2952, %v2960
  %v2962 = vsub.f32 %v2961, %v2416
  %v2963 = vadd.f32 %v2416, %v2962
  %v2964 = vsub.f32 %v2959, %v2418
  %v2965 = vadd.f32 %v2418, %v2964
  %v2966 = vadd.f32 %v2747, %v2830
  %v2967 = vadd.f32 %v2749, %v2832
  %v2968 = vadd.f32 %v2788, %v2871
  %v2969 = vadd.f32 %v2790, %v2873
  %v2970 = vadd.f32 %v2966, %v1861
  %v2971 = vadd.f32 %v2967, %v1865
  %v2972 = vadd.f32 %v2968, %v1869
  %v2973 = vadd.f32 %v2969, %v1873
  %v2974 = vxor.u32 %v2970, 2147483648
  %v2975 = vxor.u32 %v2971, 2147483648
  %v2976 = vxor.u32 %v2972, 2147483648
  %v2977 = vxor.u32 %v2973, 2147483648
  %v2978 = vmul.f32 %v2974, 1.442695
  %v2979 = vpow.pop %v2978
  %v2980 = vmul.f32 %v2975, 1.442695
  %v2981 = vpow.pop %v2980
  %v2982 = vmul.f32 %v2976, 1.442695
  %v2983 = vpow.pop %v2982
  %v2984 = vmul.f32 %v2977, 1.442695
  %v2985 = vpow.pop %v2984
  %v2986 = vadd.f32 %v2979, 1.0
  %v2987 = vadd.f32 %v2981, 1.0
  %v2988 = vadd.f32 %v2983, 1.0
  %v2989 = vadd.f32 %v2985, 1.0
  %v2990 = vrcp.pop %v2986
  %v2991 = vmul.f32 1.0, %v2990
  %v2992 = vrcp.pop %v2987
  %v2993 = vmul.f32 1.0, %v2992
  %v2994 = vrcp.pop %v2988
  %v2995 = vmul.f32 1.0, %v2994
  %v2996 = vrcp.pop %v2989
  %v2997 = vmul.f32 1.0, %v2996
  %v2998 = vmul.f32 %v2997, 2.0
  %v2999 = vsub.f32 %v2998, 1.0
  %v3000 = vmul.f32 %v2993, %v2463
  %v3001 = vmul.f32 %v2991, %v2999
  %v3002 = vadd.f32 %v3000, %v3001
  %v3003 = vtanh.pop %v3002
  %v3004 = vmul.f32 %v2995, %v3003
  %v3005 = vsub.f32 %v3004, %v2460
  %v3006 = vadd.f32 %v2460, %v3005
  %v3007 = vsub.f32 %v3002, %v2463
  %v3008 = vadd.f32 %v2463, %v3007
  %v3009 = vpack.c.bf16 %v2920, %v2920
  %3010 = vmatprep.subr.bf16.mxu0 %v728
  %3011 = vmatpush1.bf16.msra.mxu0 %v727
  %3012 = vmatprep.subr.bf16.mxu0 %v736
  %3013 = vmatpush1.bf16.msra.mxu0 %v735
  %3014 = vmatprep.subr.bf16.mxu0 %v744
  %3015 = vmatpush1.bf16.msra.mxu0 %v743
  %3016 = vmatprep.subr.bf16.mxu0 %v752
  %3017 = vmatpush1.bf16.msra.mxu0 %v751
  %3018 = vmatprep.subr.bf16.mxu0 %v760
  %3019 = vmatpush1.bf16.msra.mxu0 %v759
  %3020 = vmatprep.subr.bf16.mxu0 %v768
  %3021 = vmatpush1.bf16.msra.mxu0 %v767
  %3022 = vmatprep.subr.bf16.mxu0 %v776
  %3023 = vmatpush1.bf16.msra.mxu0 %v775
  %3024 = vmatprep.subr.bf16.mxu0 %v784
  %3025 = vmatpush1.bf16.msra.mxu0 %v783
  %3026 = vmatprep.subr.bf16.mxu0 0
  %3027 = vmatpush1.bf16.msra.mxu0 0
  %3028 = vmatprep.subr.bf16.mxu0 0
  %3029 = vmatpush1.bf16.msra.mxu0 0
  %3030 = vmatprep.subr.bf16.mxu0 0
  %3031 = vmatpush1.bf16.msra.mxu0 0
  %3032 = vmatprep.subr.bf16.mxu0 0
  %3033 = vmatpush1.bf16.msra.mxu0 0
  %3034 = vmatprep.subr.bf16.mxu0 0
  %3035 = vmatpush1.bf16.msra.mxu0 0
  %3036 = vmatprep.subr.bf16.mxu0 0
  %3037 = vmatpush1.bf16.msra.mxu0 0
  %3038 = vmatprep.subr.bf16.mxu0 0
  %3039 = vmatpush1.bf16.msra.mxu0 0
  %3040 = vmatprep.subr.bf16.mxu0 0
  %3041 = vmatpush1.bf16.msra.mxu0 0
  %3042 = vmatprep.mubr.bf16.mxu0 0
  %3043 = vmatmul.mubr.bf16.gmra.mrb[0].mxu0 %v3009
  %v3044 = vpop.f32.mrb[0].mxu0
  %v3045 = vadd.f32 0.0, %v3044
  %v3046 = vpop.f32.mrb[0].mxu0
  %v3047 = vadd.f32 0.0, %v3046
  %v3048 = vpop.f32.mrb[0].mxu0
  %v3049 = vpop.f32.mrb[0].mxu0
  %3050 = vdwg.mxu0
  %3051 = vmatprep.subr.bf16.mxu0 %v730
  %3052 = vmatpush1.bf16.msra.mxu0 %v729
  %3053 = vmatprep.subr.bf16.mxu0 %v738
  %3054 = vmatpush1.bf16.msra.mxu0 %v737
  %3055 = vmatprep.subr.bf16.mxu0 %v746
  %3056 = vmatpush1.bf16.msra.mxu0 %v745
  %3057 = vmatprep.subr.bf16.mxu0 %v754
  %3058 = vmatpush1.bf16.msra.mxu0 %v753
  %3059 = vmatprep.subr.bf16.mxu0 %v762
  %3060 = vmatpush1.bf16.msra.mxu0 %v761
  %3061 = vmatprep.subr.bf16.mxu0 %v770
  %3062 = vmatpush1.bf16.msra.mxu0 %v769
  %3063 = vmatprep.subr.bf16.mxu0 %v778
  %3064 = vmatpush1.bf16.msra.mxu0 %v777
  %3065 = vmatprep.subr.bf16.mxu0 %v786
  %3066 = vmatpush1.bf16.msra.mxu0 %v785
  %3067 = vmatprep.subr.bf16.mxu0 0
  %3068 = vmatpush1.bf16.msra.mxu0 0
  %3069 = vmatprep.subr.bf16.mxu0 0
  %3070 = vmatpush1.bf16.msra.mxu0 0
  %3071 = vmatprep.subr.bf16.mxu0 0
  %3072 = vmatpush1.bf16.msra.mxu0 0
  %3073 = vmatprep.subr.bf16.mxu0 0
  %3074 = vmatpush1.bf16.msra.mxu0 0
  %3075 = vmatprep.subr.bf16.mxu0 0
  %3076 = vmatpush1.bf16.msra.mxu0 0
  %3077 = vmatprep.subr.bf16.mxu0 0
  %3078 = vmatpush1.bf16.msra.mxu0 0
  %3079 = vmatprep.subr.bf16.mxu0 0
  %3080 = vmatpush1.bf16.msra.mxu0 0
  %3081 = vmatprep.subr.bf16.mxu0 0
  %3082 = vmatpush1.bf16.msra.mxu0 0
  %3083 = vmatprep.mubr.bf16.mxu0 0
  %3084 = vmatmul.mubr.bf16.gmra.mrb[0].mxu0 %v3009
  %v3085 = vpop.f32.mrb[0].mxu0
  %v3086 = vadd.f32 0.0, %v3085
  %v3087 = vpop.f32.mrb[0].mxu0
  %v3088 = vadd.f32 0.0, %v3087
  %v3089 = vpop.f32.mrb[0].mxu0
  %v3090 = vpop.f32.mrb[0].mxu0
  %3091 = vdwg.mxu0
  %3092 = vmatprep.subr.bf16.mxu0 %v732
  %3093 = vmatpush1.bf16.msra.mxu0 %v731
  %3094 = vmatprep.subr.bf16.mxu0 %v740
  %3095 = vmatpush1.bf16.msra.mxu0 %v739
  %3096 = vmatprep.subr.bf16.mxu0 %v748
  %3097 = vmatpush1.bf16.msra.mxu0 %v747
  %3098 = vmatprep.subr.bf16.mxu0 %v756
  %3099 = vmatpush1.bf16.msra.mxu0 %v755
  %3100 = vmatprep.subr.bf16.mxu0 %v764
  %3101 = vmatpush1.bf16.msra.mxu0 %v763
  %3102 = vmatprep.subr.bf16.mxu0 %v772
  %3103 = vmatpush1.bf16.msra.mxu0 %v771
  %3104 = vmatprep.subr.bf16.mxu0 %v780
  %3105 = vmatpush1.bf16.msra.mxu0 %v779
  %3106 = vmatprep.subr.bf16.mxu0 %v788
  %3107 = vmatpush1.bf16.msra.mxu0 %v787
  %3108 = vmatprep.subr.bf16.mxu0 0
  %3109 = vmatpush1.bf16.msra.mxu0 0
  %3110 = vmatprep.subr.bf16.mxu0 0
  %3111 = vmatpush1.bf16.msra.mxu0 0
  %3112 = vmatprep.subr.bf16.mxu0 0
  %3113 = vmatpush1.bf16.msra.mxu0 0
  %3114 = vmatprep.subr.bf16.mxu0 0
  %3115 = vmatpush1.bf16.msra.mxu0 0
  %3116 = vmatprep.subr.bf16.mxu0 0
  %3117 = vmatpush1.bf16.msra.mxu0 0
  %3118 = vmatprep.subr.bf16.mxu0 0
  %3119 = vmatpush1.bf16.msra.mxu0 0
  %3120 = vmatprep.subr.bf16.mxu0 0
  %3121 = vmatpush1.bf16.msra.mxu0 0
  %3122 = vmatprep.subr.bf16.mxu0 0
  %3123 = vmatpush1.bf16.msra.mxu0 0
  %3124 = vmatprep.mubr.bf16.mxu0 0
  %3125 = vmatmul.mubr.bf16.gmra.mrb[0].mxu0 %v3009
  %v3126 = vpop.f32.mrb[0].mxu0
  %v3127 = vadd.f32 0.0, %v3126
  %v3128 = vpop.f32.mrb[0].mxu0
  %v3129 = vadd.f32 0.0, %v3128
  %v3130 = vpop.f32.mrb[0].mxu0
  %v3131 = vpop.f32.mrb[0].mxu0
  %3132 = vdwg.mxu0
  %3133 = vmatprep.subr.bf16.mxu0 %v734
  %3134 = vmatpush1.bf16.msra.mxu0 %v733
  %3135 = vmatprep.subr.bf16.mxu0 %v742
  %3136 = vmatpush1.bf16.msra.mxu0 %v741
  %3137 = vmatprep.subr.bf16.mxu0 %v750
  %3138 = vmatpush1.bf16.msra.mxu0 %v749
  %3139 = vmatprep.subr.bf16.mxu0 %v758
  %3140 = vmatpush1.bf16.msra.mxu0 %v757
  %3141 = vmatprep.subr.bf16.mxu0 %v766
  %3142 = vmatpush1.bf16.msra.mxu0 %v765
  %3143 = vmatprep.subr.bf16.mxu0 %v774
  %3144 = vmatpush1.bf16.msra.mxu0 %v773
  %3145 = vmatprep.subr.bf16.mxu0 %v782
  %3146 = vmatpush1.bf16.msra.mxu0 %v781
  %3147 = vmatprep.subr.bf16.mxu0 %v790
  %3148 = vmatpush1.bf16.msra.mxu0 %v789
  %3149 = vmatprep.subr.bf16.mxu0 0
  %3150 = vmatpush1.bf16.msra.mxu0 0
  %3151 = vmatprep.subr.bf16.mxu0 0
  %3152 = vmatpush1.bf16.msra.mxu0 0
  %3153 = vmatprep.subr.bf16.mxu0 0
  %3154 = vmatpush1.bf16.msra.mxu0 0
  %3155 = vmatprep.subr.bf16.mxu0 0
  %3156 = vmatpush1.bf16.msra.mxu0 0
  %3157 = vmatprep.subr.bf16.mxu0 0
  %3158 = vmatpush1.bf16.msra.mxu0 0
  %3159 = vmatprep.subr.bf16.mxu0 0
  %3160 = vmatpush1.bf16.msra.mxu0 0
  %3161 = vmatprep.subr.bf16.mxu0 0
  %3162 = vmatpush1.bf16.msra.mxu0 0
  %3163 = vmatprep.subr.bf16.mxu0 0
  %3164 = vmatpush1.bf16.msra.mxu0 0
  %3165 = vmatprep.mubr.bf16.mxu0 0
  %3166 = vmatmul.mubr.bf16.gmra.mrb[0].mxu0 %v3009
  %v3167 = vpop.f32.mrb[0].mxu0
  %v3168 = vadd.f32 0.0, %v3167
  %v3169 = vpop.f32.mrb[0].mxu0
  %v3170 = vadd.f32 0.0, %v3169
  %v3171 = vpop.f32.mrb[0].mxu0
  %v3172 = vpop.f32.mrb[0].mxu0
  %3173 = vdwg.mxu0
  %v3174 = vpack.c.bf16 %v2963, %v2963
  %3175 = vmatprep.subr.bf16.mxu0 %v1212
  %3176 = vmatpush1.bf16.msra.mxu0 %v1211
  %3177 = vmatprep.subr.bf16.mxu0 %v1220
  %3178 = vmatpush1.bf16.msra.mxu0 %v1219
  %3179 = vmatprep.subr.bf16.mxu0 %v1228
  %3180 = vmatpush1.bf16.msra.mxu0 %v1227
  %3181 = vmatprep.subr.bf16.mxu0 %v1236
  %3182 = vmatpush1.bf16.msra.mxu0 %v1235
  %3183 = vmatprep.subr.bf16.mxu0 %v1244
  %3184 = vmatpush1.bf16.msra.mxu0 %v1243
  %3185 = vmatprep.subr.bf16.mxu0 %v1252
  %3186 = vmatpush1.bf16.msra.mxu0 %v1251
  %3187 = vmatprep.subr.bf16.mxu0 %v1260
  %3188 = vmatpush1.bf16.msra.mxu0 %v1259
  %3189 = vmatprep.subr.bf16.mxu0 %v1268
  %3190 = vmatpush1.bf16.msra.mxu0 %v1267
  %3191 = vmatprep.subr.bf16.mxu0 0
  %3192 = vmatpush1.bf16.msra.mxu0 0
  %3193 = vmatprep.subr.bf16.mxu0 0
  %3194 = vmatpush1.bf16.msra.mxu0 0
  %3195 = vmatprep.subr.bf16.mxu0 0
  %3196 = vmatpush1.bf16.msra.mxu0 0
  %3197 = vmatprep.subr.bf16.mxu0 0
  %3198 = vmatpush1.bf16.msra.mxu0 0
  %3199 = vmatprep.subr.bf16.mxu0 0
  %3200 = vmatpush1.bf16.msra.mxu0 0
  %3201 = vmatprep.subr.bf16.mxu0 0
  %3202 = vmatpush1.bf16.msra.mxu0 0
  %3203 = vmatprep.subr.bf16.mxu0 0
  %3204 = vmatpush1.bf16.msra.mxu0 0
  %3205 = vmatprep.subr.bf16.mxu0 0
  %3206 = vmatpush1.bf16.msra.mxu0 0
  %3207 = vmatprep.mubr.bf16.mxu0 0
  %3208 = vmatmul.mubr.bf16.gmra.mrb[0].mxu0 %v3174
  %v3209 = vpop.f32.mrb[0].mxu0
  %v3210 = vadd.f32 0.0, %v3209
  %v3211 = vpop.f32.mrb[0].mxu0
  %v3212 = vadd.f32 0.0, %v3211
  %v3213 = vpop.f32.mrb[0].mxu0
  %v3214 = vpop.f32.mrb[0].mxu0
  %3215 = vdwg.mxu0
  %3216 = vmatprep.subr.bf16.mxu0 %v1214
  %3217 = vmatpush1.bf16.msra.mxu0 %v1213
  %3218 = vmatprep.subr.bf16.mxu0 %v1222
  %3219 = vmatpush1.bf16.msra.mxu0 %v1221
  %3220 = vmatprep.subr.bf16.mxu0 %v1230
  %3221 = vmatpush1.bf16.msra.mxu0 %v1229
  %3222 = vmatprep.subr.bf16.mxu0 %v1238
  %3223 = vmatpush1.bf16.msra.mxu0 %v1237
  %3224 = vmatprep.subr.bf16.mxu0 %v1246
  %3225 = vmatpush1.bf16.msra.mxu0 %v1245
  %3226 = vmatprep.subr.bf16.mxu0 %v1254
  %3227 = vmatpush1.bf16.msra.mxu0 %v1253
  %3228 = vmatprep.subr.bf16.mxu0 %v1262
  %3229 = vmatpush1.bf16.msra.mxu0 %v1261
  %3230 = vmatprep.subr.bf16.mxu0 %v1270
  %3231 = vmatpush1.bf16.msra.mxu0 %v1269
  %3232 = vmatprep.subr.bf16.mxu0 0
  %3233 = vmatpush1.bf16.msra.mxu0 0
  %3234 = vmatprep.subr.bf16.mxu0 0
  %3235 = vmatpush1.bf16.msra.mxu0 0
  %3236 = vmatprep.subr.bf16.mxu0 0
  %3237 = vmatpush1.bf16.msra.mxu0 0
  %3238 = vmatprep.subr.bf16.mxu0 0
  %3239 = vmatpush1.bf16.msra.mxu0 0
  %3240 = vmatprep.subr.bf16.mxu0 0
  %3241 = vmatpush1.bf16.msra.mxu0 0
  %3242 = vmatprep.subr.bf16.mxu0 0
  %3243 = vmatpush1.bf16.msra.mxu0 0
  %3244 = vmatprep.subr.bf16.mxu0 0
  %3245 = vmatpush1.bf16.msra.mxu0 0
  %3246 = vmatprep.subr.bf16.mxu0 0
  %3247 = vmatpush1.bf16.msra.mxu0 0
  %3248 = vmatprep.mubr.bf16.mxu0 0
  %3249 = vmatmul.mubr.bf16.gmra.mrb[0].mxu0 %v3174
  %v3250 = vpop.f32.mrb[0].mxu0
  %v3251 = vadd.f32 0.0, %v3250
  %v3252 = vpop.f32.mrb[0].mxu0
  %v3253 = vadd.f32 0.0, %v3252
  %v3254 = vpop.f32.mrb[0].mxu0
  %v3255 = vpop.f32.mrb[0].mxu0
  %3256 = vdwg.mxu0
  %3257 = vmatprep.subr.bf16.mxu0 %v1216
  %3258 = vmatpush1.bf16.msra.mxu0 %v1215
  %3259 = vmatprep.subr.bf16.mxu0 %v1224
  %3260 = vmatpush1.bf16.msra.mxu0 %v1223
  %3261 = vmatprep.subr.bf16.mxu0 %v1232
  %3262 = vmatpush1.bf16.msra.mxu0 %v1231
  %3263 = vmatprep.subr.bf16.mxu0 %v1240
  %3264 = vmatpush1.bf16.msra.mxu0 %v1239
  %3265 = vmatprep.subr.bf16.mxu0 %v1248
  %3266 = vmatpush1.bf16.msra.mxu0 %v1247
  %3267 = vmatprep.subr.bf16.mxu0 %v1256
  %3268 = vmatpush1.bf16.msra.mxu0 %v1255
  %3269 = vmatprep.subr.bf16.mxu0 %v1264
  %3270 = vmatpush1.bf16.msra.mxu0 %v1263
  %3271 = vmatprep.subr.bf16.mxu0 %v1272
  %3272 = vmatpush1.bf16.msra.mxu0 %v1271
  %3273 = vmatprep.subr.bf16.mxu0 0
  %3274 = vmatpush1.bf16.msra.mxu0 0
  %3275 = vmatprep.subr.bf16.mxu0 0
  %3276 = vmatpush1.bf16.msra.mxu0 0
  %3277 = vmatprep.subr.bf16.mxu0 0
  %3278 = vmatpush1.bf16.msra.mxu0 0
  %3279 = vmatprep.subr.bf16.mxu0 0
  %3280 = vmatpush1.bf16.msra.mxu0 0
  %3281 = vmatprep.subr.bf16.mxu0 0
  %3282 = vmatpush1.bf16.msra.mxu0 0
  %3283 = vmatprep.subr.bf16.mxu0 0
  %3284 = vmatpush1.bf16.msra.mxu0 0
  %3285 = vmatprep.subr.bf16.mxu0 0
  %3286 = vmatpush1.bf16.msra.mxu0 0
  %3287 = vmatprep.subr.bf16.mxu0 0
  %3288 = vmatpush1.bf16.msra.mxu0 0
  %3289 = vmatprep.mubr.bf16.mxu0 0
  %3290 = vmatmul.mubr.bf16.gmra.mrb[0].mxu0 %v3174
  %v3291 = vpop.f32.mrb[0].mxu0
  %v3292 = vadd.f32 0.0, %v3291
  %v3293 = vpop.f32.mrb[0].mxu0
  %v3294 = vadd.f32 0.0, %v3293
  %v3295 = vpop.f32.mrb[0].mxu0
  %v3296 = vpop.f32.mrb[0].mxu0
  %3297 = vdwg.mxu0
  %3298 = vmatprep.subr.bf16.mxu0 %v1218
  %3299 = vmatpush1.bf16.msra.mxu0 %v1217
  %3300 = vmatprep.subr.bf16.mxu0 %v1226
  %3301 = vmatpush1.bf16.msra.mxu0 %v1225
  %3302 = vmatprep.subr.bf16.mxu0 %v1234
  %3303 = vmatpush1.bf16.msra.mxu0 %v1233
  %3304 = vmatprep.subr.bf16.mxu0 %v1242
  %3305 = vmatpush1.bf16.msra.mxu0 %v1241
  %3306 = vmatprep.subr.bf16.mxu0 %v1250
  %3307 = vmatpush1.bf16.msra.mxu0 %v1249
  %3308 = vmatprep.subr.bf16.mxu0 %v1258
  %3309 = vmatpush1.bf16.msra.mxu0 %v1257
  %3310 = vmatprep.subr.bf16.mxu0 %v1266
  %3311 = vmatpush1.bf16.msra.mxu0 %v1265
  %3312 = vmatprep.subr.bf16.mxu0 %v1274
  %3313 = vmatpush1.bf16.msra.mxu0 %v1273
  %3314 = vmatprep.subr.bf16.mxu0 0
  %3315 = vmatpush1.bf16.msra.mxu0 0
  %3316 = vmatprep.subr.bf16.mxu0 0
  %3317 = vmatpush1.bf16.msra.mxu0 0
  %3318 = vmatprep.subr.bf16.mxu0 0
  %3319 = vmatpush1.bf16.msra.mxu0 0
  %3320 = vmatprep.subr.bf16.mxu0 0
  %3321 = vmatpush1.bf16.msra.mxu0 0
  %3322 = vmatprep.subr.bf16.mxu0 0
  %3323 = vmatpush1.bf16.msra.mxu0 0
  %3324 = vmatprep.subr.bf16.mxu0 0
  %3325 = vmatpush1.bf16.msra.mxu0 0
  %3326 = vmatprep.subr.bf16.mxu0 0
  %3327 = vmatpush1.bf16.msra.mxu0 0
  %3328 = vmatprep.subr.bf16.mxu0 0
  %3329 = vmatpush1.bf16.msra.mxu0 0
  %3330 = vmatprep.mubr.bf16.mxu0 0
  %3331 = vmatmul.mubr.bf16.gmra.mrb[0].mxu0 %v3174
  %v3332 = vpop.f32.mrb[0].mxu0
  %v3333 = vadd.f32 0.0, %v3332
  %v3334 = vpop.f32.mrb[0].mxu0
  %v3335 = vadd.f32 0.0, %v3334
  %v3336 = vpop.f32.mrb[0].mxu0
  %v3337 = vpop.f32.mrb[0].mxu0
  %3338 = vdwg.mxu0
  %v3339 = vpack.c.bf16 %v3006, %v3006
  %3340 = vmatprep.subr.bf16.mxu0 %v1600
  %3341 = vmatpush1.bf16.msra.mxu0 %v1599
  %3342 = vmatprep.subr.bf16.mxu0 %v1604
  %3343 = vmatpush1.bf16.msra.mxu0 %v1603
  %3344 = vmatprep.subr.bf16.mxu0 %v1608
  %3345 = vmatpush1.bf16.msra.mxu0 %v1607
  %3346 = vmatprep.subr.bf16.mxu0 %v1612
  %3347 = vmatpush1.bf16.msra.mxu0 %v1611
  %3348 = vmatprep.subr.bf16.mxu0 %v1616
  %3349 = vmatpush1.bf16.msra.mxu0 %v1615
  %3350 = vmatprep.subr.bf16.mxu0 %v1620
  %3351 = vmatpush1.bf16.msra.mxu0 %v1619
  %3352 = vmatprep.subr.bf16.mxu0 %v1624
  %3353 = vmatpush1.bf16.msra.mxu0 %v1623
  %3354 = vmatprep.subr.bf16.mxu0 %v1628
  %3355 = vmatpush1.bf16.msra.mxu0 %v1627
  %3356 = vmatprep.subr.bf16.mxu0 0
  %3357 = vmatpush1.bf16.msra.mxu0 0
  %3358 = vmatprep.subr.bf16.mxu0 0
  %3359 = vmatpush1.bf16.msra.mxu0 0
  %3360 = vmatprep.subr.bf16.mxu0 0
  %3361 = vmatpush1.bf16.msra.mxu0 0
  %3362 = vmatprep.subr.bf16.mxu0 0
  %3363 = vmatpush1.bf16.msra.mxu0 0
  %3364 = vmatprep.subr.bf16.mxu0 0
  %3365 = vmatpush1.bf16.msra.mxu0 0
  %3366 = vmatprep.subr.bf16.mxu0 0
  %3367 = vmatpush1.bf16.msra.mxu0 0
  %3368 = vmatprep.subr.bf16.mxu0 0
  %3369 = vmatpush1.bf16.msra.mxu0 0
  %3370 = vmatprep.subr.bf16.mxu0 0
  %3371 = vmatpush1.bf16.msra.mxu0 0
  %3372 = vmatprep.mubr.bf16.mxu0 0
  %3373 = vmatmul.mubr.bf16.gmra.mrb[0].mxu0 %v3339
  %v3374 = vpop.f32.mrb[0].mxu0
  %v3375 = vadd.f32 0.0, %v3374
  %v3376 = vpop.f32.mrb[0].mxu0
  %v3377 = vadd.f32 0.0, %v3376
  %v3378 = vpop.f32.mrb[0].mxu0
  %v3379 = vpop.f32.mrb[0].mxu0
  %3380 = vdwg.mxu0
  %3381 = vmatprep.subr.bf16.mxu0 %v1602
  %3382 = vmatpush1.bf16.msra.mxu0 %v1601
  %3383 = vmatprep.subr.bf16.mxu0 %v1606
  %3384 = vmatpush1.bf16.msra.mxu0 %v1605
  %3385 = vmatprep.subr.bf16.mxu0 %v1610
  %3386 = vmatpush1.bf16.msra.mxu0 %v1609
  %3387 = vmatprep.subr.bf16.mxu0 %v1614
  %3388 = vmatpush1.bf16.msra.mxu0 %v1613
  %3389 = vmatprep.subr.bf16.mxu0 %v1618
  %3390 = vmatpush1.bf16.msra.mxu0 %v1617
  %3391 = vmatprep.subr.bf16.mxu0 %v1622
  %3392 = vmatpush1.bf16.msra.mxu0 %v1621
  %3393 = vmatprep.subr.bf16.mxu0 %v1626
  %3394 = vmatpush1.bf16.msra.mxu0 %v1625
  %3395 = vmatprep.subr.bf16.mxu0 %v1630
  %3396 = vmatpush1.bf16.msra.mxu0 %v1629
  %3397 = vmatprep.subr.bf16.mxu0 0
  %3398 = vmatpush1.bf16.msra.mxu0 0
  %3399 = vmatprep.subr.bf16.mxu0 0
  %3400 = vmatpush1.bf16.msra.mxu0 0
  %3401 = vmatprep.subr.bf16.mxu0 0
  %3402 = vmatpush1.bf16.msra.mxu0 0
  %3403 = vmatprep.subr.bf16.mxu0 0
  %3404 = vmatpush1.bf16.msra.mxu0 0
  %3405 = vmatprep.subr.bf16.mxu0 0
  %3406 = vmatpush1.bf16.msra.mxu0 0
  %3407 = vmatprep.subr.bf16.mxu0 0
  %3408 = vmatpush1.bf16.msra.mxu0 0
  %3409 = vmatprep.subr.bf16.mxu0 0
  %3410 = vmatpush1.bf16.msra.mxu0 0
  %3411 = vmatprep.subr.bf16.mxu0 0
  %3412 = vmatpush1.bf16.msra.mxu0 0
  %3413 = vmatprep.mubr.bf16.mxu0 0
  %3414 = vmatmul.mubr.bf16.gmra.mrb[0].mxu0 %v3339
  %v3415 = vpop.f32.mrb[0].mxu0
  %v3416 = vadd.f32 0.0, %v3415
  %v3417 = vpop.f32.mrb[0].mxu0
  %v3418 = vadd.f32 0.0, %v3417
  %v3419 = vpop.f32.mrb[0].mxu0
  %v3420 = vpop.f32.mrb[0].mxu0
  %3421 = vdwg.mxu0
  %s3422 = smul.u32 3, 4
  %s3423 = smul.addr %s3422, 8
  %s3424 = scalar_lea.vmem [#allocation2], %s3423
  %v3425 = vld [vmem:[%s3424] sm:$0xff]
  %v3426 = vld [vmem:[%s3424 + $0x8] sm:$0xff]
  %v3427 = vld [vmem:[%s3424 + $0x10] sm:$0xff]
  %v3428 = vld [vmem:[%s3424 + $0x18] sm:$0xff]
  %v3429 = vadd.f32 %v3425, %v3045
  %v3430 = vadd.f32 %v3426, %v3047
  %v3431 = vadd.f32 %v3427, %v3086
  %v3432 = vadd.f32 %v3428, %v3088
  %v3433 = vxor.u32 %v3429, 2147483648
  %v3434 = vxor.u32 %v3430, 2147483648
  %v3435 = vxor.u32 %v3431, 2147483648
  %v3436 = vxor.u32 %v3432, 2147483648
  %v3437 = vmul.f32 %v3433, 1.442695
  %v3438 = vpow.pop %v3437
  %v3439 = vmul.f32 %v3434, 1.442695
  %v3440 = vpow.pop %v3439
  %v3441 = vmul.f32 %v3435, 1.442695
  %v3442 = vpow.pop %v3441
  %v3443 = vmul.f32 %v3436, 1.442695
  %v3444 = vpow.pop %v3443
  %v3445 = vadd.f32 %v3438, 1.0
  %v3446 = vadd.f32 %v3440, 1.0
  %v3447 = vadd.f32 %v3442, 1.0
  %v3448 = vadd.f32 %v3444, 1.0
  %v3449 = vrcp.pop %v3445
  %v3450 = vmul.f32 1.0, %v3449
  %v3451 = vrcp.pop %v3446
  %v3452 = vmul.f32 1.0, %v3451
  %v3453 = vrcp.pop %v3447
  %v3454 = vmul.f32 1.0, %v3453
  %v3455 = vrcp.pop %v3448
  %v3456 = vmul.f32 1.0, %v3455
  %v3457 = vmul.f32 %v3456, 2.0
  %v3458 = vsub.f32 %v3457, 1.0
  %v3459 = vmul.f32 %v3452, %v2922
  %v3460 = vmul.f32 %v3450, %v3458
  %v3461 = vadd.f32 %v3459, %v3460
  %v3462 = vtanh.pop %v3461
  %v3463 = vmul.f32 %v3454, %v3462
  %v3464 = vsub.f32 %v3463, %v2920
  %v3465 = vadd.f32 %v2920, %v3464
  %v3466 = vsub.f32 %v3461, %v2922
  %v3467 = vadd.f32 %v2922, %v3466
  %v3468 = vadd.f32 %v3127, %v3210
  %v3469 = vadd.f32 %v3129, %v3212
  %v3470 = vadd.f32 %v3168, %v3251
  %v3471 = vadd.f32 %v3170, %v3253
  %v3472 = vadd.f32 %v3468, %v1797
  %v3473 = vadd.f32 %v3469, %v1801
  %v3474 = vadd.f32 %v3470, %v1805
  %v3475 = vadd.f32 %v3471, %v1809
  %v3476 = vxor.u32 %v3472, 2147483648
  %v3477 = vxor.u32 %v3473, 2147483648
  %v3478 = vxor.u32 %v3474, 2147483648
  %v3479 = vxor.u32 %v3475, 2147483648
  %v3480 = vmul.f32 %v3476, 1.442695
  %v3481 = vpow.pop %v3480
  %v3482 = vmul.f32 %v3477, 1.442695
  %v3483 = vpow.pop %v3482
  %v3484 = vmul.f32 %v3478, 1.442695
  %v3485 = vpow.pop %v3484
  %v3486 = vmul.f32 %v3479, 1.442695
  %v3487 = vpow.pop %v3486
  %v3488 = vadd.f32 %v3481, 1.0
  %v3489 = vadd.f32 %v3483, 1.0
  %v3490 = vadd.f32 %v3485, 1.0
  %v3491 = vadd.f32 %v3487, 1.0
  %v3492 = vrcp.pop %v3488
  %v3493 = vmul.f32 1.0, %v3492
  %v3494 = vrcp.pop %v3489
  %v3495 = vmul.f32 1.0, %v3494
  %v3496 = vrcp.pop %v3490
  %v3497 = vmul.f32 1.0, %v3496
  %v3498 = vrcp.pop %v3491
  %v3499 = vmul.f32 1.0, %v3498
  %v3500 = vmul.f32 %v3499, 2.0
  %v3501 = vsub.f32 %v3500, 1.0
  %v3502 = vmul.f32 %v3495, %v2965
  %v3503 = vmul.f32 %v3493, %v3501
  %v3504 = vadd.f32 %v3502, %v3503
  %v3505 = vtanh.pop %v3504
  %v3506 = vmul.f32 %v3497, %v3505
  %v3507 = vsub.f32 %v3506, %v2963
  %v3508 = vadd.f32 %v2963, %v3507
  %v3509 = vsub.f32 %v3504, %v2965
  %v3510 = vadd.f32 %v2965, %v3509
  %v3511 = vadd.f32 %v3292, %v3375
  %v3512 = vadd.f32 %v3294, %v3377
  %v3513 = vadd.f32 %v3333, %v3416
  %v3514 = vadd.f32 %v3335, %v3418
  %v3515 = vadd.f32 %v3511, %v1861
  %v3516 = vadd.f32 %v3512, %v1865
  %v3517 = vadd.f32 %v3513, %v1869
  %v3518 = vadd.f32 %v3514, %v1873
  %v3519 = vxor.u32 %v3515, 2147483648
  %v3520 = vxor.u32 %v3516, 2147483648
  %v3521 = vxor.u32 %v3517, 2147483648
  %v3522 = vxor.u32 %v3518, 2147483648
  %v3523 = vmul.f32 %v3519, 1.442695
  %v3524 = vpow.pop %v3523
  %v3525 = vmul.f32 %v3520, 1.442695
  %v3526 = vpow.pop %v3525
  %v3527 = vmul.f32 %v3521, 1.442695
  %v3528 = vpow.pop %v3527
  %v3529 = vmul.f32 %v3522, 1.442695
  %v3530 = vpow.pop %v3529
  %v3531 = vadd.f32 %v3524, 1.0
  %v3532 = vadd.f32 %v3526, 1.0
  %v3533 = vadd.f32 %v3528, 1.0
  %v3534 = vadd.f32 %v3530, 1.0
  %v3535 = vrcp.pop %v3531
  %v3536 = vmul.f32 1.0, %v3535
  %v3537 = vrcp.pop %v3532
  %v3538 = vmul.f32 1.0, %v3537
  %v3539 = vrcp.pop %v3533
  %v3540 = vmul.f32 1.0, %v3539
  %v3541 = vrcp.pop %v3534
  %v3542 = vmul.f32 1.0, %v3541
  %v3543 = vmul.f32 %v3542, 2.0
  %v3544 = vsub.f32 %v3543, 1.0
  %v3545 = vmul.f32 %v3538, %v3008
  %v3546 = vmul.f32 %v3536, %v3544
  %v3547 = vadd.f32 %v3545, %v3546
  %v3548 = vtanh.pop %v3547
  %v3549 = vmul.f32 %v3540, %v3548
  %v3550 = vsub.f32 %v3549, %v3006
  %v3551 = vadd.f32 %v3006, %v3550
  %v3552 = vsub.f32 %v3547, %v3008
  %v3553 = vadd.f32 %v3008, %v3552
  %v3554 = vpack.c.bf16 %v3465, %v3465
  %3555 = vmatprep.subr.bf16.mxu0 %v728
  %3556 = vmatpush1.bf16.msra.mxu0 %v727
  %3557 = vmatprep.subr.bf16.mxu0 %v736
  %3558 = vmatpush1.bf16.msra.mxu0 %v735
  %3559 = vmatprep.subr.bf16.mxu0 %v744
  %3560 = vmatpush1.bf16.msra.mxu0 %v743
  %3561 = vmatprep.subr.bf16.mxu0 %v752
  %3562 = vmatpush1.bf16.msra.mxu0 %v751
  %3563 = vmatprep.subr.bf16.mxu0 %v760
  %3564 = vmatpush1.bf16.msra.mxu0 %v759
  %3565 = vmatprep.subr.bf16.mxu0 %v768
  %3566 = vmatpush1.bf16.msra.mxu0 %v767
  %3567 = vmatprep.subr.bf16.mxu0 %v776
  %3568 = vmatpush1.bf16.msra.mxu0 %v775
  %3569 = vmatprep.subr.bf16.mxu0 %v784
  %3570 = vmatpush1.bf16.msra.mxu0 %v783
  %3571 = vmatprep.subr.bf16.mxu0 0
  %3572 = vmatpush1.bf16.msra.mxu0 0
  %3573 = vmatprep.subr.bf16.mxu0 0
  %3574 = vmatpush1.bf16.msra.mxu0 0
  %3575 = vmatprep.subr.bf16.mxu0 0
  %3576 = vmatpush1.bf16.msra.mxu0 0
  %3577 = vmatprep.subr.bf16.mxu0 0
  %3578 = vmatpush1.bf16.msra.mxu0 0
  %3579 = vmatprep.subr.bf16.mxu0 0
  %3580 = vmatpush1.bf16.msra.mxu0 0
  %3581 = vmatprep.subr.bf16.mxu0 0
  %3582 = vmatpush1.bf16.msra.mxu0 0
  %3583 = vmatprep.subr.bf16.mxu0 0
  %3584 = vmatpush1.bf16.msra.mxu0 0
  %3585 = vmatprep.subr.bf16.mxu0 0
  %3586 = vmatpush1.bf16.msra.mxu0 0
  %3587 = vmatprep.mubr.bf16.mxu0 0
  %3588 = vmatmul.mubr.bf16.gmra.mrb[0].mxu0 %v3554
  %v3589 = vpop.f32.mrb[0].mxu0
  %v3590 = vadd.f32 0.0, %v3589
  %v3591 = vpop.f32.mrb[0].mxu0
  %v3592 = vadd.f32 0.0, %v3591
  %v3593 = vpop.f32.mrb[0].mxu0
  %v3594 = vpop.f32.mrb[0].mxu0
  %3595 = vdwg.mxu0
  %3596 = vmatprep.subr.bf16.mxu0 %v730
  %3597 = vmatpush1.bf16.msra.mxu0 %v729
  %3598 = vmatprep.subr.bf16.mxu0 %v738
  %3599 = vmatpush1.bf16.msra.mxu0 %v737
  %3600 = vmatprep.subr.bf16.mxu0 %v746
  %3601 = vmatpush1.bf16.msra.mxu0 %v745
  %3602 = vmatprep.subr.bf16.mxu0 %v754
  %3603 = vmatpush1.bf16.msra.mxu0 %v753
  %3604 = vmatprep.subr.bf16.mxu0 %v762
  %3605 = vmatpush1.bf16.msra.mxu0 %v761
  %3606 = vmatprep.subr.bf16.mxu0 %v770
  %3607 = vmatpush1.bf16.msra.mxu0 %v769
  %3608 = vmatprep.subr.bf16.mxu0 %v778
  %3609 = vmatpush1.bf16.msra.mxu0 %v777
  %3610 = vmatprep.subr.bf16.mxu0 %v786
  %3611 = vmatpush1.bf16.msra.mxu0 %v785
  %3612 = vmatprep.subr.bf16.mxu0 0
  %3613 = vmatpush1.bf16.msra.mxu0 0
  %3614 = vmatprep.subr.bf16.mxu0 0
  %3615 = vmatpush1.bf16.msra.mxu0 0
  %3616 = vmatprep.subr.bf16.mxu0 0
  %3617 = vmatpush1.bf16.msra.mxu0 0
  %3618 = vmatprep.subr.bf16.mxu0 0
  %3619 = vmatpush1.bf16.msra.mxu0 0
  %3620 = vmatprep.subr.bf16.mxu0 0
  %3621 = vmatpush1.bf16.msra.mxu0 0
  %3622 = vmatprep.subr.bf16.mxu0 0
  %3623 = vmatpush1.bf16.msra.mxu0 0
  %3624 = vmatprep.subr.bf16.mxu0 0
  %3625 = vmatpush1.bf16.msra.mxu0 0
  %3626 = vmatprep.subr.bf16.mxu0 0
  %3627 = vmatpush1.bf16.msra.mxu0 0
  %3628 = vmatprep.mubr.bf16.mxu0 0
  %3629 = vmatmul.mubr.bf16.gmra.mrb[0].mxu0 %v3554
  %v3630 = vpop.f32.mrb[0].mxu0
  %v3631 = vadd.f32 0.0, %v3630
  %v3632 = vpop.f32.mrb[0].mxu0
  %v3633 = vadd.f32 0.0, %v3632
  %v3634 = vpop.f32.mrb[0].mxu0
  %v3635 = vpop.f32.mrb[0].mxu0
  %3636 = vdwg.mxu0
  %3637 = vmatprep.subr.bf16.mxu0 %v732
  %3638 = vmatpush1.bf16.msra.mxu0 %v731
  %3639 = vmatprep.subr.bf16.mxu0 %v740
  %3640 = vmatpush1.bf16.msra.mxu0 %v739
  %3641 = vmatprep.subr.bf16.mxu0 %v748
  %3642 = vmatpush1.bf16.msra.mxu0 %v747
  %3643 = vmatprep.subr.bf16.mxu0 %v756
  %3644 = vmatpush1.bf16.msra.mxu0 %v755
  %3645 = vmatprep.subr.bf16.mxu0 %v764
  %3646 = vmatpush1.bf16.msra.mxu0 %v763
  %3647 = vmatprep.subr.bf16.mxu0 %v772
  %3648 = vmatpush1.bf16.msra.mxu0 %v771
  %3649 = vmatprep.subr.bf16.mxu0 %v780
  %3650 = vmatpush1.bf16.msra.mxu0 %v779
  %3651 = vmatprep.subr.bf16.mxu0 %v788
  %3652 = vmatpush1.bf16.msra.mxu0 %v787
  %3653 = vmatprep.subr.bf16.mxu0 0
  %3654 = vmatpush1.bf16.msra.mxu0 0
  %3655 = vmatprep.subr.bf16.mxu0 0
  %3656 = vmatpush1.bf16.msra.mxu0 0
  %3657 = vmatprep.subr.bf16.mxu0 0
  %3658 = vmatpush1.bf16.msra.mxu0 0
  %3659 = vmatprep.subr.bf16.mxu0 0
  %3660 = vmatpush1.bf16.msra.mxu0 0
  %3661 = vmatprep.subr.bf16.mxu0 0
  %3662 = vmatpush1.bf16.msra.mxu0 0
  %3663 = vmatprep.subr.bf16.mxu0 0
  %3664 = vmatpush1.bf16.msra.mxu0 0
  %3665 = vmatprep.subr.bf16.mxu0 0
  %3666 = vmatpush1.bf16.msra.mxu0 0
  %3667 = vmatprep.subr.bf16.mxu0 0
  %3668 = vmatpush1.bf16.msra.mxu0 0
  %3669 = vmatprep.mubr.bf16.mxu0 0
  %3670 = vmatmul.mubr.bf16.gmra.mrb[0].mxu0 %v3554
  %v3671 = vpop.f32.mrb[0].mxu0
  %v3672 = vadd.f32 0.0, %v3671
  %v3673 = vpop.f32.mrb[0].mxu0
  %v3674 = vadd.f32 0.0, %v3673
  %v3675 = vpop.f32.mrb[0].mxu0
  %v3676 = vpop.f32.mrb[0].mxu0
  %3677 = vdwg.mxu0
  %3678 = vmatprep.subr.bf16.mxu0 %v734
  %3679 = vmatpush1.bf16.msra.mxu0 %v733
  %3680 = vmatprep.subr.bf16.mxu0 %v742
  %3681 = vmatpush1.bf16.msra.mxu0 %v741
  %3682 = vmatprep.subr.bf16.mxu0 %v750
  %3683 = vmatpush1.bf16.msra.mxu0 %v749
  %3684 = vmatprep.subr.bf16.mxu0 %v758
  %3685 = vmatpush1.bf16.msra.mxu0 %v757
  %3686 = vmatprep.subr.bf16.mxu0 %v766
  %3687 = vmatpush1.bf16.msra.mxu0 %v765
  %3688 = vmatprep.subr.bf16.mxu0 %v774
  %3689 = vmatpush1.bf16.msra.mxu0 %v773
  %3690 = vmatprep.subr.bf16.mxu0 %v782
  %3691 = vmatpush1.bf16.msra.mxu0 %v781
  %3692 = vmatprep.subr.bf16.mxu0 %v790
  %3693 = vmatpush1.bf16.msra.mxu0 %v789
  %3694 = vmatprep.subr.bf16.mxu0 0
  %3695 = vmatpush1.bf16.msra.mxu0 0
  %3696 = vmatprep.subr.bf16.mxu0 0
  %3697 = vmatpush1.bf16.msra.mxu0 0
  %3698 = vmatprep.subr.bf16.mxu0 0
  %3699 = vmatpush1.bf16.msra.mxu0 0
  %3700 = vmatprep.subr.bf16.mxu0 0
  %3701 = vmatpush1.bf16.msra.mxu0 0
  %3702 = vmatprep.subr.bf16.mxu0 0
  %3703 = vmatpush1.bf16.msra.mxu0 0
  %3704 = vmatprep.subr.bf16.mxu0 0
  %3705 = vmatpush1.bf16.msra.mxu0 0
  %3706 = vmatprep.subr.bf16.mxu0 0
  %3707 = vmatpush1.bf16.msra.mxu0 0
  %3708 = vmatprep.subr.bf16.mxu0 0
  %3709 = vmatpush1.bf16.msra.mxu0 0
  %3710 = vmatprep.mubr.bf16.mxu0 0
  %3711 = vmatmul.mubr.bf16.gmra.mrb[0].mxu0 %v3554
  %v3712 = vpop.f32.mrb[0].mxu0
  %v3713 = vadd.f32 0.0, %v3712
  %v3714 = vpop.f32.mrb[0].mxu0
  %v3715 = vadd.f32 0.0, %v3714
  %v3716 = vpop.f32.mrb[0].mxu0
  %v3717 = vpop.f32.mrb[0].mxu0
  %3718 = vdwg.mxu0
  %v3719 = vpack.c.bf16 %v3508, %v3508
  %3720 = vmatprep.subr.bf16.mxu0 %v1212
  %3721 = vmatpush1.bf16.msra.mxu0 %v1211
  %3722 = vmatprep.subr.bf16.mxu0 %v1220
  %3723 = vmatpush1.bf16.msra.mxu0 %v1219
  %3724 = vmatprep.subr.bf16.mxu0 %v1228
  %3725 = vmatpush1.bf16.msra.mxu0 %v1227
  %3726 = vmatprep.subr.bf16.mxu0 %v1236
  %3727 = vmatpush1.bf16.msra.mxu0 %v1235
  %3728 = vmatprep.subr.bf16.mxu0 %v1244
  %3729 = vmatpush1.bf16.msra.mxu0 %v1243
  %3730 = vmatprep.subr.bf16.mxu0 %v1252
  %3731 = vmatpush1.bf16.msra.mxu0 %v1251
  %3732 = vmatprep.subr.bf16.mxu0 %v1260
  %3733 = vmatpush1.bf16.msra.mxu0 %v1259
  %3734 = vmatprep.subr.bf16.mxu0 %v1268
  %3735 = vmatpush1.bf16.msra.mxu0 %v1267
  %3736 = vmatprep.subr.bf16.mxu0 0
  %3737 = vmatpush1.bf16.msra.mxu0 0
  %3738 = vmatprep.subr.bf16.mxu0 0
  %3739 = vmatpush1.bf16.msra.mxu0 0
  %3740 = vmatprep.subr.bf16.mxu0 0
  %3741 = vmatpush1.bf16.msra.mxu0 0
  %3742 = vmatprep.subr.bf16.mxu0 0
  %3743 = vmatpush1.bf16.msra.mxu0 0
  %3744 = vmatprep.subr.bf16.mxu0 0
  %3745 = vmatpush1.bf16.msra.mxu0 0
  %3746 = vmatprep.subr.bf16.mxu0 0
  %3747 = vmatpush1.bf16.msra.mxu0 0
  %3748 = vmatprep.subr.bf16.mxu0 0
  %3749 = vmatpush1.bf16.msra.mxu0 0
  %3750 = vmatprep.subr.bf16.mxu0 0
  %3751 = vmatpush1.bf16.msra.mxu0 0
  %3752 = vmatprep.mubr.bf16.mxu0 0
  %3753 = vmatmul.mubr.bf16.gmra.mrb[0].mxu0 %v3719
  %v3754 = vpop.f32.mrb[0].mxu0
  %v3755 = vadd.f32 0.0, %v3754
  %v3756 = vpop.f32.mrb[0].mxu0
  %v3757 = vadd.f32 0.0, %v3756
  %v3758 = vpop.f32.mrb[0].mxu0
  %v3759 = vpop.f32.mrb[0].mxu0
  %3760 = vdwg.mxu0
  %3761 = vmatprep.subr.bf16.mxu0 %v1214
  %3762 = vmatpush1.bf16.msra.mxu0 %v1213
  %3763 = vmatprep.subr.bf16.mxu0 %v1222
  %3764 = vmatpush1.bf16.msra.mxu0 %v1221
  %3765 = vmatprep.subr.bf16.mxu0 %v1230
  %3766 = vmatpush1.bf16.msra.mxu0 %v1229
  %3767 = vmatprep.subr.bf16.mxu0 %v1238
  %3768 = vmatpush1.bf16.msra.mxu0 %v1237
  %3769 = vmatprep.subr.bf16.mxu0 %v1246
  %3770 = vmatpush1.bf16.msra.mxu0 %v1245
  %3771 = vmatprep.subr.bf16.mxu0 %v1254
  %3772 = vmatpush1.bf16.msra.mxu0 %v1253
  %3773 = vmatprep.subr.bf16.mxu0 %v1262
  %3774 = vmatpush1.bf16.msra.mxu0 %v1261
  %3775 = vmatprep.subr.bf16.mxu0 %v1270
  %3776 = vmatpush1.bf16.msra.mxu0 %v1269
  %3777 = vmatprep.subr.bf16.mxu0 0
  %3778 = vmatpush1.bf16.msra.mxu0 0
  %3779 = vmatprep.subr.bf16.mxu0 0
  %3780 = vmatpush1.bf16.msra.mxu0 0
  %3781 = vmatprep.subr.bf16.mxu0 0
  %3782 = vmatpush1.bf16.msra.mxu0 0
  %3783 = vmatprep.subr.bf16.mxu0 0
  %3784 = vmatpush1.bf16.msra.mxu0 0
  %3785 = vmatprep.subr.bf16.mxu0 0
  %3786 = vmatpush1.bf16.msra.mxu0 0
  %3787 = vmatprep.subr.bf16.mxu0 0
  %3788 = vmatpush1.bf16.msra.mxu0 0
  %3789 = vmatprep.subr.bf16.mxu0 0
  %3790 = vmatpush1.bf16.msra.mxu0 0
  %3791 = vmatprep.subr.bf16.mxu0 0
  %3792 = vmatpush1.bf16.msra.mxu0 0
  %3793 = vmatprep.mubr.bf16.mxu0 0
  %3794 = vmatmul.mubr.bf16.gmra.mrb[0].mxu0 %v3719
  %v3795 = vpop.f32.mrb[0].mxu0
  %v3796 = vadd.f32 0.0, %v3795
  %v3797 = vpop.f32.mrb[0].mxu0
  %v3798 = vadd.f32 0.0, %v3797
  %v3799 = vpop.f32.mrb[0].mxu0
  %v3800 = vpop.f32.mrb[0].mxu0
  %3801 = vdwg.mxu0
  %3802 = vmatprep.subr.bf16.mxu0 %v1216
  %3803 = vmatpush1.bf16.msra.mxu0 %v1215
  %3804 = vmatprep.subr.bf16.mxu0 %v1224
  %3805 = vmatpush1.bf16.msra.mxu0 %v1223
  %3806 = vmatprep.subr.bf16.mxu0 %v1232
  %3807 = vmatpush1.bf16.msra.mxu0 %v1231
  %3808 = vmatprep.subr.bf16.mxu0 %v1240
  %3809 = vmatpush1.bf16.msra.mxu0 %v1239
  %3810 = vmatprep.subr.bf16.mxu0 %v1248
  %3811 = vmatpush1.bf16.msra.mxu0 %v1247
  %3812 = vmatprep.subr.bf16.mxu0 %v1256
  %3813 = vmatpush1.bf16.msra.mxu0 %v1255
  %3814 = vmatprep.subr.bf16.mxu0 %v1264
  %3815 = vmatpush1.bf16.msra.mxu0 %v1263
  %3816 = vmatprep.subr.bf16.mxu0 %v1272
  %3817 = vmatpush1.bf16.msra.mxu0 %v1271
  %3818 = vmatprep.subr.bf16.mxu0 0
  %3819 = vmatpush1.bf16.msra.mxu0 0
  %3820 = vmatprep.subr.bf16.mxu0 0
  %3821 = vmatpush1.bf16.msra.mxu0 0
  %3822 = vmatprep.subr.bf16.mxu0 0
  %3823 = vmatpush1.bf16.msra.mxu0 0
  %3824 = vmatprep.subr.bf16.mxu0 0
  %3825 = vmatpush1.bf16.msra.mxu0 0
  %3826 = vmatprep.subr.bf16.mxu0 0
  %3827 = vmatpush1.bf16.msra.mxu0 0
  %3828 = vmatprep.subr.bf16.mxu0 0
  %3829 = vmatpush1.bf16.msra.mxu0 0
  %3830 = vmatprep.subr.bf16.mxu0 0
  %3831 = vmatpush1.bf16.msra.mxu0 0
  %3832 = vmatprep.subr.bf16.mxu0 0
  %3833 = vmatpush1.bf16.msra.mxu0 0
  %3834 = vmatprep.mubr.bf16.mxu0 0
  %3835 = vmatmul.mubr.bf16.gmra.mrb[0].mxu0 %v3719
  %v3836 = vpop.f32.mrb[0].mxu0
  %v3837 = vadd.f32 0.0, %v3836
  %v3838 = vpop.f32.mrb[0].mxu0
  %v3839 = vadd.f32 0.0, %v3838
  %v3840 = vpop.f32.mrb[0].mxu0
  %v3841 = vpop.f32.mrb[0].mxu0
  %3842 = vdwg.mxu0
  %3843 = vmatprep.subr.bf16.mxu0 %v1218
  %3844 = vmatpush1.bf16.msra.mxu0 %v1217
  %3845 = vmatprep.subr.bf16.mxu0 %v1226
  %3846 = vmatpush1.bf16.msra.mxu0 %v1225
  %3847 = vmatprep.subr.bf16.mxu0 %v1234
  %3848 = vmatpush1.bf16.msra.mxu0 %v1233
  %3849 = vmatprep.subr.bf16.mxu0 %v1242
  %3850 = vmatpush1.bf16.msra.mxu0 %v1241
  %3851 = vmatprep.subr.bf16.mxu0 %v1250
  %3852 = vmatpush1.bf16.msra.mxu0 %v1249
  %3853 = vmatprep.subr.bf16.mxu0 %v1258
  %3854 = vmatpush1.bf16.msra.mxu0 %v1257
  %3855 = vmatprep.subr.bf16.mxu0 %v1266
  %3856 = vmatpush1.bf16.msra.mxu0 %v1265
  %3857 = vmatprep.subr.bf16.mxu0 %v1274
  %3858 = vmatpush1.bf16.msra.mxu0 %v1273
  %3859 = vmatprep.subr.bf16.mxu0 0
  %3860 = vmatpush1.bf16.msra.mxu0 0
  %3861 = vmatprep.subr.bf16.mxu0 0
  %3862 = vmatpush1.bf16.msra.mxu0 0
  %3863 = vmatprep.subr.bf16.mxu0 0
  %3864 = vmatpush1.bf16.msra.mxu0 0
  %3865 = vmatprep.subr.bf16.mxu0 0
  %3866 = vmatpush1.bf16.msra.mxu0 0
  %3867 = vmatprep.subr.bf16.mxu0 0
  %3868 = vmatpush1.bf16.msra.mxu0 0
  %3869 = vmatprep.subr.bf16.mxu0 0
  %3870 = vmatpush1.bf16.msra.mxu0 0
  %3871 = vmatprep.subr.bf16.mxu0 0
  %3872 = vmatpush1.bf16.msra.mxu0 0
  %3873 = vmatprep.subr.bf16.mxu0 0
  %3874 = vmatpush1.bf16.msra.mxu0 0
  %3875 = vmatprep.mubr.bf16.mxu0 0
  %3876 = vmatmul.mubr.bf16.gmra.mrb[0].mxu0 %v3719
  %v3877 = vpop.f32.mrb[0].mxu0
  %v3878 = vadd.f32 0.0, %v3877
  %v3879 = vpop.f32.mrb[0].mxu0
  %v3880 = vadd.f32 0.0, %v3879
  %v3881 = vpop.f32.mrb[0].mxu0
  %v3882 = vpop.f32.mrb[0].mxu0
  %3883 = vdwg.mxu0
  %v3884 = vpack.c.bf16 %v3551, %v3551
  %3885 = vmatprep.subr.bf16.mxu0 %v1600
  %3886 = vmatpush1.bf16.msra.mxu0 %v1599
  %3887 = vmatprep.subr.bf16.mxu0 %v1604
  %3888 = vmatpush1.bf16.msra.mxu0 %v1603
  %3889 = vmatprep.subr.bf16.mxu0 %v1608
  %3890 = vmatpush1.bf16.msra.mxu0 %v1607
  %3891 = vmatprep.subr.bf16.mxu0 %v1612
  %3892 = vmatpush1.bf16.msra.mxu0 %v1611
  %3893 = vmatprep.subr.bf16.mxu0 %v1616
  %3894 = vmatpush1.bf16.msra.mxu0 %v1615
  %3895 = vmatprep.subr.bf16.mxu0 %v1620
  %3896 = vmatpush1.bf16.msra.mxu0 %v1619
  %3897 = vmatprep.subr.bf16.mxu0 %v1624
  %3898 = vmatpush1.bf16.msra.mxu0 %v1623
  %3899 = vmatprep.subr.bf16.mxu0 %v1628
  %3900 = vmatpush1.bf16.msra.mxu0 %v1627
  %3901 = vmatprep.subr.bf16.mxu0 0
  %3902 = vmatpush1.bf16.msra.mxu0 0
  %3903 = vmatprep.subr.bf16.mxu0 0
  %3904 = vmatpush1.bf16.msra.mxu0 0
  %3905 = vmatprep.subr.bf16.mxu0 0
  %3906 = vmatpush1.bf16.msra.mxu0 0
  %3907 = vmatprep.subr.bf16.mxu0 0
  %3908 = vmatpush1.bf16.msra.mxu0 0
  %3909 = vmatprep.subr.bf16.mxu0 0
  %3910 = vmatpush1.bf16.msra.mxu0 0
  %3911 = vmatprep.subr.bf16.mxu0 0
  %3912 = vmatpush1.bf16.msra.mxu0 0
  %3913 = vmatprep.subr.bf16.mxu0 0
  %3914 = vmatpush1.bf16.msra.mxu0 0
  %3915 = vmatprep.subr.bf16.mxu0 0
  %3916 = vmatpush1.bf16.msra.mxu0 0
  %3917 = vmatprep.mubr.bf16.mxu0 0
  %3918 = vmatmul.mubr.bf16.gmra.mrb[0].mxu0 %v3884
  %v3919 = vpop.f32.mrb[0].mxu0
  %v3920 = vadd.f32 0.0, %v3919
  %v3921 = vpop.f32.mrb[0].mxu0
  %v3922 = vadd.f32 0.0, %v3921
  %v3923 = vpop.f32.mrb[0].mxu0
  %v3924 = vpop.f32.mrb[0].mxu0
  %3925 = vdwg.mxu0
  %3926 = vmatprep.subr.bf16.mxu0 %v1602
  %3927 = vmatpush1.bf16.msra.mxu0 %v1601
  %3928 = vmatprep.subr.bf16.mxu0 %v1606
  %3929 = vmatpush1.bf16.msra.mxu0 %v1605
  %3930 = vmatprep.subr.bf16.mxu0 %v1610
  %3931 = vmatpush1.bf16.msra.mxu0 %v1609
  %3932 = vmatprep.subr.bf16.mxu0 %v1614
  %3933 = vmatpush1.bf16.msra.mxu0 %v1613
  %3934 = vmatprep.subr.bf16.mxu0 %v1618
  %3935 = vmatpush1.bf16.msra.mxu0 %v1617
  %3936 = vmatprep.subr.bf16.mxu0 %v1622
  %3937 = vmatpush1.bf16.msra.mxu0 %v1621
  %3938 = vmatprep.subr.bf16.mxu0 %v1626
  %3939 = vmatpush1.bf16.msra.mxu0 %v1625
  %3940 = vmatprep.subr.bf16.mxu0 %v1630
  %3941 = vmatpush1.bf16.msra.mxu0 %v1629
  %3942 = vmatprep.subr.bf16.mxu0 0
  %3943 = vmatpush1.bf16.msra.mxu0 0
  %3944 = vmatprep.subr.bf16.mxu0 0
  %3945 = vmatpush1.bf16.msra.mxu0 0
  %3946 = vmatprep.subr.bf16.mxu0 0
  %3947 = vmatpush1.bf16.msra.mxu0 0
  %3948 = vmatprep.subr.bf16.mxu0 0
  %3949 = vmatpush1.bf16.msra.mxu0 0
  %3950 = vmatprep.subr.bf16.mxu0 0
  %3951 = vmatpush1.bf16.msra.mxu0 0
  %3952 = vmatprep.subr.bf16.mxu0 0
  %3953 = vmatpush1.bf16.msra.mxu0 0
  %3954 = vmatprep.subr.bf16.mxu0 0
  %3955 = vmatpush1.bf16.msra.mxu0 0
  %3956 = vmatprep.subr.bf16.mxu0 0
  %3957 = vmatpush1.bf16.msra.mxu0 0
  %3958 = vmatprep.mubr.bf16.mxu0 0
  %3959 = vmatmul.mubr.bf16.gmra.mrb[0].mxu0 %v3884
  %v3960 = vpop.f32.mrb[0].mxu0
  %v3961 = vadd.f32 0.0, %v3960
  %v3962 = vpop.f32.mrb[0].mxu0
  %v3963 = vadd.f32 0.0, %v3962
  %v3964 = vpop.f32.mrb[0].mxu0
  %v3965 = vpop.f32.mrb[0].mxu0
  %3966 = vdwg.mxu0
  %s3967 = smul.u32 4, 4
  %s3968 = smul.addr %s3967, 8
  %s3969 = scalar_lea.vmem [#allocation2], %s3968
  %v3970 = vld [vmem:[%s3969] sm:$0xff]
  %v3971 = vld [vmem:[%s3969 + $0x8] sm:$0xff]
  %v3972 = vld [vmem:[%s3969 + $0x10] sm:$0xff]
  %v3973 = vld [vmem:[%s3969 + $0x18] sm:$0xff]
  %v3974 = vadd.f32 %v3970, %v3590
  %v3975 = vadd.f32 %v3971, %v3592
  %v3976 = vadd.f32 %v3972, %v3631
  %v3977 = vadd.f32 %v3973, %v3633
  %v3978 = vxor.u32 %v3974, 2147483648
  %v3979 = vxor.u32 %v3975, 2147483648
  %v3980 = vxor.u32 %v3976, 2147483648
  %v3981 = vxor.u32 %v3977, 2147483648
  %v3982 = vmul.f32 %v3978, 1.442695
  %v3983 = vpow.pop %v3982
  %v3984 = vmul.f32 %v3979, 1.442695
  %v3985 = vpow.pop %v3984
  %v3986 = vmul.f32 %v3980, 1.442695
  %v3987 = vpow.pop %v3986
  %v3988 = vmul.f32 %v3981, 1.442695
  %v3989 = vpow.pop %v3988
  %v3990 = vadd.f32 %v3983, 1.0
  %v3991 = vadd.f32 %v3985, 1.0
  %v3992 = vadd.f32 %v3987, 1.0
  %v3993 = vadd.f32 %v3989, 1.0
  %v3994 = vrcp.pop %v3990
  %v3995 = vmul.f32 1.0, %v3994
  %v3996 = vrcp.pop %v3991
  %v3997 = vmul.f32 1.0, %v3996
  %v3998 = vrcp.pop %v3992
  %v3999 = vmul.f32 1.0, %v3998
  %v4000 = vrcp.pop %v3993
  %v4001 = vmul.f32 1.0, %v4000
  %v4002 = vmul.f32 %v4001, 2.0
  %v4003 = vsub.f32 %v4002, 1.0
  %v4004 = vmul.f32 %v3997, %v3467
  %v4005 = vmul.f32 %v3995, %v4003
  %v4006 = vadd.f32 %v4004, %v4005
  %v4007 = vtanh.pop %v4006
  %v4008 = vmul.f32 %v3999, %v4007
  %v4009 = vsub.f32 %v4008, %v3465
  %v4010 = vadd.f32 %v3465, %v4009
  %v4011 = vsub.f32 %v4006, %v3467
  %v4012 = vadd.f32 %v3467, %v4011
  %v4013 = vadd.f32 %v3672, %v3755
  %v4014 = vadd.f32 %v3674, %v3757
  %v4015 = vadd.f32 %v3713, %v3796
  %v4016 = vadd.f32 %v3715, %v3798
  %v4017 = vadd.f32 %v4013, %v1797
  %v4018 = vadd.f32 %v4014, %v1801
  %v4019 = vadd.f32 %v4015, %v1805
  %v4020 = vadd.f32 %v4016, %v1809
  %v4021 = vxor.u32 %v4017, 2147483648
  %v4022 = vxor.u32 %v4018, 2147483648
  %v4023 = vxor.u32 %v4019, 2147483648
  %v4024 = vxor.u32 %v4020, 2147483648
  %v4025 = vmul.f32 %v4021, 1.442695
  %v4026 = vpow.pop %v4025
  %v4027 = vmul.f32 %v4022, 1.442695
  %v4028 = vpow.pop %v4027
  %v4029 = vmul.f32 %v4023, 1.442695
  %v4030 = vpow.pop %v4029
  %v4031 = vmul.f32 %v4024, 1.442695
  %v4032 = vpow.pop %v4031
  %v4033 = vadd.f32 %v4026, 1.0
  %v4034 = vadd.f32 %v4028, 1.0
  %v4035 = vadd.f32 %v4030, 1.0
  %v4036 = vadd.f32 %v4032, 1.0
  %v4037 = vrcp.pop %v4033
  %v4038 = vmul.f32 1.0, %v4037
  %v4039 = vrcp.pop %v4034
  %v4040 = vmul.f32 1.0, %v4039
  %v4041 = vrcp.pop %v4035
  %v4042 = vmul.f32 1.0, %v4041
  %v4043 = vrcp.pop %v4036
  %v4044 = vmul.f32 1.0, %v4043
  %v4045 = vmul.f32 %v4044, 2.0
  %v4046 = vsub.f32 %v4045, 1.0
  %v4047 = vmul.f32 %v4040, %v3510
  %v4048 = vmul.f32 %v4038, %v4046
  %v4049 = vadd.f32 %v4047, %v4048
  %v4050 = vtanh.pop %v4049
  %v4051 = vmul.f32 %v4042, %v4050
  %v4052 = vsub.f32 %v4051, %v3508
  %v4053 = vadd.f32 %v3508, %v4052
  %v4054 = vsub.f32 %v4049, %v3510
  %v4055 = vadd.f32 %v3510, %v4054
  %v4056 = vadd.f32 %v3837, %v3920
  %v4057 = vadd.f32 %v3839, %v3922
  %v4058 = vadd.f32 %v3878, %v3961
  %v4059 = vadd.f32 %v3880, %v3963
  %v4060 = vadd.f32 %v4056, %v1861
  %v4061 = vadd.f32 %v4057, %v1865
  %v4062 = vadd.f32 %v4058, %v1869
  %v4063 = vadd.f32 %v4059, %v1873
  %v4064 = vxor.u32 %v4060, 2147483648
  %v4065 = vxor.u32 %v4061, 2147483648
  %v4066 = vxor.u32 %v4062, 2147483648
  %v4067 = vxor.u32 %v4063, 2147483648
  %v4068 = vmul.f32 %v4064, 1.442695
  %v4069 = vpow.pop %v4068
  %v4070 = vmul.f32 %v4065, 1.442695
  %v4071 = vpow.pop %v4070
  %v4072 = vmul.f32 %v4066, 1.442695
  %v4073 = vpow.pop %v4072
  %v4074 = vmul.f32 %v4067, 1.442695
  %v4075 = vpow.pop %v4074
  %v4076 = vadd.f32 %v4069, 1.0
  %v4077 = vadd.f32 %v4071, 1.0
  %v4078 = vadd.f32 %v4073, 1.0
  %v4079 = vadd.f32 %v4075, 1.0
  %v4080 = vrcp.pop %v4076
  %v4081 = vmul.f32 1.0, %v4080
  %v4082 = vrcp.pop %v4077
  %v4083 = vmul.f32 1.0, %v4082
  %v4084 = vrcp.pop %v4078
  %v4085 = vmul.f32 1.0, %v4084
  %v4086 = vrcp.pop %v4079
  %v4087 = vmul.f32 1.0, %v4086
  %v4088 = vmul.f32 %v4087, 2.0
  %v4089 = vsub.f32 %v4088, 1.0
  %v4090 = vmul.f32 %v4083, %v3553
  %v4091 = vmul.f32 %v4081, %v4089
  %v4092 = vadd.f32 %v4090, %v4091
  %v4093 = vtanh.pop %v4092
  %v4094 = vmul.f32 %v4085, %v4093
  %v4095 = vsub.f32 %v4094, %v3551
  %v4096 = vadd.f32 %v3551, %v4095
  %v4097 = vsub.f32 %v4092, %v3553
  %v4098 = vadd.f32 %v3553, %v4097
  %v4099 = vpack.c.bf16 %v4010, %v4010
  %4100 = vmatprep.subr.bf16.mxu0 %v728
  %4101 = vmatpush1.bf16.msra.mxu0 %v727
  %4102 = vmatprep.subr.bf16.mxu0 %v736
  %4103 = vmatpush1.bf16.msra.mxu0 %v735
  %4104 = vmatprep.subr.bf16.mxu0 %v744
  %4105 = vmatpush1.bf16.msra.mxu0 %v743
  %4106 = vmatprep.subr.bf16.mxu0 %v752
  %4107 = vmatpush1.bf16.msra.mxu0 %v751
  %4108 = vmatprep.subr.bf16.mxu0 %v760
  %4109 = vmatpush1.bf16.msra.mxu0 %v759
  %4110 = vmatprep.subr.bf16.mxu0 %v768
  %4111 = vmatpush1.bf16.msra.mxu0 %v767
  %4112 = vmatprep.subr.bf16.mxu0 %v776
  %4113 = vmatpush1.bf16.msra.mxu0 %v775
  %4114 = vmatprep.subr.bf16.mxu0 %v784
  %4115 = vmatpush1.bf16.msra.mxu0 %v783
  %4116 = vmatprep.subr.bf16.mxu0 0
  %4117 = vmatpush1.bf16.msra.mxu0 0
  %4118 = vmatprep.subr.bf16.mxu0 0
  %4119 = vmatpush1.bf16.msra.mxu0 0
  %4120 = vmatprep.subr.bf16.mxu0 0
  %4121 = vmatpush1.bf16.msra.mxu0 0
  %4122 = vmatprep.subr.bf16.mxu0 0
  %4123 = vmatpush1.bf16.msra.mxu0 0
  %4124 = vmatprep.subr.bf16.mxu0 0
  %4125 = vmatpush1.bf16.msra.mxu0 0
  %4126 = vmatprep.subr.bf16.mxu0 0
  %4127 = vmatpush1.bf16.msra.mxu0 0
  %4128 = vmatprep.subr.bf16.mxu0 0
  %4129 = vmatpush1.bf16.msra.mxu0 0
  %4130 = vmatprep.subr.bf16.mxu0 0
  %4131 = vmatpush1.bf16.msra.mxu0 0
  %4132 = vmatprep.mubr.bf16.mxu0 0
  %4133 = vmatmul.mubr.bf16.gmra.mrb[0].mxu0 %v4099
  %v4134 = vpop.f32.mrb[0].mxu0
  %v4135 = vadd.f32 0.0, %v4134
  %v4136 = vpop.f32.mrb[0].mxu0
  %v4137 = vadd.f32 0.0, %v4136
  %v4138 = vpop.f32.mrb[0].mxu0
  %v4139 = vpop.f32.mrb[0].mxu0
  %4140 = vdwg.mxu0
  %4141 = vmatprep.subr.bf16.mxu0 %v730
  %4142 = vmatpush1.bf16.msra.mxu0 %v729
  %4143 = vmatprep.subr.bf16.mxu0 %v738
  %4144 = vmatpush1.bf16.msra.mxu0 %v737
  %4145 = vmatprep.subr.bf16.mxu0 %v746
  %4146 = vmatpush1.bf16.msra.mxu0 %v745
  %4147 = vmatprep.subr.bf16.mxu0 %v754
  %4148 = vmatpush1.bf16.msra.mxu0 %v753
  %4149 = vmatprep.subr.bf16.mxu0 %v762
  %4150 = vmatpush1.bf16.msra.mxu0 %v761
  %4151 = vmatprep.subr.bf16.mxu0 %v770
  %4152 = vmatpush1.bf16.msra.mxu0 %v769
  %4153 = vmatprep.subr.bf16.mxu0 %v778
  %4154 = vmatpush1.bf16.msra.mxu0 %v777
  %4155 = vmatprep.subr.bf16.mxu0 %v786
  %4156 = vmatpush1.bf16.msra.mxu0 %v785
  %4157 = vmatprep.subr.bf16.mxu0 0
  %4158 = vmatpush1.bf16.msra.mxu0 0
  %4159 = vmatprep.subr.bf16.mxu0 0
  %4160 = vmatpush1.bf16.msra.mxu0 0
  %4161 = vmatprep.subr.bf16.mxu0 0
  %4162 = vmatpush1.bf16.msra.mxu0 0
  %4163 = vmatprep.subr.bf16.mxu0 0
  %4164 = vmatpush1.bf16.msra.mxu0 0
  %4165 = vmatprep.subr.bf16.mxu0 0
  %4166 = vmatpush1.bf16.msra.mxu0 0
  %4167 = vmatprep.subr.bf16.mxu0 0
  %4168 = vmatpush1.bf16.msra.mxu0 0
  %4169 = vmatprep.subr.bf16.mxu0 0
  %4170 = vmatpush1.bf16.msra.mxu0 0
  %4171 = vmatprep.subr.bf16.mxu0 0
  %4172 = vmatpush1.bf16.msra.mxu0 0
  %4173 = vmatprep.mubr.bf16.mxu0 0
  %4174 = vmatmul.mubr.bf16.gmra.mrb[0].mxu0 %v4099
  %v4175 = vpop.f32.mrb[0].mxu0
  %v4176 = vadd.f32 0.0, %v4175
  %v4177 = vpop.f32.mrb[0].mxu0
  %v4178 = vadd.f32 0.0, %v4177
  %v4179 = vpop.f32.mrb[0].mxu0
  %v4180 = vpop.f32.mrb[0].mxu0
  %4181 = vdwg.mxu0
  %4182 = vmatprep.subr.bf16.mxu0 %v732
  %4183 = vmatpush1.bf16.msra.mxu0 %v731
  %4184 = vmatprep.subr.bf16.mxu0 %v740
  %4185 = vmatpush1.bf16.msra.mxu0 %v739
  %4186 = vmatprep.subr.bf16.mxu0 %v748
  %4187 = vmatpush1.bf16.msra.mxu0 %v747
  %4188 = vmatprep.subr.bf16.mxu0 %v756
  %4189 = vmatpush1.bf16.msra.mxu0 %v755
  %4190 = vmatprep.subr.bf16.mxu0 %v764
  %4191 = vmatpush1.bf16.msra.mxu0 %v763
  %4192 = vmatprep.subr.bf16.mxu0 %v772
  %4193 = vmatpush1.bf16.msra.mxu0 %v771
  %4194 = vmatprep.subr.bf16.mxu0 %v780
  %4195 = vmatpush1.bf16.msra.mxu0 %v779
  %4196 = vmatprep.subr.bf16.mxu0 %v788
  %4197 = vmatpush1.bf16.msra.mxu0 %v787
  %4198 = vmatprep.subr.bf16.mxu0 0
  %4199 = vmatpush1.bf16.msra.mxu0 0
  %4200 = vmatprep.subr.bf16.mxu0 0
  %4201 = vmatpush1.bf16.msra.mxu0 0
  %4202 = vmatprep.subr.bf16.mxu0 0
  %4203 = vmatpush1.bf16.msra.mxu0 0
  %4204 = vmatprep.subr.bf16.mxu0 0
  %4205 = vmatpush1.bf16.msra.mxu0 0
  %4206 = vmatprep.subr.bf16.mxu0 0
  %4207 = vmatpush1.bf16.msra.mxu0 0
  %4208 = vmatprep.subr.bf16.mxu0 0
  %4209 = vmatpush1.bf16.msra.mxu0 0
  %4210 = vmatprep.subr.bf16.mxu0 0
  %4211 = vmatpush1.bf16.msra.mxu0 0
  %4212 = vmatprep.subr.bf16.mxu0 0
  %4213 = vmatpush1.bf16.msra.mxu0 0
  %4214 = vmatprep.mubr.bf16.mxu0 0
  %4215 = vmatmul.mubr.bf16.gmra.mrb[0].mxu0 %v4099
  %v4216 = vpop.f32.mrb[0].mxu0
  %v4217 = vadd.f32 0.0, %v4216
  %v4218 = vpop.f32.mrb[0].mxu0
  %v4219 = vadd.f32 0.0, %v4218
  %v4220 = vpop.f32.mrb[0].mxu0
  %v4221 = vpop.f32.mrb[0].mxu0
  %4222 = vdwg.mxu0
  %4223 = vmatprep.subr.bf16.mxu0 %v734
  %4224 = vmatpush1.bf16.msra.mxu0 %v733
  %4225 = vmatprep.subr.bf16.mxu0 %v742
  %4226 = vmatpush1.bf16.msra.mxu0 %v741
  %4227 = vmatprep.subr.bf16.mxu0 %v750
  %4228 = vmatpush1.bf16.msra.mxu0 %v749
  %4229 = vmatprep.subr.bf16.mxu0 %v758
  %4230 = vmatpush1.bf16.msra.mxu0 %v757
  %4231 = vmatprep.subr.bf16.mxu0 %v766
  %4232 = vmatpush1.bf16.msra.mxu0 %v765
  %4233 = vmatprep.subr.bf16.mxu0 %v774
  %4234 = vmatpush1.bf16.msra.mxu0 %v773
  %4235 = vmatprep.subr.bf16.mxu0 %v782
  %4236 = vmatpush1.bf16.msra.mxu0 %v781
  %4237 = vmatprep.subr.bf16.mxu0 %v790
  %4238 = vmatpush1.bf16.msra.mxu0 %v789
  %4239 = vmatprep.subr.bf16.mxu0 0
  %4240 = vmatpush1.bf16.msra.mxu0 0
  %4241 = vmatprep.subr.bf16.mxu0 0
  %4242 = vmatpush1.bf16.msra.mxu0 0
  %4243 = vmatprep.subr.bf16.mxu0 0
  %4244 = vmatpush1.bf16.msra.mxu0 0
  %4245 = vmatprep.subr.bf16.mxu0 0
  %4246 = vmatpush1.bf16.msra.mxu0 0
  %4247 = vmatprep.subr.bf16.mxu0 0
  %4248 = vmatpush1.bf16.msra.mxu0 0
  %4249 = vmatprep.subr.bf16.mxu0 0
  %4250 = vmatpush1.bf16.msra.mxu0 0
  %4251 = vmatprep.subr.bf16.mxu0 0
  %4252 = vmatpush1.bf16.msra.mxu0 0
  %4253 = vmatprep.subr.bf16.mxu0 0
  %4254 = vmatpush1.bf16.msra.mxu0 0
  %4255 = vmatprep.mubr.bf16.mxu0 0
  %4256 = vmatmul.mubr.bf16.gmra.mrb[0].mxu0 %v4099
  %v4257 = vpop.f32.mrb[0].mxu0
  %v4258 = vadd.f32 0.0, %v4257
  %v4259 = vpop.f32.mrb[0].mxu0
  %v4260 = vadd.f32 0.0, %v4259
  %v4261 = vpop.f32.mrb[0].mxu0
  %v4262 = vpop.f32.mrb[0].mxu0
  %4263 = vdwg.mxu0
  %v4264 = vpack.c.bf16 %v4053, %v4053
  %4265 = vmatprep.subr.bf16.mxu0 %v1212
  %4266 = vmatpush1.bf16.msra.mxu0 %v1211
  %4267 = vmatprep.subr.bf16.mxu0 %v1220
  %4268 = vmatpush1.bf16.msra.mxu0 %v1219
  %4269 = vmatprep.subr.bf16.mxu0 %v1228
  %4270 = vmatpush1.bf16.msra.mxu0 %v1227
  %4271 = vmatprep.subr.bf16.mxu0 %v1236
  %4272 = vmatpush1.bf16.msra.mxu0 %v1235
  %4273 = vmatprep.subr.bf16.mxu0 %v1244
  %4274 = vmatpush1.bf16.msra.mxu0 %v1243
  %4275 = vmatprep.subr.bf16.mxu0 %v1252
  %4276 = vmatpush1.bf16.msra.mxu0 %v1251
  %4277 = vmatprep.subr.bf16.mxu0 %v1260
  %4278 = vmatpush1.bf16.msra.mxu0 %v1259
  %4279 = vmatprep.subr.bf16.mxu0 %v1268
  %4280 = vmatpush1.bf16.msra.mxu0 %v1267
  %4281 = vmatprep.subr.bf16.mxu0 0
  %4282 = vmatpush1.bf16.msra.mxu0 0
  %4283 = vmatprep.subr.bf16.mxu0 0
  %4284 = vmatpush1.bf16.msra.mxu0 0
  %4285 = vmatprep.subr.bf16.mxu0 0
  %4286 = vmatpush1.bf16.msra.mxu0 0
  %4287 = vmatprep.subr.bf16.mxu0 0
  %4288 = vmatpush1.bf16.msra.mxu0 0
  %4289 = vmatprep.subr.bf16.mxu0 0
  %4290 = vmatpush1.bf16.msra.mxu0 0
  %4291 = vmatprep.subr.bf16.mxu0 0
  %4292 = vmatpush1.bf16.msra.mxu0 0
  %4293 = vmatprep.subr.bf16.mxu0 0
  %4294 = vmatpush1.bf16.msra.mxu0 0
  %4295 = vmatprep.subr.bf16.mxu0 0
  %4296 = vmatpush1.bf16.msra.mxu0 0
  %4297 = vmatprep.mubr.bf16.mxu0 0
  %4298 = vmatmul.mubr.bf16.gmra.mrb[0].mxu0 %v4264
  %v4299 = vpop.f32.mrb[0].mxu0
  %v4300 = vadd.f32 0.0, %v4299
  %v4301 = vpop.f32.mrb[0].mxu0
  %v4302 = vadd.f32 0.0, %v4301
  %v4303 = vpop.f32.mrb[0].mxu0
  %v4304 = vpop.f32.mrb[0].mxu0
  %4305 = vdwg.mxu0
  %4306 = vmatprep.subr.bf16.mxu0 %v1214
  %4307 = vmatpush1.bf16.msra.mxu0 %v1213
  %4308 = vmatprep.subr.bf16.mxu0 %v1222
  %4309 = vmatpush1.bf16.msra.mxu0 %v1221
  %4310 = vmatprep.subr.bf16.mxu0 %v1230
  %4311 = vmatpush1.bf16.msra.mxu0 %v1229
  %4312 = vmatprep.subr.bf16.mxu0 %v1238
  %4313 = vmatpush1.bf16.msra.mxu0 %v1237
  %4314 = vmatprep.subr.bf16.mxu0 %v1246
  %4315 = vmatpush1.bf16.msra.mxu0 %v1245
  %4316 = vmatprep.subr.bf16.mxu0 %v1254
  %4317 = vmatpush1.bf16.msra.mxu0 %v1253
  %4318 = vmatprep.subr.bf16.mxu0 %v1262
  %4319 = vmatpush1.bf16.msra.mxu0 %v1261
  %4320 = vmatprep.subr.bf16.mxu0 %v1270
  %4321 = vmatpush1.bf16.msra.mxu0 %v1269
  %4322 = vmatprep.subr.bf16.mxu0 0
  %4323 = vmatpush1.bf16.msra.mxu0 0
  %4324 = vmatprep.subr.bf16.mxu0 0
  %4325 = vmatpush1.bf16.msra.mxu0 0
  %4326 = vmatprep.subr.bf16.mxu0 0
  %4327 = vmatpush1.bf16.msra.mxu0 0
  %4328 = vmatprep.subr.bf16.mxu0 0
  %4329 = vmatpush1.bf16.msra.mxu0 0
  %4330 = vmatprep.subr.bf16.mxu0 0
  %4331 = vmatpush1.bf16.msra.mxu0 0
  %4332 = vmatprep.subr.bf16.mxu0 0
  %4333 = vmatpush1.bf16.msra.mxu0 0
  %4334 = vmatprep.subr.bf16.mxu0 0
  %4335 = vmatpush1.bf16.msra.mxu0 0
  %4336 = vmatprep.subr.bf16.mxu0 0
  %4337 = vmatpush1.bf16.msra.mxu0 0
  %4338 = vmatprep.mubr.bf16.mxu0 0
  %4339 = vmatmul.mubr.bf16.gmra.mrb[0].mxu0 %v4264
  %v4340 = vpop.f32.mrb[0].mxu0
  %v4341 = vadd.f32 0.0, %v4340
  %v4342 = vpop.f32.mrb[0].mxu0
  %v4343 = vadd.f32 0.0, %v4342
  %v4344 = vpop.f32.mrb[0].mxu0
  %v4345 = vpop.f32.mrb[0].mxu0
  %4346 = vdwg.mxu0
  %4347 = vmatprep.subr.bf16.mxu0 %v1216
  %4348 = vmatpush1.bf16.msra.mxu0 %v1215
  %4349 = vmatprep.subr.bf16.mxu0 %v1224
  %4350 = vmatpush1.bf16.msra.mxu0 %v1223
  %4351 = vmatprep.subr.bf16.mxu0 %v1232
  %4352 = vmatpush1.bf16.msra.mxu0 %v1231
  %4353 = vmatprep.subr.bf16.mxu0 %v1240
  %4354 = vmatpush1.bf16.msra.mxu0 %v1239
  %4355 = vmatprep.subr.bf16.mxu0 %v1248
  %4356 = vmatpush1.bf16.msra.mxu0 %v1247
  %4357 = vmatprep.subr.bf16.mxu0 %v1256
  %4358 = vmatpush1.bf16.msra.mxu0 %v1255
  %4359 = vmatprep.subr.bf16.mxu0 %v1264
  %4360 = vmatpush1.bf16.msra.mxu0 %v1263
  %4361 = vmatprep.subr.bf16.mxu0 %v1272
  %4362 = vmatpush1.bf16.msra.mxu0 %v1271
  %4363 = vmatprep.subr.bf16.mxu0 0
  %4364 = vmatpush1.bf16.msra.mxu0 0
  %4365 = vmatprep.subr.bf16.mxu0 0
  %4366 = vmatpush1.bf16.msra.mxu0 0
  %4367 = vmatprep.subr.bf16.mxu0 0
  %4368 = vmatpush1.bf16.msra.mxu0 0
  %4369 = vmatprep.subr.bf16.mxu0 0
  %4370 = vmatpush1.bf16.msra.mxu0 0
  %4371 = vmatprep.subr.bf16.mxu0 0
  %4372 = vmatpush1.bf16.msra.mxu0 0
  %4373 = vmatprep.subr.bf16.mxu0 0
  %4374 = vmatpush1.bf16.msra.mxu0 0
  %4375 = vmatprep.subr.bf16.mxu0 0
  %4376 = vmatpush1.bf16.msra.mxu0 0
  %4377 = vmatprep.subr.bf16.mxu0 0
  %4378 = vmatpush1.bf16.msra.mxu0 0
  %4379 = vmatprep.mubr.bf16.mxu0 0
  %4380 = vmatmul.mubr.bf16.gmra.mrb[0].mxu0 %v4264
  %v4381 = vpop.f32.mrb[0].mxu0
  %v4382 = vadd.f32 0.0, %v4381
  %v4383 = vpop.f32.mrb[0].mxu0
  %v4384 = vadd.f32 0.0, %v4383
  %v4385 = vpop.f32.mrb[0].mxu0
  %v4386 = vpop.f32.mrb[0].mxu0
  %4387 = vdwg.mxu0
  %4388 = vmatprep.subr.bf16.mxu0 %v1218
  %4389 = vmatpush1.bf16.msra.mxu0 %v1217
  %4390 = vmatprep.subr.bf16.mxu0 %v1226
  %4391 = vmatpush1.bf16.msra.mxu0 %v1225
  %4392 = vmatprep.subr.bf16.mxu0 %v1234
  %4393 = vmatpush1.bf16.msra.mxu0 %v1233
  %4394 = vmatprep.subr.bf16.mxu0 %v1242
  %4395 = vmatpush1.bf16.msra.mxu0 %v1241
  %4396 = vmatprep.subr.bf16.mxu0 %v1250
  %4397 = vmatpush1.bf16.msra.mxu0 %v1249
  %4398 = vmatprep.subr.bf16.mxu0 %v1258
  %4399 = vmatpush1.bf16.msra.mxu0 %v1257
  %4400 = vmatprep.subr.bf16.mxu0 %v1266
  %4401 = vmatpush1.bf16.msra.mxu0 %v1265
  %4402 = vmatprep.subr.bf16.mxu0 %v1274
  %4403 = vmatpush1.bf16.msra.mxu0 %v1273
  %4404 = vmatprep.subr.bf16.mxu0 0
  %4405 = vmatpush1.bf16.msra.mxu0 0
  %4406 = vmatprep.subr.bf16.mxu0 0
  %4407 = vmatpush1.bf16.msra.mxu0 0
  %4408 = vmatprep.subr.bf16.mxu0 0
  %4409 = vmatpush1.bf16.msra.mxu0 0
  %4410 = vmatprep.subr.bf16.mxu0 0
  %4411 = vmatpush1.bf16.msra.mxu0 0
  %4412 = vmatprep.subr.bf16.mxu0 0
  %4413 = vmatpush1.bf16.msra.mxu0 0
  %4414 = vmatprep.subr.bf16.mxu0 0
  %4415 = vmatpush1.bf16.msra.mxu0 0
  %4416 = vmatprep.subr.bf16.mxu0 0
  %4417 = vmatpush1.bf16.msra.mxu0 0
  %4418 = vmatprep.subr.bf16.mxu0 0
  %4419 = vmatpush1.bf16.msra.mxu0 0
  %4420 = vmatprep.mubr.bf16.mxu0 0
  %4421 = vmatmul.mubr.bf16.gmra.mrb[0].mxu0 %v4264
  %v4422 = vpop.f32.mrb[0].mxu0
  %v4423 = vadd.f32 0.0, %v4422
  %v4424 = vpop.f32.mrb[0].mxu0
  %v4425 = vadd.f32 0.0, %v4424
  %v4426 = vpop.f32.mrb[0].mxu0
  %v4427 = vpop.f32.mrb[0].mxu0
  %4428 = vdwg.mxu0
  %v4429 = vpack.c.bf16 %v4096, %v4096
  %4430 = vmatprep.subr.bf16.mxu0 %v1600
  %4431 = vmatpush1.bf16.msra.mxu0 %v1599
  %4432 = vmatprep.subr.bf16.mxu0 %v1604
  %4433 = vmatpush1.bf16.msra.mxu0 %v1603
  %4434 = vmatprep.subr.bf16.mxu0 %v1608
  %4435 = vmatpush1.bf16.msra.mxu0 %v1607
  %4436 = vmatprep.subr.bf16.mxu0 %v1612
  %4437 = vmatpush1.bf16.msra.mxu0 %v1611
  %4438 = vmatprep.subr.bf16.mxu0 %v1616
  %4439 = vmatpush1.bf16.msra.mxu0 %v1615
  %4440 = vmatprep.subr.bf16.mxu0 %v1620
  %4441 = vmatpush1.bf16.msra.mxu0 %v1619
  %4442 = vmatprep.subr.bf16.mxu0 %v1624
  %4443 = vmatpush1.bf16.msra.mxu0 %v1623
  %4444 = vmatprep.subr.bf16.mxu0 %v1628
  %4445 = vmatpush1.bf16.msra.mxu0 %v1627
  %4446 = vmatprep.subr.bf16.mxu0 0
  %4447 = vmatpush1.bf16.msra.mxu0 0
  %4448 = vmatprep.subr.bf16.mxu0 0
  %4449 = vmatpush1.bf16.msra.mxu0 0
  %4450 = vmatprep.subr.bf16.mxu0 0
  %4451 = vmatpush1.bf16.msra.mxu0 0
  %4452 = vmatprep.subr.bf16.mxu0 0
  %4453 = vmatpush1.bf16.msra.mxu0 0
  %4454 = vmatprep.subr.bf16.mxu0 0
  %4455 = vmatpush1.bf16.msra.mxu0 0
  %4456 = vmatprep.subr.bf16.mxu0 0
  %4457 = vmatpush1.bf16.msra.mxu0 0
  %4458 = vmatprep.subr.bf16.mxu0 0
  %4459 = vmatpush1.bf16.msra.mxu0 0
  %4460 = vmatprep.subr.bf16.mxu0 0
  %4461 = vmatpush1.bf16.msra.mxu0 0
  %4462 = vmatprep.mubr.bf16.mxu0 0
  %4463 = vmatmul.mubr.bf16.gmra.mrb[0].mxu0 %v4429
  %v4464 = vpop.f32.mrb[0].mxu0
  %v4465 = vadd.f32 0.0, %v4464
  %v4466 = vpop.f32.mrb[0].mxu0
  %v4467 = vadd.f32 0.0, %v4466
  %v4468 = vpop.f32.mrb[0].mxu0
  %v4469 = vpop.f32.mrb[0].mxu0
  %4470 = vdwg.mxu0
  %4471 = vmatprep.subr.bf16.mxu0 %v1602
  %4472 = vmatpush1.bf16.msra.mxu0 %v1601
  %4473 = vmatprep.subr.bf16.mxu0 %v1606
  %4474 = vmatpush1.bf16.msra.mxu0 %v1605
  %4475 = vmatprep.subr.bf16.mxu0 %v1610
  %4476 = vmatpush1.bf16.msra.mxu0 %v1609
  %4477 = vmatprep.subr.bf16.mxu0 %v1614
  %4478 = vmatpush1.bf16.msra.mxu0 %v1613
  %4479 = vmatprep.subr.bf16.mxu0 %v1618
  %4480 = vmatpush1.bf16.msra.mxu0 %v1617
  %4481 = vmatprep.subr.bf16.mxu0 %v1622
  %4482 = vmatpush1.bf16.msra.mxu0 %v1621
  %4483 = vmatprep.subr.bf16.mxu0 %v1626
  %4484 = vmatpush1.bf16.msra.mxu0 %v1625
  %4485 = vmatprep.subr.bf16.mxu0 %v1630
  %4486 = vmatpush1.bf16.msra.mxu0 %v1629
  %4487 = vmatprep.subr.bf16.mxu0 0
  %4488 = vmatpush1.bf16.msra.mxu0 0
  %4489 = vmatprep.subr.bf16.mxu0 0
  %4490 = vmatpush1.bf16.msra.mxu0 0
  %4491 = vmatprep.subr.bf16.mxu0 0
  %4492 = vmatpush1.bf16.msra.mxu0 0
  %4493 = vmatprep.subr.bf16.mxu0 0
  %4494 = vmatpush1.bf16.msra.mxu0 0
  %4495 = vmatprep.subr.bf16.mxu0 0
  %4496 = vmatpush1.bf16.msra.mxu0 0
  %4497 = vmatprep.subr.bf16.mxu0 0
  %4498 = vmatpush1.bf16.msra.mxu0 0
  %4499 = vmatprep.subr.bf16.mxu0 0
  %4500 = vmatpush1.bf16.msra.mxu0 0
  %4501 = vmatprep.subr.bf16.mxu0 0
  %4502 = vmatpush1.bf16.msra.mxu0 0
  %4503 = vmatprep.mubr.bf16.mxu0 0
  %4504 = vmatmul.mubr.bf16.gmra.mrb[0].mxu0 %v4429
  %v4505 = vpop.f32.mrb[0].mxu0
  %v4506 = vadd.f32 0.0, %v4505
  %v4507 = vpop.f32.mrb[0].mxu0
  %v4508 = vadd.f32 0.0, %v4507
  %v4509 = vpop.f32.mrb[0].mxu0
  %v4510 = vpop.f32.mrb[0].mxu0
  %4511 = vdwg.mxu0
  %s4512 = smul.u32 5, 4
  %s4513 = smul.addr %s4512, 8
  %s4514 = scalar_lea.vmem [#allocation2], %s4513
  %v4515 = vld [vmem:[%s4514] sm:$0xff]
  %v4516 = vld [vmem:[%s4514 + $0x8] sm:$0xff]
  %v4517 = vld [vmem:[%s4514 + $0x10] sm:$0xff]
  %v4518 = vld [vmem:[%s4514 + $0x18] sm:$0xff]
  %v4519 = vadd.f32 %v4515, %v4135
  %v4520 = vadd.f32 %v4516, %v4137
  %v4521 = vadd.f32 %v4517, %v4176
  %v4522 = vadd.f32 %v4518, %v4178
  %v4523 = vxor.u32 %v4519, 2147483648
  %v4524 = vxor.u32 %v4520, 2147483648
  %v4525 = vxor.u32 %v4521, 2147483648
  %v4526 = vxor.u32 %v4522, 2147483648
  %v4527 = vmul.f32 %v4523, 1.442695
  %v4528 = vpow.pop %v4527
  %v4529 = vmul.f32 %v4524, 1.442695
  %v4530 = vpow.pop %v4529
  %v4531 = vmul.f32 %v4525, 1.442695
  %v4532 = vpow.pop %v4531
  %v4533 = vmul.f32 %v4526, 1.442695
  %v4534 = vpow.pop %v4533
  %v4535 = vadd.f32 %v4528, 1.0
  %v4536 = vadd.f32 %v4530, 1.0
  %v4537 = vadd.f32 %v4532, 1.0
  %v4538 = vadd.f32 %v4534, 1.0
  %v4539 = vrcp.pop %v4535
  %v4540 = vmul.f32 1.0, %v4539
  %v4541 = vrcp.pop %v4536
  %v4542 = vmul.f32 1.0, %v4541
  %v4543 = vrcp.pop %v4537
  %v4544 = vmul.f32 1.0, %v4543
  %v4545 = vrcp.pop %v4538
  %v4546 = vmul.f32 1.0, %v4545
  %v4547 = vmul.f32 %v4546, 2.0
  %v4548 = vsub.f32 %v4547, 1.0
  %v4549 = vmul.f32 %v4542, %v4012
  %v4550 = vmul.f32 %v4540, %v4548
  %v4551 = vadd.f32 %v4549, %v4550
  %v4552 = vtanh.pop %v4551
  %v4553 = vmul.f32 %v4544, %v4552
  %v4554 = vsub.f32 %v4553, %v4010
  %v4555 = vadd.f32 %v4010, %v4554
  %v4556 = vsub.f32 %v4551, %v4012
  %v4557 = vadd.f32 %v4012, %v4556
  %v4558 = vadd.f32 %v4217, %v4300
  %v4559 = vadd.f32 %v4219, %v4302
  %v4560 = vadd.f32 %v4258, %v4341
  %v4561 = vadd.f32 %v4260, %v4343
  %v4562 = vadd.f32 %v4558, %v1797
  %v4563 = vadd.f32 %v4559, %v1801
  %v4564 = vadd.f32 %v4560, %v1805
  %v4565 = vadd.f32 %v4561, %v1809
  %v4566 = vxor.u32 %v4562, 2147483648
  %v4567 = vxor.u32 %v4563, 2147483648
  %v4568 = vxor.u32 %v4564, 2147483648
  %v4569 = vxor.u32 %v4565, 2147483648
  %v4570 = vmul.f32 %v4566, 1.442695
  %v4571 = vpow.pop %v4570
  %v4572 = vmul.f32 %v4567, 1.442695
  %v4573 = vpow.pop %v4572
  %v4574 = vmul.f32 %v4568, 1.442695
  %v4575 = vpow.pop %v4574
  %v4576 = vmul.f32 %v4569, 1.442695
  %v4577 = vpow.pop %v4576
  %v4578 = vadd.f32 %v4571, 1.0
  %v4579 = vadd.f32 %v4573, 1.0
  %v4580 = vadd.f32 %v4575, 1.0
  %v4581 = vadd.f32 %v4577, 1.0
  %v4582 = vrcp.pop %v4578
  %v4583 = vmul.f32 1.0, %v4582
  %v4584 = vrcp.pop %v4579
  %v4585 = vmul.f32 1.0, %v4584
  %v4586 = vrcp.pop %v4580
  %v4587 = vmul.f32 1.0, %v4586
  %v4588 = vrcp.pop %v4581
  %v4589 = vmul.f32 1.0, %v4588
  %v4590 = vmul.f32 %v4589, 2.0
  %v4591 = vsub.f32 %v4590, 1.0
  %v4592 = vmul.f32 %v4585, %v4055
  %v4593 = vmul.f32 %v4583, %v4591
  %v4594 = vadd.f32 %v4592, %v4593
  %v4595 = vtanh.pop %v4594
  %v4596 = vmul.f32 %v4587, %v4595
  %v4597 = vsub.f32 %v4596, %v4053
  %v4598 = vadd.f32 %v4053, %v4597
  %v4599 = vsub.f32 %v4594, %v4055
  %v4600 = vadd.f32 %v4055, %v4599
  %v4601 = vadd.f32 %v4382, %v4465
  %v4602 = vadd.f32 %v4384, %v4467
  %v4603 = vadd.f32 %v4423, %v4506
  %v4604 = vadd.f32 %v4425, %v4508
  %v4605 = vadd.f32 %v4601, %v1861
  %v4606 = vadd.f32 %v4602, %v1865
  %v4607 = vadd.f32 %v4603, %v1869
  %v4608 = vadd.f32 %v4604, %v1873
  %v4609 = vxor.u32 %v4605, 2147483648
  %v4610 = vxor.u32 %v4606, 2147483648
  %v4611 = vxor.u32 %v4607, 2147483648
  %v4612 = vxor.u32 %v4608, 2147483648
  %v4613 = vmul.f32 %v4609, 1.442695
  %v4614 = vpow.pop %v4613
  %v4615 = vmul.f32 %v4610, 1.442695
  %v4616 = vpow.pop %v4615
  %v4617 = vmul.f32 %v4611, 1.442695
  %v4618 = vpow.pop %v4617
  %v4619 = vmul.f32 %v4612, 1.442695
  %v4620 = vpow.pop %v4619
  %v4621 = vadd.f32 %v4614, 1.0
  %v4622 = vadd.f32 %v4616, 1.0
  %v4623 = vadd.f32 %v4618, 1.0
  %v4624 = vadd.f32 %v4620, 1.0
  %v4625 = vrcp.pop %v4621
  %v4626 = vmul.f32 1.0, %v4625
  %v4627 = vrcp.pop %v4622
  %v4628 = vmul.f32 1.0, %v4627
  %v4629 = vrcp.pop %v4623
  %v4630 = vmul.f32 1.0, %v4629
  %v4631 = vrcp.pop %v4624
  %v4632 = vmul.f32 1.0, %v4631
  %v4633 = vmul.f32 %v4632, 2.0
  %v4634 = vsub.f32 %v4633, 1.0
  %v4635 = vmul.f32 %v4628, %v4098
  %v4636 = vmul.f32 %v4626, %v4634
  %v4637 = vadd.f32 %v4635, %v4636
  %v4638 = vtanh.pop %v4637
  %v4639 = vmul.f32 %v4630, %v4638
  %v4640 = vsub.f32 %v4639, %v4096
  %v4641 = vadd.f32 %v4096, %v4640
  %v4642 = vsub.f32 %v4637, %v4098
  %v4643 = vadd.f32 %v4098, %v4642
  %v4644 = vpack.c.bf16 %v4555, %v4555
  %4645 = vmatprep.subr.bf16.mxu0 %v728
  %4646 = vmatpush1.bf16.msra.mxu0 %v727
  %4647 = vmatprep.subr.bf16.mxu0 %v736
  %4648 = vmatpush1.bf16.msra.mxu0 %v735
  %4649 = vmatprep.subr.bf16.mxu0 %v744
  %4650 = vmatpush1.bf16.msra.mxu0 %v743
  %4651 = vmatprep.subr.bf16.mxu0 %v752
  %4652 = vmatpush1.bf16.msra.mxu0 %v751
  %4653 = vmatprep.subr.bf16.mxu0 %v760
  %4654 = vmatpush1.bf16.msra.mxu0 %v759
  %4655 = vmatprep.subr.bf16.mxu0 %v768
  %4656 = vmatpush1.bf16.msra.mxu0 %v767
  %4657 = vmatprep.subr.bf16.mxu0 %v776
  %4658 = vmatpush1.bf16.msra.mxu0 %v775
  %4659 = vmatprep.subr.bf16.mxu0 %v784
  %4660 = vmatpush1.bf16.msra.mxu0 %v783
  %4661 = vmatprep.subr.bf16.mxu0 0
  %4662 = vmatpush1.bf16.msra.mxu0 0
  %4663 = vmatprep.subr.bf16.mxu0 0
  %4664 = vmatpush1.bf16.msra.mxu0 0
  %4665 = vmatprep.subr.bf16.mxu0 0
  %4666 = vmatpush1.bf16.msra.mxu0 0
  %4667 = vmatprep.subr.bf16.mxu0 0
  %4668 = vmatpush1.bf16.msra.mxu0 0
  %4669 = vmatprep.subr.bf16.mxu0 0
  %4670 = vmatpush1.bf16.msra.mxu0 0
  %4671 = vmatprep.subr.bf16.mxu0 0
  %4672 = vmatpush1.bf16.msra.mxu0 0
  %4673 = vmatprep.subr.bf16.mxu0 0
  %4674 = vmatpush1.bf16.msra.mxu0 0
  %4675 = vmatprep.subr.bf16.mxu0 0
  %4676 = vmatpush1.bf16.msra.mxu0 0
  %4677 = vmatprep.mubr.bf16.mxu0 0
  %4678 = vmatmul.mubr.bf16.gmra.mrb[0].mxu0 %v4644
  %v4679 = vpop.f32.mrb[0].mxu0
  %v4680 = vadd.f32 0.0, %v4679
  %v4681 = vpop.f32.mrb[0].mxu0
  %v4682 = vadd.f32 0.0, %v4681
  %v4683 = vpop.f32.mrb[0].mxu0
  %v4684 = vpop.f32.mrb[0].mxu0
  %4685 = vdwg.mxu0
  %4686 = vmatprep.subr.bf16.mxu0 %v730
  %4687 = vmatpush1.bf16.msra.mxu0 %v729
  %4688 = vmatprep.subr.bf16.mxu0 %v738
  %4689 = vmatpush1.bf16.msra.mxu0 %v737
  %4690 = vmatprep.subr.bf16.mxu0 %v746
  %4691 = vmatpush1.bf16.msra.mxu0 %v745
  %4692 = vmatprep.subr.bf16.mxu0 %v754
  %4693 = vmatpush1.bf16.msra.mxu0 %v753
  %4694 = vmatprep.subr.bf16.mxu0 %v762
  %4695 = vmatpush1.bf16.msra.mxu0 %v761
  %4696 = vmatprep.subr.bf16.mxu0 %v770
  %4697 = vmatpush1.bf16.msra.mxu0 %v769
  %4698 = vmatprep.subr.bf16.mxu0 %v778
  %4699 = vmatpush1.bf16.msra.mxu0 %v777
  %4700 = vmatprep.subr.bf16.mxu0 %v786
  %4701 = vmatpush1.bf16.msra.mxu0 %v785
  %4702 = vmatprep.subr.bf16.mxu0 0
  %4703 = vmatpush1.bf16.msra.mxu0 0
  %4704 = vmatprep.subr.bf16.mxu0 0
  %4705 = vmatpush1.bf16.msra.mxu0 0
  %4706 = vmatprep.subr.bf16.mxu0 0
  %4707 = vmatpush1.bf16.msra.mxu0 0
  %4708 = vmatprep.subr.bf16.mxu0 0
  %4709 = vmatpush1.bf16.msra.mxu0 0
  %4710 = vmatprep.subr.bf16.mxu0 0
  %4711 = vmatpush1.bf16.msra.mxu0 0
  %4712 = vmatprep.subr.bf16.mxu0 0
  %4713 = vmatpush1.bf16.msra.mxu0 0
  %4714 = vmatprep.subr.bf16.mxu0 0
  %4715 = vmatpush1.bf16.msra.mxu0 0
  %4716 = vmatprep.subr.bf16.mxu0 0
  %4717 = vmatpush1.bf16.msra.mxu0 0
  %4718 = vmatprep.mubr.bf16.mxu0 0
  %4719 = vmatmul.mubr.bf16.gmra.mrb[0].mxu0 %v4644
  %v4720 = vpop.f32.mrb[0].mxu0
  %v4721 = vadd.f32 0.0, %v4720
  %v4722 = vpop.f32.mrb[0].mxu0
  %v4723 = vadd.f32 0.0, %v4722
  %v4724 = vpop.f32.mrb[0].mxu0
  %v4725 = vpop.f32.mrb[0].mxu0
  %4726 = vdwg.mxu0
  %4727 = vmatprep.subr.bf16.mxu0 %v732
  %4728 = vmatpush1.bf16.msra.mxu0 %v731
  %4729 = vmatprep.subr.bf16.mxu0 %v740
  %4730 = vmatpush1.bf16.msra.mxu0 %v739
  %4731 = vmatprep.subr.bf16.mxu0 %v748
  %4732 = vmatpush1.bf16.msra.mxu0 %v747
  %4733 = vmatprep.subr.bf16.mxu0 %v756
  %4734 = vmatpush1.bf16.msra.mxu0 %v755
  %4735 = vmatprep.subr.bf16.mxu0 %v764
  %4736 = vmatpush1.bf16.msra.mxu0 %v763
  %4737 = vmatprep.subr.bf16.mxu0 %v772
  %4738 = vmatpush1.bf16.msra.mxu0 %v771
  %4739 = vmatprep.subr.bf16.mxu0 %v780
  %4740 = vmatpush1.bf16.msra.mxu0 %v779
  %4741 = vmatprep.subr.bf16.mxu0 %v788
  %4742 = vmatpush1.bf16.msra.mxu0 %v787
  %4743 = vmatprep.subr.bf16.mxu0 0
  %4744 = vmatpush1.bf16.msra.mxu0 0
  %4745 = vmatprep.subr.bf16.mxu0 0
  %4746 = vmatpush1.bf16.msra.mxu0 0
  %4747 = vmatprep.subr.bf16.mxu0 0
  %4748 = vmatpush1.bf16.msra.mxu0 0
  %4749 = vmatprep.subr.bf16.mxu0 0
  %4750 = vmatpush1.bf16.msra.mxu0 0
  %4751 = vmatprep.subr.bf16.mxu0 0
  %4752 = vmatpush1.bf16.msra.mxu0 0
  %4753 = vmatprep.subr.bf16.mxu0 0
  %4754 = vmatpush1.bf16.msra.mxu0 0
  %4755 = vmatprep.subr.bf16.mxu0 0
  %4756 = vmatpush1.bf16.msra.mxu0 0
  %4757 = vmatprep.subr.bf16.mxu0 0
  %4758 = vmatpush1.bf16.msra.mxu0 0
  %4759 = vmatprep.mubr.bf16.mxu0 0
  %4760 = vmatmul.mubr.bf16.gmra.mrb[0].mxu0 %v4644
  %v4761 = vpop.f32.mrb[0].mxu0
  %v4762 = vadd.f32 0.0, %v4761
  %v4763 = vpop.f32.mrb[0].mxu0
  %v4764 = vadd.f32 0.0, %v4763
  %v4765 = vpop.f32.mrb[0].mxu0
  %v4766 = vpop.f32.mrb[0].mxu0
  %4767 = vdwg.mxu0
  %4768 = vmatprep.subr.bf16.mxu0 %v734
  %4769 = vmatpush1.bf16.msra.mxu0 %v733
  %4770 = vmatprep.subr.bf16.mxu0 %v742
  %4771 = vmatpush1.bf16.msra.mxu0 %v741
  %4772 = vmatprep.subr.bf16.mxu0 %v750
  %4773 = vmatpush1.bf16.msra.mxu0 %v749
  %4774 = vmatprep.subr.bf16.mxu0 %v758
  %4775 = vmatpush1.bf16.msra.mxu0 %v757
  %4776 = vmatprep.subr.bf16.mxu0 %v766
  %4777 = vmatpush1.bf16.msra.mxu0 %v765
  %4778 = vmatprep.subr.bf16.mxu0 %v774
  %4779 = vmatpush1.bf16.msra.mxu0 %v773
  %4780 = vmatprep.subr.bf16.mxu0 %v782
  %4781 = vmatpush1.bf16.msra.mxu0 %v781
  %4782 = vmatprep.subr.bf16.mxu0 %v790
  %4783 = vmatpush1.bf16.msra.mxu0 %v789
  %4784 = vmatprep.subr.bf16.mxu0 0
  %4785 = vmatpush1.bf16.msra.mxu0 0
  %4786 = vmatprep.subr.bf16.mxu0 0
  %4787 = vmatpush1.bf16.msra.mxu0 0
  %4788 = vmatprep.subr.bf16.mxu0 0
  %4789 = vmatpush1.bf16.msra.mxu0 0
  %4790 = vmatprep.subr.bf16.mxu0 0
  %4791 = vmatpush1.bf16.msra.mxu0 0
  %4792 = vmatprep.subr.bf16.mxu0 0
  %4793 = vmatpush1.bf16.msra.mxu0 0
  %4794 = vmatprep.subr.bf16.mxu0 0
  %4795 = vmatpush1.bf16.msra.mxu0 0
  %4796 = vmatprep.subr.bf16.mxu0 0
  %4797 = vmatpush1.bf16.msra.mxu0 0
  %4798 = vmatprep.subr.bf16.mxu0 0
  %4799 = vmatpush1.bf16.msra.mxu0 0
  %4800 = vmatprep.mubr.bf16.mxu0 0
  %4801 = vmatmul.mubr.bf16.gmra.mrb[0].mxu0 %v4644
  %v4802 = vpop.f32.mrb[0].mxu0
  %v4803 = vadd.f32 0.0, %v4802
  %v4804 = vpop.f32.mrb[0].mxu0
  %v4805 = vadd.f32 0.0, %v4804
  %v4806 = vpop.f32.mrb[0].mxu0
  %v4807 = vpop.f32.mrb[0].mxu0
  %4808 = vdwg.mxu0
  %v4809 = vpack.c.bf16 %v4598, %v4598
  %4810 = vmatprep.subr.bf16.mxu0 %v1212
  %4811 = vmatpush1.bf16.msra.mxu0 %v1211
  %4812 = vmatprep.subr.bf16.mxu0 %v1220
  %4813 = vmatpush1.bf16.msra.mxu0 %v1219
  %4814 = vmatprep.subr.bf16.mxu0 %v1228
  %4815 = vmatpush1.bf16.msra.mxu0 %v1227
  %4816 = vmatprep.subr.bf16.mxu0 %v1236
  %4817 = vmatpush1.bf16.msra.mxu0 %v1235
  %4818 = vmatprep.subr.bf16.mxu0 %v1244
  %4819 = vmatpush1.bf16.msra.mxu0 %v1243
  %4820 = vmatprep.subr.bf16.mxu0 %v1252
  %4821 = vmatpush1.bf16.msra.mxu0 %v1251
  %4822 = vmatprep.subr.bf16.mxu0 %v1260
  %4823 = vmatpush1.bf16.msra.mxu0 %v1259
  %4824 = vmatprep.subr.bf16.mxu0 %v1268
  %4825 = vmatpush1.bf16.msra.mxu0 %v1267
  %4826 = vmatprep.subr.bf16.mxu0 0
  %4827 = vmatpush1.bf16.msra.mxu0 0
  %4828 = vmatprep.subr.bf16.mxu0 0
  %4829 = vmatpush1.bf16.msra.mxu0 0
  %4830 = vmatprep.subr.bf16.mxu0 0
  %4831 = vmatpush1.bf16.msra.mxu0 0
  %4832 = vmatprep.subr.bf16.mxu0 0
  %4833 = vmatpush1.bf16.msra.mxu0 0
  %4834 = vmatprep.subr.bf16.mxu0 0
  %4835 = vmatpush1.bf16.msra.mxu0 0
  %4836 = vmatprep.subr.bf16.mxu0 0
  %4837 = vmatpush1.bf16.msra.mxu0 0
  %4838 = vmatprep.subr.bf16.mxu0 0
  %4839 = vmatpush1.bf16.msra.mxu0 0
  %4840 = vmatprep.subr.bf16.mxu0 0
  %4841 = vmatpush1.bf16.msra.mxu0 0
  %4842 = vmatprep.mubr.bf16.mxu0 0
  %4843 = vmatmul.mubr.bf16.gmra.mrb[0].mxu0 %v4809
  %v4844 = vpop.f32.mrb[0].mxu0
  %v4845 = vadd.f32 0.0, %v4844
  %v4846 = vpop.f32.mrb[0].mxu0
  %v4847 = vadd.f32 0.0, %v4846
  %v4848 = vpop.f32.mrb[0].mxu0
  %v4849 = vpop.f32.mrb[0].mxu0
  %4850 = vdwg.mxu0
  %4851 = vmatprep.subr.bf16.mxu0 %v1214
  %4852 = vmatpush1.bf16.msra.mxu0 %v1213
  %4853 = vmatprep.subr.bf16.mxu0 %v1222
  %4854 = vmatpush1.bf16.msra.mxu0 %v1221
  %4855 = vmatprep.subr.bf16.mxu0 %v1230
  %4856 = vmatpush1.bf16.msra.mxu0 %v1229
  %4857 = vmatprep.subr.bf16.mxu0 %v1238
  %4858 = vmatpush1.bf16.msra.mxu0 %v1237
  %4859 = vmatprep.subr.bf16.mxu0 %v1246
  %4860 = vmatpush1.bf16.msra.mxu0 %v1245
  %4861 = vmatprep.subr.bf16.mxu0 %v1254
  %4862 = vmatpush1.bf16.msra.mxu0 %v1253
  %4863 = vmatprep.subr.bf16.mxu0 %v1262
  %4864 = vmatpush1.bf16.msra.mxu0 %v1261
  %4865 = vmatprep.subr.bf16.mxu0 %v1270
  %4866 = vmatpush1.bf16.msra.mxu0 %v1269
  %4867 = vmatprep.subr.bf16.mxu0 0
  %4868 = vmatpush1.bf16.msra.mxu0 0
  %4869 = vmatprep.subr.bf16.mxu0 0
  %4870 = vmatpush1.bf16.msra.mxu0 0
  %4871 = vmatprep.subr.bf16.mxu0 0
  %4872 = vmatpush1.bf16.msra.mxu0 0
  %4873 = vmatprep.subr.bf16.mxu0 0
  %4874 = vmatpush1.bf16.msra.mxu0 0
  %4875 = vmatprep.subr.bf16.mxu0 0
  %4876 = vmatpush1.bf16.msra.mxu0 0
  %4877 = vmatprep.subr.bf16.mxu0 0
  %4878 = vmatpush1.bf16.msra.mxu0 0
  %4879 = vmatprep.subr.bf16.mxu0 0
  %4880 = vmatpush1.bf16.msra.mxu0 0
  %4881 = vmatprep.subr.bf16.mxu0 0
  %4882 = vmatpush1.bf16.msra.mxu0 0
  %4883 = vmatprep.mubr.bf16.mxu0 0
  %4884 = vmatmul.mubr.bf16.gmra.mrb[0].mxu0 %v4809
  %v4885 = vpop.f32.mrb[0].mxu0
  %v4886 = vadd.f32 0.0, %v4885
  %v4887 = vpop.f32.mrb[0].mxu0
  %v4888 = vadd.f32 0.0, %v4887
  %v4889 = vpop.f32.mrb[0].mxu0
  %v4890 = vpop.f32.mrb[0].mxu0
  %4891 = vdwg.mxu0
  %4892 = vmatprep.subr.bf16.mxu0 %v1216
  %4893 = vmatpush1.bf16.msra.mxu0 %v1215
  %4894 = vmatprep.subr.bf16.mxu0 %v1224
  %4895 = vmatpush1.bf16.msra.mxu0 %v1223
  %4896 = vmatprep.subr.bf16.mxu0 %v1232
  %4897 = vmatpush1.bf16.msra.mxu0 %v1231
  %4898 = vmatprep.subr.bf16.mxu0 %v1240
  %4899 = vmatpush1.bf16.msra.mxu0 %v1239
  %4900 = vmatprep.subr.bf16.mxu0 %v1248
  %4901 = vmatpush1.bf16.msra.mxu0 %v1247
  %4902 = vmatprep.subr.bf16.mxu0 %v1256
  %4903 = vmatpush1.bf16.msra.mxu0 %v1255
  %4904 = vmatprep.subr.bf16.mxu0 %v1264
  %4905 = vmatpush1.bf16.msra.mxu0 %v1263
  %4906 = vmatprep.subr.bf16.mxu0 %v1272
  %4907 = vmatpush1.bf16.msra.mxu0 %v1271
  %4908 = vmatprep.subr.bf16.mxu0 0
  %4909 = vmatpush1.bf16.msra.mxu0 0
  %4910 = vmatprep.subr.bf16.mxu0 0
  %4911 = vmatpush1.bf16.msra.mxu0 0
  %4912 = vmatprep.subr.bf16.mxu0 0
  %4913 = vmatpush1.bf16.msra.mxu0 0
  %4914 = vmatprep.subr.bf16.mxu0 0
  %4915 = vmatpush1.bf16.msra.mxu0 0
  %4916 = vmatprep.subr.bf16.mxu0 0
  %4917 = vmatpush1.bf16.msra.mxu0 0
  %4918 = vmatprep.subr.bf16.mxu0 0
  %4919 = vmatpush1.bf16.msra.mxu0 0
  %4920 = vmatprep.subr.bf16.mxu0 0
  %4921 = vmatpush1.bf16.msra.mxu0 0
  %4922 = vmatprep.subr.bf16.mxu0 0
  %4923 = vmatpush1.bf16.msra.mxu0 0
  %4924 = vmatprep.mubr.bf16.mxu0 0
  %4925 = vmatmul.mubr.bf16.gmra.mrb[0].mxu0 %v4809
  %v4926 = vpop.f32.mrb[0].mxu0
  %v4927 = vadd.f32 0.0, %v4926
  %v4928 = vpop.f32.mrb[0].mxu0
  %v4929 = vadd.f32 0.0, %v4928
  %v4930 = vpop.f32.mrb[0].mxu0
  %v4931 = vpop.f32.mrb[0].mxu0
  %4932 = vdwg.mxu0
  %4933 = vmatprep.subr.bf16.mxu0 %v1218
  %4934 = vmatpush1.bf16.msra.mxu0 %v1217
  %4935 = vmatprep.subr.bf16.mxu0 %v1226
  %4936 = vmatpush1.bf16.msra.mxu0 %v1225
  %4937 = vmatprep.subr.bf16.mxu0 %v1234
  %4938 = vmatpush1.bf16.msra.mxu0 %v1233
  %4939 = vmatprep.subr.bf16.mxu0 %v1242
  %4940 = vmatpush1.bf16.msra.mxu0 %v1241
  %4941 = vmatprep.subr.bf16.mxu0 %v1250
  %4942 = vmatpush1.bf16.msra.mxu0 %v1249
  %4943 = vmatprep.subr.bf16.mxu0 %v1258
  %4944 = vmatpush1.bf16.msra.mxu0 %v1257
  %4945 = vmatprep.subr.bf16.mxu0 %v1266
  %4946 = vmatpush1.bf16.msra.mxu0 %v1265
  %4947 = vmatprep.subr.bf16.mxu0 %v1274
  %4948 = vmatpush1.bf16.msra.mxu0 %v1273
  %4949 = vmatprep.subr.bf16.mxu0 0
  %4950 = vmatpush1.bf16.msra.mxu0 0
  %4951 = vmatprep.subr.bf16.mxu0 0
  %4952 = vmatpush1.bf16.msra.mxu0 0
  %4953 = vmatprep.subr.bf16.mxu0 0
  %4954 = vmatpush1.bf16.msra.mxu0 0
  %4955 = vmatprep.subr.bf16.mxu0 0
  %4956 = vmatpush1.bf16.msra.mxu0 0
  %4957 = vmatprep.subr.bf16.mxu0 0
  %4958 = vmatpush1.bf16.msra.mxu0 0
  %4959 = vmatprep.subr.bf16.mxu0 0
  %4960 = vmatpush1.bf16.msra.mxu0 0
  %4961 = vmatprep.subr.bf16.mxu0 0
  %4962 = vmatpush1.bf16.msra.mxu0 0
  %4963 = vmatprep.subr.bf16.mxu0 0
  %4964 = vmatpush1.bf16.msra.mxu0 0
  %4965 = vmatprep.mubr.bf16.mxu0 0
  %4966 = vmatmul.mubr.bf16.gmra.mrb[0].mxu0 %v4809
  %v4967 = vpop.f32.mrb[0].mxu0
  %v4968 = vadd.f32 0.0, %v4967
  %v4969 = vpop.f32.mrb[0].mxu0
  %v4970 = vadd.f32 0.0, %v4969
  %v4971 = vpop.f32.mrb[0].mxu0
  %v4972 = vpop.f32.mrb[0].mxu0
  %4973 = vdwg.mxu0
  %v4974 = vpack.c.bf16 %v4641, %v4641
  %4975 = vmatprep.subr.bf16.mxu0 %v1600
  %4976 = vmatpush1.bf16.msra.mxu0 %v1599
  %4977 = vmatprep.subr.bf16.mxu0 %v1604
  %4978 = vmatpush1.bf16.msra.mxu0 %v1603
  %4979 = vmatprep.subr.bf16.mxu0 %v1608
  %4980 = vmatpush1.bf16.msra.mxu0 %v1607
  %4981 = vmatprep.subr.bf16.mxu0 %v1612
  %4982 = vmatpush1.bf16.msra.mxu0 %v1611
  %4983 = vmatprep.subr.bf16.mxu0 %v1616
  %4984 = vmatpush1.bf16.msra.mxu0 %v1615
  %4985 = vmatprep.subr.bf16.mxu0 %v1620
  %4986 = vmatpush1.bf16.msra.mxu0 %v1619
  %4987 = vmatprep.subr.bf16.mxu0 %v1624
  %4988 = vmatpush1.bf16.msra.mxu0 %v1623
  %4989 = vmatprep.subr.bf16.mxu0 %v1628
  %4990 = vmatpush1.bf16.msra.mxu0 %v1627
  %4991 = vmatprep.subr.bf16.mxu0 0
  %4992 = vmatpush1.bf16.msra.mxu0 0
  %4993 = vmatprep.subr.bf16.mxu0 0
  %4994 = vmatpush1.bf16.msra.mxu0 0
  %4995 = vmatprep.subr.bf16.mxu0 0
  %4996 = vmatpush1.bf16.msra.mxu0 0
  %4997 = vmatprep.subr.bf16.mxu0 0
  %4998 = vmatpush1.bf16.msra.mxu0 0
  %4999 = vmatprep.subr.bf16.mxu0 0
  %5000 = vmatpush1.bf16.msra.mxu0 0
  %5001 = vmatprep.subr.bf16.mxu0 0
  %5002 = vmatpush1.bf16.msra.mxu0 0
  %5003 = vmatprep.subr.bf16.mxu0 0
  %5004 = vmatpush1.bf16.msra.mxu0 0
  %5005 = vmatprep.subr.bf16.mxu0 0
  %5006 = vmatpush1.bf16.msra.mxu0 0
  %5007 = vmatprep.mubr.bf16.mxu0 0
  %5008 = vmatmul.mubr.bf16.gmra.mrb[0].mxu0 %v4974
  %v5009 = vpop.f32.mrb[0].mxu0
  %v5010 = vadd.f32 0.0, %v5009
  %v5011 = vpop.f32.mrb[0].mxu0
  %v5012 = vadd.f32 0.0, %v5011
  %v5013 = vpop.f32.mrb[0].mxu0
  %v5014 = vpop.f32.mrb[0].mxu0
  %5015 = vdwg.mxu0
  %5016 = vmatprep.subr.bf16.mxu0 %v1602
  %5017 = vmatpush1.bf16.msra.mxu0 %v1601
  %5018 = vmatprep.subr.bf16.mxu0 %v1606
  %5019 = vmatpush1.bf16.msra.mxu0 %v1605
  %5020 = vmatprep.subr.bf16.mxu0 %v1610
  %5021 = vmatpush1.bf16.msra.mxu0 %v1609
  %5022 = vmatprep.subr.bf16.mxu0 %v1614
  %5023 = vmatpush1.bf16.msra.mxu0 %v1613
  %5024 = vmatprep.subr.bf16.mxu0 %v1618
  %5025 = vmatpush1.bf16.msra.mxu0 %v1617
  %5026 = vmatprep.subr.bf16.mxu0 %v1622
  %5027 = vmatpush1.bf16.msra.mxu0 %v1621
  %5028 = vmatprep.subr.bf16.mxu0 %v1626
  %5029 = vmatpush1.bf16.msra.mxu0 %v1625
  %5030 = vmatprep.subr.bf16.mxu0 %v1630
  %5031 = vmatpush1.bf16.msra.mxu0 %v1629
  %5032 = vmatprep.subr.bf16.mxu0 0
  %5033 = vmatpush1.bf16.msra.mxu0 0
  %5034 = vmatprep.subr.bf16.mxu0 0
  %5035 = vmatpush1.bf16.msra.mxu0 0
  %5036 = vmatprep.subr.bf16.mxu0 0
  %5037 = vmatpush1.bf16.msra.mxu0 0
  %5038 = vmatprep.subr.bf16.mxu0 0
  %5039 = vmatpush1.bf16.msra.mxu0 0
  %5040 = vmatprep.subr.bf16.mxu0 0
  %5041 = vmatpush1.bf16.msra.mxu0 0
  %5042 = vmatprep.subr.bf16.mxu0 0
  %5043 = vmatpush1.bf16.msra.mxu0 0
  %5044 = vmatprep.subr.bf16.mxu0 0
  %5045 = vmatpush1.bf16.msra.mxu0 0
  %5046 = vmatprep.subr.bf16.mxu0 0
  %5047 = vmatpush1.bf16.msra.mxu0 0
  %5048 = vmatprep.mubr.bf16.mxu0 0
  %5049 = vmatmul.mubr.bf16.gmra.mrb[0].mxu0 %v4974
  %v5050 = vpop.f32.mrb[0].mxu0
  %v5051 = vadd.f32 0.0, %v5050
  %v5052 = vpop.f32.mrb[0].mxu0
  %v5053 = vadd.f32 0.0, %v5052
  %v5054 = vpop.f32.mrb[0].mxu0
  %v5055 = vpop.f32.mrb[0].mxu0
  %5056 = vdwg.mxu0
  %s5057 = smul.u32 6, 4
  %s5058 = smul.addr %s5057, 8
  %s5059 = scalar_lea.vmem [#allocation2], %s5058
  %v5060 = vld [vmem:[%s5059] sm:$0xff]
  %v5061 = vld [vmem:[%s5059 + $0x8] sm:$0xff]
  %v5062 = vld [vmem:[%s5059 + $0x10] sm:$0xff]
  %v5063 = vld [vmem:[%s5059 + $0x18] sm:$0xff]
  %v5064 = vadd.f32 %v5060, %v4680
  %v5065 = vadd.f32 %v5061, %v4682
  %v5066 = vadd.f32 %v5062, %v4721
  %v5067 = vadd.f32 %v5063, %v4723
  %v5068 = vxor.u32 %v5064, 2147483648
  %v5069 = vxor.u32 %v5065, 2147483648
  %v5070 = vxor.u32 %v5066, 2147483648
  %v5071 = vxor.u32 %v5067, 2147483648
  %v5072 = vmul.f32 %v5068, 1.442695
  %v5073 = vpow.pop %v5072
  %v5074 = vmul.f32 %v5069, 1.442695
  %v5075 = vpow.pop %v5074
  %v5076 = vmul.f32 %v5070, 1.442695
  %v5077 = vpow.pop %v5076
  %v5078 = vmul.f32 %v5071, 1.442695
  %v5079 = vpow.pop %v5078
  %v5080 = vadd.f32 %v5073, 1.0
  %v5081 = vadd.f32 %v5075, 1.0
  %v5082 = vadd.f32 %v5077, 1.0
  %v5083 = vadd.f32 %v5079, 1.0
  %v5084 = vrcp.pop %v5080
  %v5085 = vmul.f32 1.0, %v5084
  %v5086 = vrcp.pop %v5081
  %v5087 = vmul.f32 1.0, %v5086
  %v5088 = vrcp.pop %v5082
  %v5089 = vmul.f32 1.0, %v5088
  %v5090 = vrcp.pop %v5083
  %v5091 = vmul.f32 1.0, %v5090
  %v5092 = vmul.f32 %v5091, 2.0
  %v5093 = vsub.f32 %v5092, 1.0
  %v5094 = vmul.f32 %v5087, %v4557
  %v5095 = vmul.f32 %v5085, %v5093
  %v5096 = vadd.f32 %v5094, %v5095
  %v5097 = vtanh.pop %v5096
  %v5098 = vmul.f32 %v5089, %v5097
  %v5099 = vsub.f32 %v5098, %v4555
  %v5100 = vadd.f32 %v4555, %v5099
  %v5101 = vsub.f32 %v5096, %v4557
  %v5102 = vadd.f32 %v4557, %v5101
  %v5103 = vadd.f32 %v4762, %v4845
  %v5104 = vadd.f32 %v4764, %v4847
  %v5105 = vadd.f32 %v4803, %v4886
  %v5106 = vadd.f32 %v4805, %v4888
  %v5107 = vadd.f32 %v5103, %v1797
  %v5108 = vadd.f32 %v5104, %v1801
  %v5109 = vadd.f32 %v5105, %v1805
  %v5110 = vadd.f32 %v5106, %v1809
  %v5111 = vxor.u32 %v5107, 2147483648
  %v5112 = vxor.u32 %v5108, 2147483648
  %v5113 = vxor.u32 %v5109, 2147483648
  %v5114 = vxor.u32 %v5110, 2147483648
  %v5115 = vmul.f32 %v5111, 1.442695
  %v5116 = vpow.pop %v5115
  %v5117 = vmul.f32 %v5112, 1.442695
  %v5118 = vpow.pop %v5117
  %v5119 = vmul.f32 %v5113, 1.442695
  %v5120 = vpow.pop %v5119
  %v5121 = vmul.f32 %v5114, 1.442695
  %v5122 = vpow.pop %v5121
  %v5123 = vadd.f32 %v5116, 1.0
  %v5124 = vadd.f32 %v5118, 1.0
  %v5125 = vadd.f32 %v5120, 1.0
  %v5126 = vadd.f32 %v5122, 1.0
  %v5127 = vrcp.pop %v5123
  %v5128 = vmul.f32 1.0, %v5127
  %v5129 = vrcp.pop %v5124
  %v5130 = vmul.f32 1.0, %v5129
  %v5131 = vrcp.pop %v5125
  %v5132 = vmul.f32 1.0, %v5131
  %v5133 = vrcp.pop %v5126
  %v5134 = vmul.f32 1.0, %v5133
  %v5135 = vmul.f32 %v5134, 2.0
  %v5136 = vsub.f32 %v5135, 1.0
  %v5137 = vmul.f32 %v5130, %v4600
  %v5138 = vmul.f32 %v5128, %v5136
  %v5139 = vadd.f32 %v5137, %v5138
  %v5140 = vtanh.pop %v5139
  %v5141 = vmul.f32 %v5132, %v5140
  %v5142 = vsub.f32 %v5141, %v4598
  %v5143 = vadd.f32 %v4598, %v5142
  %v5144 = vsub.f32 %v5139, %v4600
  %v5145 = vadd.f32 %v4600, %v5144
  %v5146 = vadd.f32 %v4927, %v5010
  %v5147 = vadd.f32 %v4929, %v5012
  %v5148 = vadd.f32 %v4968, %v5051
  %v5149 = vadd.f32 %v4970, %v5053
  %v5150 = vadd.f32 %v5146, %v1861
  %v5151 = vadd.f32 %v5147, %v1865
  %v5152 = vadd.f32 %v5148, %v1869
  %v5153 = vadd.f32 %v5149, %v1873
  %v5154 = vxor.u32 %v5150, 2147483648
  %v5155 = vxor.u32 %v5151, 2147483648
  %v5156 = vxor.u32 %v5152, 2147483648
  %v5157 = vxor.u32 %v5153, 2147483648
  %v5158 = vmul.f32 %v5154, 1.442695
  %v5159 = vpow.pop %v5158
  %v5160 = vmul.f32 %v5155, 1.442695
  %v5161 = vpow.pop %v5160
  %v5162 = vmul.f32 %v5156, 1.442695
  %v5163 = vpow.pop %v5162
  %v5164 = vmul.f32 %v5157, 1.442695
  %v5165 = vpow.pop %v5164
  %v5166 = vadd.f32 %v5159, 1.0
  %v5167 = vadd.f32 %v5161, 1.0
  %v5168 = vadd.f32 %v5163, 1.0
  %v5169 = vadd.f32 %v5165, 1.0
  %v5170 = vrcp.pop %v5166
  %v5171 = vmul.f32 1.0, %v5170
  %v5172 = vrcp.pop %v5167
  %v5173 = vmul.f32 1.0, %v5172
  %v5174 = vrcp.pop %v5168
  %v5175 = vmul.f32 1.0, %v5174
  %v5176 = vrcp.pop %v5169
  %v5177 = vmul.f32 1.0, %v5176
  %v5178 = vmul.f32 %v5177, 2.0
  %v5179 = vsub.f32 %v5178, 1.0
  %v5180 = vmul.f32 %v5173, %v4643
  %v5181 = vmul.f32 %v5171, %v5179
  %v5182 = vadd.f32 %v5180, %v5181
  %v5183 = vtanh.pop %v5182
  %v5184 = vmul.f32 %v5175, %v5183
  %v5185 = vsub.f32 %v5184, %v4641
  %v5186 = vadd.f32 %v4641, %v5185
  %v5187 = vsub.f32 %v5182, %v4643
  %v5188 = vadd.f32 %v4643, %v5187
  %v5189 = vpack.c.bf16 %v5100, %v5100
  %5190 = vmatprep.subr.bf16.mxu0 %v728
  %5191 = vmatpush1.bf16.msra.mxu0 %v727
  %5192 = vmatprep.subr.bf16.mxu0 %v736
  %5193 = vmatpush1.bf16.msra.mxu0 %v735
  %5194 = vmatprep.subr.bf16.mxu0 %v744
  %5195 = vmatpush1.bf16.msra.mxu0 %v743
  %5196 = vmatprep.subr.bf16.mxu0 %v752
  %5197 = vmatpush1.bf16.msra.mxu0 %v751
  %5198 = vmatprep.subr.bf16.mxu0 %v760
  %5199 = vmatpush1.bf16.msra.mxu0 %v759
  %5200 = vmatprep.subr.bf16.mxu0 %v768
  %5201 = vmatpush1.bf16.msra.mxu0 %v767
  %5202 = vmatprep.subr.bf16.mxu0 %v776
  %5203 = vmatpush1.bf16.msra.mxu0 %v775
  %5204 = vmatprep.subr.bf16.mxu0 %v784
  %5205 = vmatpush1.bf16.msra.mxu0 %v783
  %5206 = vmatprep.subr.bf16.mxu0 0
  %5207 = vmatpush1.bf16.msra.mxu0 0
  %5208 = vmatprep.subr.bf16.mxu0 0
  %5209 = vmatpush1.bf16.msra.mxu0 0
  %5210 = vmatprep.subr.bf16.mxu0 0
  %5211 = vmatpush1.bf16.msra.mxu0 0
  %5212 = vmatprep.subr.bf16.mxu0 0
  %5213 = vmatpush1.bf16.msra.mxu0 0
  %5214 = vmatprep.subr.bf16.mxu0 0
  %5215 = vmatpush1.bf16.msra.mxu0 0
  %5216 = vmatprep.subr.bf16.mxu0 0
  %5217 = vmatpush1.bf16.msra.mxu0 0
  %5218 = vmatprep.subr.bf16.mxu0 0
  %5219 = vmatpush1.bf16.msra.mxu0 0
  %5220 = vmatprep.subr.bf16.mxu0 0
  %5221 = vmatpush1.bf16.msra.mxu0 0
  %5222 = vmatprep.mubr.bf16.mxu0 0
  %5223 = vmatmul.mubr.bf16.gmra.mrb[0].mxu0 %v5189
  %v5224 = vpop.f32.mrb[0].mxu0
  %v5225 = vadd.f32 0.0, %v5224
  %v5226 = vpop.f32.mrb[0].mxu0
  %v5227 = vadd.f32 0.0, %v5226
  %v5228 = vpop.f32.mrb[0].mxu0
  %v5229 = vpop.f32.mrb[0].mxu0
  %5230 = vdwg.mxu0
  %5231 = vmatprep.subr.bf16.mxu0 %v730
  %5232 = vmatpush1.bf16.msra.mxu0 %v729
  %5233 = vmatprep.subr.bf16.mxu0 %v738
  %5234 = vmatpush1.bf16.msra.mxu0 %v737
  %5235 = vmatprep.subr.bf16.mxu0 %v746
  %5236 = vmatpush1.bf16.msra.mxu0 %v745
  %5237 = vmatprep.subr.bf16.mxu0 %v754
  %5238 = vmatpush1.bf16.msra.mxu0 %v753
  %5239 = vmatprep.subr.bf16.mxu0 %v762
  %5240 = vmatpush1.bf16.msra.mxu0 %v761
  %5241 = vmatprep.subr.bf16.mxu0 %v770
  %5242 = vmatpush1.bf16.msra.mxu0 %v769
  %5243 = vmatprep.subr.bf16.mxu0 %v778
  %5244 = vmatpush1.bf16.msra.mxu0 %v777
  %5245 = vmatprep.subr.bf16.mxu0 %v786
  %5246 = vmatpush1.bf16.msra.mxu0 %v785
  %5247 = vmatprep.subr.bf16.mxu0 0
  %5248 = vmatpush1.bf16.msra.mxu0 0
  %5249 = vmatprep.subr.bf16.mxu0 0
  %5250 = vmatpush1.bf16.msra.mxu0 0
  %5251 = vmatprep.subr.bf16.mxu0 0
  %5252 = vmatpush1.bf16.msra.mxu0 0
  %5253 = vmatprep.subr.bf16.mxu0 0
  %5254 = vmatpush1.bf16.msra.mxu0 0
  %5255 = vmatprep.subr.bf16.mxu0 0
  %5256 = vmatpush1.bf16.msra.mxu0 0
  %5257 = vmatprep.subr.bf16.mxu0 0
  %5258 = vmatpush1.bf16.msra.mxu0 0
  %5259 = vmatprep.subr.bf16.mxu0 0
  %5260 = vmatpush1.bf16.msra.mxu0 0
  %5261 = vmatprep.subr.bf16.mxu0 0
  %5262 = vmatpush1.bf16.msra.mxu0 0
  %5263 = vmatprep.mubr.bf16.mxu0 0
  %5264 = vmatmul.mubr.bf16.gmra.mrb[0].mxu0 %v5189
  %v5265 = vpop.f32.mrb[0].mxu0
  %v5266 = vadd.f32 0.0, %v5265
  %v5267 = vpop.f32.mrb[0].mxu0
  %v5268 = vadd.f32 0.0, %v5267
  %v5269 = vpop.f32.mrb[0].mxu0
  %v5270 = vpop.f32.mrb[0].mxu0
  %5271 = vdwg.mxu0
  %5272 = vmatprep.subr.bf16.mxu0 %v732
  %5273 = vmatpush1.bf16.msra.mxu0 %v731
  %5274 = vmatprep.subr.bf16.mxu0 %v740
  %5275 = vmatpush1.bf16.msra.mxu0 %v739
  %5276 = vmatprep.subr.bf16.mxu0 %v748
  %5277 = vmatpush1.bf16.msra.mxu0 %v747
  %5278 = vmatprep.subr.bf16.mxu0 %v756
  %5279 = vmatpush1.bf16.msra.mxu0 %v755
  %5280 = vmatprep.subr.bf16.mxu0 %v764
  %5281 = vmatpush1.bf16.msra.mxu0 %v763
  %5282 = vmatprep.subr.bf16.mxu0 %v772
  %5283 = vmatpush1.bf16.msra.mxu0 %v771
  %5284 = vmatprep.subr.bf16.mxu0 %v780
  %5285 = vmatpush1.bf16.msra.mxu0 %v779
  %5286 = vmatprep.subr.bf16.mxu0 %v788
  %5287 = vmatpush1.bf16.msra.mxu0 %v787
  %5288 = vmatprep.subr.bf16.mxu0 0
  %5289 = vmatpush1.bf16.msra.mxu0 0
  %5290 = vmatprep.subr.bf16.mxu0 0
  %5291 = vmatpush1.bf16.msra.mxu0 0
  %5292 = vmatprep.subr.bf16.mxu0 0
  %5293 = vmatpush1.bf16.msra.mxu0 0
  %5294 = vmatprep.subr.bf16.mxu0 0
  %5295 = vmatpush1.bf16.msra.mxu0 0
  %5296 = vmatprep.subr.bf16.mxu0 0
  %5297 = vmatpush1.bf16.msra.mxu0 0
  %5298 = vmatprep.subr.bf16.mxu0 0
  %5299 = vmatpush1.bf16.msra.mxu0 0
  %5300 = vmatprep.subr.bf16.mxu0 0
  %5301 = vmatpush1.bf16.msra.mxu0 0
  %5302 = vmatprep.subr.bf16.mxu0 0
  %5303 = vmatpush1.bf16.msra.mxu0 0
  %5304 = vmatprep.mubr.bf16.mxu0 0
  %5305 = vmatmul.mubr.bf16.gmra.mrb[0].mxu0 %v5189
  %v5306 = vpop.f32.mrb[0].mxu0
  %v5307 = vadd.f32 0.0, %v5306
  %v5308 = vpop.f32.mrb[0].mxu0
  %v5309 = vadd.f32 0.0, %v5308
  %v5310 = vpop.f32.mrb[0].mxu0
  %v5311 = vpop.f32.mrb[0].mxu0
  %5312 = vdwg.mxu0
  %5313 = vmatprep.subr.bf16.mxu0 %v734
  %5314 = vmatpush1.bf16.msra.mxu0 %v733
  %5315 = vmatprep.subr.bf16.mxu0 %v742
  %5316 = vmatpush1.bf16.msra.mxu0 %v741
  %5317 = vmatprep.subr.bf16.mxu0 %v750
  %5318 = vmatpush1.bf16.msra.mxu0 %v749
  %5319 = vmatprep.subr.bf16.mxu0 %v758
  %5320 = vmatpush1.bf16.msra.mxu0 %v757
  %5321 = vmatprep.subr.bf16.mxu0 %v766
  %5322 = vmatpush1.bf16.msra.mxu0 %v765
  %5323 = vmatprep.subr.bf16.mxu0 %v774
  %5324 = vmatpush1.bf16.msra.mxu0 %v773
  %5325 = vmatprep.subr.bf16.mxu0 %v782
  %5326 = vmatpush1.bf16.msra.mxu0 %v781
  %5327 = vmatprep.subr.bf16.mxu0 %v790
  %5328 = vmatpush1.bf16.msra.mxu0 %v789
  %5329 = vmatprep.subr.bf16.mxu0 0
  %5330 = vmatpush1.bf16.msra.mxu0 0
  %5331 = vmatprep.subr.bf16.mxu0 0
  %5332 = vmatpush1.bf16.msra.mxu0 0
  %5333 = vmatprep.subr.bf16.mxu0 0
  %5334 = vmatpush1.bf16.msra.mxu0 0
  %5335 = vmatprep.subr.bf16.mxu0 0
  %5336 = vmatpush1.bf16.msra.mxu0 0
  %5337 = vmatprep.subr.bf16.mxu0 0
  %5338 = vmatpush1.bf16.msra.mxu0 0
  %5339 = vmatprep.subr.bf16.mxu0 0
  %5340 = vmatpush1.bf16.msra.mxu0 0
  %5341 = vmatprep.subr.bf16.mxu0 0
  %5342 = vmatpush1.bf16.msra.mxu0 0
  %5343 = vmatprep.subr.bf16.mxu0 0
  %5344 = vmatpush1.bf16.msra.mxu0 0
  %5345 = vmatprep.mubr.bf16.mxu0 0
  %5346 = vmatmul.mubr.bf16.gmra.mrb[0].mxu0 %v5189
  %v5347 = vpop.f32.mrb[0].mxu0
  %v5348 = vadd.f32 0.0, %v5347
  %v5349 = vpop.f32.mrb[0].mxu0
  %v5350 = vadd.f32 0.0, %v5349
  %v5351 = vpop.f32.mrb[0].mxu0
  %v5352 = vpop.f32.mrb[0].mxu0
  %5353 = vdwg.mxu0
  %v5354 = vpack.c.bf16 %v5143, %v5143
  %5355 = vmatprep.subr.bf16.mxu0 %v1212
  %5356 = vmatpush1.bf16.msra.mxu0 %v1211
  %5357 = vmatprep.subr.bf16.mxu0 %v1220
  %5358 = vmatpush1.bf16.msra.mxu0 %v1219
  %5359 = vmatprep.subr.bf16.mxu0 %v1228
  %5360 = vmatpush1.bf16.msra.mxu0 %v1227
  %5361 = vmatprep.subr.bf16.mxu0 %v1236
  %5362 = vmatpush1.bf16.msra.mxu0 %v1235
  %5363 = vmatprep.subr.bf16.mxu0 %v1244
  %5364 = vmatpush1.bf16.msra.mxu0 %v1243
  %5365 = vmatprep.subr.bf16.mxu0 %v1252
  %5366 = vmatpush1.bf16.msra.mxu0 %v1251
  %5367 = vmatprep.subr.bf16.mxu0 %v1260
  %5368 = vmatpush1.bf16.msra.mxu0 %v1259
  %5369 = vmatprep.subr.bf16.mxu0 %v1268
  %5370 = vmatpush1.bf16.msra.mxu0 %v1267
  %5371 = vmatprep.subr.bf16.mxu0 0
  %5372 = vmatpush1.bf16.msra.mxu0 0
  %5373 = vmatprep.subr.bf16.mxu0 0
  %5374 = vmatpush1.bf16.msra.mxu0 0
  %5375 = vmatprep.subr.bf16.mxu0 0
  %5376 = vmatpush1.bf16.msra.mxu0 0
  %5377 = vmatprep.subr.bf16.mxu0 0
  %5378 = vmatpush1.bf16.msra.mxu0 0
  %5379 = vmatprep.subr.bf16.mxu0 0
  %5380 = vmatpush1.bf16.msra.mxu0 0
  %5381 = vmatprep.subr.bf16.mxu0 0
  %5382 = vmatpush1.bf16.msra.mxu0 0
  %5383 = vmatprep.subr.bf16.mxu0 0
  %5384 = vmatpush1.bf16.msra.mxu0 0
  %5385 = vmatprep.subr.bf16.mxu0 0
  %5386 = vmatpush1.bf16.msra.mxu0 0
  %5387 = vmatprep.mubr.bf16.mxu0 0
  %5388 = vmatmul.mubr.bf16.gmra.mrb[0].mxu0 %v5354
  %v5389 = vpop.f32.mrb[0].mxu0
  %v5390 = vadd.f32 0.0, %v5389
  %v5391 = vpop.f32.mrb[0].mxu0
  %v5392 = vadd.f32 0.0, %v5391
  %v5393 = vpop.f32.mrb[0].mxu0
  %v5394 = vpop.f32.mrb[0].mxu0
  %5395 = vdwg.mxu0
  %5396 = vmatprep.subr.bf16.mxu0 %v1214
  %5397 = vmatpush1.bf16.msra.mxu0 %v1213
  %5398 = vmatprep.subr.bf16.mxu0 %v1222
  %5399 = vmatpush1.bf16.msra.mxu0 %v1221
  %5400 = vmatprep.subr.bf16.mxu0 %v1230
  %5401 = vmatpush1.bf16.msra.mxu0 %v1229
  %5402 = vmatprep.subr.bf16.mxu0 %v1238
  %5403 = vmatpush1.bf16.msra.mxu0 %v1237
  %5404 = vmatprep.subr.bf16.mxu0 %v1246
  %5405 = vmatpush1.bf16.msra.mxu0 %v1245
  %5406 = vmatprep.subr.bf16.mxu0 %v1254
  %5407 = vmatpush1.bf16.msra.mxu0 %v1253
  %5408 = vmatprep.subr.bf16.mxu0 %v1262
  %5409 = vmatpush1.bf16.msra.mxu0 %v1261
  %5410 = vmatprep.subr.bf16.mxu0 %v1270
  %5411 = vmatpush1.bf16.msra.mxu0 %v1269
  %5412 = vmatprep.subr.bf16.mxu0 0
  %5413 = vmatpush1.bf16.msra.mxu0 0
  %5414 = vmatprep.subr.bf16.mxu0 0
  %5415 = vmatpush1.bf16.msra.mxu0 0
  %5416 = vmatprep.subr.bf16.mxu0 0
  %5417 = vmatpush1.bf16.msra.mxu0 0
  %5418 = vmatprep.subr.bf16.mxu0 0
  %5419 = vmatpush1.bf16.msra.mxu0 0
  %5420 = vmatprep.subr.bf16.mxu0 0
  %5421 = vmatpush1.bf16.msra.mxu0 0
  %5422 = vmatprep.subr.bf16.mxu0 0
  %5423 = vmatpush1.bf16.msra.mxu0 0
  %5424 = vmatprep.subr.bf16.mxu0 0
  %5425 = vmatpush1.bf16.msra.mxu0 0
  %5426 = vmatprep.subr.bf16.mxu0 0
  %5427 = vmatpush1.bf16.msra.mxu0 0
  %5428 = vmatprep.mubr.bf16.mxu0 0
  %5429 = vmatmul.mubr.bf16.gmra.mrb[0].mxu0 %v5354
  %v5430 = vpop.f32.mrb[0].mxu0
  %v5431 = vadd.f32 0.0, %v5430
  %v5432 = vpop.f32.mrb[0].mxu0
  %v5433 = vadd.f32 0.0, %v5432
  %v5434 = vpop.f32.mrb[0].mxu0
  %v5435 = vpop.f32.mrb[0].mxu0
  %5436 = vdwg.mxu0
  %5437 = vmatprep.subr.bf16.mxu0 %v1216
  %5438 = vmatpush1.bf16.msra.mxu0 %v1215
  %5439 = vmatprep.subr.bf16.mxu0 %v1224
  %5440 = vmatpush1.bf16.msra.mxu0 %v1223
  %5441 = vmatprep.subr.bf16.mxu0 %v1232
  %5442 = vmatpush1.bf16.msra.mxu0 %v1231
  %5443 = vmatprep.subr.bf16.mxu0 %v1240
  %5444 = vmatpush1.bf16.msra.mxu0 %v1239
  %5445 = vmatprep.subr.bf16.mxu0 %v1248
  %5446 = vmatpush1.bf16.msra.mxu0 %v1247
  %5447 = vmatprep.subr.bf16.mxu0 %v1256
  %5448 = vmatpush1.bf16.msra.mxu0 %v1255
  %5449 = vmatprep.subr.bf16.mxu0 %v1264
  %5450 = vmatpush1.bf16.msra.mxu0 %v1263
  %5451 = vmatprep.subr.bf16.mxu0 %v1272
  %5452 = vmatpush1.bf16.msra.mxu0 %v1271
  %5453 = vmatprep.subr.bf16.mxu0 0
  %5454 = vmatpush1.bf16.msra.mxu0 0
  %5455 = vmatprep.subr.bf16.mxu0 0
  %5456 = vmatpush1.bf16.msra.mxu0 0
  %5457 = vmatprep.subr.bf16.mxu0 0
  %5458 = vmatpush1.bf16.msra.mxu0 0
  %5459 = vmatprep.subr.bf16.mxu0 0
  %5460 = vmatpush1.bf16.msra.mxu0 0
  %5461 = vmatprep.subr.bf16.mxu0 0
  %5462 = vmatpush1.bf16.msra.mxu0 0
  %5463 = vmatprep.subr.bf16.mxu0 0
  %5464 = vmatpush1.bf16.msra.mxu0 0
  %5465 = vmatprep.subr.bf16.mxu0 0
  %5466 = vmatpush1.bf16.msra.mxu0 0
  %5467 = vmatprep.subr.bf16.mxu0 0
  %5468 = vmatpush1.bf16.msra.mxu0 0
  %5469 = vmatprep.mubr.bf16.mxu0 0
  %5470 = vmatmul.mubr.bf16.gmra.mrb[0].mxu0 %v5354
  %v5471 = vpop.f32.mrb[0].mxu0
  %v5472 = vadd.f32 0.0, %v5471
  %v5473 = vpop.f32.mrb[0].mxu0
  %v5474 = vadd.f32 0.0, %v5473
  %v5475 = vpop.f32.mrb[0].mxu0
  %v5476 = vpop.f32.mrb[0].mxu0
  %5477 = vdwg.mxu0
  %5478 = vmatprep.subr.bf16.mxu0 %v1218
  %5479 = vmatpush1.bf16.msra.mxu0 %v1217
  %5480 = vmatprep.subr.bf16.mxu0 %v1226
  %5481 = vmatpush1.bf16.msra.mxu0 %v1225
  %5482 = vmatprep.subr.bf16.mxu0 %v1234
  %5483 = vmatpush1.bf16.msra.mxu0 %v1233
  %5484 = vmatprep.subr.bf16.mxu0 %v1242
  %5485 = vmatpush1.bf16.msra.mxu0 %v1241
  %5486 = vmatprep.subr.bf16.mxu0 %v1250
  %5487 = vmatpush1.bf16.msra.mxu0 %v1249
  %5488 = vmatprep.subr.bf16.mxu0 %v1258
  %5489 = vmatpush1.bf16.msra.mxu0 %v1257
  %5490 = vmatprep.subr.bf16.mxu0 %v1266
  %5491 = vmatpush1.bf16.msra.mxu0 %v1265
  %5492 = vmatprep.subr.bf16.mxu0 %v1274
  %5493 = vmatpush1.bf16.msra.mxu0 %v1273
  %5494 = vmatprep.subr.bf16.mxu0 0
  %5495 = vmatpush1.bf16.msra.mxu0 0
  %5496 = vmatprep.subr.bf16.mxu0 0
  %5497 = vmatpush1.bf16.msra.mxu0 0
  %5498 = vmatprep.subr.bf16.mxu0 0
  %5499 = vmatpush1.bf16.msra.mxu0 0
  %5500 = vmatprep.subr.bf16.mxu0 0
  %5501 = vmatpush1.bf16.msra.mxu0 0
  %5502 = vmatprep.subr.bf16.mxu0 0
  %5503 = vmatpush1.bf16.msra.mxu0 0
  %5504 = vmatprep.subr.bf16.mxu0 0
  %5505 = vmatpush1.bf16.msra.mxu0 0
  %5506 = vmatprep.subr.bf16.mxu0 0
  %5507 = vmatpush1.bf16.msra.mxu0 0
  %5508 = vmatprep.subr.bf16.mxu0 0
  %5509 = vmatpush1.bf16.msra.mxu0 0
  %5510 = vmatprep.mubr.bf16.mxu0 0
  %5511 = vmatmul.mubr.bf16.gmra.mrb[0].mxu0 %v5354
  %v5512 = vpop.f32.mrb[0].mxu0
  %v5513 = vadd.f32 0.0, %v5512
  %v5514 = vpop.f32.mrb[0].mxu0
  %v5515 = vadd.f32 0.0, %v5514
  %v5516 = vpop.f32.mrb[0].mxu0
  %v5517 = vpop.f32.mrb[0].mxu0
  %5518 = vdwg.mxu0
  %v5519 = vpack.c.bf16 %v5186, %v5186
  %5520 = vmatprep.subr.bf16.mxu0 %v1600
  %5521 = vmatpush1.bf16.msra.mxu0 %v1599
  %5522 = vmatprep.subr.bf16.mxu0 %v1604
  %5523 = vmatpush1.bf16.msra.mxu0 %v1603
  %5524 = vmatprep.subr.bf16.mxu0 %v1608
  %5525 = vmatpush1.bf16.msra.mxu0 %v1607
  %5526 = vmatprep.subr.bf16.mxu0 %v1612
  %5527 = vmatpush1.bf16.msra.mxu0 %v1611
  %5528 = vmatprep.subr.bf16.mxu0 %v1616
  %5529 = vmatpush1.bf16.msra.mxu0 %v1615
  %5530 = vmatprep.subr.bf16.mxu0 %v1620
  %5531 = vmatpush1.bf16.msra.mxu0 %v1619
  %5532 = vmatprep.subr.bf16.mxu0 %v1624
  %5533 = vmatpush1.bf16.msra.mxu0 %v1623
  %5534 = vmatprep.subr.bf16.mxu0 %v1628
  %5535 = vmatpush1.bf16.msra.mxu0 %v1627
  %5536 = vmatprep.subr.bf16.mxu0 0
  %5537 = vmatpush1.bf16.msra.mxu0 0
  %5538 = vmatprep.subr.bf16.mxu0 0
  %5539 = vmatpush1.bf16.msra.mxu0 0
  %5540 = vmatprep.subr.bf16.mxu0 0
  %5541 = vmatpush1.bf16.msra.mxu0 0
  %5542 = vmatprep.subr.bf16.mxu0 0
  %5543 = vmatpush1.bf16.msra.mxu0 0
  %5544 = vmatprep.subr.bf16.mxu0 0
  %5545 = vmatpush1.bf16.msra.mxu0 0
  %5546 = vmatprep.subr.bf16.mxu0 0
  %5547 = vmatpush1.bf16.msra.mxu0 0
  %5548 = vmatprep.subr.bf16.mxu0 0
  %5549 = vmatpush1.bf16.msra.mxu0 0
  %5550 = vmatprep.subr.bf16.mxu0 0
  %5551 = vmatpush1.bf16.msra.mxu0 0
  %5552 = vmatprep.mubr.bf16.mxu0 0
  %5553 = vmatmul.mubr.bf16.gmra.mrb[0].mxu0 %v5519
  %v5554 = vpop.f32.mrb[0].mxu0
  %v5555 = vadd.f32 0.0, %v5554
  %v5556 = vpop.f32.mrb[0].mxu0
  %v5557 = vadd.f32 0.0, %v5556
  %v5558 = vpop.f32.mrb[0].mxu0
  %v5559 = vpop.f32.mrb[0].mxu0
  %5560 = vdwg.mxu0
  %5561 = vmatprep.subr.bf16.mxu0 %v1602
  %5562 = vmatpush1.bf16.msra.mxu0 %v1601
  %5563 = vmatprep.subr.bf16.mxu0 %v1606
  %5564 = vmatpush1.bf16.msra.mxu0 %v1605
  %5565 = vmatprep.subr.bf16.mxu0 %v1610
  %5566 = vmatpush1.bf16.msra.mxu0 %v1609
  %5567 = vmatprep.subr.bf16.mxu0 %v1614
  %5568 = vmatpush1.bf16.msra.mxu0 %v1613
  %5569 = vmatprep.subr.bf16.mxu0 %v1618
  %5570 = vmatpush1.bf16.msra.mxu0 %v1617
  %5571 = vmatprep.subr.bf16.mxu0 %v1622
  %5572 = vmatpush1.bf16.msra.mxu0 %v1621
  %5573 = vmatprep.subr.bf16.mxu0 %v1626
  %5574 = vmatpush1.bf16.msra.mxu0 %v1625
  %5575 = vmatprep.subr.bf16.mxu0 %v1630
  %5576 = vmatpush1.bf16.msra.mxu0 %v1629
  %5577 = vmatprep.subr.bf16.mxu0 0
  %5578 = vmatpush1.bf16.msra.mxu0 0
  %5579 = vmatprep.subr.bf16.mxu0 0
  %5580 = vmatpush1.bf16.msra.mxu0 0
  %5581 = vmatprep.subr.bf16.mxu0 0
  %5582 = vmatpush1.bf16.msra.mxu0 0
  %5583 = vmatprep.subr.bf16.mxu0 0
  %5584 = vmatpush1.bf16.msra.mxu0 0
  %5585 = vmatprep.subr.bf16.mxu0 0
  %5586 = vmatpush1.bf16.msra.mxu0 0
  %5587 = vmatprep.subr.bf16.mxu0 0
  %5588 = vmatpush1.bf16.msra.mxu0 0
  %5589 = vmatprep.subr.bf16.mxu0 0
  %5590 = vmatpush1.bf16.msra.mxu0 0
  %5591 = vmatprep.subr.bf16.mxu0 0
  %5592 = vmatpush1.bf16.msra.mxu0 0
  %5593 = vmatprep.mubr.bf16.mxu0 0
  %5594 = vmatmul.mubr.bf16.gmra.mrb[0].mxu0 %v5519
  %v5595 = vpop.f32.mrb[0].mxu0
  %v5596 = vadd.f32 0.0, %v5595
  %v5597 = vpop.f32.mrb[0].mxu0
  %v5598 = vadd.f32 0.0, %v5597
  %v5599 = vpop.f32.mrb[0].mxu0
  %v5600 = vpop.f32.mrb[0].mxu0
  %5601 = vdwg.mxu0
  %s5602 = smul.u32 7, 4
  %s5603 = smul.addr %s5602, 8
  %s5604 = scalar_lea.vmem [#allocation2], %s5603
  %v5605 = vld [vmem:[%s5604] sm:$0xff]
  %v5606 = vld [vmem:[%s5604 + $0x8] sm:$0xff]
  %v5607 = vld [vmem:[%s5604 + $0x10] sm:$0xff]
  %v5608 = vld [vmem:[%s5604 + $0x18] sm:$0xff]
  %v5609 = vadd.f32 %v5605, %v5225
  %v5610 = vadd.f32 %v5606, %v5227
  %v5611 = vadd.f32 %v5607, %v5266
  %v5612 = vadd.f32 %v5608, %v5268
  %v5613 = vxor.u32 %v5609, 2147483648
  %v5614 = vxor.u32 %v5610, 2147483648
  %v5615 = vxor.u32 %v5611, 2147483648
  %v5616 = vxor.u32 %v5612, 2147483648
  %v5617 = vmul.f32 %v5613, 1.442695
  %v5618 = vpow.pop %v5617
  %v5619 = vmul.f32 %v5614, 1.442695
  %v5620 = vpow.pop %v5619
  %v5621 = vmul.f32 %v5615, 1.442695
  %v5622 = vpow.pop %v5621
  %v5623 = vmul.f32 %v5616, 1.442695
  %v5624 = vpow.pop %v5623
  %v5625 = vadd.f32 %v5618, 1.0
  %v5626 = vadd.f32 %v5620, 1.0
  %v5627 = vadd.f32 %v5622, 1.0
  %v5628 = vadd.f32 %v5624, 1.0
  %v5629 = vrcp.pop %v5625
  %v5630 = vmul.f32 1.0, %v5629
  %v5631 = vrcp.pop %v5626
  %v5632 = vmul.f32 1.0, %v5631
  %v5633 = vrcp.pop %v5627
  %v5634 = vmul.f32 1.0, %v5633
  %v5635 = vrcp.pop %v5628
  %v5636 = vmul.f32 1.0, %v5635
  %v5637 = vmul.f32 %v5636, 2.0
  %v5638 = vsub.f32 %v5637, 1.0
  %v5639 = vmul.f32 %v5632, %v5102
  %v5640 = vmul.f32 %v5630, %v5638
  %v5641 = vadd.f32 %v5639, %v5640
  %v5642 = vtanh.pop %v5641
  %v5643 = vmul.f32 %v5634, %v5642
  %v5644 = vsub.f32 %v5643, %v5100
  %v5645 = vadd.f32 %v5100, %v5644
  %v5646 = vadd.f32 %v5307, %v5390
  %v5647 = vadd.f32 %v5309, %v5392
  %v5648 = vadd.f32 %v5348, %v5431
  %v5649 = vadd.f32 %v5350, %v5433
  %v5650 = vadd.f32 %v5646, %v1797
  %v5651 = vadd.f32 %v5647, %v1801
  %v5652 = vadd.f32 %v5648, %v1805
  %v5653 = vadd.f32 %v5649, %v1809
  %v5654 = vxor.u32 %v5650, 2147483648
  %v5655 = vxor.u32 %v5651, 2147483648
  %v5656 = vxor.u32 %v5652, 2147483648
  %v5657 = vxor.u32 %v5653, 2147483648
  %v5658 = vmul.f32 %v5654, 1.442695
  %v5659 = vpow.pop %v5658
  %v5660 = vmul.f32 %v5655, 1.442695
  %v5661 = vpow.pop %v5660
  %v5662 = vmul.f32 %v5656, 1.442695
  %v5663 = vpow.pop %v5662
  %v5664 = vmul.f32 %v5657, 1.442695
  %v5665 = vpow.pop %v5664
  %v5666 = vadd.f32 %v5659, 1.0
  %v5667 = vadd.f32 %v5661, 1.0
  %v5668 = vadd.f32 %v5663, 1.0
  %v5669 = vadd.f32 %v5665, 1.0
  %v5670 = vrcp.pop %v5666
  %v5671 = vmul.f32 1.0, %v5670
  %v5672 = vrcp.pop %v5667
  %v5673 = vmul.f32 1.0, %v5672
  %v5674 = vrcp.pop %v5668
  %v5675 = vmul.f32 1.0, %v5674
  %v5676 = vrcp.pop %v5669
  %v5677 = vmul.f32 1.0, %v5676
  %v5678 = vmul.f32 %v5677, 2.0
  %v5679 = vsub.f32 %v5678, 1.0
  %v5680 = vmul.f32 %v5673, %v5145
  %v5681 = vmul.f32 %v5671, %v5679
  %v5682 = vadd.f32 %v5680, %v5681
  %v5683 = vtanh.pop %v5682
  %v5684 = vmul.f32 %v5675, %v5683
  %v5685 = vsub.f32 %v5684, %v5143
  %v5686 = vadd.f32 %v5143, %v5685
  %v5687 = vsub.f32 %v5682, %v5145
  %v5688 = vadd.f32 %v5145, %v5687
  %v5689 = vadd.f32 %v5472, %v5555
  %v5690 = vadd.f32 %v5474, %v5557
  %v5691 = vadd.f32 %v5513, %v5596
  %v5692 = vadd.f32 %v5515, %v5598
  %v5693 = vadd.f32 %v5689, %v1861
  %v5694 = vadd.f32 %v5690, %v1865
  %v5695 = vadd.f32 %v5691, %v1869
  %v5696 = vadd.f32 %v5692, %v1873
  %v5697 = vxor.u32 %v5693, 2147483648
  %v5698 = vxor.u32 %v5694, 2147483648
  %v5699 = vxor.u32 %v5695, 2147483648
  %v5700 = vxor.u32 %v5696, 2147483648
  %v5701 = vmul.f32 %v5697, 1.442695
  %v5702 = vpow.pop %v5701
  %v5703 = vmul.f32 %v5698, 1.442695
  %v5704 = vpow.pop %v5703
  %v5705 = vmul.f32 %v5699, 1.442695
  %v5706 = vpow.pop %v5705
  %v5707 = vmul.f32 %v5700, 1.442695
  %v5708 = vpow.pop %v5707
  %v5709 = vadd.f32 %v5702, 1.0
  %v5710 = vadd.f32 %v5704, 1.0
  %v5711 = vadd.f32 %v5706, 1.0
  %v5712 = vadd.f32 %v5708, 1.0
  %v5713 = vrcp.pop %v5709
  %v5714 = vmul.f32 1.0, %v5713
  %v5715 = vrcp.pop %v5710
  %v5716 = vmul.f32 1.0, %v5715
  %v5717 = vrcp.pop %v5711
  %v5718 = vmul.f32 1.0, %v5717
  %v5719 = vrcp.pop %v5712
  %v5720 = vmul.f32 1.0, %v5719
  %v5721 = vmul.f32 %v5720, 2.0
  %v5722 = vsub.f32 %v5721, 1.0
  %v5723 = vmul.f32 %v5716, %v5188
  %v5724 = vmul.f32 %v5714, %v5722
  %v5725 = vadd.f32 %v5723, %v5724
  %v5726 = vtanh.pop %v5725
  %v5727 = vmul.f32 %v5718, %v5726
  %v5728 = vsub.f32 %v5727, %v5186
  %v5729 = vadd.f32 %v5186, %v5728
  %v5730 = vsub.f32 %v5725, %v5188
  %v5731 = vadd.f32 %v5188, %v5730
  %v5732 = vpack.c.bf16 %v5645, %v5645
  %5733 = vmatprep.subr.bf16.mxu0 %v732
  %5734 = vmatpush1.bf16.msra.mxu0 %v731
  %5735 = vmatprep.subr.bf16.mxu0 %v740
  %5736 = vmatpush1.bf16.msra.mxu0 %v739
  %5737 = vmatprep.subr.bf16.mxu0 %v748
  %5738 = vmatpush1.bf16.msra.mxu0 %v747
  %5739 = vmatprep.subr.bf16.mxu0 %v756
  %5740 = vmatpush1.bf16.msra.mxu0 %v755
  %5741 = vmatprep.subr.bf16.mxu0 %v764
  %5742 = vmatpush1.bf16.msra.mxu0 %v763
  %5743 = vmatprep.subr.bf16.mxu0 %v772
  %5744 = vmatpush1.bf16.msra.mxu0 %v771
  %5745 = vmatprep.subr.bf16.mxu0 %v780
  %5746 = vmatpush1.bf16.msra.mxu0 %v779
  %5747 = vmatprep.subr.bf16.mxu0 %v788
  %5748 = vmatpush1.bf16.msra.mxu0 %v787
  %5749 = vmatprep.subr.bf16.mxu0 0
  %5750 = vmatpush1.bf16.msra.mxu0 0
  %5751 = vmatprep.subr.bf16.mxu0 0
  %5752 = vmatpush1.bf16.msra.mxu0 0
  %5753 = vmatprep.subr.bf16.mxu0 0
  %5754 = vmatpush1.bf16.msra.mxu0 0
  %5755 = vmatprep.subr.bf16.mxu0 0
  %5756 = vmatpush1.bf16.msra.mxu0 0
  %5757 = vmatprep.subr.bf16.mxu0 0
  %5758 = vmatpush1.bf16.msra.mxu0 0
  %5759 = vmatprep.subr.bf16.mxu0 0
  %5760 = vmatpush1.bf16.msra.mxu0 0
  %5761 = vmatprep.subr.bf16.mxu0 0
  %5762 = vmatpush1.bf16.msra.mxu0 0
  %5763 = vmatprep.subr.bf16.mxu0 0
  %5764 = vmatpush1.bf16.msra.mxu0 0
  %5765 = vmatprep.mubr.bf16.mxu0 0
  %5766 = vmatmul.mubr.bf16.gmra.mrb[0].mxu0 %v5732
  %v5767 = vpop.f32.mrb[0].mxu0
  %v5768 = vadd.f32 0.0, %v5767
  %v5769 = vpop.f32.mrb[0].mxu0
  %v5770 = vadd.f32 0.0, %v5769
  %v5771 = vpop.f32.mrb[0].mxu0
  %v5772 = vpop.f32.mrb[0].mxu0
  %5773 = vdwg.mxu0
  %5774 = vmatprep.subr.bf16.mxu0 %v734
  %5775 = vmatpush1.bf16.msra.mxu0 %v733
  %5776 = vmatprep.subr.bf16.mxu0 %v742
  %5777 = vmatpush1.bf16.msra.mxu0 %v741
  %5778 = vmatprep.subr.bf16.mxu0 %v750
  %5779 = vmatpush1.bf16.msra.mxu0 %v749
  %5780 = vmatprep.subr.bf16.mxu0 %v758
  %5781 = vmatpush1.bf16.msra.mxu0 %v757
  %5782 = vmatprep.subr.bf16.mxu0 %v766
  %5783 = vmatpush1.bf16.msra.mxu0 %v765
  %5784 = vmatprep.subr.bf16.mxu0 %v774
  %5785 = vmatpush1.bf16.msra.mxu0 %v773
  %5786 = vmatprep.subr.bf16.mxu0 %v782
  %5787 = vmatpush1.bf16.msra.mxu0 %v781
  %5788 = vmatprep.subr.bf16.mxu0 %v790
  %5789 = vmatpush1.bf16.msra.mxu0 %v789
  %5790 = vmatprep.subr.bf16.mxu0 0
  %5791 = vmatpush1.bf16.msra.mxu0 0
  %5792 = vmatprep.subr.bf16.mxu0 0
  %5793 = vmatpush1.bf16.msra.mxu0 0
  %5794 = vmatprep.subr.bf16.mxu0 0
  %5795 = vmatpush1.bf16.msra.mxu0 0
  %5796 = vmatprep.subr.bf16.mxu0 0
  %5797 = vmatpush1.bf16.msra.mxu0 0
  %5798 = vmatprep.subr.bf16.mxu0 0
  %5799 = vmatpush1.bf16.msra.mxu0 0
  %5800 = vmatprep.subr.bf16.mxu0 0
  %5801 = vmatpush1.bf16.msra.mxu0 0
  %5802 = vmatprep.subr.bf16.mxu0 0
  %5803 = vmatpush1.bf16.msra.mxu0 0
  %5804 = vmatprep.subr.bf16.mxu0 0
  %5805 = vmatpush1.bf16.msra.mxu0 0
  %5806 = vmatprep.mubr.bf16.mxu0 0
  %5807 = vmatmul.mubr.bf16.gmra.mrb[0].mxu0 %v5732
  %v5808 = vpop.f32.mrb[0].mxu0
  %v5809 = vadd.f32 0.0, %v5808
  %v5810 = vpop.f32.mrb[0].mxu0
  %v5811 = vadd.f32 0.0, %v5810
  %v5812 = vpop.f32.mrb[0].mxu0
  %v5813 = vpop.f32.mrb[0].mxu0
  %5814 = vdwg.mxu0
  %v5815 = vpack.c.bf16 %v5686, %v5686
  %5816 = vmatprep.subr.bf16.mxu0 %v1212
  %5817 = vmatpush1.bf16.msra.mxu0 %v1211
  %5818 = vmatprep.subr.bf16.mxu0 %v1220
  %5819 = vmatpush1.bf16.msra.mxu0 %v1219
  %5820 = vmatprep.subr.bf16.mxu0 %v1228
  %5821 = vmatpush1.bf16.msra.mxu0 %v1227
  %5822 = vmatprep.subr.bf16.mxu0 %v1236
  %5823 = vmatpush1.bf16.msra.mxu0 %v1235
  %5824 = vmatprep.subr.bf16.mxu0 %v1244
  %5825 = vmatpush1.bf16.msra.mxu0 %v1243
  %5826 = vmatprep.subr.bf16.mxu0 %v1252
  %5827 = vmatpush1.bf16.msra.mxu0 %v1251
  %5828 = vmatprep.subr.bf16.mxu0 %v1260
  %5829 = vmatpush1.bf16.msra.mxu0 %v1259
  %5830 = vmatprep.subr.bf16.mxu0 %v1268
  %5831 = vmatpush1.bf16.msra.mxu0 %v1267
  %5832 = vmatprep.subr.bf16.mxu0 0
  %5833 = vmatpush1.bf16.msra.mxu0 0
  %5834 = vmatprep.subr.bf16.mxu0 0
  %5835 = vmatpush1.bf16.msra.mxu0 0
  %5836 = vmatprep.subr.bf16.mxu0 0
  %5837 = vmatpush1.bf16.msra.mxu0 0
  %5838 = vmatprep.subr.bf16.mxu0 0
  %5839 = vmatpush1.bf16.msra.mxu0 0
  %5840 = vmatprep.subr.bf16.mxu0 0
  %5841 = vmatpush1.bf16.msra.mxu0 0
  %5842 = vmatprep.subr.bf16.mxu0 0
  %5843 = vmatpush1.bf16.msra.mxu0 0
  %5844 = vmatprep.subr.bf16.mxu0 0
  %5845 = vmatpush1.bf16.msra.mxu0 0
  %5846 = vmatprep.subr.bf16.mxu0 0
  %5847 = vmatpush1.bf16.msra.mxu0 0
  %5848 = vmatprep.mubr.bf16.mxu0 0
  %5849 = vmatmul.mubr.bf16.gmra.mrb[0].mxu0 %v5815
  %v5850 = vpop.f32.mrb[0].mxu0
  %v5851 = vadd.f32 0.0, %v5850
  %v5852 = vpop.f32.mrb[0].mxu0
  %v5853 = vadd.f32 0.0, %v5852
  %v5854 = vpop.f32.mrb[0].mxu0
  %v5855 = vpop.f32.mrb[0].mxu0
  %5856 = vdwg.mxu0
  %5857 = vmatprep.subr.bf16.mxu0 %v1214
  %5858 = vmatpush1.bf16.msra.mxu0 %v1213
  %5859 = vmatprep.subr.bf16.mxu0 %v1222
  %5860 = vmatpush1.bf16.msra.mxu0 %v1221
  %5861 = vmatprep.subr.bf16.mxu0 %v1230
  %5862 = vmatpush1.bf16.msra.mxu0 %v1229
  %5863 = vmatprep.subr.bf16.mxu0 %v1238
  %5864 = vmatpush1.bf16.msra.mxu0 %v1237
  %5865 = vmatprep.subr.bf16.mxu0 %v1246
  %5866 = vmatpush1.bf16.msra.mxu0 %v1245
  %5867 = vmatprep.subr.bf16.mxu0 %v1254
  %5868 = vmatpush1.bf16.msra.mxu0 %v1253
  %5869 = vmatprep.subr.bf16.mxu0 %v1262
  %5870 = vmatpush1.bf16.msra.mxu0 %v1261
  %5871 = vmatprep.subr.bf16.mxu0 %v1270
  %5872 = vmatpush1.bf16.msra.mxu0 %v1269
  %5873 = vmatprep.subr.bf16.mxu0 0
  %5874 = vmatpush1.bf16.msra.mxu0 0
  %5875 = vmatprep.subr.bf16.mxu0 0
  %5876 = vmatpush1.bf16.msra.mxu0 0
  %5877 = vmatprep.subr.bf16.mxu0 0
  %5878 = vmatpush1.bf16.msra.mxu0 0
  %5879 = vmatprep.subr.bf16.mxu0 0
  %5880 = vmatpush1.bf16.msra.mxu0 0
  %5881 = vmatprep.subr.bf16.mxu0 0
  %5882 = vmatpush1.bf16.msra.mxu0 0
  %5883 = vmatprep.subr.bf16.mxu0 0
  %5884 = vmatpush1.bf16.msra.mxu0 0
  %5885 = vmatprep.subr.bf16.mxu0 0
  %5886 = vmatpush1.bf16.msra.mxu0 0
  %5887 = vmatprep.subr.bf16.mxu0 0
  %5888 = vmatpush1.bf16.msra.mxu0 0
  %5889 = vmatprep.mubr.bf16.mxu0 0
  %5890 = vmatmul.mubr.bf16.gmra.mrb[0].mxu0 %v5815
  %v5891 = vpop.f32.mrb[0].mxu0
  %v5892 = vadd.f32 0.0, %v5891
  %v5893 = vpop.f32.mrb[0].mxu0
  %v5894 = vadd.f32 0.0, %v5893
  %v5895 = vpop.f32.mrb[0].mxu0
  %v5896 = vpop.f32.mrb[0].mxu0
  %5897 = vdwg.mxu0
  %5898 = vmatprep.subr.bf16.mxu0 %v1216
  %5899 = vmatpush1.bf16.msra.mxu0 %v1215
  %5900 = vmatprep.subr.bf16.mxu0 %v1224
  %5901 = vmatpush1.bf16.msra.mxu0 %v1223
  %5902 = vmatprep.subr.bf16.mxu0 %v1232
  %5903 = vmatpush1.bf16.msra.mxu0 %v1231
  %5904 = vmatprep.subr.bf16.mxu0 %v1240
  %5905 = vmatpush1.bf16.msra.mxu0 %v1239
  %5906 = vmatprep.subr.bf16.mxu0 %v1248
  %5907 = vmatpush1.bf16.msra.mxu0 %v1247
  %5908 = vmatprep.subr.bf16.mxu0 %v1256
  %5909 = vmatpush1.bf16.msra.mxu0 %v1255
  %5910 = vmatprep.subr.bf16.mxu0 %v1264
  %5911 = vmatpush1.bf16.msra.mxu0 %v1263
  %5912 = vmatprep.subr.bf16.mxu0 %v1272
  %5913 = vmatpush1.bf16.msra.mxu0 %v1271
  %5914 = vmatprep.subr.bf16.mxu0 0
  %5915 = vmatpush1.bf16.msra.mxu0 0
  %5916 = vmatprep.subr.bf16.mxu0 0
  %5917 = vmatpush1.bf16.msra.mxu0 0
  %5918 = vmatprep.subr.bf16.mxu0 0
  %5919 = vmatpush1.bf16.msra.mxu0 0
  %5920 = vmatprep.subr.bf16.mxu0 0
  %5921 = vmatpush1.bf16.msra.mxu0 0
  %5922 = vmatprep.subr.bf16.mxu0 0
  %5923 = vmatpush1.bf16.msra.mxu0 0
  %5924 = vmatprep.subr.bf16.mxu0 0
  %5925 = vmatpush1.bf16.msra.mxu0 0
  %5926 = vmatprep.subr.bf16.mxu0 0
  %5927 = vmatpush1.bf16.msra.mxu0 0
  %5928 = vmatprep.subr.bf16.mxu0 0
  %5929 = vmatpush1.bf16.msra.mxu0 0
  %5930 = vmatprep.mubr.bf16.mxu0 0
  %5931 = vmatmul.mubr.bf16.gmra.mrb[0].mxu0 %v5815
  %v5932 = vpop.f32.mrb[0].mxu0
  %v5933 = vadd.f32 0.0, %v5932
  %v5934 = vpop.f32.mrb[0].mxu0
  %v5935 = vadd.f32 0.0, %v5934
  %v5936 = vpop.f32.mrb[0].mxu0
  %v5937 = vpop.f32.mrb[0].mxu0
  %5938 = vdwg.mxu0
  %5939 = vmatprep.subr.bf16.mxu0 %v1218
  %5940 = vmatpush1.bf16.msra.mxu0 %v1217
  %5941 = vmatprep.subr.bf16.mxu0 %v1226
  %5942 = vmatpush1.bf16.msra.mxu0 %v1225
  %5943 = vmatprep.subr.bf16.mxu0 %v1234
  %5944 = vmatpush1.bf16.msra.mxu0 %v1233
  %5945 = vmatprep.subr.bf16.mxu0 %v1242
  %5946 = vmatpush1.bf16.msra.mxu0 %v1241
  %5947 = vmatprep.subr.bf16.mxu0 %v1250
  %5948 = vmatpush1.bf16.msra.mxu0 %v1249
  %5949 = vmatprep.subr.bf16.mxu0 %v1258
  %5950 = vmatpush1.bf16.msra.mxu0 %v1257
  %5951 = vmatprep.subr.bf16.mxu0 %v1266
  %5952 = vmatpush1.bf16.msra.mxu0 %v1265
  %5953 = vmatprep.subr.bf16.mxu0 %v1274
  %5954 = vmatpush1.bf16.msra.mxu0 %v1273
  %5955 = vmatprep.subr.bf16.mxu0 0
  %5956 = vmatpush1.bf16.msra.mxu0 0
  %5957 = vmatprep.subr.bf16.mxu0 0
  %5958 = vmatpush1.bf16.msra.mxu0 0
  %5959 = vmatprep.subr.bf16.mxu0 0
  %5960 = vmatpush1.bf16.msra.mxu0 0
  %5961 = vmatprep.subr.bf16.mxu0 0
  %5962 = vmatpush1.bf16.msra.mxu0 0
  %5963 = vmatprep.subr.bf16.mxu0 0
  %5964 = vmatpush1.bf16.msra.mxu0 0
  %5965 = vmatprep.subr.bf16.mxu0 0
  %5966 = vmatpush1.bf16.msra.mxu0 0
  %5967 = vmatprep.subr.bf16.mxu0 0
  %5968 = vmatpush1.bf16.msra.mxu0 0
  %5969 = vmatprep.subr.bf16.mxu0 0
  %5970 = vmatpush1.bf16.msra.mxu0 0
  %5971 = vmatprep.mubr.bf16.mxu0 0
  %5972 = vmatmul.mubr.bf16.gmra.mrb[0].mxu0 %v5815
  %v5973 = vpop.f32.mrb[0].mxu0
  %v5974 = vadd.f32 0.0, %v5973
  %v5975 = vpop.f32.mrb[0].mxu0
  %v5976 = vadd.f32 0.0, %v5975
  %v5977 = vpop.f32.mrb[0].mxu0
  %v5978 = vpop.f32.mrb[0].mxu0
  %5979 = vdwg.mxu0
  %v5980 = vpack.c.bf16 %v5729, %v5729
  %5981 = vmatprep.subr.bf16.mxu0 %v1600
  %5982 = vmatpush1.bf16.msra.mxu0 %v1599
  %5983 = vmatprep.subr.bf16.mxu0 %v1604
  %5984 = vmatpush1.bf16.msra.mxu0 %v1603
  %5985 = vmatprep.subr.bf16.mxu0 %v1608
  %5986 = vmatpush1.bf16.msra.mxu0 %v1607
  %5987 = vmatprep.subr.bf16.mxu0 %v1612
  %5988 = vmatpush1.bf16.msra.mxu0 %v1611
  %5989 = vmatprep.subr.bf16.mxu0 %v1616
  %5990 = vmatpush1.bf16.msra.mxu0 %v1615
  %5991 = vmatprep.subr.bf16.mxu0 %v1620
  %5992 = vmatpush1.bf16.msra.mxu0 %v1619
  %5993 = vmatprep.subr.bf16.mxu0 %v1624
  %5994 = vmatpush1.bf16.msra.mxu0 %v1623
  %5995 = vmatprep.subr.bf16.mxu0 %v1628
  %5996 = vmatpush1.bf16.msra.mxu0 %v1627
  %5997 = vmatprep.subr.bf16.mxu0 0
  %5998 = vmatpush1.bf16.msra.mxu0 0
  %5999 = vmatprep.subr.bf16.mxu0 0
  %6000 = vmatpush1.bf16.msra.mxu0 0
  %6001 = vmatprep.subr.bf16.mxu0 0
  %6002 = vmatpush1.bf16.msra.mxu0 0
  %6003 = vmatprep.subr.bf16.mxu0 0
  %6004 = vmatpush1.bf16.msra.mxu0 0
  %6005 = vmatprep.subr.bf16.mxu0 0
  %6006 = vmatpush1.bf16.msra.mxu0 0
  %6007 = vmatprep.subr.bf16.mxu0 0
  %6008 = vmatpush1.bf16.msra.mxu0 0
  %6009 = vmatprep.subr.bf16.mxu0 0
  %6010 = vmatpush1.bf16.msra.mxu0 0
  %6011 = vmatprep.subr.bf16.mxu0 0
  %6012 = vmatpush1.bf16.msra.mxu0 0
  %6013 = vmatprep.mubr.bf16.mxu0 0
  %6014 = vmatmul.mubr.bf16.gmra.mrb[0].mxu0 %v5980
  %v6015 = vpop.f32.mrb[0].mxu0
  %v6016 = vadd.f32 0.0, %v6015
  %v6017 = vpop.f32.mrb[0].mxu0
  %v6018 = vadd.f32 0.0, %v6017
  %v6019 = vpop.f32.mrb[0].mxu0
  %v6020 = vpop.f32.mrb[0].mxu0
  %6021 = vdwg.mxu0
  %6022 = vmatprep.subr.bf16.mxu0 %v1602
  %6023 = vmatpush1.bf16.msra.mxu0 %v1601
  %6024 = vmatprep.subr.bf16.mxu0 %v1606
  %6025 = vmatpush1.bf16.msra.mxu0 %v1605
  %6026 = vmatprep.subr.bf16.mxu0 %v1610
  %6027 = vmatpush1.bf16.msra.mxu0 %v1609
  %6028 = vmatprep.subr.bf16.mxu0 %v1614
  %6029 = vmatpush1.bf16.msra.mxu0 %v1613
  %6030 = vmatprep.subr.bf16.mxu0 %v1618
  %6031 = vmatpush1.bf16.msra.mxu0 %v1617
  %6032 = vmatprep.subr.bf16.mxu0 %v1622
  %6033 = vmatpush1.bf16.msra.mxu0 %v1621
  %6034 = vmatprep.subr.bf16.mxu0 %v1626
  %6035 = vmatpush1.bf16.msra.mxu0 %v1625
  %6036 = vmatprep.subr.bf16.mxu0 %v1630
  %6037 = vmatpush1.bf16.msra.mxu0 %v1629
  %6038 = vmatprep.subr.bf16.mxu0 0
  %6039 = vmatpush1.bf16.msra.mxu0 0
  %6040 = vmatprep.subr.bf16.mxu0 0
  %6041 = vmatpush1.bf16.msra.mxu0 0
  %6042 = vmatprep.subr.bf16.mxu0 0
  %6043 = vmatpush1.bf16.msra.mxu0 0
  %6044 = vmatprep.subr.bf16.mxu0 0
  %6045 = vmatpush1.bf16.msra.mxu0 0
  %6046 = vmatprep.subr.bf16.mxu0 0
  %6047 = vmatpush1.bf16.msra.mxu0 0
  %6048 = vmatprep.subr.bf16.mxu0 0
  %6049 = vmatpush1.bf16.msra.mxu0 0
  %6050 = vmatprep.subr.bf16.mxu0 0
  %6051 = vmatpush1.bf16.msra.mxu0 0
  %6052 = vmatprep.subr.bf16.mxu0 0
  %6053 = vmatpush1.bf16.msra.mxu0 0
  %6054 = vmatprep.mubr.bf16.mxu0 0
  %6055 = vmatmul.mubr.bf16.gmra.mrb[0].mxu0 %v5980
  %v6056 = vpop.f32.mrb[0].mxu0
  %v6057 = vadd.f32 0.0, %v6056
  %v6058 = vpop.f32.mrb[0].mxu0
  %v6059 = vadd.f32 0.0, %v6058
  %v6060 = vpop.f32.mrb[0].mxu0
  %v6061 = vpop.f32.mrb[0].mxu0
  %6062 = vdwg.mxu0
  %v6063 = vadd.f32 %v5768, %v5851
  %v6064 = vadd.f32 %v5770, %v5853
  %v6065 = vadd.f32 %v5809, %v5892
  %v6066 = vadd.f32 %v5811, %v5894
  %v6067 = vadd.f32 %v6063, %v1797
  %v6068 = vadd.f32 %v6064, %v1801
  %v6069 = vadd.f32 %v6065, %v1805
  %v6070 = vadd.f32 %v6066, %v1809
  %v6071 = vxor.u32 %v6067, 2147483648
  %v6072 = vxor.u32 %v6068, 2147483648
  %v6073 = vxor.u32 %v6069, 2147483648
  %v6074 = vxor.u32 %v6070, 2147483648
  %v6075 = vmul.f32 %v6071, 1.442695
  %v6076 = vpow.pop %v6075
  %v6077 = vmul.f32 %v6072, 1.442695
  %v6078 = vpow.pop %v6077
  %v6079 = vmul.f32 %v6073, 1.442695
  %v6080 = vpow.pop %v6079
  %v6081 = vmul.f32 %v6074, 1.442695
  %v6082 = vpow.pop %v6081
  %v6083 = vadd.f32 %v6076, 1.0
  %v6084 = vadd.f32 %v6078, 1.0
  %v6085 = vadd.f32 %v6080, 1.0
  %v6086 = vadd.f32 %v6082, 1.0
  %v6087 = vrcp.pop %v6083
  %v6088 = vmul.f32 1.0, %v6087
  %v6089 = vrcp.pop %v6084
  %v6090 = vmul.f32 1.0, %v6089
  %v6091 = vrcp.pop %v6085
  %v6092 = vmul.f32 1.0, %v6091
  %v6093 = vrcp.pop %v6086
  %v6094 = vmul.f32 1.0, %v6093
  %v6095 = vmul.f32 %v6094, 2.0
  %v6096 = vsub.f32 %v6095, 1.0
  %v6097 = vmul.f32 %v6090, %v5688
  %v6098 = vmul.f32 %v6088, %v6096
  %v6099 = vadd.f32 %v6097, %v6098
  %v6100 = vtanh.pop %v6099
  %v6101 = vmul.f32 %v6092, %v6100
  %v6102 = vsub.f32 %v6101, %v5686
  %v6103 = vadd.f32 %v5686, %v6102
  %v6104 = vadd.f32 %v5933, %v6016
  %v6105 = vadd.f32 %v5935, %v6018
  %v6106 = vadd.f32 %v5974, %v6057
  %v6107 = vadd.f32 %v5976, %v6059
  %v6108 = vadd.f32 %v6104, %v1861
  %v6109 = vadd.f32 %v6105, %v1865
  %v6110 = vadd.f32 %v6106, %v1869
  %v6111 = vadd.f32 %v6107, %v1873
  %v6112 = vxor.u32 %v6108, 2147483648
  %v6113 = vxor.u32 %v6109, 2147483648
  %v6114 = vxor.u32 %v6110, 2147483648
  %v6115 = vxor.u32 %v6111, 2147483648
  %v6116 = vmul.f32 %v6112, 1.442695
  %v6117 = vpow.pop %v6116
  %v6118 = vmul.f32 %v6113, 1.442695
  %v6119 = vpow.pop %v6118
  %v6120 = vmul.f32 %v6114, 1.442695
  %v6121 = vpow.pop %v6120
  %v6122 = vmul.f32 %v6115, 1.442695
  %v6123 = vpow.pop %v6122
  %v6124 = vadd.f32 %v6117, 1.0
  %v6125 = vadd.f32 %v6119, 1.0
  %v6126 = vadd.f32 %v6121, 1.0
  %v6127 = vadd.f32 %v6123, 1.0
  %v6128 = vrcp.pop %v6124
  %v6129 = vmul.f32 1.0, %v6128
  %v6130 = vrcp.pop %v6125
  %v6131 = vmul.f32 1.0, %v6130
  %v6132 = vrcp.pop %v6126
  %v6133 = vmul.f32 1.0, %v6132
  %v6134 = vrcp.pop %v6127
  %v6135 = vmul.f32 1.0, %v6134
  %v6136 = vmul.f32 %v6135, 2.0
  %v6137 = vsub.f32 %v6136, 1.0
  %v6138 = vmul.f32 %v6131, %v5731
  %v6139 = vmul.f32 %v6129, %v6137
  %v6140 = vadd.f32 %v6138, %v6139
  %v6141 = vtanh.pop %v6140
  %v6142 = vmul.f32 %v6133, %v6141
  %v6143 = vsub.f32 %v6142, %v5729
  %v6144 = vadd.f32 %v5729, %v6143
  %v6145 = vsub.f32 %v6140, %v5731
  %v6146 = vadd.f32 %v5731, %v6145
  %v6147 = vpack.c.bf16 %v6103, %v6103
  %6148 = vmatprep.subr.bf16.mxu0 %v1216
  %6149 = vmatpush1.bf16.msra.mxu0 %v1215
  %6150 = vmatprep.subr.bf16.mxu0 %v1224
  %6151 = vmatpush1.bf16.msra.mxu0 %v1223
  %6152 = vmatprep.subr.bf16.mxu0 %v1232
  %6153 = vmatpush1.bf16.msra.mxu0 %v1231
  %6154 = vmatprep.subr.bf16.mxu0 %v1240
  %6155 = vmatpush1.bf16.msra.mxu0 %v1239
  %6156 = vmatprep.subr.bf16.mxu0 %v1248
  %6157 = vmatpush1.bf16.msra.mxu0 %v1247
  %6158 = vmatprep.subr.bf16.mxu0 %v1256
  %6159 = vmatpush1.bf16.msra.mxu0 %v1255
  %6160 = vmatprep.subr.bf16.mxu0 %v1264
  %6161 = vmatpush1.bf16.msra.mxu0 %v1263
  %6162 = vmatprep.subr.bf16.mxu0 %v1272
  %6163 = vmatpush1.bf16.msra.mxu0 %v1271
  %6164 = vmatprep.subr.bf16.mxu0 0
  %6165 = vmatpush1.bf16.msra.mxu0 0
  %6166 = vmatprep.subr.bf16.mxu0 0
  %6167 = vmatpush1.bf16.msra.mxu0 0
  %6168 = vmatprep.subr.bf16.mxu0 0
  %6169 = vmatpush1.bf16.msra.mxu0 0
  %6170 = vmatprep.subr.bf16.mxu0 0
  %6171 = vmatpush1.bf16.msra.mxu0 0
  %6172 = vmatprep.subr.bf16.mxu0 0
  %6173 = vmatpush1.bf16.msra.mxu0 0
  %6174 = vmatprep.subr.bf16.mxu0 0
  %6175 = vmatpush1.bf16.msra.mxu0 0
  %6176 = vmatprep.subr.bf16.mxu0 0
  %6177 = vmatpush1.bf16.msra.mxu0 0
  %6178 = vmatprep.subr.bf16.mxu0 0
  %6179 = vmatpush1.bf16.msra.mxu0 0
  %6180 = vmatprep.mubr.bf16.mxu0 0
  %6181 = vmatmul.mubr.bf16.gmra.mrb[0].mxu0 %v6147
  %v6182 = vpop.f32.mrb[0].mxu0
  %v6183 = vadd.f32 0.0, %v6182
  %v6184 = vpop.f32.mrb[0].mxu0
  %v6185 = vadd.f32 0.0, %v6184
  %v6186 = vpop.f32.mrb[0].mxu0
  %v6187 = vpop.f32.mrb[0].mxu0
  %6188 = vdwg.mxu0
  %6189 = vmatprep.subr.bf16.mxu0 %v1218
  %6190 = vmatpush1.bf16.msra.mxu0 %v1217
  %6191 = vmatprep.subr.bf16.mxu0 %v1226
  %6192 = vmatpush1.bf16.msra.mxu0 %v1225
  %6193 = vmatprep.subr.bf16.mxu0 %v1234
  %6194 = vmatpush1.bf16.msra.mxu0 %v1233
  %6195 = vmatprep.subr.bf16.mxu0 %v1242
  %6196 = vmatpush1.bf16.msra.mxu0 %v1241
  %6197 = vmatprep.subr.bf16.mxu0 %v1250
  %6198 = vmatpush1.bf16.msra.mxu0 %v1249
  %6199 = vmatprep.subr.bf16.mxu0 %v1258
  %6200 = vmatpush1.bf16.msra.mxu0 %v1257
  %6201 = vmatprep.subr.bf16.mxu0 %v1266
  %6202 = vmatpush1.bf16.msra.mxu0 %v1265
  %6203 = vmatprep.subr.bf16.mxu0 %v1274
  %6204 = vmatpush1.bf16.msra.mxu0 %v1273
  %6205 = vmatprep.subr.bf16.mxu0 0
  %6206 = vmatpush1.bf16.msra.mxu0 0
  %6207 = vmatprep.subr.bf16.mxu0 0
  %6208 = vmatpush1.bf16.msra.mxu0 0
  %6209 = vmatprep.subr.bf16.mxu0 0
  %6210 = vmatpush1.bf16.msra.mxu0 0
  %6211 = vmatprep.subr.bf16.mxu0 0
  %6212 = vmatpush1.bf16.msra.mxu0 0
  %6213 = vmatprep.subr.bf16.mxu0 0
  %6214 = vmatpush1.bf16.msra.mxu0 0
  %6215 = vmatprep.subr.bf16.mxu0 0
  %6216 = vmatpush1.bf16.msra.mxu0 0
  %6217 = vmatprep.subr.bf16.mxu0 0
  %6218 = vmatpush1.bf16.msra.mxu0 0
  %6219 = vmatprep.subr.bf16.mxu0 0
  %6220 = vmatpush1.bf16.msra.mxu0 0
  %6221 = vmatprep.mubr.bf16.mxu0 0
  %6222 = vmatmul.mubr.bf16.gmra.mrb[0].mxu0 %v6147
  %v6223 = vpop.f32.mrb[0].mxu0
  %v6224 = vadd.f32 0.0, %v6223
  %v6225 = vpop.f32.mrb[0].mxu0
  %v6226 = vadd.f32 0.0, %v6225
  %v6227 = vpop.f32.mrb[0].mxu0
  %v6228 = vpop.f32.mrb[0].mxu0
  %6229 = vdwg.mxu0
  %v6230 = vpack.c.bf16 %v6144, %v6144
  %6231 = vmatprep.subr.bf16.mxu0 %v1600
  %6232 = vmatpush1.bf16.msra.mxu0 %v1599
  %6233 = vmatprep.subr.bf16.mxu0 %v1604
  %6234 = vmatpush1.bf16.msra.mxu0 %v1603
  %6235 = vmatprep.subr.bf16.mxu0 %v1608
  %6236 = vmatpush1.bf16.msra.mxu0 %v1607
  %6237 = vmatprep.subr.bf16.mxu0 %v1612
  %6238 = vmatpush1.bf16.msra.mxu0 %v1611
  %6239 = vmatprep.subr.bf16.mxu0 %v1616
  %6240 = vmatpush1.bf16.msra.mxu0 %v1615
  %6241 = vmatprep.subr.bf16.mxu0 %v1620
  %6242 = vmatpush1.bf16.msra.mxu0 %v1619
  %6243 = vmatprep.subr.bf16.mxu0 %v1624
  %6244 = vmatpush1.bf16.msra.mxu0 %v1623
  %6245 = vmatprep.subr.bf16.mxu0 %v1628
  %6246 = vmatpush1.bf16.msra.mxu0 %v1627
  %6247 = vmatprep.subr.bf16.mxu0 0
  %6248 = vmatpush1.bf16.msra.mxu0 0
  %6249 = vmatprep.subr.bf16.mxu0 0
  %6250 = vmatpush1.bf16.msra.mxu0 0
  %6251 = vmatprep.subr.bf16.mxu0 0
  %6252 = vmatpush1.bf16.msra.mxu0 0
  %6253 = vmatprep.subr.bf16.mxu0 0
  %6254 = vmatpush1.bf16.msra.mxu0 0
  %6255 = vmatprep.subr.bf16.mxu0 0
  %6256 = vmatpush1.bf16.msra.mxu0 0
  %6257 = vmatprep.subr.bf16.mxu0 0
  %6258 = vmatpush1.bf16.msra.mxu0 0
  %6259 = vmatprep.subr.bf16.mxu0 0
  %6260 = vmatpush1.bf16.msra.mxu0 0
  %6261 = vmatprep.subr.bf16.mxu0 0
  %6262 = vmatpush1.bf16.msra.mxu0 0
  %6263 = vmatprep.mubr.bf16.mxu0 0
  %6264 = vmatmul.mubr.bf16.gmra.mrb[0].mxu0 %v6230
  %v6265 = vpop.f32.mrb[0].mxu0
  %v6266 = vadd.f32 0.0, %v6265
  %v6267 = vpop.f32.mrb[0].mxu0
  %v6268 = vadd.f32 0.0, %v6267
  %v6269 = vpop.f32.mrb[0].mxu0
  %v6270 = vpop.f32.mrb[0].mxu0
  %6271 = vdwg.mxu0
  %6272 = vmatprep.subr.bf16.mxu0 %v1602
  %6273 = vmatpush1.bf16.msra.mxu0 %v1601
  %6274 = vmatprep.subr.bf16.mxu0 %v1606
  %6275 = vmatpush1.bf16.msra.mxu0 %v1605
  %6276 = vmatprep.subr.bf16.mxu0 %v1610
  %6277 = vmatpush1.bf16.msra.mxu0 %v1609
  %6278 = vmatprep.subr.bf16.mxu0 %v1614
  %6279 = vmatpush1.bf16.msra.mxu0 %v1613
  %6280 = vmatprep.subr.bf16.mxu0 %v1618
  %6281 = vmatpush1.bf16.msra.mxu0 %v1617
  %6282 = vmatprep.subr.bf16.mxu0 %v1622
  %6283 = vmatpush1.bf16.msra.mxu0 %v1621
  %6284 = vmatprep.subr.bf16.mxu0 %v1626
  %6285 = vmatpush1.bf16.msra.mxu0 %v1625
  %6286 = vmatprep.subr.bf16.mxu0 %v1630
  %6287 = vmatpush1.bf16.msra.mxu0 %v1629
  %6288 = vmatprep.subr.bf16.mxu0 0
  %6289 = vmatpush1.bf16.msra.mxu0 0
  %6290 = vmatprep.subr.bf16.mxu0 0
  %6291 = vmatpush1.bf16.msra.mxu0 0
  %6292 = vmatprep.subr.bf16.mxu0 0
  %6293 = vmatpush1.bf16.msra.mxu0 0
  %6294 = vmatprep.subr.bf16.mxu0 0
  %6295 = vmatpush1.bf16.msra.mxu0 0
  %6296 = vmatprep.subr.bf16.mxu0 0
  %6297 = vmatpush1.bf16.msra.mxu0 0
  %6298 = vmatprep.subr.bf16.mxu0 0
  %6299 = vmatpush1.bf16.msra.mxu0 0
  %6300 = vmatprep.subr.bf16.mxu0 0
  %6301 = vmatpush1.bf16.msra.mxu0 0
  %6302 = vmatprep.subr.bf16.mxu0 0
  %6303 = vmatpush1.bf16.msra.mxu0 0
  %6304 = vmatprep.mubr.bf16.mxu0 0
  %6305 = vmatmul.mubr.bf16.gmra.mrb[0].mxu0 %v6230
  %v6306 = vpop.f32.mrb[0].mxu0
  %v6307 = vadd.f32 0.0, %v6306
  %v6308 = vpop.f32.mrb[0].mxu0
  %v6309 = vadd.f32 0.0, %v6308
  %v6310 = vpop.f32.mrb[0].mxu0
  %v6311 = vpop.f32.mrb[0].mxu0
  %6312 = vdwg.mxu0
  %v6313 = vadd.f32 %v6183, %v6266
  %v6314 = vadd.f32 %v6185, %v6268
  %v6315 = vadd.f32 %v6224, %v6307
  %v6316 = vadd.f32 %v6226, %v6309
  %v6317 = vadd.f32 %v6313, %v1861
  %v6318 = vadd.f32 %v6314, %v1865
  %v6319 = vadd.f32 %v6315, %v1869
  %v6320 = vadd.f32 %v6316, %v1873
  %v6321 = vxor.u32 %v6317, 2147483648
  %v6322 = vxor.u32 %v6318, 2147483648
  %v6323 = vxor.u32 %v6319, 2147483648
  %v6324 = vxor.u32 %v6320, 2147483648
  %v6325 = vmul.f32 %v6321, 1.442695
  %v6326 = vpow.pop %v6325
  %v6327 = vmul.f32 %v6322, 1.442695
  %v6328 = vpow.pop %v6327
  %v6329 = vmul.f32 %v6323, 1.442695
  %v6330 = vpow.pop %v6329
  %v6331 = vmul.f32 %v6324, 1.442695
  %v6332 = vpow.pop %v6331
  %v6333 = vadd.f32 %v6326, 1.0
  %v6334 = vadd.f32 %v6328, 1.0
  %v6335 = vadd.f32 %v6330, 1.0
  %v6336 = vadd.f32 %v6332, 1.0
  %v6337 = vrcp.pop %v6333
  %v6338 = vmul.f32 1.0, %v6337
  %v6339 = vrcp.pop %v6334
  %v6340 = vmul.f32 1.0, %v6339
  %v6341 = vrcp.pop %v6335
  %v6342 = vmul.f32 1.0, %v6341
  %v6343 = vrcp.pop %v6336
  %v6344 = vmul.f32 1.0, %v6343
  %v6345 = vmul.f32 %v6344, 2.0
  %v6346 = vsub.f32 %v6345, 1.0
  %v6347 = vmul.f32 %v6340, %v6146
  %v6348 = vmul.f32 %v6338, %v6346
  %v6349 = vadd.f32 %v6347, %v6348
  %v6350 = vtanh.pop %v6349
  %v6351 = vmul.f32 %v6342, %v6350
  %v6352 = vsub.f32 %v6351, %v6144
  %v6353 = vadd.f32 %v6144, %v6352
  %v6354 = vpack.c.bf16 %v6353, %v6353
  %v6355 = vld [vmem:[%s8] sm:$0xf]
  %v6356 = vld [vmem:[%s8 + $0x4] sm:$0xf]
  %v6357 = vld [vmem:[%s8 + $0x8] sm:$0xf]
  %v6358 = vld [vmem:[%s8 + $0xc] sm:$0xf]
  %v6359 = vld [vmem:[%s8 + $0x10] sm:$0xf]
  %v6360 = vld [vmem:[%s8 + $0x14] sm:$0xf]
  %v6361 = vld [vmem:[%s8 + $0x18] sm:$0xf]
  %v6362 = vld [vmem:[%s8 + $0x1c] sm:$0xf]
  %v6363 = vld [vmem:[%s8 + $0x20] sm:$0xf]
  %v6364 = vld [vmem:[%s8 + $0x24] sm:$0xf]
  %v6365 = vld [vmem:[%s8 + $0x28] sm:$0xf]
  %v6366 = vld [vmem:[%s8 + $0x2c] sm:$0xf]
  %v6367 = vld [vmem:[%s8 + $0x30] sm:$0xf]
  %v6368 = vld [vmem:[%s8 + $0x34] sm:$0xf]
  %v6369 = vld [vmem:[%s8 + $0x38] sm:$0xf]
  %v6370 = vld [vmem:[%s8 + $0x3c] sm:$0xf]
  %v6371 = vld [vmem:[%s9] sm:$0x1]
  %v6373 = vlaneseq
  %v6374 = vshrl.u32 %v6373, 7
  %v6375 = vsub.s32 0, %v6374
  %v6376 = vrot.slane %v6371, %v6375
  %v6394 = vunpack.c.l.b16 %v6355
  %v6395 = vunpack.c.l.b16 %v6356
  %v6396 = vunpack.c.l.b16 %v6357
  %v6397 = vunpack.c.l.b16 %v6358
  %v6398 = vunpack.c.l.b16 %v6359
  %v6399 = vunpack.c.l.b16 %v6360
  %v6400 = vunpack.c.l.b16 %v6361
  %v6401 = vunpack.c.l.b16 %v6362
  %v6402 = vunpack.c.l.b16 %v6363
  %v6403 = vunpack.c.l.b16 %v6364
  %v6404 = vunpack.c.l.b16 %v6365
  %v6405 = vunpack.c.l.b16 %v6366
  %v6406 = vunpack.c.l.b16 %v6367
  %v6407 = vunpack.c.l.b16 %v6368
  %v6408 = vunpack.c.l.b16 %v6369
  %v6409 = vunpack.c.l.b16 %v6370
  %v6410 = vpack.c.b16 %v6395, %v6394
  %v6411 = vpack.c.b16 %v6397, %v6396
  %v6412 = vpack.c.b16 %v6399, %v6398
  %v6413 = vpack.c.b16 %v6401, %v6400
  %v6414 = vpack.c.b16 %v6403, %v6402
  %v6415 = vpack.c.b16 %v6405, %v6404
  %v6416 = vpack.c.b16 %v6407, %v6406
  %v6417 = vpack.c.b16 %v6409, %v6408
  %6426 = vmatprep.subr.bf16.mxu0 0
  %6427 = vmatpush1.bf16.msra.mxu0 %v6410
  %6428 = vmatprep.subr.bf16.mxu0 0
  %6429 = vmatpush1.bf16.msra.mxu0 %v6411
  %6430 = vmatprep.subr.bf16.mxu0 0
  %6431 = vmatpush1.bf16.msra.mxu0 %v6412
  %6432 = vmatprep.subr.bf16.mxu0 0
  %6433 = vmatpush1.bf16.msra.mxu0 %v6413
  %6434 = vmatprep.subr.bf16.mxu0 0
  %6435 = vmatpush1.bf16.msra.mxu0 %v6414
  %6436 = vmatprep.subr.bf16.mxu0 0
  %6437 = vmatpush1.bf16.msra.mxu0 %v6415
  %6438 = vmatprep.subr.bf16.mxu0 0
  %6439 = vmatpush1.bf16.msra.mxu0 %v6416
  %6440 = vmatprep.subr.bf16.mxu0 0
  %6441 = vmatpush1.bf16.msra.mxu0 %v6417
  %6442 = vmatprep.subr.bf16.mxu0 0
  %6443 = vmatpush1.bf16.msra.mxu0 0
  %6444 = vmatprep.subr.bf16.mxu0 0
  %6445 = vmatpush1.bf16.msra.mxu0 0
  %6446 = vmatprep.subr.bf16.mxu0 0
  %6447 = vmatpush1.bf16.msra.mxu0 0
  %6448 = vmatprep.subr.bf16.mxu0 0
  %6449 = vmatpush1.bf16.msra.mxu0 0
  %6450 = vmatprep.subr.bf16.mxu0 0
  %6451 = vmatpush1.bf16.msra.mxu0 0
  %6452 = vmatprep.subr.bf16.mxu0 0
  %6453 = vmatpush1.bf16.msra.mxu0 0
  %6454 = vmatprep.subr.bf16.mxu0 0
  %6455 = vmatpush1.bf16.msra.mxu0 0
  %6456 = vmatprep.subr.bf16.mxu0 0
  %6457 = vmatpush1.bf16.msra.mxu0 0
  %6458 = vmatprep.mubr.bf16.mxu0 0
  %6459 = vmatmul.mubr.bf16.gmra.mrb[0].mxu0 %v6354
  %v6460 = vpop.f32.mrb[0].mxu0
  %v6461 = vadd.f32 %v6376, %v6460
  %v6462 = vpop.f32.mrb[0].mxu0
  %v6463 = vpop.f32.mrb[0].mxu0
  %v6464 = vpop.f32.mrb[0].mxu0
  %6465 = vdwg.mxu0
  %6466 = vst [vmem:[%s10] sm:$0xff] %v6461
  // Predicated region
  $region42: #{lstm_text_generation_forward.1} parent=0 // pred_check
    _
  $region43: #{lstm_text_generation_forward.1} parent=0 // pred_check_branch
    %6468 = sbr.rel (0) target = $region45
  $region44: #{lstm_text_generation_forward.1} parent=0 // pred_region
    _
  $region45: #{lstm_text_generation_forward.1} parent=0 // pred_fallthru
    _
  // Predicated region
  $region46: #{lstm_text_generation_forward.1} parent=0 // pred_check
    _
  $region47: #{lstm_text_generation_forward.1} parent=0 // pred_check_branch
    %6470 = sbr.rel (0) target = $region49
  $region48: #{lstm_text_generation_forward.1} parent=0 // pred_region
    _
  $region49: #{lstm_text_generation_forward.1} parent=0 // pred_fallthru
    _

</llo_original>
